<compile_context>
chip_gen: v7x
topology: tpu7x:2x2x1
jax: 0.10.0
libtpu: 0.0.40
codegen_flags: <defaults>
</compile_context>

<pallas_src>
import jax
import jax.numpy as jnp
from jax.experimental import pallas as pl
from jax.experimental.pallas import tpu as pltpu

NB = 32      # images per grid step (multiple of 8 -> clean sublane tiling)
NOFF = 128   # lane offset of the odd column-pooling phase in the merged slabs


# ----------------------------- Pallas kernel -----------------------------

def _cnn_kernel(xe1_ref, xo1_ref, t1_ref, bb1_ref, t2_ref, bb2_ref,
                t3_ref, bb3_ref, wsl_ref, bc_ref, o_ref,
                xe2, xo2, xe3, xo3):
    nb = o_ref.shape[0]

    def conv_block(kh, oh2, half, read_l, t_ref, bb_ref):
        # Fused conv + bias + ReLU + 2x2 max-pool.
        # For each vertical pooling phase vp, accumulate KH banded GEMMs; the
        # two column-pooling phases live at lanes [0:half] / [NOFF:NOFF+half].
        pooled = None
        for vp in (0, 1):
            acc = None
            for ki in range(kh):
                d = jnp.dot(read_l(vp + ki), t_ref[ki],
                            preferred_element_type=jnp.float32)
                acc = d if acc is None else acc + d
            cp = jnp.maximum(acc[:, :half], acc[:, NOFF:NOFF + half])
            pooled = cp if pooled is None else jnp.maximum(pooled, cp)
        # bias + ReLU after the max is equivalent (bias commutes, ReLU monotone)
        return jnp.maximum(pooled + bb_ref[...], 0.0)

    # ---- block 1: 1x(28x28) -> 8x(15x15) ----
    def l1(m):
        src = xe1_ref if m % 2 == 0 else xo1_ref
        return src[pl.ds((m // 2) * nb, 15 * nb), :]
    p1 = conv_block(3, 15, 120, l1, t1_ref, bb1_ref).astype(jnp.bfloat16)

    # scatter pooled rows (row = i2*NB + b) into block-2 row-parity buffers
    zero2 = jnp.zeros((nb, 120), jnp.bfloat16)
    xe2[pl.ds(0, nb), :] = zero2                    # padded row 0
    xo2[pl.ds(0, nb), :] = zero2                    # padded row 1
    xo2[pl.ds(8 * nb, nb), :] = zero2               # padded row 17
    for s in range(1, 9):                           # even padded rows 2..16
        xe2[pl.ds(s * nb, nb), :] = p1[(2 * s - 2) * nb:(2 * s - 1) * nb, :]
    for s in range(1, 8):                           # odd padded rows 3..15
        xo2[pl.ds(s * nb, nb), :] = p1[(2 * s - 1) * nb:(2 * s) * nb, :]

    # ---- block 2: 8x(15x15) -> 16x(7x7) ----
    def l2(m):
        src = xe2 if m % 2 == 0 else xo2
        return src[pl.ds((m // 2) * nb, 7 * nb), :]
    p2 = conv_block(5, 7, 112, l2, t2_ref, bb2_ref).astype(jnp.bfloat16)

    zero3 = jnp.zeros((nb, 112), jnp.bfloat16)
    xe3[pl.ds(0, nb), :] = zero3                    # padded row 0
    for s in range(1, 4):                           # even padded rows 2,4,6
        xe3[pl.ds(s * nb, nb), :] = p2[(2 * s - 1) * nb:(2 * s) * nb, :]
    for s in range(4):                              # odd padded rows 1,3,5,7
        xo3[pl.ds(s * nb, nb), :] = p2[(2 * s) * nb:(2 * s + 1) * nb, :]

    # ---- block 3: 16x(7x7) -> 32x(3x3) ----
    def l3(m):
        src = xe3 if m % 2 == 0 else xo3
        return src[pl.ds((m // 2) * nb, 3 * nb), :]
    p3 = conv_block(3, 3, 96, l3, t3_ref, bb3_ref)   # f32, (3*NB, 96)

    # ---- MLP: fc1+fc2 folded; torch (C,H,W) flatten order folded into wsl ----
    out = bc_ref[...]
    for i2 in range(3):
        out = out + jnp.dot(p3[i2 * nb:(i2 + 1) * nb, :], wsl_ref[i2],
                            preferred_element_type=jnp.float32)
    o_ref[...] = out


# ----------------------------- host-side weight prep -----------------------------

def _conv_slabs(w_oihw, bias, w_in, pad, dtype=jnp.bfloat16):
    """Banded per-kernel-row weight slabs with merged column-pooling phases.

    t[ki, wu*Cin+ci, q*NOFF + j2*Cout+co] = W[co, ci, ki, (wu+pad) - (2*j2+q)]
    (zero outside the kernel band).  Zero-padding *columns* are folded out of K.
    """
    w = jnp.asarray(w_oihw, jnp.float32)
    cout, cin, kh, kw = w.shape
    wp = w_in + 2 * pad
    ow = wp - kw + 1
    ow2 = ow // 2
    half = ow2 * cout
    assert half <= NOFF
    full = jnp.zeros((kh, wp, cin, ow, cout), jnp.float32)
    j_idx = jnp.arange(ow)
    for kj in range(kw):
        upd = jnp.broadcast_to(
            jnp.transpose(w[:, :, :, kj], (2, 1, 0))[None],   # (1, kh, cin, cout)
            (ow, kh, cin, cout))
        full = full.at[:, j_idx + kj, :, j_idx, :].set(upd)
    full = full[:, pad:pad + w_in].reshape(kh, w_in * cin, ow, cout)
    ph0 = full[:, :, 0:2 * ow2:2, :].reshape(kh, w_in * cin, half)
    ph1 = full[:, :, 1:2 * ow2:2, :].reshape(kh, w_in * cin, half)
    t = jnp.zeros((kh, w_in * cin, NOFF + half), jnp.float32)
    t = t.at[:, :, :half].set(ph0).at[:, :, NOFF:].set(ph1)
    bb = jnp.tile(jnp.asarray(bias, jnp.float32), ow2).reshape(1, half)
    return t.astype(dtype), bb


def _fc_slabs(p):
    fc1_w = jnp.asarray(p["fc1_w"], jnp.float32)   # (64, 288)
    fc2_w = jnp.asarray(p["fc2_w"], jnp.float32)   # (10, 64)
    w_comb = fc1_w.T @ fc2_w.T                     # (288, 10), torch CHW order
    wsl = w_comb.reshape(32, 3, 3, 10).transpose(1, 2, 0, 3).reshape(3, 96, 10)
    b_comb = (jnp.asarray(p["fc1_b"], jnp.float32) @ fc2_w.T
              + jnp.asarray(p["fc2_b"], jnp.float32)).reshape(1, 10)
    return wsl, b_comb


# ----------------------------- forward pass -----------------------------

def cnn_forward(x_nchw, p):
    n = x_nchw.shape[0]
    npad = ((n + NB - 1) // NB) * NB
    g = npad // NB

    # input prep: pad rows, split by row parity, lay out as (g, S*NB, 28)
    x = x_nchw[:, 0, :, :].astype(jnp.float32)                # (n, 28, 28)
    xr = jnp.pad(x, ((0, npad - n), (2, 2), (0, 0)))          # (npad, 32, 28)

    def tile_rows(a):                                         # (npad, S, W) -> (g, S*NB, W)
        s, w = a.shape[1], a.shape[2]
        return (a.reshape(g, NB, s, w).transpose(0, 2, 1, 3)
                .reshape(g, s * NB, w).astype(jnp.bfloat16))

    xe_in = tile_rows(xr[:, 0::2, :])                         # even padded rows
    xo_in = tile_rows(xr[:, 1::2, :])                         # odd  padded rows

    # one-time (batch independent) weight prep
    t1, bb1 = _conv_slabs(p["w1"], p["b1"], w_in=28, pad=2)   # (3, 28, 248), (1,120)
    t2, bb2 = _conv_slabs(p["w2"], p["b2"], w_in=15, pad=2)   # (5,120, 240), (1,112)
    t3, bb3 = _conv_slabs(p["w3"], p["b3"], w_in=7,  pad=1)   # (3,112, 224), (1, 96)
    wsl, bc = _fc_slabs(p)

    def const(a):
        return pl.BlockSpec(a.shape, lambda i, _nd=a.ndim: (0,) * _nd)

    out = pl.pallas_call(
        _cnn_kernel,
        out_shape=jax.ShapeDtypeStruct((npad, 10), jnp.float32),
        grid=(g,),
        in_specs=[
            pl.BlockSpec((None, 16 * NB, 28), lambda i: (i, 0, 0)),
            pl.BlockSpec((None, 16 * NB, 28), lambda i: (i, 0, 0)),
            const(t1), const(bb1), const(t2), const(bb2),
            const(t3), const(bb3), const(wsl), const(bc),
        ],
        out_specs=pl.BlockSpec((NB, 10), lambda i: (i, 0)),
        scratch_shapes=[
            pltpu.VMEM((9 * NB, 120), jnp.bfloat16),   # xe2: even padded rows, block 2
            pltpu.VMEM((9 * NB, 120), jnp.bfloat16),   # xo2: odd  padded rows, block 2
            pltpu.VMEM((4 * NB, 112), jnp.bfloat16),   # xe3: even padded rows, block 3
            pltpu.VMEM((4 * NB, 112), jnp.bfloat16),   # xo3: odd  padded rows, block 3
        ],
        compiler_params=pltpu.CompilerParams(
            dimension_semantics=("parallel",)),
    )(xe_in, xo_in, t1, bb1, t2, bb2, t3, bb3, wsl, bc)
    return out[:n]


# ----------------------------- params & reference -----------------------------

def init_params(key):
    def uinit(k, shape, fan_in):
        bound = 1.0 / float(fan_in) ** 0.5
        return jax.random.uniform(k, shape, jnp.float32, -bound, bound)

    ks = jax.random.split(key, 10)
    return {
        "w1": uinit(ks[0], (8, 1, 3, 3), 1 * 3 * 3),
        "b1": uinit(ks[1], (8,), 1 * 3 * 3),
        "w2": uinit(ks[2], (16, 8, 5, 5), 8 * 5 * 5),
        "b2": uinit(ks[3], (16,), 8 * 5 * 5),
        "w3": uinit(ks[4], (32, 16, 3, 3), 16 * 3 * 3),
        "b3": uinit(ks[5], (32,), 16 * 3 * 3),
        "fc1_w": uinit(ks[6], (64, 288), 288),
        "fc1_b": uinit(ks[7], (64,), 288),
        "fc2_w": uinit(ks[8], (10, 64), 64),
        "fc2_b": uinit(ks[9], (10,), 64),
    }


def ref_forward(x_nchw, p):
    x = jnp.transpose(x_nchw, (0, 2, 3, 1)).astype(jnp.float32)

    def block(x, w, b, pad):
        y = jax.lax.conv_general_dilated(
            x, jnp.transpose(w, (2, 3, 1, 0)),
            window_strides=(1, 1), padding=[(pad, pad), (pad, pad)],
            dimension_numbers=("NHWC", "HWIO", "NHWC"))
        y = jax.nn.relu(y + b)
        return jax.lax.reduce_window(y, -jnp.inf, jax.lax.max,
                                     (1, 2, 2, 1), (1, 2, 2, 1), "VALID")

    x = block(x, p["w1"], p["b1"], 2)
    x = block(x, p["w2"], p["b2"], 2)
    x = block(x, p["w3"], p["b3"], 1)
    feat = jnp.transpose(x, (0, 3, 1, 2)).reshape(x.shape[0], -1)
    h = feat @ p["fc1_w"].T + p["fc1_b"]
    return h @ p["fc2_w"].T + p["fc2_b"]


# ----------------------------- main -----------------------------

if __name__ == "__main__":
    key = jax.random.PRNGKey(0)
    kx, kp = jax.random.split(key)
    # NCHW input, MNIST-like: flatten to 32*3*3 requires 28x28 spatial.
    x = jax.random.normal(kx, (2, 1, 28, 28), jnp.float32)
    params = init_params(kp)

    out = jax.block_until_ready(jax.jit(cnn_forward)(x, params))
    assert out.shape == (2, 10), out.shape

    ref = jax.block_until_ready(ref_forward(x, params))
    err = float(jnp.max(jnp.abs(out - ref)))
    assert bool(jnp.allclose(out, ref, rtol=2e-2, atol=2e-2)), f"max abs err = {err}"

    print("KERNEL_OK")
</pallas_src>

<mosaic_0001>
module attributes {stable_mosaic.version = 11 : i64} {
  func.func @_cnn_kernel(%arg0: i32, %arg1: memref<1x512x28xbf16, #tpu.memory_space<vmem>>, %arg2: memref<1x512x28xbf16, #tpu.memory_space<vmem>>, %arg3: memref<3x28x248xbf16, #tpu.memory_space<vmem>>, %arg4: memref<1x120xf32, #tpu.memory_space<vmem>>, %arg5: memref<5x120x240xbf16, #tpu.memory_space<vmem>>, %arg6: memref<1x112xf32, #tpu.memory_space<vmem>>, %arg7: memref<3x112x224xbf16, #tpu.memory_space<vmem>>, %arg8: memref<1x96xf32, #tpu.memory_space<vmem>>, %arg9: memref<3x96x10xf32, #tpu.memory_space<vmem>>, %arg10: memref<1x10xf32, #tpu.memory_space<vmem>>, %arg11: memref<32x10xf32, #tpu.memory_space<vmem>>, %arg12: memref<288x120xbf16, #tpu.memory_space<vmem>>, %arg13: memref<288x120xbf16, #tpu.memory_space<vmem>>, %arg14: memref<128x112xbf16, #tpu.memory_space<vmem>>, %arg15: memref<128x112xbf16, #tpu.memory_space<vmem>>) attributes {dimension_semantics = [#tpu.dimension_semantics<parallel>], iteration_bounds = array<i64: 1>, scalar_prefetch = 0 : i64, scratch_operands = 4 : i64, tpu.core_type = #tpu.core_type<tc>, window_params = [{transform_indices = @transform_0, window_bounds = array<i64: 1, 512, 28>}, {transform_indices = @transform_1, window_bounds = array<i64: 1, 512, 28>}, {pipeline_mode = #tpu.pipeline_mode<synchronous>, transform_indices = @transform_2, window_bounds = array<i64: 3, 28, 248>}, {pipeline_mode = #tpu.pipeline_mode<synchronous>, transform_indices = @transform_3, window_bounds = array<i64: 1, 120>}, {pipeline_mode = #tpu.pipeline_mode<synchronous>, transform_indices = @transform_4, window_bounds = array<i64: 5, 120, 240>}, {pipeline_mode = #tpu.pipeline_mode<synchronous>, transform_indices = @transform_5, window_bounds = array<i64: 1, 112>}, {pipeline_mode = #tpu.pipeline_mode<synchronous>, transform_indices = @transform_6, window_bounds = array<i64: 3, 112, 224>}, {pipeline_mode = #tpu.pipeline_mode<synchronous>, transform_indices = @transform_7, window_bounds = array<i64: 1, 96>}, {pipeline_mode = #tpu.pipeline_mode<synchronous>, transform_indices = @transform_8, window_bounds = array<i64: 3, 96, 10>}, {pipeline_mode = #tpu.pipeline_mode<synchronous>, transform_indices = @transform_9, window_bounds = array<i64: 1, 10>}, {transform_indices = @transform_10, window_bounds = array<i64: 32, 10>}]} {
    %c0 = arith.constant 0 : index
    %c0_0 = arith.constant 0 : index
    %c0_1 = arith.constant 0 : index
    %0 = vector.load %arg1[%c0, %c0_0, %c0_1] : memref<1x512x28xbf16, #tpu.memory_space<vmem>>, vector<1x480x28xbf16>
    %1 = vector.shape_cast %0 : vector<1x480x28xbf16> to vector<480x28xbf16>
    %c0_2 = arith.constant 0 : index
    %c0_3 = arith.constant 0 : index
    %c0_4 = arith.constant 0 : index
    %2 = vector.load %arg3[%c0_2, %c0_3, %c0_4] : memref<3x28x248xbf16, #tpu.memory_space<vmem>>, vector<1x28x248xbf16>
    %3 = vector.shape_cast %2 : vector<1x28x248xbf16> to vector<28x248xbf16>
    %cst = arith.constant dense<0.000000e+00> : vector<480x248xf32>
    %4 = tpu.matmul %1, %3, %cst {dimension_numbers = #tpu.dot_dimension_numbers<[1], [0], [0], [1], [0, 0, 1, 1], [], []>} : vector<480x28xbf16>, vector<28x248xbf16>, vector<480x248xf32> -> vector<480x248xf32>
    %c0_5 = arith.constant 0 : index
    %c0_6 = arith.constant 0 : index
    %c0_7 = arith.constant 0 : index
    %5 = vector.load %arg2[%c0_5, %c0_6, %c0_7] : memref<1x512x28xbf16, #tpu.memory_space<vmem>>, vector<1x480x28xbf16>
    %6 = vector.shape_cast %5 : vector<1x480x28xbf16> to vector<480x28xbf16>
    %c1 = arith.constant 1 : index
    %c0_8 = arith.constant 0 : index
    %c0_9 = arith.constant 0 : index
    %7 = vector.load %arg3[%c1, %c0_8, %c0_9] : memref<3x28x248xbf16, #tpu.memory_space<vmem>>, vector<1x28x248xbf16>
    %8 = vector.shape_cast %7 : vector<1x28x248xbf16> to vector<28x248xbf16>
    %cst_10 = arith.constant dense<0.000000e+00> : vector<480x248xf32>
    %9 = tpu.matmul %6, %8, %cst_10 {dimension_numbers = #tpu.dot_dimension_numbers<[1], [0], [0], [1], [0, 0, 1, 1], [], []>} : vector<480x28xbf16>, vector<28x248xbf16>, vector<480x248xf32> -> vector<480x248xf32>
    %10 = arith.addf %4, %9 : vector<480x248xf32>
    %c0_11 = arith.constant 0 : index
    %c32 = arith.constant 32 : index
    %c0_12 = arith.constant 0 : index
    %11 = vector.load %arg1[%c0_11, %c32, %c0_12] : memref<1x512x28xbf16, #tpu.memory_space<vmem>>, vector<1x480x28xbf16>
    %12 = vector.shape_cast %11 : vector<1x480x28xbf16> to vector<480x28xbf16>
    %c2 = arith.constant 2 : index
    %c0_13 = arith.constant 0 : index
    %c0_14 = arith.constant 0 : index
    %13 = vector.load %arg3[%c2, %c0_13, %c0_14] : memref<3x28x248xbf16, #tpu.memory_space<vmem>>, vector<1x28x248xbf16>
    %14 = vector.shape_cast %13 : vector<1x28x248xbf16> to vector<28x248xbf16>
    %cst_15 = arith.constant dense<0.000000e+00> : vector<480x248xf32>
    %15 = tpu.matmul %12, %14, %cst_15 {dimension_numbers = #tpu.dot_dimension_numbers<[1], [0], [0], [1], [0, 0, 1, 1], [], []>} : vector<480x28xbf16>, vector<28x248xbf16>, vector<480x248xf32> -> vector<480x248xf32>
    %16 = arith.addf %10, %15 : vector<480x248xf32>
    %17 = vector.extract_strided_slice %16 {offsets = [0, 0], sizes = [480, 120], strides = [1, 1]} : vector<480x248xf32> to vector<480x120xf32>
    %18 = vector.extract_strided_slice %16 {offsets = [0, 128], sizes = [480, 120], strides = [1, 1]} : vector<480x248xf32> to vector<480x120xf32>
    %19 = arith.maximumf %17, %18 : vector<480x120xf32>
    %c0_16 = arith.constant 0 : index
    %c0_17 = arith.constant 0 : index
    %c0_18 = arith.constant 0 : index
    %20 = vector.load %arg2[%c0_16, %c0_17, %c0_18] : memref<1x512x28xbf16, #tpu.memory_space<vmem>>, vector<1x480x28xbf16>
    %21 = vector.shape_cast %20 : vector<1x480x28xbf16> to vector<480x28xbf16>
    %c0_19 = arith.constant 0 : index
    %c0_20 = arith.constant 0 : index
    %c0_21 = arith.constant 0 : index
    %22 = vector.load %arg3[%c0_19, %c0_20, %c0_21] : memref<3x28x248xbf16, #tpu.memory_space<vmem>>, vector<1x28x248xbf16>
    %23 = vector.shape_cast %22 : vector<1x28x248xbf16> to vector<28x248xbf16>
    %cst_22 = arith.constant dense<0.000000e+00> : vector<480x248xf32>
    %24 = tpu.matmul %21, %23, %cst_22 {dimension_numbers = #tpu.dot_dimension_numbers<[1], [0], [0], [1], [0, 0, 1, 1], [], []>} : vector<480x28xbf16>, vector<28x248xbf16>, vector<480x248xf32> -> vector<480x248xf32>
    %c0_23 = arith.constant 0 : index
    %c32_24 = arith.constant 32 : index
    %c0_25 = arith.constant 0 : index
    %25 = vector.load %arg1[%c0_23, %c32_24, %c0_25] : memref<1x512x28xbf16, #tpu.memory_space<vmem>>, vector<1x480x28xbf16>
    %26 = vector.shape_cast %25 : vector<1x480x28xbf16> to vector<480x28xbf16>
    %c1_26 = arith.constant 1 : index
    %c0_27 = arith.constant 0 : index
    %c0_28 = arith.constant 0 : index
    %27 = vector.load %arg3[%c1_26, %c0_27, %c0_28] : memref<3x28x248xbf16, #tpu.memory_space<vmem>>, vector<1x28x248xbf16>
    %28 = vector.shape_cast %27 : vector<1x28x248xbf16> to vector<28x248xbf16>
    %cst_29 = arith.constant dense<0.000000e+00> : vector<480x248xf32>
    %29 = tpu.matmul %26, %28, %cst_29 {dimension_numbers = #tpu.dot_dimension_numbers<[1], [0], [0], [1], [0, 0, 1, 1], [], []>} : vector<480x28xbf16>, vector<28x248xbf16>, vector<480x248xf32> -> vector<480x248xf32>
    %30 = arith.addf %24, %29 : vector<480x248xf32>
    %c0_30 = arith.constant 0 : index
    %c32_31 = arith.constant 32 : index
    %c0_32 = arith.constant 0 : index
    %31 = vector.load %arg2[%c0_30, %c32_31, %c0_32] : memref<1x512x28xbf16, #tpu.memory_space<vmem>>, vector<1x480x28xbf16>
    %32 = vector.shape_cast %31 : vector<1x480x28xbf16> to vector<480x28xbf16>
    %c2_33 = arith.constant 2 : index
    %c0_34 = arith.constant 0 : index
    %c0_35 = arith.constant 0 : index
    %33 = vector.load %arg3[%c2_33, %c0_34, %c0_35] : memref<3x28x248xbf16, #tpu.memory_space<vmem>>, vector<1x28x248xbf16>
    %34 = vector.shape_cast %33 : vector<1x28x248xbf16> to vector<28x248xbf16>
    %cst_36 = arith.constant dense<0.000000e+00> : vector<480x248xf32>
    %35 = tpu.matmul %32, %34, %cst_36 {dimension_numbers = #tpu.dot_dimension_numbers<[1], [0], [0], [1], [0, 0, 1, 1], [], []>} : vector<480x28xbf16>, vector<28x248xbf16>, vector<480x248xf32> -> vector<480x248xf32>
    %36 = arith.addf %30, %35 : vector<480x248xf32>
    %37 = vector.extract_strided_slice %36 {offsets = [0, 0], sizes = [480, 120], strides = [1, 1]} : vector<480x248xf32> to vector<480x120xf32>
    %38 = vector.extract_strided_slice %36 {offsets = [0, 128], sizes = [480, 120], strides = [1, 1]} : vector<480x248xf32> to vector<480x120xf32>
    %39 = arith.maximumf %37, %38 : vector<480x120xf32>
    %40 = arith.maximumf %19, %39 : vector<480x120xf32>
    %c0_37 = arith.constant 0 : index
    %c0_38 = arith.constant 0 : index
    %41 = vector.load %arg4[%c0_37, %c0_38] : memref<1x120xf32, #tpu.memory_space<vmem>>, vector<1x120xf32>
    %42 = vector.broadcast %41 : vector<1x120xf32> to vector<480x120xf32>
    %43 = arith.addf %40, %42 : vector<480x120xf32>
    %cst_39 = arith.constant 0.000000e+00 : f32
    %44 = vector.broadcast %cst_39 : f32 to vector<480x120xf32>
    %45 = arith.maximumf %43, %44 : vector<480x120xf32>
    %46 = arith.truncf %45 : vector<480x120xf32> to vector<480x120xbf16>
    %cst_40 = arith.constant 0.000000e+00 : bf16
    %47 = vector.broadcast %cst_40 : bf16 to vector<32x120xbf16>
    %c0_41 = arith.constant 0 : index
    %c0_42 = arith.constant 0 : index
    %48 = vector.load %arg12[%c0_41, %c0_42] : memref<288x120xbf16, #tpu.memory_space<vmem>>, vector<32x120xbf16>
    tpu.vector_store %arg12[%c0_41, %c0_42], %47 {strides = array<i32>} : memref<288x120xbf16, #tpu.memory_space<vmem>>, vector<32x120xbf16>,
    %c0_43 = arith.constant 0 : index
    %c0_44 = arith.constant 0 : index
    %49 = vector.load %arg13[%c0_43, %c0_44] : memref<288x120xbf16, #tpu.memory_space<vmem>>, vector<32x120xbf16>
    tpu.vector_store %arg13[%c0_43, %c0_44], %47 {strides = array<i32>} : memref<288x120xbf16, #tpu.memory_space<vmem>>, vector<32x120xbf16>,
    %c256 = arith.constant 256 : index
    %c0_45 = arith.constant 0 : index
    %50 = vector.load %arg13[%c256, %c0_45] : memref<288x120xbf16, #tpu.memory_space<vmem>>, vector<32x120xbf16>
    tpu.vector_store %arg13[%c256, %c0_45], %47 {strides = array<i32>} : memref<288x120xbf16, #tpu.memory_space<vmem>>, vector<32x120xbf16>,
    %51 = vector.extract_strided_slice %46 {offsets = [0, 0], sizes = [32, 120], strides = [1, 1]} : vector<480x120xbf16> to vector<32x120xbf16>
    %c32_46 = arith.constant 32 : index
    %c0_47 = arith.constant 0 : index
    %52 = vector.load %arg12[%c32_46, %c0_47] : memref<288x120xbf16, #tpu.memory_space<vmem>>, vector<32x120xbf16>
    tpu.vector_store %arg12[%c32_46, %c0_47], %51 {strides = array<i32>} : memref<288x120xbf16, #tpu.memory_space<vmem>>, vector<32x120xbf16>,
    %53 = vector.extract_strided_slice %46 {offsets = [64, 0], sizes = [32, 120], strides = [1, 1]} : vector<480x120xbf16> to vector<32x120xbf16>
    %c64 = arith.constant 64 : index
    %c0_48 = arith.constant 0 : index
    %54 = vector.load %arg12[%c64, %c0_48] : memref<288x120xbf16, #tpu.memory_space<vmem>>, vector<32x120xbf16>
    tpu.vector_store %arg12[%c64, %c0_48], %53 {strides = array<i32>} : memref<288x120xbf16, #tpu.memory_space<vmem>>, vector<32x120xbf16>,
    %55 = vector.extract_strided_slice %46 {offsets = [128, 0], sizes = [32, 120], strides = [1, 1]} : vector<480x120xbf16> to vector<32x120xbf16>
    %c96 = arith.constant 96 : index
    %c0_49 = arith.constant 0 : index
    %56 = vector.load %arg12[%c96, %c0_49] : memref<288x120xbf16, #tpu.memory_space<vmem>>, vector<32x120xbf16>
    tpu.vector_store %arg12[%c96, %c0_49], %55 {strides = array<i32>} : memref<288x120xbf16, #tpu.memory_space<vmem>>, vector<32x120xbf16>,
    %57 = vector.extract_strided_slice %46 {offsets = [192, 0], sizes = [32, 120], strides = [1, 1]} : vector<480x120xbf16> to vector<32x120xbf16>
    %c128 = arith.constant 128 : index
    %c0_50 = arith.constant 0 : index
    %58 = vector.load %arg12[%c128, %c0_50] : memref<288x120xbf16, #tpu.memory_space<vmem>>, vector<32x120xbf16>
    tpu.vector_store %arg12[%c128, %c0_50], %57 {strides = array<i32>} : memref<288x120xbf16, #tpu.memory_space<vmem>>, vector<32x120xbf16>,
    %59 = vector.extract_strided_slice %46 {offsets = [256, 0], sizes = [32, 120], strides = [1, 1]} : vector<480x120xbf16> to vector<32x120xbf16>
    %c160 = arith.constant 160 : index
    %c0_51 = arith.constant 0 : index
    %60 = vector.load %arg12[%c160, %c0_51] : memref<288x120xbf16, #tpu.memory_space<vmem>>, vector<32x120xbf16>
    tpu.vector_store %arg12[%c160, %c0_51], %59 {strides = array<i32>} : memref<288x120xbf16, #tpu.memory_space<vmem>>, vector<32x120xbf16>,
    %61 = vector.extract_strided_slice %46 {offsets = [320, 0], sizes = [32, 120], strides = [1, 1]} : vector<480x120xbf16> to vector<32x120xbf16>
    %c192 = arith.constant 192 : index
    %c0_52 = arith.constant 0 : index
    %62 = vector.load %arg12[%c192, %c0_52] : memref<288x120xbf16, #tpu.memory_space<vmem>>, vector<32x120xbf16>
    tpu.vector_store %arg12[%c192, %c0_52], %61 {strides = array<i32>} : memref<288x120xbf16, #tpu.memory_space<vmem>>, vector<32x120xbf16>,
    %63 = vector.extract_strided_slice %46 {offsets = [384, 0], sizes = [32, 120], strides = [1, 1]} : vector<480x120xbf16> to vector<32x120xbf16>
    %c224 = arith.constant 224 : index
    %c0_53 = arith.constant 0 : index
    %64 = vector.load %arg12[%c224, %c0_53] : memref<288x120xbf16, #tpu.memory_space<vmem>>, vector<32x120xbf16>
    tpu.vector_store %arg12[%c224, %c0_53], %63 {strides = array<i32>} : memref<288x120xbf16, #tpu.memory_space<vmem>>, vector<32x120xbf16>,
    %65 = vector.extract_strided_slice %46 {offsets = [448, 0], sizes = [32, 120], strides = [1, 1]} : vector<480x120xbf16> to vector<32x120xbf16>
    %c256_54 = arith.constant 256 : index
    %c0_55 = arith.constant 0 : index
    %66 = vector.load %arg12[%c256_54, %c0_55] : memref<288x120xbf16, #tpu.memory_space<vmem>>, vector<32x120xbf16>
    tpu.vector_store %arg12[%c256_54, %c0_55], %65 {strides = array<i32>} : memref<288x120xbf16, #tpu.memory_space<vmem>>, vector<32x120xbf16>,
    %67 = vector.extract_strided_slice %46 {offsets = [32, 0], sizes = [32, 120], strides = [1, 1]} : vector<480x120xbf16> to vector<32x120xbf16>
    %c32_56 = arith.constant 32 : index
    %c0_57 = arith.constant 0 : index
    %68 = vector.load %arg13[%c32_56, %c0_57] : memref<288x120xbf16, #tpu.memory_space<vmem>>, vector<32x120xbf16>
    tpu.vector_store %arg13[%c32_56, %c0_57], %67 {strides = array<i32>} : memref<288x120xbf16, #tpu.memory_space<vmem>>, vector<32x120xbf16>,
    %69 = vector.extract_strided_slice %46 {offsets = [96, 0], sizes = [32, 120], strides = [1, 1]} : vector<480x120xbf16> to vector<32x120xbf16>
    %c64_58 = arith.constant 64 : index
    %c0_59 = arith.constant 0 : index
    %70 = vector.load %arg13[%c64_58, %c0_59] : memref<288x120xbf16, #tpu.memory_space<vmem>>, vector<32x120xbf16>
    tpu.vector_store %arg13[%c64_58, %c0_59], %69 {strides = array<i32>} : memref<288x120xbf16, #tpu.memory_space<vmem>>, vector<32x120xbf16>,
    %71 = vector.extract_strided_slice %46 {offsets = [160, 0], sizes = [32, 120], strides = [1, 1]} : vector<480x120xbf16> to vector<32x120xbf16>
    %c96_60 = arith.constant 96 : index
    %c0_61 = arith.constant 0 : index
    %72 = vector.load %arg13[%c96_60, %c0_61] : memref<288x120xbf16, #tpu.memory_space<vmem>>, vector<32x120xbf16>
    tpu.vector_store %arg13[%c96_60, %c0_61], %71 {strides = array<i32>} : memref<288x120xbf16, #tpu.memory_space<vmem>>, vector<32x120xbf16>,
    %73 = vector.extract_strided_slice %46 {offsets = [224, 0], sizes = [32, 120], strides = [1, 1]} : vector<480x120xbf16> to vector<32x120xbf16>
    %c128_62 = arith.constant 128 : index
    %c0_63 = arith.constant 0 : index
    %74 = vector.load %arg13[%c128_62, %c0_63] : memref<288x120xbf16, #tpu.memory_space<vmem>>, vector<32x120xbf16>
    tpu.vector_store %arg13[%c128_62, %c0_63], %73 {strides = array<i32>} : memref<288x120xbf16, #tpu.memory_space<vmem>>, vector<32x120xbf16>,
    %75 = vector.extract_strided_slice %46 {offsets = [288, 0], sizes = [32, 120], strides = [1, 1]} : vector<480x120xbf16> to vector<32x120xbf16>
    %c160_64 = arith.constant 160 : index
    %c0_65 = arith.constant 0 : index
    %76 = vector.load %arg13[%c160_64, %c0_65] : memref<288x120xbf16, #tpu.memory_space<vmem>>, vector<32x120xbf16>
    tpu.vector_store %arg13[%c160_64, %c0_65], %75 {strides = array<i32>} : memref<288x120xbf16, #tpu.memory_space<vmem>>, vector<32x120xbf16>,
    %77 = vector.extract_strided_slice %46 {offsets = [352, 0], sizes = [32, 120], strides = [1, 1]} : vector<480x120xbf16> to vector<32x120xbf16>
    %c192_66 = arith.constant 192 : index
    %c0_67 = arith.constant 0 : index
    %78 = vector.load %arg13[%c192_66, %c0_67] : memref<288x120xbf16, #tpu.memory_space<vmem>>, vector<32x120xbf16>
    tpu.vector_store %arg13[%c192_66, %c0_67], %77 {strides = array<i32>} : memref<288x120xbf16, #tpu.memory_space<vmem>>, vector<32x120xbf16>,
    %79 = vector.extract_strided_slice %46 {offsets = [416, 0], sizes = [32, 120], strides = [1, 1]} : vector<480x120xbf16> to vector<32x120xbf16>
    %c224_68 = arith.constant 224 : index
    %c0_69 = arith.constant 0 : index
    %80 = vector.load %arg13[%c224_68, %c0_69] : memref<288x120xbf16, #tpu.memory_space<vmem>>, vector<32x120xbf16>
    tpu.vector_store %arg13[%c224_68, %c0_69], %79 {strides = array<i32>} : memref<288x120xbf16, #tpu.memory_space<vmem>>, vector<32x120xbf16>,
    %c0_70 = arith.constant 0 : index
    %c0_71 = arith.constant 0 : index
    %81 = vector.load %arg12[%c0_70, %c0_71] : memref<288x120xbf16, #tpu.memory_space<vmem>>, vector<224x120xbf16>
    %c0_72 = arith.constant 0 : index
    %c0_73 = arith.constant 0 : index
    %c0_74 = arith.constant 0 : index
    %82 = vector.load %arg5[%c0_72, %c0_73, %c0_74] : memref<5x120x240xbf16, #tpu.memory_space<vmem>>, vector<1x120x240xbf16>
    %83 = vector.shape_cast %82 : vector<1x120x240xbf16> to vector<120x240xbf16>
    %cst_75 = arith.constant dense<0.000000e+00> : vector<224x240xf32>
    %84 = tpu.matmul %81, %83, %cst_75 {dimension_numbers = #tpu.dot_dimension_numbers<[1], [0], [0], [1], [0, 0, 1, 1], [], []>} : vector<224x120xbf16>, vector<120x240xbf16>, vector<224x240xf32> -> vector<224x240xf32>
    %c0_76 = arith.constant 0 : index
    %c0_77 = arith.constant 0 : index
    %85 = vector.load %arg13[%c0_76, %c0_77] : memref<288x120xbf16, #tpu.memory_space<vmem>>, vector<224x120xbf16>
    %c1_78 = arith.constant 1 : index
    %c0_79 = arith.constant 0 : index
    %c0_80 = arith.constant 0 : index
    %86 = vector.load %arg5[%c1_78, %c0_79, %c0_80] : memref<5x120x240xbf16, #tpu.memory_space<vmem>>, vector<1x120x240xbf16>
    %87 = vector.shape_cast %86 : vector<1x120x240xbf16> to vector<120x240xbf16>
    %cst_81 = arith.constant dense<0.000000e+00> : vector<224x240xf32>
    %88 = tpu.matmul %85, %87, %cst_81 {dimension_numbers = #tpu.dot_dimension_numbers<[1], [0], [0], [1], [0, 0, 1, 1], [], []>} : vector<224x120xbf16>, vector<120x240xbf16>, vector<224x240xf32> -> vector<224x240xf32>
    %89 = arith.addf %84, %88 : vector<224x240xf32>
    %c32_82 = arith.constant 32 : index
    %c0_83 = arith.constant 0 : index
    %90 = vector.load %arg12[%c32_82, %c0_83] : memref<288x120xbf16, #tpu.memory_space<vmem>>, vector<224x120xbf16>
    %c2_84 = arith.constant 2 : index
    %c0_85 = arith.constant 0 : index
    %c0_86 = arith.constant 0 : index
    %91 = vector.load %arg5[%c2_84, %c0_85, %c0_86] : memref<5x120x240xbf16, #tpu.memory_space<vmem>>, vector<1x120x240xbf16>
    %92 = vector.shape_cast %91 : vector<1x120x240xbf16> to vector<120x240xbf16>
    %cst_87 = arith.constant dense<0.000000e+00> : vector<224x240xf32>
    %93 = tpu.matmul %90, %92, %cst_87 {dimension_numbers = #tpu.dot_dimension_numbers<[1], [0], [0], [1], [0, 0, 1, 1], [], []>} : vector<224x120xbf16>, vector<120x240xbf16>, vector<224x240xf32> -> vector<224x240xf32>
    %94 = arith.addf %89, %93 : vector<224x240xf32>
    %c32_88 = arith.constant 32 : index
    %c0_89 = arith.constant 0 : index
    %95 = vector.load %arg13[%c32_88, %c0_89] : memref<288x120xbf16, #tpu.memory_space<vmem>>, vector<224x120xbf16>
    %c3 = arith.constant 3 : index
    %c0_90 = arith.constant 0 : index
    %c0_91 = arith.constant 0 : index
    %96 = vector.load %arg5[%c3, %c0_90, %c0_91] : memref<5x120x240xbf16, #tpu.memory_space<vmem>>, vector<1x120x240xbf16>
    %97 = vector.shape_cast %96 : vector<1x120x240xbf16> to vector<120x240xbf16>
    %cst_92 = arith.constant dense<0.000000e+00> : vector<224x240xf32>
    %98 = tpu.matmul %95, %97, %cst_92 {dimension_numbers = #tpu.dot_dimension_numbers<[1], [0], [0], [1], [0, 0, 1, 1], [], []>} : vector<224x120xbf16>, vector<120x240xbf16>, vector<224x240xf32> -> vector<224x240xf32>
    %99 = arith.addf %94, %98 : vector<224x240xf32>
    %c64_93 = arith.constant 64 : index
    %c0_94 = arith.constant 0 : index
    %100 = vector.load %arg12[%c64_93, %c0_94] : memref<288x120xbf16, #tpu.memory_space<vmem>>, vector<224x120xbf16>
    %c4 = arith.constant 4 : index
    %c0_95 = arith.constant 0 : index
    %c0_96 = arith.constant 0 : index
    %101 = vector.load %arg5[%c4, %c0_95, %c0_96] : memref<5x120x240xbf16, #tpu.memory_space<vmem>>, vector<1x120x240xbf16>
    %102 = vector.shape_cast %101 : vector<1x120x240xbf16> to vector<120x240xbf16>
    %cst_97 = arith.constant dense<0.000000e+00> : vector<224x240xf32>
    %103 = tpu.matmul %100, %102, %cst_97 {dimension_numbers = #tpu.dot_dimension_numbers<[1], [0], [0], [1], [0, 0, 1, 1], [], []>} : vector<224x120xbf16>, vector<120x240xbf16>, vector<224x240xf32> -> vector<224x240xf32>
    %104 = arith.addf %99, %103 : vector<224x240xf32>
    %105 = vector.extract_strided_slice %104 {offsets = [0, 0], sizes = [224, 112], strides = [1, 1]} : vector<224x240xf32> to vector<224x112xf32>
    %106 = vector.extract_strided_slice %104 {offsets = [0, 128], sizes = [224, 112], strides = [1, 1]} : vector<224x240xf32> to vector<224x112xf32>
    %107 = arith.maximumf %105, %106 : vector<224x112xf32>
    %c0_98 = arith.constant 0 : index
    %c0_99 = arith.constant 0 : index
    %108 = vector.load %arg13[%c0_98, %c0_99] : memref<288x120xbf16, #tpu.memory_space<vmem>>, vector<224x120xbf16>
    %c0_100 = arith.constant 0 : index
    %c0_101 = arith.constant 0 : index
    %c0_102 = arith.constant 0 : index
    %109 = vector.load %arg5[%c0_100, %c0_101, %c0_102] : memref<5x120x240xbf16, #tpu.memory_space<vmem>>, vector<1x120x240xbf16>
    %110 = vector.shape_cast %109 : vector<1x120x240xbf16> to vector<120x240xbf16>
    %cst_103 = arith.constant dense<0.000000e+00> : vector<224x240xf32>
    %111 = tpu.matmul %108, %110, %cst_103 {dimension_numbers = #tpu.dot_dimension_numbers<[1], [0], [0], [1], [0, 0, 1, 1], [], []>} : vector<224x120xbf16>, vector<120x240xbf16>, vector<224x240xf32> -> vector<224x240xf32>
    %c32_104 = arith.constant 32 : index
    %c0_105 = arith.constant 0 : index
    %112 = vector.load %arg12[%c32_104, %c0_105] : memref<288x120xbf16, #tpu.memory_space<vmem>>, vector<224x120xbf16>
    %c1_106 = arith.constant 1 : index
    %c0_107 = arith.constant 0 : index
    %c0_108 = arith.constant 0 : index
    %113 = vector.load %arg5[%c1_106, %c0_107, %c0_108] : memref<5x120x240xbf16, #tpu.memory_space<vmem>>, vector<1x120x240xbf16>
    %114 = vector.shape_cast %113 : vector<1x120x240xbf16> to vector<120x240xbf16>
    %cst_109 = arith.constant dense<0.000000e+00> : vector<224x240xf32>
    %115 = tpu.matmul %112, %114, %cst_109 {dimension_numbers = #tpu.dot_dimension_numbers<[1], [0], [0], [1], [0, 0, 1, 1], [], []>} : vector<224x120xbf16>, vector<120x240xbf16>, vector<224x240xf32> -> vector<224x240xf32>
    %116 = arith.addf %111, %115 : vector<224x240xf32>
    %c32_110 = arith.constant 32 : index
    %c0_111 = arith.constant 0 : index
    %117 = vector.load %arg13[%c32_110, %c0_111] : memref<288x120xbf16, #tpu.memory_space<vmem>>, vector<224x120xbf16>
    %c2_112 = arith.constant 2 : index
    %c0_113 = arith.constant 0 : index
    %c0_114 = arith.constant 0 : index
    %118 = vector.load %arg5[%c2_112, %c0_113, %c0_114] : memref<5x120x240xbf16, #tpu.memory_space<vmem>>, vector<1x120x240xbf16>
    %119 = vector.shape_cast %118 : vector<1x120x240xbf16> to vector<120x240xbf16>
    %cst_115 = arith.constant dense<0.000000e+00> : vector<224x240xf32>
    %120 = tpu.matmul %117, %119, %cst_115 {dimension_numbers = #tpu.dot_dimension_numbers<[1], [0], [0], [1], [0, 0, 1, 1], [], []>} : vector<224x120xbf16>, vector<120x240xbf16>, vector<224x240xf32> -> vector<224x240xf32>
    %121 = arith.addf %116, %120 : vector<224x240xf32>
    %c64_116 = arith.constant 64 : index
    %c0_117 = arith.constant 0 : index
    %122 = vector.load %arg12[%c64_116, %c0_117] : memref<288x120xbf16, #tpu.memory_space<vmem>>, vector<224x120xbf16>
    %c3_118 = arith.constant 3 : index
    %c0_119 = arith.constant 0 : index
    %c0_120 = arith.constant 0 : index
    %123 = vector.load %arg5[%c3_118, %c0_119, %c0_120] : memref<5x120x240xbf16, #tpu.memory_space<vmem>>, vector<1x120x240xbf16>
    %124 = vector.shape_cast %123 : vector<1x120x240xbf16> to vector<120x240xbf16>
    %cst_121 = arith.constant dense<0.000000e+00> : vector<224x240xf32>
    %125 = tpu.matmul %122, %124, %cst_121 {dimension_numbers = #tpu.dot_dimension_numbers<[1], [0], [0], [1], [0, 0, 1, 1], [], []>} : vector<224x120xbf16>, vector<120x240xbf16>, vector<224x240xf32> -> vector<224x240xf32>
    %126 = arith.addf %121, %125 : vector<224x240xf32>
    %c64_122 = arith.constant 64 : index
    %c0_123 = arith.constant 0 : index
    %127 = vector.load %arg13[%c64_122, %c0_123] : memref<288x120xbf16, #tpu.memory_space<vmem>>, vector<224x120xbf16>
    %c4_124 = arith.constant 4 : index
    %c0_125 = arith.constant 0 : index
    %c0_126 = arith.constant 0 : index
    %128 = vector.load %arg5[%c4_124, %c0_125, %c0_126] : memref<5x120x240xbf16, #tpu.memory_space<vmem>>, vector<1x120x240xbf16>
    %129 = vector.shape_cast %128 : vector<1x120x240xbf16> to vector<120x240xbf16>
    %cst_127 = arith.constant dense<0.000000e+00> : vector<224x240xf32>
    %130 = tpu.matmul %127, %129, %cst_127 {dimension_numbers = #tpu.dot_dimension_numbers<[1], [0], [0], [1], [0, 0, 1, 1], [], []>} : vector<224x120xbf16>, vector<120x240xbf16>, vector<224x240xf32> -> vector<224x240xf32>
    %131 = arith.addf %126, %130 : vector<224x240xf32>
    %132 = vector.extract_strided_slice %131 {offsets = [0, 0], sizes = [224, 112], strides = [1, 1]} : vector<224x240xf32> to vector<224x112xf32>
    %133 = vector.extract_strided_slice %131 {offsets = [0, 128], sizes = [224, 112], strides = [1, 1]} : vector<224x240xf32> to vector<224x112xf32>
    %134 = arith.maximumf %132, %133 : vector<224x112xf32>
    %135 = arith.maximumf %107, %134 : vector<224x112xf32>
    %c0_128 = arith.constant 0 : index
    %c0_129 = arith.constant 0 : index
    %136 = vector.load %arg6[%c0_128, %c0_129] : memref<1x112xf32, #tpu.memory_space<vmem>>, vector<1x112xf32>
    %137 = vector.broadcast %136 : vector<1x112xf32> to vector<224x112xf32>
    %138 = arith.addf %135, %137 : vector<224x112xf32>
    %cst_130 = arith.constant 0.000000e+00 : f32
    %139 = vector.broadcast %cst_130 : f32 to vector<224x112xf32>
    %140 = arith.maximumf %138, %139 : vector<224x112xf32>
    %141 = arith.truncf %140 : vector<224x112xf32> to vector<224x112xbf16>
    %cst_131 = arith.constant 0.000000e+00 : bf16
    %142 = vector.broadcast %cst_131 : bf16 to vector<32x112xbf16>
    %c0_132 = arith.constant 0 : index
    %c0_133 = arith.constant 0 : index
    %143 = vector.load %arg14[%c0_132, %c0_133] : memref<128x112xbf16, #tpu.memory_space<vmem>>, vector<32x112xbf16>
    tpu.vector_store %arg14[%c0_132, %c0_133], %142 {strides = array<i32>} : memref<128x112xbf16, #tpu.memory_space<vmem>>, vector<32x112xbf16>,
    %144 = vector.extract_strided_slice %141 {offsets = [32, 0], sizes = [32, 112], strides = [1, 1]} : vector<224x112xbf16> to vector<32x112xbf16>
    %c32_134 = arith.constant 32 : index
    %c0_135 = arith.constant 0 : index
    %145 = vector.load %arg14[%c32_134, %c0_135] : memref<128x112xbf16, #tpu.memory_space<vmem>>, vector<32x112xbf16>
    tpu.vector_store %arg14[%c32_134, %c0_135], %144 {strides = array<i32>} : memref<128x112xbf16, #tpu.memory_space<vmem>>, vector<32x112xbf16>,
    %146 = vector.extract_strided_slice %141 {offsets = [96, 0], sizes = [32, 112], strides = [1, 1]} : vector<224x112xbf16> to vector<32x112xbf16>
    %c64_136 = arith.constant 64 : index
    %c0_137 = arith.constant 0 : index
    %147 = vector.load %arg14[%c64_136, %c0_137] : memref<128x112xbf16, #tpu.memory_space<vmem>>, vector<32x112xbf16>
    tpu.vector_store %arg14[%c64_136, %c0_137], %146 {strides = array<i32>} : memref<128x112xbf16, #tpu.memory_space<vmem>>, vector<32x112xbf16>,
    %148 = vector.extract_strided_slice %141 {offsets = [160, 0], sizes = [32, 112], strides = [1, 1]} : vector<224x112xbf16> to vector<32x112xbf16>
    %c96_138 = arith.constant 96 : index
    %c0_139 = arith.constant 0 : index
    %149 = vector.load %arg14[%c96_138, %c0_139] : memref<128x112xbf16, #tpu.memory_space<vmem>>, vector<32x112xbf16>
    tpu.vector_store %arg14[%c96_138, %c0_139], %148 {strides = array<i32>} : memref<128x112xbf16, #tpu.memory_space<vmem>>, vector<32x112xbf16>,
    %150 = vector.extract_strided_slice %141 {offsets = [0, 0], sizes = [32, 112], strides = [1, 1]} : vector<224x112xbf16> to vector<32x112xbf16>
    %c0_140 = arith.constant 0 : index
    %c0_141 = arith.constant 0 : index
    %151 = vector.load %arg15[%c0_140, %c0_141] : memref<128x112xbf16, #tpu.memory_space<vmem>>, vector<32x112xbf16>
    tpu.vector_store %arg15[%c0_140, %c0_141], %150 {strides = array<i32>} : memref<128x112xbf16, #tpu.memory_space<vmem>>, vector<32x112xbf16>,
    %152 = vector.extract_strided_slice %141 {offsets = [64, 0], sizes = [32, 112], strides = [1, 1]} : vector<224x112xbf16> to vector<32x112xbf16>
    %c32_142 = arith.constant 32 : index
    %c0_143 = arith.constant 0 : index
    %153 = vector.load %arg15[%c32_142, %c0_143] : memref<128x112xbf16, #tpu.memory_space<vmem>>, vector<32x112xbf16>
    tpu.vector_store %arg15[%c32_142, %c0_143], %152 {strides = array<i32>} : memref<128x112xbf16, #tpu.memory_space<vmem>>, vector<32x112xbf16>,
    %154 = vector.extract_strided_slice %141 {offsets = [128, 0], sizes = [32, 112], strides = [1, 1]} : vector<224x112xbf16> to vector<32x112xbf16>
    %c64_144 = arith.constant 64 : index
    %c0_145 = arith.constant 0 : index
    %155 = vector.load %arg15[%c64_144, %c0_145] : memref<128x112xbf16, #tpu.memory_space<vmem>>, vector<32x112xbf16>
    tpu.vector_store %arg15[%c64_144, %c0_145], %154 {strides = array<i32>} : memref<128x112xbf16, #tpu.memory_space<vmem>>, vector<32x112xbf16>,
    %156 = vector.extract_strided_slice %141 {offsets = [192, 0], sizes = [32, 112], strides = [1, 1]} : vector<224x112xbf16> to vector<32x112xbf16>
    %c96_146 = arith.constant 96 : index
    %c0_147 = arith.constant 0 : index
    %157 = vector.load %arg15[%c96_146, %c0_147] : memref<128x112xbf16, #tpu.memory_space<vmem>>, vector<32x112xbf16>
    tpu.vector_store %arg15[%c96_146, %c0_147], %156 {strides = array<i32>} : memref<128x112xbf16, #tpu.memory_space<vmem>>, vector<32x112xbf16>,
    %c0_148 = arith.constant 0 : index
    %c0_149 = arith.constant 0 : index
    %158 = vector.load %arg14[%c0_148, %c0_149] : memref<128x112xbf16, #tpu.memory_space<vmem>>, vector<96x112xbf16>
    %c0_150 = arith.constant 0 : index
    %c0_151 = arith.constant 0 : index
    %c0_152 = arith.constant 0 : index
    %159 = vector.load %arg7[%c0_150, %c0_151, %c0_152] : memref<3x112x224xbf16, #tpu.memory_space<vmem>>, vector<1x112x224xbf16>
    %160 = vector.shape_cast %159 : vector<1x112x224xbf16> to vector<112x224xbf16>
    %cst_153 = arith.constant dense<0.000000e+00> : vector<96x224xf32>
    %161 = tpu.matmul %158, %160, %cst_153 {dimension_numbers = #tpu.dot_dimension_numbers<[1], [0], [0], [1], [0, 0, 1, 1], [], []>} : vector<96x112xbf16>, vector<112x224xbf16>, vector<96x224xf32> -> vector<96x224xf32>
    %c0_154 = arith.constant 0 : index
    %c0_155 = arith.constant 0 : index
    %162 = vector.load %arg15[%c0_154, %c0_155] : memref<128x112xbf16, #tpu.memory_space<vmem>>, vector<96x112xbf16>
    %c1_156 = arith.constant 1 : index
    %c0_157 = arith.constant 0 : index
    %c0_158 = arith.constant 0 : index
    %163 = vector.load %arg7[%c1_156, %c0_157, %c0_158] : memref<3x112x224xbf16, #tpu.memory_space<vmem>>, vector<1x112x224xbf16>
    %164 = vector.shape_cast %163 : vector<1x112x224xbf16> to vector<112x224xbf16>
    %cst_159 = arith.constant dense<0.000000e+00> : vector<96x224xf32>
    %165 = tpu.matmul %162, %164, %cst_159 {dimension_numbers = #tpu.dot_dimension_numbers<[1], [0], [0], [1], [0, 0, 1, 1], [], []>} : vector<96x112xbf16>, vector<112x224xbf16>, vector<96x224xf32> -> vector<96x224xf32>
    %166 = arith.addf %161, %165 : vector<96x224xf32>
    %c32_160 = arith.constant 32 : index
    %c0_161 = arith.constant 0 : index
    %167 = vector.load %arg14[%c32_160, %c0_161] : memref<128x112xbf16, #tpu.memory_space<vmem>>, vector<96x112xbf16>
    %c2_162 = arith.constant 2 : index
    %c0_163 = arith.constant 0 : index
    %c0_164 = arith.constant 0 : index
    %168 = vector.load %arg7[%c2_162, %c0_163, %c0_164] : memref<3x112x224xbf16, #tpu.memory_space<vmem>>, vector<1x112x224xbf16>
    %169 = vector.shape_cast %168 : vector<1x112x224xbf16> to vector<112x224xbf16>
    %cst_165 = arith.constant dense<0.000000e+00> : vector<96x224xf32>
    %170 = tpu.matmul %167, %169, %cst_165 {dimension_numbers = #tpu.dot_dimension_numbers<[1], [0], [0], [1], [0, 0, 1, 1], [], []>} : vector<96x112xbf16>, vector<112x224xbf16>, vector<96x224xf32> -> vector<96x224xf32>
    %171 = arith.addf %166, %170 : vector<96x224xf32>
    %172 = vector.extract_strided_slice %171 {offsets = [0, 0], sizes = [96, 96], strides = [1, 1]} : vector<96x224xf32> to vector<96x96xf32>
    %173 = vector.extract_strided_slice %171 {offsets = [0, 128], sizes = [96, 96], strides = [1, 1]} : vector<96x224xf32> to vector<96x96xf32>
    %174 = arith.maximumf %172, %173 : vector<96x96xf32>
    %c0_166 = arith.constant 0 : index
    %c0_167 = arith.constant 0 : index
    %175 = vector.load %arg15[%c0_166, %c0_167] : memref<128x112xbf16, #tpu.memory_space<vmem>>, vector<96x112xbf16>
    %c0_168 = arith.constant 0 : index
    %c0_169 = arith.constant 0 : index
    %c0_170 = arith.constant 0 : index
    %176 = vector.load %arg7[%c0_168, %c0_169, %c0_170] : memref<3x112x224xbf16, #tpu.memory_space<vmem>>, vector<1x112x224xbf16>
    %177 = vector.shape_cast %176 : vector<1x112x224xbf16> to vector<112x224xbf16>
    %cst_171 = arith.constant dense<0.000000e+00> : vector<96x224xf32>
    %178 = tpu.matmul %175, %177, %cst_171 {dimension_numbers = #tpu.dot_dimension_numbers<[1], [0], [0], [1], [0, 0, 1, 1], [], []>} : vector<96x112xbf16>, vector<112x224xbf16>, vector<96x224xf32> -> vector<96x224xf32>
    %c32_172 = arith.constant 32 : index
    %c0_173 = arith.constant 0 : index
    %179 = vector.load %arg14[%c32_172, %c0_173] : memref<128x112xbf16, #tpu.memory_space<vmem>>, vector<96x112xbf16>
    %c1_174 = arith.constant 1 : index
    %c0_175 = arith.constant 0 : index
    %c0_176 = arith.constant 0 : index
    %180 = vector.load %arg7[%c1_174, %c0_175, %c0_176] : memref<3x112x224xbf16, #tpu.memory_space<vmem>>, vector<1x112x224xbf16>
    %181 = vector.shape_cast %180 : vector<1x112x224xbf16> to vector<112x224xbf16>
    %cst_177 = arith.constant dense<0.000000e+00> : vector<96x224xf32>
    %182 = tpu.matmul %179, %181, %cst_177 {dimension_numbers = #tpu.dot_dimension_numbers<[1], [0], [0], [1], [0, 0, 1, 1], [], []>} : vector<96x112xbf16>, vector<112x224xbf16>, vector<96x224xf32> -> vector<96x224xf32>
    %183 = arith.addf %178, %182 : vector<96x224xf32>
    %c32_178 = arith.constant 32 : index
    %c0_179 = arith.constant 0 : index
    %184 = vector.load %arg15[%c32_178, %c0_179] : memref<128x112xbf16, #tpu.memory_space<vmem>>, vector<96x112xbf16>
    %c2_180 = arith.constant 2 : index
    %c0_181 = arith.constant 0 : index
    %c0_182 = arith.constant 0 : index
    %185 = vector.load %arg7[%c2_180, %c0_181, %c0_182] : memref<3x112x224xbf16, #tpu.memory_space<vmem>>, vector<1x112x224xbf16>
    %186 = vector.shape_cast %185 : vector<1x112x224xbf16> to vector<112x224xbf16>
    %cst_183 = arith.constant dense<0.000000e+00> : vector<96x224xf32>
    %187 = tpu.matmul %184, %186, %cst_183 {dimension_numbers = #tpu.dot_dimension_numbers<[1], [0], [0], [1], [0, 0, 1, 1], [], []>} : vector<96x112xbf16>, vector<112x224xbf16>, vector<96x224xf32> -> vector<96x224xf32>
    %188 = arith.addf %183, %187 : vector<96x224xf32>
    %189 = vector.extract_strided_slice %188 {offsets = [0, 0], sizes = [96, 96], strides = [1, 1]} : vector<96x224xf32> to vector<96x96xf32>
    %190 = vector.extract_strided_slice %188 {offsets = [0, 128], sizes = [96, 96], strides = [1, 1]} : vector<96x224xf32> to vector<96x96xf32>
    %191 = arith.maximumf %189, %190 : vector<96x96xf32>
    %192 = arith.maximumf %174, %191 : vector<96x96xf32>
    %c0_184 = arith.constant 0 : index
    %c0_185 = arith.constant 0 : index
    %193 = vector.load %arg8[%c0_184, %c0_185] : memref<1x96xf32, #tpu.memory_space<vmem>>, vector<1x96xf32>
    %194 = vector.broadcast %193 : vector<1x96xf32> to vector<96x96xf32>
    %195 = arith.addf %192, %194 : vector<96x96xf32>
    %cst_186 = arith.constant 0.000000e+00 : f32
    %196 = vector.broadcast %cst_186 : f32 to vector<96x96xf32>
    %197 = arith.maximumf %195, %196 : vector<96x96xf32>
    %c0_187 = arith.constant 0 : index
    %c0_188 = arith.constant 0 : index
    %198 = vector.load %arg10[%c0_187, %c0_188] : memref<1x10xf32, #tpu.memory_space<vmem>>, vector<1x10xf32>
    %199 = vector.extract_strided_slice %197 {offsets = [0, 0], sizes = [32, 96], strides = [1, 1]} : vector<96x96xf32> to vector<32x96xf32>
    %c0_189 = arith.constant 0 : index
    %c0_190 = arith.constant 0 : index
    %c0_191 = arith.constant 0 : index
    %200 = vector.load %arg9[%c0_189, %c0_190, %c0_191] : memref<3x96x10xf32, #tpu.memory_space<vmem>>, vector<1x96x10xf32>
    %201 = vector.shape_cast %200 : vector<1x96x10xf32> to vector<96x10xf32>
    %cst_192 = arith.constant dense<0.000000e+00> : vector<32x10xf32>
    %202 = tpu.matmul %199, %201, %cst_192 {dimension_numbers = #tpu.dot_dimension_numbers<[1], [0], [0], [1], [0, 0, 1, 1], [], []>} : vector<32x96xf32>, vector<96x10xf32>, vector<32x10xf32> -> vector<32x10xf32>
    %203 = vector.broadcast %198 : vector<1x10xf32> to vector<32x10xf32>
    %204 = arith.addf %203, %202 : vector<32x10xf32>
    %205 = vector.extract_strided_slice %197 {offsets = [32, 0], sizes = [32, 96], strides = [1, 1]} : vector<96x96xf32> to vector<32x96xf32>
    %c1_193 = arith.constant 1 : index
    %c0_194 = arith.constant 0 : index
    %c0_195 = arith.constant 0 : index
    %206 = vector.load %arg9[%c1_193, %c0_194, %c0_195] : memref<3x96x10xf32, #tpu.memory_space<vmem>>, vector<1x96x10xf32>
    %207 = vector.shape_cast %206 : vector<1x96x10xf32> to vector<96x10xf32>
    %cst_196 = arith.constant dense<0.000000e+00> : vector<32x10xf32>
    %208 = tpu.matmul %205, %207, %cst_196 {dimension_numbers = #tpu.dot_dimension_numbers<[1], [0], [0], [1], [0, 0, 1, 1], [], []>} : vector<32x96xf32>, vector<96x10xf32>, vector<32x10xf32> -> vector<32x10xf32>
    %209 = arith.addf %204, %208 : vector<32x10xf32>
    %210 = vector.extract_strided_slice %197 {offsets = [64, 0], sizes = [32, 96], strides = [1, 1]} : vector<96x96xf32> to vector<32x96xf32>
    %c2_197 = arith.constant 2 : index
    %c0_198 = arith.constant 0 : index
    %c0_199 = arith.constant 0 : index
    %211 = vector.load %arg9[%c2_197, %c0_198, %c0_199] : memref<3x96x10xf32, #tpu.memory_space<vmem>>, vector<1x96x10xf32>
    %212 = vector.shape_cast %211 : vector<1x96x10xf32> to vector<96x10xf32>
    %cst_200 = arith.constant dense<0.000000e+00> : vector<32x10xf32>
    %213 = tpu.matmul %210, %212, %cst_200 {dimension_numbers = #tpu.dot_dimension_numbers<[1], [0], [0], [1], [0, 0, 1, 1], [], []>} : vector<32x96xf32>, vector<96x10xf32>, vector<32x10xf32> -> vector<32x10xf32>
    %214 = arith.addf %209, %213 : vector<32x10xf32>
    %c0_201 = arith.constant 0 : index
    %c0_202 = arith.constant 0 : index
    %215 = vector.load %arg11[%c0_201, %c0_202] : memref<32x10xf32, #tpu.memory_space<vmem>>, vector<32x10xf32>
    tpu.vector_store %arg11[%c0_201, %c0_202], %214 {strides = array<i32>} : memref<32x10xf32, #tpu.memory_space<vmem>>, vector<32x10xf32>,
    return
  }
  func.func @transform_0(%arg0: i32) -> (i32, i32, i32) {
    %c0_i32 = arith.constant 0 : i32
    %c0_i32_0 = arith.constant 0 : i32
    %c0_i32_1 = arith.constant 0 : i32
    return %arg0, %c0_i32, %c0_i32_0 : i32, i32, i32
  }
  func.func @transform_1(%arg0: i32) -> (i32, i32, i32) {
    %c0_i32 = arith.constant 0 : i32
    %c0_i32_0 = arith.constant 0 : i32
    %c0_i32_1 = arith.constant 0 : i32
    return %arg0, %c0_i32, %c0_i32_0 : i32, i32, i32
  }
  func.func @transform_2(%arg0: i32) -> (i32, i32, i32) {
    %c0_i32 = arith.constant 0 : i32
    %c0_i32_0 = arith.constant 0 : i32
    %c0_i32_1 = arith.constant 0 : i32
    %c0_i32_2 = arith.constant 0 : i32
    return %c0_i32, %c0_i32_0, %c0_i32_1 : i32, i32, i32
  }
  func.func @transform_3(%arg0: i32) -> (i32, i32) {
    %c0_i32 = arith.constant 0 : i32
    %c0_i32_0 = arith.constant 0 : i32
    %c0_i32_1 = arith.constant 0 : i32
    return %c0_i32, %c0_i32_0 : i32, i32
  }
  func.func @transform_4(%arg0: i32) -> (i32, i32, i32) {
    %c0_i32 = arith.constant 0 : i32
    %c0_i32_0 = arith.constant 0 : i32
    %c0_i32_1 = arith.constant 0 : i32
    %c0_i32_2 = arith.constant 0 : i32
    return %c0_i32, %c0_i32_0, %c0_i32_1 : i32, i32, i32
  }
  func.func @transform_5(%arg0: i32) -> (i32, i32) {
    %c0_i32 = arith.constant 0 : i32
    %c0_i32_0 = arith.constant 0 : i32
    %c0_i32_1 = arith.constant 0 : i32
    return %c0_i32, %c0_i32_0 : i32, i32
  }
  func.func @transform_6(%arg0: i32) -> (i32, i32, i32) {
    %c0_i32 = arith.constant 0 : i32
    %c0_i32_0 = arith.constant 0 : i32
    %c0_i32_1 = arith.constant 0 : i32
    %c0_i32_2 = arith.constant 0 : i32
    return %c0_i32, %c0_i32_0, %c0_i32_1 : i32, i32, i32
  }
  func.func @transform_7(%arg0: i32) -> (i32, i32) {
    %c0_i32 = arith.constant 0 : i32
    %c0_i32_0 = arith.constant 0 : i32
    %c0_i32_1 = arith.constant 0 : i32
    return %c0_i32, %c0_i32_0 : i32, i32
  }
  func.func @transform_8(%arg0: i32) -> (i32, i32, i32) {
    %c0_i32 = arith.constant 0 : i32
    %c0_i32_0 = arith.constant 0 : i32
    %c0_i32_1 = arith.constant 0 : i32
    %c0_i32_2 = arith.constant 0 : i32
    return %c0_i32, %c0_i32_0, %c0_i32_1 : i32, i32, i32
  }
  func.func @transform_9(%arg0: i32) -> (i32, i32) {
    %c0_i32 = arith.constant 0 : i32
    %c0_i32_0 = arith.constant 0 : i32
    %c0_i32_1 = arith.constant 0 : i32
    return %c0_i32, %c0_i32_0 : i32, i32
  }
  func.func @transform_10(%arg0: i32) -> (i32, i32) {
    %c0_i32 = arith.constant 0 : i32
    %c0_i32_0 = arith.constant 0 : i32
    return %arg0, %c0_i32 : i32, i32
  }
}

</mosaic_0001>

<llo_original>
// kernel: tile.18
$region0: #{tile.18}
  #allocation0 [shape = 's32[1]{0}', space=sflag, size = 0x4, scoped, tag = 'scoped memory for tile.18']
  %s0 = inlined_call_operand.vmem [shape: f32[8], index: 0, kind: input, shape index: {}]
  %s1 = inlined_call_operand.vmem [shape: f32[15,8], index: 1, kind: output, shape index: {}]
  // Predicated region
  $region2: #{tile.18} parent=0 // pred_check
    _
  $region3: #{tile.18} parent=0 // pred_check_branch
    %3 = sbr.rel (0) target = $region5
  $region4: #{tile.18} parent=0 // pred_region
    _
  $region5: #{tile.18} parent=0 // pred_fallthru
    _
  %v4 = vld [vmem:[%s0] ss:$0 sm:$0xff]
  %5 = vst [vmem:[%s1] sm:$0xff] %v4
  %s6 = scalar_lea.vmem %s1, 8
  %7 = vst [vmem:[%s6] sm:$0xff] %v4

// kernel: tile.19
$region0: #{tile.19}
  %s0 = inlined_call_operand.vmem [shape: f32[15,8], index: 0, kind: input, shape index: {}]
  %s1 = inlined_call_operand.vmem [shape: f32[1,120], index: 1, kind: output, shape index: {}]
  $region1: #{tile.19} parent=0
    #allocation0 [shape = 'u8[4096]{0}', space=vmem, size = 0x1000, scoped, tag = 'scoped mem for output reshape']
    %v2 = vld [vmem:[%s0] sm:$0x1]
    %vm3 = vcmask 64512
    %4 = vst.msk [vmem:[#allocation0] sm:$0x1] %vm3, %v2
    %s5 = scalar_lea.vmem %s0, 14
    %v6 = vld [vmem:[%s5] sm:$0x1]
    %7 = vrot.lane.b32.xlu0 %v6, 112
    %v8 = vpop.permute.xlu0 %7
    %vm9 = vcmask 982912
    %10 = vst.msk [vmem:[#allocation0] sm:$0x1] %vm9, %v8
    %s11 = scalar_lea.vmem %s0, 13
    %v12 = vld [vmem:[%s11] sm:$0x1]
    %13 = vrot.lane.b32.xlu0 %v12, 104
    %v14 = vpop.permute.xlu0 %13
    %vm15 = vcmask 917312
    %16 = vst.msk [vmem:[#allocation0] sm:$0x1] %vm15, %v14
    %s17 = scalar_lea.vmem %s0, 12
    %v18 = vld [vmem:[%s17] sm:$0x1]
    %19 = vrot.lane.b32.xlu0 %v18, 96
    %v20 = vpop.permute.xlu0 %19
    %vm21 = vcmask 851712
    %22 = vst.msk [vmem:[#allocation0] sm:$0x1] %vm21, %v20
    %s23 = scalar_lea.vmem %s0, 11
    %v24 = vld [vmem:[%s23] sm:$0x1]
    %25 = vrot.lane.b32.xlu0 %v24, 88
    %v26 = vpop.permute.xlu0 %25
    %vm27 = vcmask 786112
    %28 = vst.msk [vmem:[#allocation0] sm:$0x1] %vm27, %v26
    %s29 = scalar_lea.vmem %s0, 10
    %v30 = vld [vmem:[%s29] sm:$0x1]
    %31 = vrot.lane.b32.xlu0 %v30, 80
    %v32 = vpop.permute.xlu0 %31
    %vm33 = vcmask 720512
    %34 = vst.msk [vmem:[#allocation0] sm:$0x1] %vm33, %v32
    %s35 = scalar_lea.vmem %s0, 9
    %v36 = vld [vmem:[%s35] sm:$0x1]
    %37 = vrot.lane.b32.xlu0 %v36, 72
    %v38 = vpop.permute.xlu0 %37
    %vm39 = vcmask 654912
    %40 = vst.msk [vmem:[#allocation0] sm:$0x1] %vm39, %v38
    %s41 = scalar_lea.vmem %s0, 8
    %v42 = vld [vmem:[%s41] sm:$0x1]
    %43 = vrot.lane.b32.xlu0 %v42, 64
    %v44 = vpop.permute.xlu0 %43
    %vm45 = vcmask 589312
    %46 = vst.msk [vmem:[#allocation0] sm:$0x1] %vm45, %v44
    %s47 = scalar_lea.vmem %s0, 7
    %v48 = vld [vmem:[%s47] sm:$0x1]
    %49 = vrot.lane.b32.xlu0 %v48, 56
    %v50 = vpop.permute.xlu0 %49
    %vm51 = vcmask 523712
    %52 = vst.msk [vmem:[#allocation0] sm:$0x1] %vm51, %v50
    %s53 = scalar_lea.vmem %s0, 6
    %v54 = vld [vmem:[%s53] sm:$0x1]
    %55 = vrot.lane.b32.xlu0 %v54, 48
    %v56 = vpop.permute.xlu0 %55
    %vm57 = vcmask 458112
    %58 = vst.msk [vmem:[#allocation0] sm:$0x1] %vm57, %v56
    %s59 = scalar_lea.vmem %s0, 5
    %v60 = vld [vmem:[%s59] sm:$0x1]
    %61 = vrot.lane.b32.xlu0 %v60, 40
    %v62 = vpop.permute.xlu0 %61
    %vm63 = vcmask 392512
    %64 = vst.msk [vmem:[#allocation0] sm:$0x1] %vm63, %v62
    %s65 = scalar_lea.vmem %s0, 4
    %v66 = vld [vmem:[%s65] sm:$0x1]
    %67 = vrot.lane.b32.xlu0 %v66, 32
    %v68 = vpop.permute.xlu0 %67
    %vm69 = vcmask 326912
    %70 = vst.msk [vmem:[#allocation0] sm:$0x1] %vm69, %v68
    %s71 = scalar_lea.vmem %s0, 3
    %v72 = vld [vmem:[%s71] sm:$0x1]
    %73 = vrot.lane.b32.xlu0 %v72, 24
    %v74 = vpop.permute.xlu0 %73
    %vm75 = vcmask 261312
    %76 = vst.msk [vmem:[#allocation0] sm:$0x1] %vm75, %v74
    %s77 = scalar_lea.vmem %s0, 2
    %v78 = vld [vmem:[%s77] sm:$0x1]
    %79 = vrot.lane.b32.xlu0 %v78, 16
    %v80 = vpop.permute.xlu0 %79
    %vm81 = vcmask 195712
    %82 = vst.msk [vmem:[#allocation0] sm:$0x1] %vm81, %v80
    %s83 = scalar_lea.vmem %s0, 1
    %v84 = vld [vmem:[%s83] sm:$0x1]
    %85 = vrot.lane.b32.xlu0 %v84, 8
    %v86 = vpop.permute.xlu0 %85
    %vm87 = vcmask 130112
    %88 = vst.msk [vmem:[#allocation0] sm:$0x1] %vm87, %v86
    %s90 = sshllo.u32 0, 1
    %v92 = vld [vmem:[#allocation0] sm:%s90]
    %s93 = sshllo.u32 0, 1
    %94 = vst [vmem:[%s1] sm:%s93] %v92

// kernel: tile.23
$region0: #{tile.23}
  #allocation0 [shape = 's32[1]{0}', space=sflag, size = 0x4, scoped, tag = 'scoped memory for tile.23']
  %s0 = inlined_call_operand.vmem [shape: f32[16], index: 0, kind: input, shape index: {}]
  %s1 = inlined_call_operand.vmem [shape: f32[7,16], index: 1, kind: output, shape index: {}]
  // Predicated region
  $region2: #{tile.23} parent=0 // pred_check
    _
  $region3: #{tile.23} parent=0 // pred_check_branch
    %3 = sbr.rel (0) target = $region5
  $region4: #{tile.23} parent=0 // pred_region
    _
  $region5: #{tile.23} parent=0 // pred_fallthru
    _
  %v4 = vld [vmem:[%s0] ss:$0 sm:$0xff]
  %5 = vst [vmem:[%s1] sm:$0xff] %v4

// kernel: tile.24
$region0: #{tile.24}
  %s0 = inlined_call_operand.vmem [shape: f32[7,16], index: 0, kind: input, shape index: {}]
  %s1 = inlined_call_operand.vmem [shape: f32[1,112], index: 1, kind: output, shape index: {}]
  $region1: #{tile.24} parent=0
    #allocation0 [shape = 'u8[4096]{0}', space=vmem, size = 0x1000, scoped, tag = 'scoped mem for output reshape']
    %v2 = vld [vmem:[%s0] sm:$0x1]
    %vm3 = vcmask 130048
    %4 = vst.msk [vmem:[#allocation0] sm:$0x1] %vm3, %v2
    %s5 = scalar_lea.vmem %s0, 6
    %v6 = vld [vmem:[%s5] sm:$0x1]
    %7 = vrot.lane.b32.xlu0 %v6, 96
    %v8 = vpop.permute.xlu0 %7
    %vm9 = vcmask 917248
    %10 = vst.msk [vmem:[#allocation0] sm:$0x1] %vm9, %v8
    %s11 = scalar_lea.vmem %s0, 5
    %v12 = vld [vmem:[%s11] sm:$0x1]
    %13 = vrot.lane.b32.xlu0 %v12, 80
    %v14 = vpop.permute.xlu0 %13
    %vm15 = vcmask 786048
    %16 = vst.msk [vmem:[#allocation0] sm:$0x1] %vm15, %v14
    %s17 = scalar_lea.vmem %s0, 4
    %v18 = vld [vmem:[%s17] sm:$0x1]
    %19 = vrot.lane.b32.xlu0 %v18, 64
    %v20 = vpop.permute.xlu0 %19
    %vm21 = vcmask 654848
    %22 = vst.msk [vmem:[#allocation0] sm:$0x1] %vm21, %v20
    %s23 = scalar_lea.vmem %s0, 3
    %v24 = vld [vmem:[%s23] sm:$0x1]
    %25 = vrot.lane.b32.xlu0 %v24, 48
    %v26 = vpop.permute.xlu0 %25
    %vm27 = vcmask 523648
    %28 = vst.msk [vmem:[#allocation0] sm:$0x1] %vm27, %v26
    %s29 = scalar_lea.vmem %s0, 2
    %v30 = vld [vmem:[%s29] sm:$0x1]
    %31 = vrot.lane.b32.xlu0 %v30, 32
    %v32 = vpop.permute.xlu0 %31
    %vm33 = vcmask 392448
    %34 = vst.msk [vmem:[#allocation0] sm:$0x1] %vm33, %v32
    %s35 = scalar_lea.vmem %s0, 1
    %v36 = vld [vmem:[%s35] sm:$0x1]
    %37 = vrot.lane.b32.xlu0 %v36, 16
    %v38 = vpop.permute.xlu0 %37
    %vm39 = vcmask 261248
    %40 = vst.msk [vmem:[#allocation0] sm:$0x1] %vm39, %v38
    %s42 = sshllo.u32 0, 1
    %v44 = vld [vmem:[#allocation0] sm:%s42]
    %s45 = sshllo.u32 0, 1
    %46 = vst [vmem:[%s1] sm:%s45] %v44

// kernel: tile.28
$region0: #{tile.28}
  #allocation0 [shape = 's32[1]{0}', space=sflag, size = 0x4, scoped, tag = 'scoped memory for tile.28']
  %s0 = inlined_call_operand.vmem [shape: f32[32], index: 0, kind: input, shape index: {}]
  %s1 = inlined_call_operand.vmem [shape: f32[3,32], index: 1, kind: output, shape index: {}]
  // Predicated region
  $region2: #{tile.28} parent=0 // pred_check
    _
  $region3: #{tile.28} parent=0 // pred_check_branch
    %3 = sbr.rel (0) target = $region5
  $region4: #{tile.28} parent=0 // pred_region
    _
  $region5: #{tile.28} parent=0 // pred_fallthru
    _
  %v4 = vld [vmem:[%s0] ss:$0 sm:$0xff]
  %5 = vst [vmem:[%s1] sm:$0xf] %v4

// kernel: tile.29
$region0: #{tile.29}
  %s0 = inlined_call_operand.vmem [shape: f32[3,32], index: 0, kind: input, shape index: {}]
  %s1 = inlined_call_operand.vmem [shape: f32[1,96], index: 1, kind: output, shape index: {}]
  $region1: #{tile.29} parent=0
    #allocation0 [shape = 'u8[4096]{0}', space=vmem, size = 0x1000, scoped, tag = 'scoped mem for output reshape']
    #allocation1 [shape = 'u8[4096]{0}', space=vmem, size = 0x1000, scoped, tag = 'scoped mem for input reshape']
    %s3 = sshllo.u32 0, 4
    %v4 = vld [vmem:[%s0] sm:%s3]
    %5 = vst [vmem:[#allocation1] sm:%s3] %v4
    %v6 = vld [vmem:[#allocation1] sm:$0x1]
    %vm7 = vcmask 261120
    %8 = vst.msk [vmem:[#allocation0] sm:$0x1] %vm7, %v6
    %s9 = scalar_lea.vmem [#allocation1], 2
    %v10 = vld [vmem:[%s9] sm:$0x1]
    %11 = vrot.lane.b32.xlu0 %v10, 64
    %v12 = vpop.permute.xlu0 %11
    %vm13 = vcmask 785920
    %14 = vst.msk [vmem:[#allocation0] sm:$0x1] %vm13, %v12
    %s15 = scalar_lea.vmem [#allocation1], 1
    %v16 = vld [vmem:[%s15] sm:$0x1]
    %17 = vrot.lane.b32.xlu0 %v16, 32
    %v18 = vpop.permute.xlu0 %17
    %vm19 = vcmask 523520
    %20 = vst.msk [vmem:[#allocation0] sm:$0x1] %vm19, %v18
    %s22 = sshllo.u32 0, 1
    %v24 = vld [vmem:[#allocation0] sm:%s22]
    %s25 = sshllo.u32 0, 1
    %26 = vst [vmem:[%s1] sm:%s25] %v24

// kernel: cnn_forward.1
$region0: #{cnn_forward.1}
  #allocation0 [shape = 'u32[]', space=smem, size = 0x4, offset = 0x4, fixed_abs, tag = 'smem constant byte address 0x4 - core index']
  #allocation1 [shape = 'u32[144,128]{1,0:T(1,128)}', space=vmem, size = 0x12000, scoped, tag = 'internal scratch']
  #allocation2 [shape = 'bf16[288,120]{1,0:T(16,128)(2,1)}', space=vmem, size = 0x12000, scoped, tag = 'scratch operand']
  #allocation3 [shape = 'bf16[288,120]{1,0:T(16,128)(2,1)}', space=vmem, size = 0x12000, scoped, tag = 'scratch operand']
  #allocation4 [shape = 'bf16[128,112]{1,0:T(16,128)(2,1)}', space=vmem, size = 0x8000, scoped, tag = 'scratch operand']
  #allocation5 [shape = 'bf16[128,112]{1,0:T(16,128)(2,1)}', space=vmem, size = 0x8000, scoped, tag = 'scratch operand']
  %s0 = inlined_call_operand.vmem [shape: bf16[1,512,28], index: 0, kind: input, shape index: {}]
  %s1 = inlined_call_operand.vmem [shape: bf16[1,512,28], index: 1, kind: input, shape index: {}]
  %s2 = inlined_call_operand.vmem [shape: bf16[3,28,248], index: 2, kind: input, shape index: {}]
  %s3 = inlined_call_operand.vmem [shape: f32[1,120], index: 3, kind: input, shape index: {}]
  %s4 = inlined_call_operand.vmem [shape: bf16[5,120,240], index: 4, kind: input, shape index: {}]
  %s5 = inlined_call_operand.vmem [shape: f32[1,112], index: 5, kind: input, shape index: {}]
  %s6 = inlined_call_operand.vmem [shape: bf16[3,112,224], index: 6, kind: input, shape index: {}]
  %s7 = inlined_call_operand.vmem [shape: f32[1,96], index: 7, kind: input, shape index: {}]
  %s8 = inlined_call_operand.vmem [shape: f32[3,96,10], index: 8, kind: input, shape index: {}]
  %s9 = inlined_call_operand.vmem [shape: f32[1,10], index: 9, kind: input, shape index: {}]
  %s10 = inlined_call_operand.vmem [shape: f32[32,10], index: 10, kind: output, shape index: {}]
  %s11 = sld [smem:[#allocation0]]
  $region50: #{cnn_forward.1} parent=0
    _
  %s13 = ssub.s32 1, %s11
  %s14 = scalar_select 0, %s13, %s11
  // Predicated region
  $region2: #{cnn_forward.1} parent=0 // pred_check
    _
  $region3: #{cnn_forward.1} parent=0 // pred_check_branch
    %16 = sbr.rel (0) target = $region5
  $region4: #{cnn_forward.1} parent=0 // pred_region
    _
  $region5: #{cnn_forward.1} parent=0 // pred_fallthru
    _
  // Predicated region
  $region6: #{cnn_forward.1} parent=0 // pred_check
    _
  $region7: #{cnn_forward.1} parent=0 // pred_check_branch
    %18 = sbr.rel (0) target = $region9
  $region8: #{cnn_forward.1} parent=0 // pred_region
    _
  $region9: #{cnn_forward.1} parent=0 // pred_fallthru
    _
  // Predicated region
  $region10: #{cnn_forward.1} parent=0 // pred_check
    _
  $region11: #{cnn_forward.1} parent=0 // pred_check_branch
    %20 = sbr.rel (0) target = $region13
  $region12: #{cnn_forward.1} parent=0 // pred_region
    _
  $region13: #{cnn_forward.1} parent=0 // pred_fallthru
    _
  // Predicated region
  $region14: #{cnn_forward.1} parent=0 // pred_check
    _
  $region15: #{cnn_forward.1} parent=0 // pred_check_branch
    %22 = sbr.rel (0) target = $region17
  $region16: #{cnn_forward.1} parent=0 // pred_region
    _
  $region17: #{cnn_forward.1} parent=0 // pred_fallthru
    _
  // Predicated region
  $region18: #{cnn_forward.1} parent=0 // pred_check
    _
  $region19: #{cnn_forward.1} parent=0 // pred_check_branch
    %24 = sbr.rel (0) target = $region21
  $region20: #{cnn_forward.1} parent=0 // pred_region
    _
  $region21: #{cnn_forward.1} parent=0 // pred_fallthru
    _
  // Predicated region
  $region22: #{cnn_forward.1} parent=0 // pred_check
    _
  $region23: #{cnn_forward.1} parent=0 // pred_check_branch
    %26 = sbr.rel (0) target = $region25
  $region24: #{cnn_forward.1} parent=0 // pred_region
    _
  $region25: #{cnn_forward.1} parent=0 // pred_fallthru
    _
  // Predicated region
  $region26: #{cnn_forward.1} parent=0 // pred_check
    _
  $region27: #{cnn_forward.1} parent=0 // pred_check_branch
    %28 = sbr.rel (0) target = $region29
  $region28: #{cnn_forward.1} parent=0 // pred_region
    _
  $region29: #{cnn_forward.1} parent=0 // pred_fallthru
    _
  // Predicated region
  $region30: #{cnn_forward.1} parent=0 // pred_check
    _
  $region31: #{cnn_forward.1} parent=0 // pred_check_branch
    %30 = sbr.rel (0) target = $region33
  $region32: #{cnn_forward.1} parent=0 // pred_region
    _
  $region33: #{cnn_forward.1} parent=0 // pred_fallthru
    _
  // Predicated region
  $region34: #{cnn_forward.1} parent=0 // pred_check
    _
  $region35: #{cnn_forward.1} parent=0 // pred_check_branch
    %32 = sbr.rel (0) target = $region37
  $region36: #{cnn_forward.1} parent=0 // pred_region
    _
  $region37: #{cnn_forward.1} parent=0 // pred_fallthru
    _
  // Predicated region
  $region38: #{cnn_forward.1} parent=0 // pred_check
    _
  $region39: #{cnn_forward.1} parent=0 // pred_check_branch
    %34 = sbr.rel (0) target = $region41
  $region40: #{cnn_forward.1} parent=0 // pred_region
    _
  $region41: #{cnn_forward.1} parent=0 // pred_fallthru
    _
  %v36 = vld [vmem:[%s0] sm:$0xf]
  %v37 = vld [vmem:[%s0 + $0x4] sm:$0xf]
  %v38 = vld [vmem:[%s0 + $0x8] sm:$0xf]
  %v39 = vld [vmem:[%s0 + $0xc] sm:$0xf]
  %v40 = vld [vmem:[%s0 + $0x10] sm:$0xf]
  %v41 = vld [vmem:[%s0 + $0x14] sm:$0xf]
  %v42 = vld [vmem:[%s0 + $0x18] sm:$0xf]
  %v43 = vld [vmem:[%s0 + $0x1c] sm:$0xf]
  %v44 = vld [vmem:[%s0 + $0x20] sm:$0xf]
  %v45 = vld [vmem:[%s0 + $0x24] sm:$0xf]
  %v46 = vld [vmem:[%s0 + $0x28] sm:$0xf]
  %v47 = vld [vmem:[%s0 + $0x2c] sm:$0xf]
  %v48 = vld [vmem:[%s0 + $0x30] sm:$0xf]
  %v49 = vld [vmem:[%s0 + $0x34] sm:$0xf]
  %v50 = vld [vmem:[%s0 + $0x38] sm:$0xf]
  %v51 = vld [vmem:[%s0 + $0x3c] sm:$0xf]
  %v52 = vld [vmem:[%s0 + $0x40] sm:$0xf]
  %v53 = vld [vmem:[%s0 + $0x44] sm:$0xf]
  %v54 = vld [vmem:[%s0 + $0x48] sm:$0xf]
  %v55 = vld [vmem:[%s0 + $0x4c] sm:$0xf]
  %v56 = vld [vmem:[%s0 + $0x50] sm:$0xf]
  %v57 = vld [vmem:[%s0 + $0x54] sm:$0xf]
  %v58 = vld [vmem:[%s0 + $0x58] sm:$0xf]
  %v59 = vld [vmem:[%s0 + $0x5c] sm:$0xf]
  %v60 = vld [vmem:[%s0 + $0x60] sm:$0xf]
  %v61 = vld [vmem:[%s0 + $0x64] sm:$0xf]
  %v62 = vld [vmem:[%s0 + $0x68] sm:$0xf]
  %v63 = vld [vmem:[%s0 + $0x6c] sm:$0xf]
  %v64 = vld [vmem:[%s0 + $0x70] sm:$0xf]
  %v65 = vld [vmem:[%s0 + $0x74] sm:$0xf]
  %v66 = vld [vmem:[%s0 + $0x78] sm:$0xf]
  %v67 = vld [vmem:[%s0 + $0x7c] sm:$0xf]
  %v68 = vld [vmem:[%s0 + $0x80] sm:$0xf]
  %v69 = vld [vmem:[%s0 + $0x84] sm:$0xf]
  %v70 = vld [vmem:[%s0 + $0x88] sm:$0xf]
  %v71 = vld [vmem:[%s0 + $0x8c] sm:$0xf]
  %v72 = vld [vmem:[%s0 + $0x90] sm:$0xf]
  %v73 = vld [vmem:[%s0 + $0x94] sm:$0xf]
  %v74 = vld [vmem:[%s0 + $0x98] sm:$0xf]
  %v75 = vld [vmem:[%s0 + $0x9c] sm:$0xf]
  %v76 = vld [vmem:[%s0 + $0xa0] sm:$0xf]
  %v77 = vld [vmem:[%s0 + $0xa4] sm:$0xf]
  %v78 = vld [vmem:[%s0 + $0xa8] sm:$0xf]
  %v79 = vld [vmem:[%s0 + $0xac] sm:$0xf]
  %v80 = vld [vmem:[%s0 + $0xb0] sm:$0xf]
  %v81 = vld [vmem:[%s0 + $0xb4] sm:$0xf]
  %v82 = vld [vmem:[%s0 + $0xb8] sm:$0xf]
  %v83 = vld [vmem:[%s0 + $0xbc] sm:$0xf]
  %v84 = vld [vmem:[%s0 + $0xc0] sm:$0xf]
  %v85 = vld [vmem:[%s0 + $0xc4] sm:$0xf]
  %v86 = vld [vmem:[%s0 + $0xc8] sm:$0xf]
  %v87 = vld [vmem:[%s0 + $0xcc] sm:$0xf]
  %v88 = vld [vmem:[%s0 + $0xd0] sm:$0xf]
  %v89 = vld [vmem:[%s0 + $0xd4] sm:$0xf]
  %v90 = vld [vmem:[%s0 + $0xd8] sm:$0xf]
  %v91 = vld [vmem:[%s0 + $0xdc] sm:$0xf]
  %v92 = vld [vmem:[%s0 + $0xe0] sm:$0xf]
  %v93 = vld [vmem:[%s0 + $0xe4] sm:$0xf]
  %v94 = vld [vmem:[%s0 + $0xe8] sm:$0xf]
  %v95 = vld [vmem:[%s0 + $0xec] sm:$0xf]
  %v96 = vld [vmem:[%s2] sm:$0xff]
  %v97 = vld [vmem:[%s2 + $0x8] sm:$0xff]
  %v98 = vld [vmem:[%s2 + $0x10] sm:$0xff]
  %v99 = vld [vmem:[%s2 + $0x18] sm:$0x33]
  %v100 = vld [vmem:[%s1] sm:$0xf]
  %v101 = vld [vmem:[%s1 + $0x4] sm:$0xf]
  %v102 = vld [vmem:[%s1 + $0x8] sm:$0xf]
  %v103 = vld [vmem:[%s1 + $0xc] sm:$0xf]
  %v104 = vld [vmem:[%s1 + $0x10] sm:$0xf]
  %v105 = vld [vmem:[%s1 + $0x14] sm:$0xf]
  %v106 = vld [vmem:[%s1 + $0x18] sm:$0xf]
  %v107 = vld [vmem:[%s1 + $0x1c] sm:$0xf]
  %v108 = vld [vmem:[%s1 + $0x20] sm:$0xf]
  %v109 = vld [vmem:[%s1 + $0x24] sm:$0xf]
  %v110 = vld [vmem:[%s1 + $0x28] sm:$0xf]
  %v111 = vld [vmem:[%s1 + $0x2c] sm:$0xf]
  %v112 = vld [vmem:[%s1 + $0x30] sm:$0xf]
  %v113 = vld [vmem:[%s1 + $0x34] sm:$0xf]
  %v114 = vld [vmem:[%s1 + $0x38] sm:$0xf]
  %v115 = vld [vmem:[%s1 + $0x3c] sm:$0xf]
  %v116 = vld [vmem:[%s1 + $0x40] sm:$0xf]
  %v117 = vld [vmem:[%s1 + $0x44] sm:$0xf]
  %v118 = vld [vmem:[%s1 + $0x48] sm:$0xf]
  %v119 = vld [vmem:[%s1 + $0x4c] sm:$0xf]
  %v120 = vld [vmem:[%s1 + $0x50] sm:$0xf]
  %v121 = vld [vmem:[%s1 + $0x54] sm:$0xf]
  %v122 = vld [vmem:[%s1 + $0x58] sm:$0xf]
  %v123 = vld [vmem:[%s1 + $0x5c] sm:$0xf]
  %v124 = vld [vmem:[%s1 + $0x60] sm:$0xf]
  %v125 = vld [vmem:[%s1 + $0x64] sm:$0xf]
  %v126 = vld [vmem:[%s1 + $0x68] sm:$0xf]
  %v127 = vld [vmem:[%s1 + $0x6c] sm:$0xf]
  %v128 = vld [vmem:[%s1 + $0x70] sm:$0xf]
  %v129 = vld [vmem:[%s1 + $0x74] sm:$0xf]
  %v130 = vld [vmem:[%s1 + $0x78] sm:$0xf]
  %v131 = vld [vmem:[%s1 + $0x7c] sm:$0xf]
  %v132 = vld [vmem:[%s1 + $0x80] sm:$0xf]
  %v133 = vld [vmem:[%s1 + $0x84] sm:$0xf]
  %v134 = vld [vmem:[%s1 + $0x88] sm:$0xf]
  %v135 = vld [vmem:[%s1 + $0x8c] sm:$0xf]
  %v136 = vld [vmem:[%s1 + $0x90] sm:$0xf]
  %v137 = vld [vmem:[%s1 + $0x94] sm:$0xf]
  %v138 = vld [vmem:[%s1 + $0x98] sm:$0xf]
  %v139 = vld [vmem:[%s1 + $0x9c] sm:$0xf]
  %v140 = vld [vmem:[%s1 + $0xa0] sm:$0xf]
  %v141 = vld [vmem:[%s1 + $0xa4] sm:$0xf]
  %v142 = vld [vmem:[%s1 + $0xa8] sm:$0xf]
  %v143 = vld [vmem:[%s1 + $0xac] sm:$0xf]
  %v144 = vld [vmem:[%s1 + $0xb0] sm:$0xf]
  %v145 = vld [vmem:[%s1 + $0xb4] sm:$0xf]
  %v146 = vld [vmem:[%s1 + $0xb8] sm:$0xf]
  %v147 = vld [vmem:[%s1 + $0xbc] sm:$0xf]
  %v148 = vld [vmem:[%s1 + $0xc0] sm:$0xf]
  %v149 = vld [vmem:[%s1 + $0xc4] sm:$0xf]
  %v150 = vld [vmem:[%s1 + $0xc8] sm:$0xf]
  %v151 = vld [vmem:[%s1 + $0xcc] sm:$0xf]
  %v152 = vld [vmem:[%s1 + $0xd0] sm:$0xf]
  %v153 = vld [vmem:[%s1 + $0xd4] sm:$0xf]
  %v154 = vld [vmem:[%s1 + $0xd8] sm:$0xf]
  %v155 = vld [vmem:[%s1 + $0xdc] sm:$0xf]
  %v156 = vld [vmem:[%s1 + $0xe0] sm:$0xf]
  %v157 = vld [vmem:[%s1 + $0xe4] sm:$0xf]
  %v158 = vld [vmem:[%s1 + $0xe8] sm:$0xf]
  %v159 = vld [vmem:[%s1 + $0xec] sm:$0xf]
  %s160 = scalar_lea.vmem %s2, 32
  %v161 = vld [vmem:[%s160] sm:$0xff]
  %v162 = vld [vmem:[%s160 + $0x8] sm:$0xff]
  %v163 = vld [vmem:[%s160 + $0x10] sm:$0xff]
  %v164 = vld [vmem:[%s160 + $0x18] sm:$0x33]
  %v225 = vunpack.c.l.b16 %v100
  %v226 = vunpack.c.l.b16 %v101
  %v227 = vunpack.c.l.b16 %v102
  %v228 = vunpack.c.l.b16 %v103
  %v229 = vunpack.c.l.b16 %v104
  %v230 = vunpack.c.l.b16 %v105
  %v231 = vunpack.c.l.b16 %v106
  %v232 = vunpack.c.l.b16 %v107
  %v233 = vunpack.c.l.b16 %v108
  %v234 = vunpack.c.l.b16 %v109
  %v235 = vunpack.c.l.b16 %v110
  %v236 = vunpack.c.l.b16 %v111
  %v237 = vunpack.c.l.b16 %v112
  %v238 = vunpack.c.l.b16 %v113
  %v239 = vunpack.c.l.b16 %v114
  %v240 = vunpack.c.l.b16 %v115
  %v241 = vunpack.c.l.b16 %v116
  %v242 = vunpack.c.l.b16 %v117
  %v243 = vunpack.c.l.b16 %v118
  %v244 = vunpack.c.l.b16 %v119
  %v245 = vunpack.c.l.b16 %v120
  %v246 = vunpack.c.l.b16 %v121
  %v247 = vunpack.c.l.b16 %v122
  %v248 = vunpack.c.l.b16 %v123
  %v249 = vunpack.c.l.b16 %v124
  %v250 = vunpack.c.l.b16 %v125
  %v251 = vunpack.c.l.b16 %v126
  %v252 = vunpack.c.l.b16 %v127
  %v253 = vunpack.c.l.b16 %v128
  %v254 = vunpack.c.l.b16 %v129
  %v255 = vunpack.c.l.b16 %v130
  %v256 = vunpack.c.l.b16 %v131
  %v257 = vunpack.c.l.b16 %v132
  %v258 = vunpack.c.l.b16 %v133
  %v259 = vunpack.c.l.b16 %v134
  %v260 = vunpack.c.l.b16 %v135
  %v261 = vunpack.c.l.b16 %v136
  %v262 = vunpack.c.l.b16 %v137
  %v263 = vunpack.c.l.b16 %v138
  %v264 = vunpack.c.l.b16 %v139
  %v265 = vunpack.c.l.b16 %v140
  %v266 = vunpack.c.l.b16 %v141
  %v267 = vunpack.c.l.b16 %v142
  %v268 = vunpack.c.l.b16 %v143
  %v269 = vunpack.c.l.b16 %v144
  %v270 = vunpack.c.l.b16 %v145
  %v271 = vunpack.c.l.b16 %v146
  %v272 = vunpack.c.l.b16 %v147
  %v273 = vunpack.c.l.b16 %v148
  %v274 = vunpack.c.l.b16 %v149
  %v275 = vunpack.c.l.b16 %v150
  %v276 = vunpack.c.l.b16 %v151
  %v277 = vunpack.c.l.b16 %v152
  %v278 = vunpack.c.l.b16 %v153
  %v279 = vunpack.c.l.b16 %v154
  %v280 = vunpack.c.l.b16 %v155
  %v281 = vunpack.c.l.b16 %v156
  %v282 = vunpack.c.l.b16 %v157
  %v283 = vunpack.c.l.b16 %v158
  %v284 = vunpack.c.l.b16 %v159
  %v285 = vpack.c.b16 %v226, %v225
  %v286 = vpack.c.b16 %v228, %v227
  %v287 = vpack.c.b16 %v230, %v229
  %v288 = vpack.c.b16 %v232, %v231
  %v289 = vpack.c.b16 %v234, %v233
  %v290 = vpack.c.b16 %v236, %v235
  %v291 = vpack.c.b16 %v238, %v237
  %v292 = vpack.c.b16 %v240, %v239
  %v293 = vpack.c.b16 %v242, %v241
  %v294 = vpack.c.b16 %v244, %v243
  %v295 = vpack.c.b16 %v246, %v245
  %v296 = vpack.c.b16 %v248, %v247
  %v297 = vpack.c.b16 %v250, %v249
  %v298 = vpack.c.b16 %v252, %v251
  %v299 = vpack.c.b16 %v254, %v253
  %v300 = vpack.c.b16 %v256, %v255
  %v301 = vpack.c.b16 %v258, %v257
  %v302 = vpack.c.b16 %v260, %v259
  %v303 = vpack.c.b16 %v262, %v261
  %v304 = vpack.c.b16 %v264, %v263
  %v305 = vpack.c.b16 %v266, %v265
  %v306 = vpack.c.b16 %v268, %v267
  %v307 = vpack.c.b16 %v270, %v269
  %v308 = vpack.c.b16 %v272, %v271
  %v309 = vpack.c.b16 %v274, %v273
  %v310 = vpack.c.b16 %v276, %v275
  %v311 = vpack.c.b16 %v278, %v277
  %v312 = vpack.c.b16 %v280, %v279
  %v313 = vpack.c.b16 %v282, %v281
  %v314 = vpack.c.b16 %v284, %v283
  %v319 = vunpack.c.l.b16 %v161
  %v320 = vunpack.c.h.b16 %v161
  %v321 = vunpack.c.l.b16 %v162
  %v322 = vunpack.c.h.b16 %v162
  %v323 = vunpack.c.l.b16 %v163
  %v324 = vunpack.c.h.b16 %v163
  %v325 = vunpack.c.l.b16 %v164
  %v326 = vunpack.c.h.b16 %v164
  %v327 = vpack.c.b16 %v321, %v319
  %v328 = vpack.c.b16 %v322, %v320
  %v329 = vpack.c.b16 %v325, %v323
  %v330 = vpack.c.b16 %v326, %v324
  %vm333 = vcmask 228352
  %v335 = vsel %vm333, %v285, 0
  %v338 = vsel %vm333, %v286, 0
  %v341 = vsel %vm333, %v287, 0
  %v344 = vsel %vm333, %v288, 0
  %v347 = vsel %vm333, %v289, 0
  %v350 = vsel %vm333, %v290, 0
  %v353 = vsel %vm333, %v291, 0
  %v356 = vsel %vm333, %v292, 0
  %v359 = vsel %vm333, %v293, 0
  %v362 = vsel %vm333, %v294, 0
  %v365 = vsel %vm333, %v295, 0
  %v368 = vsel %vm333, %v296, 0
  %v371 = vsel %vm333, %v297, 0
  %v374 = vsel %vm333, %v298, 0
  %v377 = vsel %vm333, %v299, 0
  %v380 = vsel %vm333, %v300, 0
  %v383 = vsel %vm333, %v301, 0
  %v386 = vsel %vm333, %v302, 0
  %v389 = vsel %vm333, %v303, 0
  %v392 = vsel %vm333, %v304, 0
  %v395 = vsel %vm333, %v305, 0
  %v398 = vsel %vm333, %v306, 0
  %v401 = vsel %vm333, %v307, 0
  %v404 = vsel %vm333, %v308, 0
  %v407 = vsel %vm333, %v309, 0
  %v410 = vsel %vm333, %v310, 0
  %v413 = vsel %vm333, %v311, 0
  %v416 = vsel %vm333, %v312, 0
  %v419 = vsel %vm333, %v313, 0
  %v422 = vsel %vm333, %v314, 0
  %vm424 = vcmask 1045504
  %v426 = vsel %vm424, %v329, 0
  %v429 = vsel %vm424, %v330, 0
  %431 = vmatprep.subr.bf16.mxu0 %v328
  %432 = vmatpush1.bf16.msra.mxu0 %v327
  %433 = vmatprep.subr.bf16.mxu0 %v429
  %434 = vmatpush1.bf16.msra.mxu0 %v426
  %435 = vmatprep.subr.bf16.mxu0 0
  %436 = vmatpush1.bf16.msra.mxu0 0
  %437 = vmatprep.subr.bf16.mxu0 0
  %438 = vmatpush1.bf16.msra.mxu0 0
  %439 = vmatprep.subr.bf16.mxu0 0
  %440 = vmatpush1.bf16.msra.mxu0 0
  %441 = vmatprep.subr.bf16.mxu0 0
  %442 = vmatpush1.bf16.msra.mxu0 0
  %443 = vmatprep.subr.bf16.mxu0 0
  %444 = vmatpush1.bf16.msra.mxu0 0
  %445 = vmatprep.subr.bf16.mxu0 0
  %446 = vmatpush1.bf16.msra.mxu0 0
  %447 = vmatprep.subr.bf16.mxu0 0
  %448 = vmatpush1.bf16.msra.mxu0 0
  %449 = vmatprep.subr.bf16.mxu0 0
  %450 = vmatpush1.bf16.msra.mxu0 0
  %451 = vmatprep.subr.bf16.mxu0 0
  %452 = vmatpush1.bf16.msra.mxu0 0
  %453 = vmatprep.subr.bf16.mxu0 0
  %454 = vmatpush1.bf16.msra.mxu0 0
  %455 = vmatprep.subr.bf16.mxu0 0
  %456 = vmatpush1.bf16.msra.mxu0 0
  %457 = vmatprep.subr.bf16.mxu0 0
  %458 = vmatpush1.bf16.msra.mxu0 0
  %459 = vmatprep.subr.bf16.mxu0 0
  %460 = vmatpush1.bf16.msra.mxu0 0
  %461 = vmatprep.subr.bf16.mxu0 0
  %462 = vmatpush1.bf16.msra.mxu0 0
  %463 = vmatprep.mubr.bf16.mxu0 0
  %464 = vmatmul.mubr.bf16.gmra.mrb[0].mxu0 %v335
  %v465 = vpop.f32.mrb[0].mxu0
  %v466 = vadd.f32 0.0, %v465
  %v467 = vpop.f32.mrb[0].mxu0
  %v468 = vadd.f32 0.0, %v467
  %v469 = vpop.f32.mrb[0].mxu0
  %v470 = vadd.f32 0.0, %v469
  %v471 = vpop.f32.mrb[0].mxu0
  %v472 = vadd.f32 0.0, %v471
  %473 = vmatprep.mubr.bf16.mxu0 0
  %474 = vmatmul.mubr.bf16.gmra.mrb[0].mxu0 %v338
  %v475 = vpop.f32.mrb[0].mxu0
  %v476 = vadd.f32 0.0, %v475
  %v477 = vpop.f32.mrb[0].mxu0
  %v478 = vadd.f32 0.0, %v477
  %v479 = vpop.f32.mrb[0].mxu0
  %v480 = vadd.f32 0.0, %v479
  %v481 = vpop.f32.mrb[0].mxu0
  %v482 = vadd.f32 0.0, %v481
  %483 = vmatprep.mubr.bf16.mxu0 0
  %484 = vmatmul.mubr.bf16.gmra.mrb[0].mxu0 %v341
  %v485 = vpop.f32.mrb[0].mxu0
  %v486 = vadd.f32 0.0, %v485
  %v487 = vpop.f32.mrb[0].mxu0
  %v488 = vadd.f32 0.0, %v487
  %v489 = vpop.f32.mrb[0].mxu0
  %v490 = vadd.f32 0.0, %v489
  %v491 = vpop.f32.mrb[0].mxu0
  %v492 = vadd.f32 0.0, %v491
  %493 = vmatprep.mubr.bf16.mxu0 0
  %494 = vmatmul.mubr.bf16.gmra.mrb[0].mxu0 %v344
  %v495 = vpop.f32.mrb[0].mxu0
  %v496 = vadd.f32 0.0, %v495
  %v497 = vpop.f32.mrb[0].mxu0
  %v498 = vadd.f32 0.0, %v497
  %v499 = vpop.f32.mrb[0].mxu0
  %v500 = vadd.f32 0.0, %v499
  %v501 = vpop.f32.mrb[0].mxu0
  %v502 = vadd.f32 0.0, %v501
  %503 = vmatprep.mubr.bf16.mxu0 0
  %504 = vmatmul.mubr.bf16.gmra.mrb[0].mxu0 %v347
  %v505 = vpop.f32.mrb[0].mxu0
  %v506 = vadd.f32 0.0, %v505
  %v507 = vpop.f32.mrb[0].mxu0
  %v508 = vadd.f32 0.0, %v507
  %v509 = vpop.f32.mrb[0].mxu0
  %v510 = vadd.f32 0.0, %v509
  %v511 = vpop.f32.mrb[0].mxu0
  %v512 = vadd.f32 0.0, %v511
  %513 = vmatprep.mubr.bf16.mxu0 0
  %514 = vmatmul.mubr.bf16.gmra.mrb[0].mxu0 %v350
  %v515 = vpop.f32.mrb[0].mxu0
  %v516 = vadd.f32 0.0, %v515
  %v517 = vpop.f32.mrb[0].mxu0
  %v518 = vadd.f32 0.0, %v517
  %v519 = vpop.f32.mrb[0].mxu0
  %v520 = vadd.f32 0.0, %v519
  %v521 = vpop.f32.mrb[0].mxu0
  %v522 = vadd.f32 0.0, %v521
  %523 = vmatprep.mubr.bf16.mxu0 0
  %524 = vmatmul.mubr.bf16.gmra.mrb[0].mxu0 %v353
  %v525 = vpop.f32.mrb[0].mxu0
  %v526 = vadd.f32 0.0, %v525
  %v527 = vpop.f32.mrb[0].mxu0
  %v528 = vadd.f32 0.0, %v527
  %v529 = vpop.f32.mrb[0].mxu0
  %v530 = vadd.f32 0.0, %v529
  %v531 = vpop.f32.mrb[0].mxu0
  %v532 = vadd.f32 0.0, %v531
  %533 = vmatprep.mubr.bf16.mxu0 0
  %534 = vmatmul.mubr.bf16.gmra.mrb[0].mxu0 %v356
  %v535 = vpop.f32.mrb[0].mxu0
  %v536 = vadd.f32 0.0, %v535
  %v537 = vpop.f32.mrb[0].mxu0
  %v538 = vadd.f32 0.0, %v537
  %v539 = vpop.f32.mrb[0].mxu0
  %v540 = vadd.f32 0.0, %v539
  %v541 = vpop.f32.mrb[0].mxu0
  %v542 = vadd.f32 0.0, %v541
  %543 = vmatprep.mubr.bf16.mxu0 0
  %544 = vmatmul.mubr.bf16.gmra.mrb[0].mxu0 %v359
  %v545 = vpop.f32.mrb[0].mxu0
  %v546 = vadd.f32 0.0, %v545
  %v547 = vpop.f32.mrb[0].mxu0
  %v548 = vadd.f32 0.0, %v547
  %v549 = vpop.f32.mrb[0].mxu0
  %v550 = vadd.f32 0.0, %v549
  %v551 = vpop.f32.mrb[0].mxu0
  %v552 = vadd.f32 0.0, %v551
  %553 = vmatprep.mubr.bf16.mxu0 0
  %554 = vmatmul.mubr.bf16.gmra.mrb[0].mxu0 %v362
  %v555 = vpop.f32.mrb[0].mxu0
  %v556 = vadd.f32 0.0, %v555
  %v557 = vpop.f32.mrb[0].mxu0
  %v558 = vadd.f32 0.0, %v557
  %v559 = vpop.f32.mrb[0].mxu0
  %v560 = vadd.f32 0.0, %v559
  %v561 = vpop.f32.mrb[0].mxu0
  %v562 = vadd.f32 0.0, %v561
  %563 = vmatprep.mubr.bf16.mxu0 0
  %564 = vmatmul.mubr.bf16.gmra.mrb[0].mxu0 %v365
  %v565 = vpop.f32.mrb[0].mxu0
  %v566 = vadd.f32 0.0, %v565
  %v567 = vpop.f32.mrb[0].mxu0
  %v568 = vadd.f32 0.0, %v567
  %v569 = vpop.f32.mrb[0].mxu0
  %v570 = vadd.f32 0.0, %v569
  %v571 = vpop.f32.mrb[0].mxu0
  %v572 = vadd.f32 0.0, %v571
  %573 = vmatprep.mubr.bf16.mxu0 0
  %574 = vmatmul.mubr.bf16.gmra.mrb[0].mxu0 %v368
  %v575 = vpop.f32.mrb[0].mxu0
  %v576 = vadd.f32 0.0, %v575
  %v577 = vpop.f32.mrb[0].mxu0
  %v578 = vadd.f32 0.0, %v577
  %v579 = vpop.f32.mrb[0].mxu0
  %v580 = vadd.f32 0.0, %v579
  %v581 = vpop.f32.mrb[0].mxu0
  %v582 = vadd.f32 0.0, %v581
  %583 = vmatprep.mubr.bf16.mxu0 0
  %584 = vmatmul.mubr.bf16.gmra.mrb[0].mxu0 %v371
  %v585 = vpop.f32.mrb[0].mxu0
  %v586 = vadd.f32 0.0, %v585
  %v587 = vpop.f32.mrb[0].mxu0
  %v588 = vadd.f32 0.0, %v587
  %v589 = vpop.f32.mrb[0].mxu0
  %v590 = vadd.f32 0.0, %v589
  %v591 = vpop.f32.mrb[0].mxu0
  %v592 = vadd.f32 0.0, %v591
  %593 = vmatprep.mubr.bf16.mxu0 0
  %594 = vmatmul.mubr.bf16.gmra.mrb[0].mxu0 %v374
  %v595 = vpop.f32.mrb[0].mxu0
  %v596 = vadd.f32 0.0, %v595
  %v597 = vpop.f32.mrb[0].mxu0
  %v598 = vadd.f32 0.0, %v597
  %v599 = vpop.f32.mrb[0].mxu0
  %v600 = vadd.f32 0.0, %v599
  %v601 = vpop.f32.mrb[0].mxu0
  %v602 = vadd.f32 0.0, %v601
  %603 = vmatprep.mubr.bf16.mxu0 0
  %604 = vmatmul.mubr.bf16.gmra.mrb[0].mxu0 %v377
  %v605 = vpop.f32.mrb[0].mxu0
  %v606 = vadd.f32 0.0, %v605
  %v607 = vpop.f32.mrb[0].mxu0
  %v608 = vadd.f32 0.0, %v607
  %v609 = vpop.f32.mrb[0].mxu0
  %v610 = vadd.f32 0.0, %v609
  %v611 = vpop.f32.mrb[0].mxu0
  %v612 = vadd.f32 0.0, %v611
  %613 = vmatprep.mubr.bf16.mxu0 0
  %614 = vmatmul.mubr.bf16.gmra.mrb[0].mxu0 %v380
  %v615 = vpop.f32.mrb[0].mxu0
  %v616 = vadd.f32 0.0, %v615
  %v617 = vpop.f32.mrb[0].mxu0
  %v618 = vadd.f32 0.0, %v617
  %v619 = vpop.f32.mrb[0].mxu0
  %v620 = vadd.f32 0.0, %v619
  %v621 = vpop.f32.mrb[0].mxu0
  %v622 = vadd.f32 0.0, %v621
  %623 = vmatprep.mubr.bf16.mxu0 0
  %624 = vmatmul.mubr.bf16.gmra.mrb[0].mxu0 %v383
  %v625 = vpop.f32.mrb[0].mxu0
  %v626 = vadd.f32 0.0, %v625
  %v627 = vpop.f32.mrb[0].mxu0
  %v628 = vadd.f32 0.0, %v627
  %v629 = vpop.f32.mrb[0].mxu0
  %v630 = vadd.f32 0.0, %v629
  %v631 = vpop.f32.mrb[0].mxu0
  %v632 = vadd.f32 0.0, %v631
  %633 = vmatprep.mubr.bf16.mxu0 0
  %634 = vmatmul.mubr.bf16.gmra.mrb[0].mxu0 %v386
  %v635 = vpop.f32.mrb[0].mxu0
  %v636 = vadd.f32 0.0, %v635
  %v637 = vpop.f32.mrb[0].mxu0
  %v638 = vadd.f32 0.0, %v637
  %v639 = vpop.f32.mrb[0].mxu0
  %v640 = vadd.f32 0.0, %v639
  %v641 = vpop.f32.mrb[0].mxu0
  %v642 = vadd.f32 0.0, %v641
  %643 = vmatprep.mubr.bf16.mxu0 0
  %644 = vmatmul.mubr.bf16.gmra.mrb[0].mxu0 %v389
  %v645 = vpop.f32.mrb[0].mxu0
  %v646 = vadd.f32 0.0, %v645
  %v647 = vpop.f32.mrb[0].mxu0
  %v648 = vadd.f32 0.0, %v647
  %v649 = vpop.f32.mrb[0].mxu0
  %v650 = vadd.f32 0.0, %v649
  %v651 = vpop.f32.mrb[0].mxu0
  %v652 = vadd.f32 0.0, %v651
  %653 = vmatprep.mubr.bf16.mxu0 0
  %654 = vmatmul.mubr.bf16.gmra.mrb[0].mxu0 %v392
  %v655 = vpop.f32.mrb[0].mxu0
  %v656 = vadd.f32 0.0, %v655
  %v657 = vpop.f32.mrb[0].mxu0
  %v658 = vadd.f32 0.0, %v657
  %v659 = vpop.f32.mrb[0].mxu0
  %v660 = vadd.f32 0.0, %v659
  %v661 = vpop.f32.mrb[0].mxu0
  %v662 = vadd.f32 0.0, %v661
  %663 = vmatprep.mubr.bf16.mxu0 0
  %664 = vmatmul.mubr.bf16.gmra.mrb[0].mxu0 %v395
  %v665 = vpop.f32.mrb[0].mxu0
  %v666 = vadd.f32 0.0, %v665
  %v667 = vpop.f32.mrb[0].mxu0
  %v668 = vadd.f32 0.0, %v667
  %v669 = vpop.f32.mrb[0].mxu0
  %v670 = vadd.f32 0.0, %v669
  %v671 = vpop.f32.mrb[0].mxu0
  %v672 = vadd.f32 0.0, %v671
  %673 = vmatprep.mubr.bf16.mxu0 0
  %674 = vmatmul.mubr.bf16.gmra.mrb[0].mxu0 %v398
  %v675 = vpop.f32.mrb[0].mxu0
  %v676 = vadd.f32 0.0, %v675
  %v677 = vpop.f32.mrb[0].mxu0
  %v678 = vadd.f32 0.0, %v677
  %v679 = vpop.f32.mrb[0].mxu0
  %v680 = vadd.f32 0.0, %v679
  %v681 = vpop.f32.mrb[0].mxu0
  %v682 = vadd.f32 0.0, %v681
  %683 = vmatprep.mubr.bf16.mxu0 0
  %684 = vmatmul.mubr.bf16.gmra.mrb[0].mxu0 %v401
  %v685 = vpop.f32.mrb[0].mxu0
  %v686 = vadd.f32 0.0, %v685
  %v687 = vpop.f32.mrb[0].mxu0
  %v688 = vadd.f32 0.0, %v687
  %v689 = vpop.f32.mrb[0].mxu0
  %v690 = vadd.f32 0.0, %v689
  %v691 = vpop.f32.mrb[0].mxu0
  %v692 = vadd.f32 0.0, %v691
  %693 = vmatprep.mubr.bf16.mxu0 0
  %694 = vmatmul.mubr.bf16.gmra.mrb[0].mxu0 %v404
  %v695 = vpop.f32.mrb[0].mxu0
  %v696 = vadd.f32 0.0, %v695
  %v697 = vpop.f32.mrb[0].mxu0
  %v698 = vadd.f32 0.0, %v697
  %v699 = vpop.f32.mrb[0].mxu0
  %v700 = vadd.f32 0.0, %v699
  %v701 = vpop.f32.mrb[0].mxu0
  %v702 = vadd.f32 0.0, %v701
  %703 = vmatprep.mubr.bf16.mxu0 0
  %704 = vmatmul.mubr.bf16.gmra.mrb[0].mxu0 %v407
  %v705 = vpop.f32.mrb[0].mxu0
  %v706 = vadd.f32 0.0, %v705
  %v707 = vpop.f32.mrb[0].mxu0
  %v708 = vadd.f32 0.0, %v707
  %v709 = vpop.f32.mrb[0].mxu0
  %v710 = vadd.f32 0.0, %v709
  %v711 = vpop.f32.mrb[0].mxu0
  %v712 = vadd.f32 0.0, %v711
  %713 = vmatprep.mubr.bf16.mxu0 0
  %714 = vmatmul.mubr.bf16.gmra.mrb[0].mxu0 %v410
  %v715 = vpop.f32.mrb[0].mxu0
  %v716 = vadd.f32 0.0, %v715
  %v717 = vpop.f32.mrb[0].mxu0
  %v718 = vadd.f32 0.0, %v717
  %v719 = vpop.f32.mrb[0].mxu0
  %v720 = vadd.f32 0.0, %v719
  %v721 = vpop.f32.mrb[0].mxu0
  %v722 = vadd.f32 0.0, %v721
  %723 = vmatprep.mubr.bf16.mxu0 0
  %724 = vmatmul.mubr.bf16.gmra.mrb[0].mxu0 %v413
  %v725 = vpop.f32.mrb[0].mxu0
  %v726 = vadd.f32 0.0, %v725
  %v727 = vpop.f32.mrb[0].mxu0
  %v728 = vadd.f32 0.0, %v727
  %v729 = vpop.f32.mrb[0].mxu0
  %v730 = vadd.f32 0.0, %v729
  %v731 = vpop.f32.mrb[0].mxu0
  %v732 = vadd.f32 0.0, %v731
  %733 = vmatprep.mubr.bf16.mxu0 0
  %734 = vmatmul.mubr.bf16.gmra.mrb[0].mxu0 %v416
  %v735 = vpop.f32.mrb[0].mxu0
  %v736 = vadd.f32 0.0, %v735
  %v737 = vpop.f32.mrb[0].mxu0
  %v738 = vadd.f32 0.0, %v737
  %v739 = vpop.f32.mrb[0].mxu0
  %v740 = vadd.f32 0.0, %v739
  %v741 = vpop.f32.mrb[0].mxu0
  %v742 = vadd.f32 0.0, %v741
  %743 = vmatprep.mubr.bf16.mxu0 0
  %744 = vmatmul.mubr.bf16.gmra.mrb[0].mxu0 %v419
  %v745 = vpop.f32.mrb[0].mxu0
  %v746 = vadd.f32 0.0, %v745
  %v747 = vpop.f32.mrb[0].mxu0
  %v748 = vadd.f32 0.0, %v747
  %v749 = vpop.f32.mrb[0].mxu0
  %v750 = vadd.f32 0.0, %v749
  %v751 = vpop.f32.mrb[0].mxu0
  %v752 = vadd.f32 0.0, %v751
  %753 = vmatprep.mubr.bf16.mxu0 0
  %754 = vmatmul.mubr.bf16.gmra.mrb[0].mxu0 %v422
  %v755 = vpop.f32.mrb[0].mxu0
  %v756 = vadd.f32 0.0, %v755
  %v757 = vpop.f32.mrb[0].mxu0
  %v758 = vadd.f32 0.0, %v757
  %v759 = vpop.f32.mrb[0].mxu0
  %v760 = vadd.f32 0.0, %v759
  %v761 = vpop.f32.mrb[0].mxu0
  %v762 = vadd.f32 0.0, %v761
  %763 = vdwg.mxu0
  %v824 = vunpack.c.l.b16 %v36
  %v825 = vunpack.c.l.b16 %v37
  %v826 = vunpack.c.l.b16 %v38
  %v827 = vunpack.c.l.b16 %v39
  %v828 = vunpack.c.l.b16 %v40
  %v829 = vunpack.c.l.b16 %v41
  %v830 = vunpack.c.l.b16 %v42
  %v831 = vunpack.c.l.b16 %v43
  %v832 = vunpack.c.l.b16 %v44
  %v833 = vunpack.c.l.b16 %v45
  %v834 = vunpack.c.l.b16 %v46
  %v835 = vunpack.c.l.b16 %v47
  %v836 = vunpack.c.l.b16 %v48
  %v837 = vunpack.c.l.b16 %v49
  %v838 = vunpack.c.l.b16 %v50
  %v839 = vunpack.c.l.b16 %v51
  %v840 = vunpack.c.l.b16 %v52
  %v841 = vunpack.c.l.b16 %v53
  %v842 = vunpack.c.l.b16 %v54
  %v843 = vunpack.c.l.b16 %v55
  %v844 = vunpack.c.l.b16 %v56
  %v845 = vunpack.c.l.b16 %v57
  %v846 = vunpack.c.l.b16 %v58
  %v847 = vunpack.c.l.b16 %v59
  %v848 = vunpack.c.l.b16 %v60
  %v849 = vunpack.c.l.b16 %v61
  %v850 = vunpack.c.l.b16 %v62
  %v851 = vunpack.c.l.b16 %v63
  %v852 = vunpack.c.l.b16 %v64
  %v853 = vunpack.c.l.b16 %v65
  %v854 = vunpack.c.l.b16 %v66
  %v855 = vunpack.c.l.b16 %v67
  %v856 = vunpack.c.l.b16 %v68
  %v857 = vunpack.c.l.b16 %v69
  %v858 = vunpack.c.l.b16 %v70
  %v859 = vunpack.c.l.b16 %v71
  %v860 = vunpack.c.l.b16 %v72
  %v861 = vunpack.c.l.b16 %v73
  %v862 = vunpack.c.l.b16 %v74
  %v863 = vunpack.c.l.b16 %v75
  %v864 = vunpack.c.l.b16 %v76
  %v865 = vunpack.c.l.b16 %v77
  %v866 = vunpack.c.l.b16 %v78
  %v867 = vunpack.c.l.b16 %v79
  %v868 = vunpack.c.l.b16 %v80
  %v869 = vunpack.c.l.b16 %v81
  %v870 = vunpack.c.l.b16 %v82
  %v871 = vunpack.c.l.b16 %v83
  %v872 = vunpack.c.l.b16 %v84
  %v873 = vunpack.c.l.b16 %v85
  %v874 = vunpack.c.l.b16 %v86
  %v875 = vunpack.c.l.b16 %v87
  %v876 = vunpack.c.l.b16 %v88
  %v877 = vunpack.c.l.b16 %v89
  %v878 = vunpack.c.l.b16 %v90
  %v879 = vunpack.c.l.b16 %v91
  %v880 = vunpack.c.l.b16 %v92
  %v881 = vunpack.c.l.b16 %v93
  %v882 = vunpack.c.l.b16 %v94
  %v883 = vunpack.c.l.b16 %v95
  %v884 = vpack.c.b16 %v825, %v824
  %v885 = vpack.c.b16 %v827, %v826
  %v886 = vpack.c.b16 %v829, %v828
  %v887 = vpack.c.b16 %v831, %v830
  %v888 = vpack.c.b16 %v833, %v832
  %v889 = vpack.c.b16 %v835, %v834
  %v890 = vpack.c.b16 %v837, %v836
  %v891 = vpack.c.b16 %v839, %v838
  %v892 = vpack.c.b16 %v841, %v840
  %v893 = vpack.c.b16 %v843, %v842
  %v894 = vpack.c.b16 %v845, %v844
  %v895 = vpack.c.b16 %v847, %v846
  %v896 = vpack.c.b16 %v849, %v848
  %v897 = vpack.c.b16 %v851, %v850
  %v898 = vpack.c.b16 %v853, %v852
  %v899 = vpack.c.b16 %v855, %v854
  %v900 = vpack.c.b16 %v857, %v856
  %v901 = vpack.c.b16 %v859, %v858
  %v902 = vpack.c.b16 %v861, %v860
  %v903 = vpack.c.b16 %v863, %v862
  %v904 = vpack.c.b16 %v865, %v864
  %v905 = vpack.c.b16 %v867, %v866
  %v906 = vpack.c.b16 %v869, %v868
  %v907 = vpack.c.b16 %v871, %v870
  %v908 = vpack.c.b16 %v873, %v872
  %v909 = vpack.c.b16 %v875, %v874
  %v910 = vpack.c.b16 %v877, %v876
  %v911 = vpack.c.b16 %v879, %v878
  %v912 = vpack.c.b16 %v881, %v880
  %v913 = vpack.c.b16 %v883, %v882
  %v918 = vunpack.c.l.b16 %v96
  %v919 = vunpack.c.h.b16 %v96
  %v920 = vunpack.c.l.b16 %v97
  %v921 = vunpack.c.h.b16 %v97
  %v922 = vunpack.c.l.b16 %v98
  %v923 = vunpack.c.h.b16 %v98
  %v924 = vunpack.c.l.b16 %v99
  %v925 = vunpack.c.h.b16 %v99
  %v926 = vpack.c.b16 %v920, %v918
  %v927 = vpack.c.b16 %v921, %v919
  %v928 = vpack.c.b16 %v924, %v922
  %v929 = vpack.c.b16 %v925, %v923
  %v933 = vsel %vm333, %v884, 0
  %v936 = vsel %vm333, %v885, 0
  %v939 = vsel %vm333, %v886, 0
  %v942 = vsel %vm333, %v887, 0
  %v945 = vsel %vm333, %v888, 0
  %v948 = vsel %vm333, %v889, 0
  %v951 = vsel %vm333, %v890, 0
  %v954 = vsel %vm333, %v891, 0
  %v957 = vsel %vm333, %v892, 0
  %v960 = vsel %vm333, %v893, 0
  %v963 = vsel %vm333, %v894, 0
  %v966 = vsel %vm333, %v895, 0
  %v969 = vsel %vm333, %v896, 0
  %v972 = vsel %vm333, %v897, 0
  %v975 = vsel %vm333, %v898, 0
  %v978 = vsel %vm333, %v899, 0
  %v981 = vsel %vm333, %v900, 0
  %v984 = vsel %vm333, %v901, 0
  %v987 = vsel %vm333, %v902, 0
  %v990 = vsel %vm333, %v903, 0
  %v993 = vsel %vm333, %v904, 0
  %v996 = vsel %vm333, %v905, 0
  %v999 = vsel %vm333, %v906, 0
  %v1002 = vsel %vm333, %v907, 0
  %v1005 = vsel %vm333, %v908, 0
  %v1008 = vsel %vm333, %v909, 0
  %v1011 = vsel %vm333, %v910, 0
  %v1014 = vsel %vm333, %v911, 0
  %v1017 = vsel %vm333, %v912, 0
  %v1020 = vsel %vm333, %v913, 0
  %v1023 = vsel %vm424, %v928, 0
  %v1026 = vsel %vm424, %v929, 0
  %1028 = vmatprep.subr.bf16.mxu0 %v927
  %1029 = vmatpush1.bf16.msra.mxu0 %v926
  %1030 = vmatprep.subr.bf16.mxu0 %v1026
  %1031 = vmatpush1.bf16.msra.mxu0 %v1023
  %1032 = vmatprep.subr.bf16.mxu0 0
  %1033 = vmatpush1.bf16.msra.mxu0 0
  %1034 = vmatprep.subr.bf16.mxu0 0
  %1035 = vmatpush1.bf16.msra.mxu0 0
  %1036 = vmatprep.subr.bf16.mxu0 0
  %1037 = vmatpush1.bf16.msra.mxu0 0
  %1038 = vmatprep.subr.bf16.mxu0 0
  %1039 = vmatpush1.bf16.msra.mxu0 0
  %1040 = vmatprep.subr.bf16.mxu0 0
  %1041 = vmatpush1.bf16.msra.mxu0 0
  %1042 = vmatprep.subr.bf16.mxu0 0
  %1043 = vmatpush1.bf16.msra.mxu0 0
  %1044 = vmatprep.subr.bf16.mxu0 0
  %1045 = vmatpush1.bf16.msra.mxu0 0
  %1046 = vmatprep.subr.bf16.mxu0 0
  %1047 = vmatpush1.bf16.msra.mxu0 0
  %1048 = vmatprep.subr.bf16.mxu0 0
  %1049 = vmatpush1.bf16.msra.mxu0 0
  %1050 = vmatprep.subr.bf16.mxu0 0
  %1051 = vmatpush1.bf16.msra.mxu0 0
  %1052 = vmatprep.subr.bf16.mxu0 0
  %1053 = vmatpush1.bf16.msra.mxu0 0
  %1054 = vmatprep.subr.bf16.mxu0 0
  %1055 = vmatpush1.bf16.msra.mxu0 0
  %1056 = vmatprep.subr.bf16.mxu0 0
  %1057 = vmatpush1.bf16.msra.mxu0 0
  %1058 = vmatprep.subr.bf16.mxu0 0
  %1059 = vmatpush1.bf16.msra.mxu0 0
  %1060 = vmatprep.mubr.bf16.mxu0 0
  %1061 = vmatmul.mubr.bf16.gmra.mrb[0].mxu0 %v933
  %v1062 = vpop.f32.mrb[0].mxu0
  %v1063 = vadd.f32 %v466, %v1062
  %v1064 = vpop.f32.mrb[0].mxu0
  %v1065 = vadd.f32 %v468, %v1064
  %v1066 = vpop.f32.mrb[0].mxu0
  %v1067 = vadd.f32 %v470, %v1066
  %v1068 = vpop.f32.mrb[0].mxu0
  %v1069 = vadd.f32 %v472, %v1068
  %1070 = vmatprep.mubr.bf16.mxu0 0
  %1071 = vmatmul.mubr.bf16.gmra.mrb[0].mxu0 %v936
  %v1072 = vpop.f32.mrb[0].mxu0
  %v1073 = vadd.f32 %v476, %v1072
  %v1074 = vpop.f32.mrb[0].mxu0
  %v1075 = vadd.f32 %v478, %v1074
  %v1076 = vpop.f32.mrb[0].mxu0
  %v1077 = vadd.f32 %v480, %v1076
  %v1078 = vpop.f32.mrb[0].mxu0
  %v1079 = vadd.f32 %v482, %v1078
  %1080 = vmatprep.mubr.bf16.mxu0 0
  %1081 = vmatmul.mubr.bf16.gmra.mrb[0].mxu0 %v939
  %v1082 = vpop.f32.mrb[0].mxu0
  %v1083 = vadd.f32 %v486, %v1082
  %v1084 = vpop.f32.mrb[0].mxu0
  %v1085 = vadd.f32 %v488, %v1084
  %v1086 = vpop.f32.mrb[0].mxu0
  %v1087 = vadd.f32 %v490, %v1086
  %v1088 = vpop.f32.mrb[0].mxu0
  %v1089 = vadd.f32 %v492, %v1088
  %1090 = vmatprep.mubr.bf16.mxu0 0
  %1091 = vmatmul.mubr.bf16.gmra.mrb[0].mxu0 %v942
  %v1092 = vpop.f32.mrb[0].mxu0
  %v1093 = vadd.f32 %v496, %v1092
  %v1094 = vpop.f32.mrb[0].mxu0
  %v1095 = vadd.f32 %v498, %v1094
  %v1096 = vpop.f32.mrb[0].mxu0
  %v1097 = vadd.f32 %v500, %v1096
  %v1098 = vpop.f32.mrb[0].mxu0
  %v1099 = vadd.f32 %v502, %v1098
  %1100 = vmatprep.mubr.bf16.mxu0 0
  %1101 = vmatmul.mubr.bf16.gmra.mrb[0].mxu0 %v945
  %v1102 = vpop.f32.mrb[0].mxu0
  %v1103 = vadd.f32 %v506, %v1102
  %v1104 = vpop.f32.mrb[0].mxu0
  %v1105 = vadd.f32 %v508, %v1104
  %v1106 = vpop.f32.mrb[0].mxu0
  %v1107 = vadd.f32 %v510, %v1106
  %v1108 = vpop.f32.mrb[0].mxu0
  %v1109 = vadd.f32 %v512, %v1108
  %1110 = vmatprep.mubr.bf16.mxu0 0
  %1111 = vmatmul.mubr.bf16.gmra.mrb[0].mxu0 %v948
  %v1112 = vpop.f32.mrb[0].mxu0
  %v1113 = vadd.f32 %v516, %v1112
  %v1114 = vpop.f32.mrb[0].mxu0
  %v1115 = vadd.f32 %v518, %v1114
  %v1116 = vpop.f32.mrb[0].mxu0
  %v1117 = vadd.f32 %v520, %v1116
  %v1118 = vpop.f32.mrb[0].mxu0
  %v1119 = vadd.f32 %v522, %v1118
  %1120 = vmatprep.mubr.bf16.mxu0 0
  %1121 = vmatmul.mubr.bf16.gmra.mrb[0].mxu0 %v951
  %v1122 = vpop.f32.mrb[0].mxu0
  %v1123 = vadd.f32 %v526, %v1122
  %v1124 = vpop.f32.mrb[0].mxu0
  %v1125 = vadd.f32 %v528, %v1124
  %v1126 = vpop.f32.mrb[0].mxu0
  %v1127 = vadd.f32 %v530, %v1126
  %v1128 = vpop.f32.mrb[0].mxu0
  %v1129 = vadd.f32 %v532, %v1128
  %1130 = vmatprep.mubr.bf16.mxu0 0
  %1131 = vmatmul.mubr.bf16.gmra.mrb[0].mxu0 %v954
  %v1132 = vpop.f32.mrb[0].mxu0
  %v1133 = vadd.f32 %v536, %v1132
  %v1134 = vpop.f32.mrb[0].mxu0
  %v1135 = vadd.f32 %v538, %v1134
  %v1136 = vpop.f32.mrb[0].mxu0
  %v1137 = vadd.f32 %v540, %v1136
  %v1138 = vpop.f32.mrb[0].mxu0
  %v1139 = vadd.f32 %v542, %v1138
  %1140 = vmatprep.mubr.bf16.mxu0 0
  %1141 = vmatmul.mubr.bf16.gmra.mrb[0].mxu0 %v957
  %v1142 = vpop.f32.mrb[0].mxu0
  %v1143 = vadd.f32 %v546, %v1142
  %v1144 = vpop.f32.mrb[0].mxu0
  %v1145 = vadd.f32 %v548, %v1144
  %v1146 = vpop.f32.mrb[0].mxu0
  %v1147 = vadd.f32 %v550, %v1146
  %v1148 = vpop.f32.mrb[0].mxu0
  %v1149 = vadd.f32 %v552, %v1148
  %1150 = vmatprep.mubr.bf16.mxu0 0
  %1151 = vmatmul.mubr.bf16.gmra.mrb[0].mxu0 %v960
  %v1152 = vpop.f32.mrb[0].mxu0
  %v1153 = vadd.f32 %v556, %v1152
  %v1154 = vpop.f32.mrb[0].mxu0
  %v1155 = vadd.f32 %v558, %v1154
  %v1156 = vpop.f32.mrb[0].mxu0
  %v1157 = vadd.f32 %v560, %v1156
  %v1158 = vpop.f32.mrb[0].mxu0
  %v1159 = vadd.f32 %v562, %v1158
  %1160 = vmatprep.mubr.bf16.mxu0 0
  %1161 = vmatmul.mubr.bf16.gmra.mrb[0].mxu0 %v963
  %v1162 = vpop.f32.mrb[0].mxu0
  %v1163 = vadd.f32 %v566, %v1162
  %v1164 = vpop.f32.mrb[0].mxu0
  %v1165 = vadd.f32 %v568, %v1164
  %v1166 = vpop.f32.mrb[0].mxu0
  %v1167 = vadd.f32 %v570, %v1166
  %v1168 = vpop.f32.mrb[0].mxu0
  %v1169 = vadd.f32 %v572, %v1168
  %1170 = vmatprep.mubr.bf16.mxu0 0
  %1171 = vmatmul.mubr.bf16.gmra.mrb[0].mxu0 %v966
  %v1172 = vpop.f32.mrb[0].mxu0
  %v1173 = vadd.f32 %v576, %v1172
  %v1174 = vpop.f32.mrb[0].mxu0
  %v1175 = vadd.f32 %v578, %v1174
  %v1176 = vpop.f32.mrb[0].mxu0
  %v1177 = vadd.f32 %v580, %v1176
  %v1178 = vpop.f32.mrb[0].mxu0
  %v1179 = vadd.f32 %v582, %v1178
  %1180 = vmatprep.mubr.bf16.mxu0 0
  %1181 = vmatmul.mubr.bf16.gmra.mrb[0].mxu0 %v969
  %v1182 = vpop.f32.mrb[0].mxu0
  %v1183 = vadd.f32 %v586, %v1182
  %v1184 = vpop.f32.mrb[0].mxu0
  %v1185 = vadd.f32 %v588, %v1184
  %v1186 = vpop.f32.mrb[0].mxu0
  %v1187 = vadd.f32 %v590, %v1186
  %v1188 = vpop.f32.mrb[0].mxu0
  %v1189 = vadd.f32 %v592, %v1188
  %1190 = vmatprep.mubr.bf16.mxu0 0
  %1191 = vmatmul.mubr.bf16.gmra.mrb[0].mxu0 %v972
  %v1192 = vpop.f32.mrb[0].mxu0
  %v1193 = vadd.f32 %v596, %v1192
  %v1194 = vpop.f32.mrb[0].mxu0
  %v1195 = vadd.f32 %v598, %v1194
  %v1196 = vpop.f32.mrb[0].mxu0
  %v1197 = vadd.f32 %v600, %v1196
  %v1198 = vpop.f32.mrb[0].mxu0
  %v1199 = vadd.f32 %v602, %v1198
  %1200 = vmatprep.mubr.bf16.mxu0 0
  %1201 = vmatmul.mubr.bf16.gmra.mrb[0].mxu0 %v975
  %v1202 = vpop.f32.mrb[0].mxu0
  %v1203 = vadd.f32 %v606, %v1202
  %v1204 = vpop.f32.mrb[0].mxu0
  %v1205 = vadd.f32 %v608, %v1204
  %v1206 = vpop.f32.mrb[0].mxu0
  %v1207 = vadd.f32 %v610, %v1206
  %v1208 = vpop.f32.mrb[0].mxu0
  %v1209 = vadd.f32 %v612, %v1208
  %1210 = vmatprep.mubr.bf16.mxu0 0
  %1211 = vmatmul.mubr.bf16.gmra.mrb[0].mxu0 %v978
  %v1212 = vpop.f32.mrb[0].mxu0
  %v1213 = vadd.f32 %v616, %v1212
  %v1214 = vpop.f32.mrb[0].mxu0
  %v1215 = vadd.f32 %v618, %v1214
  %v1216 = vpop.f32.mrb[0].mxu0
  %v1217 = vadd.f32 %v620, %v1216
  %v1218 = vpop.f32.mrb[0].mxu0
  %v1219 = vadd.f32 %v622, %v1218
  %1220 = vmatprep.mubr.bf16.mxu0 0
  %1221 = vmatmul.mubr.bf16.gmra.mrb[0].mxu0 %v981
  %v1222 = vpop.f32.mrb[0].mxu0
  %v1223 = vadd.f32 %v626, %v1222
  %v1224 = vpop.f32.mrb[0].mxu0
  %v1225 = vadd.f32 %v628, %v1224
  %v1226 = vpop.f32.mrb[0].mxu0
  %v1227 = vadd.f32 %v630, %v1226
  %v1228 = vpop.f32.mrb[0].mxu0
  %v1229 = vadd.f32 %v632, %v1228
  %1230 = vmatprep.mubr.bf16.mxu0 0
  %1231 = vmatmul.mubr.bf16.gmra.mrb[0].mxu0 %v984
  %v1232 = vpop.f32.mrb[0].mxu0
  %v1233 = vadd.f32 %v636, %v1232
  %v1234 = vpop.f32.mrb[0].mxu0
  %v1235 = vadd.f32 %v638, %v1234
  %v1236 = vpop.f32.mrb[0].mxu0
  %v1237 = vadd.f32 %v640, %v1236
  %v1238 = vpop.f32.mrb[0].mxu0
  %v1239 = vadd.f32 %v642, %v1238
  %1240 = vmatprep.mubr.bf16.mxu0 0
  %1241 = vmatmul.mubr.bf16.gmra.mrb[0].mxu0 %v987
  %v1242 = vpop.f32.mrb[0].mxu0
  %v1243 = vadd.f32 %v646, %v1242
  %v1244 = vpop.f32.mrb[0].mxu0
  %v1245 = vadd.f32 %v648, %v1244
  %v1246 = vpop.f32.mrb[0].mxu0
  %v1247 = vadd.f32 %v650, %v1246
  %v1248 = vpop.f32.mrb[0].mxu0
  %v1249 = vadd.f32 %v652, %v1248
  %1250 = vmatprep.mubr.bf16.mxu0 0
  %1251 = vmatmul.mubr.bf16.gmra.mrb[0].mxu0 %v990
  %v1252 = vpop.f32.mrb[0].mxu0
  %v1253 = vadd.f32 %v656, %v1252
  %v1254 = vpop.f32.mrb[0].mxu0
  %v1255 = vadd.f32 %v658, %v1254
  %v1256 = vpop.f32.mrb[0].mxu0
  %v1257 = vadd.f32 %v660, %v1256
  %v1258 = vpop.f32.mrb[0].mxu0
  %v1259 = vadd.f32 %v662, %v1258
  %1260 = vmatprep.mubr.bf16.mxu0 0
  %1261 = vmatmul.mubr.bf16.gmra.mrb[0].mxu0 %v993
  %v1262 = vpop.f32.mrb[0].mxu0
  %v1263 = vadd.f32 %v666, %v1262
  %v1264 = vpop.f32.mrb[0].mxu0
  %v1265 = vadd.f32 %v668, %v1264
  %v1266 = vpop.f32.mrb[0].mxu0
  %v1267 = vadd.f32 %v670, %v1266
  %v1268 = vpop.f32.mrb[0].mxu0
  %v1269 = vadd.f32 %v672, %v1268
  %1270 = vmatprep.mubr.bf16.mxu0 0
  %1271 = vmatmul.mubr.bf16.gmra.mrb[0].mxu0 %v996
  %v1272 = vpop.f32.mrb[0].mxu0
  %v1273 = vadd.f32 %v676, %v1272
  %v1274 = vpop.f32.mrb[0].mxu0
  %v1275 = vadd.f32 %v678, %v1274
  %v1276 = vpop.f32.mrb[0].mxu0
  %v1277 = vadd.f32 %v680, %v1276
  %v1278 = vpop.f32.mrb[0].mxu0
  %v1279 = vadd.f32 %v682, %v1278
  %1280 = vmatprep.mubr.bf16.mxu0 0
  %1281 = vmatmul.mubr.bf16.gmra.mrb[0].mxu0 %v999
  %v1282 = vpop.f32.mrb[0].mxu0
  %v1283 = vadd.f32 %v686, %v1282
  %v1284 = vpop.f32.mrb[0].mxu0
  %v1285 = vadd.f32 %v688, %v1284
  %v1286 = vpop.f32.mrb[0].mxu0
  %v1287 = vadd.f32 %v690, %v1286
  %v1288 = vpop.f32.mrb[0].mxu0
  %v1289 = vadd.f32 %v692, %v1288
  %1290 = vmatprep.mubr.bf16.mxu0 0
  %1291 = vmatmul.mubr.bf16.gmra.mrb[0].mxu0 %v1002
  %v1292 = vpop.f32.mrb[0].mxu0
  %v1293 = vadd.f32 %v696, %v1292
  %v1294 = vpop.f32.mrb[0].mxu0
  %v1295 = vadd.f32 %v698, %v1294
  %v1296 = vpop.f32.mrb[0].mxu0
  %v1297 = vadd.f32 %v700, %v1296
  %v1298 = vpop.f32.mrb[0].mxu0
  %v1299 = vadd.f32 %v702, %v1298
  %1300 = vmatprep.mubr.bf16.mxu0 0
  %1301 = vmatmul.mubr.bf16.gmra.mrb[0].mxu0 %v1005
  %v1302 = vpop.f32.mrb[0].mxu0
  %v1303 = vadd.f32 %v706, %v1302
  %v1304 = vpop.f32.mrb[0].mxu0
  %v1305 = vadd.f32 %v708, %v1304
  %v1306 = vpop.f32.mrb[0].mxu0
  %v1307 = vadd.f32 %v710, %v1306
  %v1308 = vpop.f32.mrb[0].mxu0
  %v1309 = vadd.f32 %v712, %v1308
  %1310 = vmatprep.mubr.bf16.mxu0 0
  %1311 = vmatmul.mubr.bf16.gmra.mrb[0].mxu0 %v1008
  %v1312 = vpop.f32.mrb[0].mxu0
  %v1313 = vadd.f32 %v716, %v1312
  %v1314 = vpop.f32.mrb[0].mxu0
  %v1315 = vadd.f32 %v718, %v1314
  %v1316 = vpop.f32.mrb[0].mxu0
  %v1317 = vadd.f32 %v720, %v1316
  %v1318 = vpop.f32.mrb[0].mxu0
  %v1319 = vadd.f32 %v722, %v1318
  %1320 = vmatprep.mubr.bf16.mxu0 0
  %1321 = vmatmul.mubr.bf16.gmra.mrb[0].mxu0 %v1011
  %v1322 = vpop.f32.mrb[0].mxu0
  %v1323 = vadd.f32 %v726, %v1322
  %v1324 = vpop.f32.mrb[0].mxu0
  %v1325 = vadd.f32 %v728, %v1324
  %v1326 = vpop.f32.mrb[0].mxu0
  %v1327 = vadd.f32 %v730, %v1326
  %v1328 = vpop.f32.mrb[0].mxu0
  %v1329 = vadd.f32 %v732, %v1328
  %1330 = vmatprep.mubr.bf16.mxu0 0
  %1331 = vmatmul.mubr.bf16.gmra.mrb[0].mxu0 %v1014
  %v1332 = vpop.f32.mrb[0].mxu0
  %v1333 = vadd.f32 %v736, %v1332
  %v1334 = vpop.f32.mrb[0].mxu0
  %v1335 = vadd.f32 %v738, %v1334
  %v1336 = vpop.f32.mrb[0].mxu0
  %v1337 = vadd.f32 %v740, %v1336
  %v1338 = vpop.f32.mrb[0].mxu0
  %v1339 = vadd.f32 %v742, %v1338
  %1340 = vmatprep.mubr.bf16.mxu0 0
  %1341 = vmatmul.mubr.bf16.gmra.mrb[0].mxu0 %v1017
  %v1342 = vpop.f32.mrb[0].mxu0
  %v1343 = vadd.f32 %v746, %v1342
  %v1344 = vpop.f32.mrb[0].mxu0
  %v1345 = vadd.f32 %v748, %v1344
  %v1346 = vpop.f32.mrb[0].mxu0
  %v1347 = vadd.f32 %v750, %v1346
  %v1348 = vpop.f32.mrb[0].mxu0
  %v1349 = vadd.f32 %v752, %v1348
  %1350 = vmatprep.mubr.bf16.mxu0 0
  %1351 = vmatmul.mubr.bf16.gmra.mrb[0].mxu0 %v1020
  %v1352 = vpop.f32.mrb[0].mxu0
  %v1353 = vadd.f32 %v756, %v1352
  %v1354 = vpop.f32.mrb[0].mxu0
  %v1355 = vadd.f32 %v758, %v1354
  %v1356 = vpop.f32.mrb[0].mxu0
  %v1357 = vadd.f32 %v760, %v1356
  %v1358 = vpop.f32.mrb[0].mxu0
  %v1359 = vadd.f32 %v762, %v1358
  %1360 = vdwg.mxu0
  %v1361 = vld [vmem:[%s0 + $0x10] sm:$0xf]
  %v1362 = vld [vmem:[%s0 + $0x14] sm:$0xf]
  %v1363 = vld [vmem:[%s0 + $0x18] sm:$0xf]
  %v1364 = vld [vmem:[%s0 + $0x1c] sm:$0xf]
  %v1365 = vld [vmem:[%s0 + $0x20] sm:$0xf]
  %v1366 = vld [vmem:[%s0 + $0x24] sm:$0xf]
  %v1367 = vld [vmem:[%s0 + $0x28] sm:$0xf]
  %v1368 = vld [vmem:[%s0 + $0x2c] sm:$0xf]
  %v1369 = vld [vmem:[%s0 + $0x30] sm:$0xf]
  %v1370 = vld [vmem:[%s0 + $0x34] sm:$0xf]
  %v1371 = vld [vmem:[%s0 + $0x38] sm:$0xf]
  %v1372 = vld [vmem:[%s0 + $0x3c] sm:$0xf]
  %v1373 = vld [vmem:[%s0 + $0x40] sm:$0xf]
  %v1374 = vld [vmem:[%s0 + $0x44] sm:$0xf]
  %v1375 = vld [vmem:[%s0 + $0x48] sm:$0xf]
  %v1376 = vld [vmem:[%s0 + $0x4c] sm:$0xf]
  %v1377 = vld [vmem:[%s0 + $0x50] sm:$0xf]
  %v1378 = vld [vmem:[%s0 + $0x54] sm:$0xf]
  %v1379 = vld [vmem:[%s0 + $0x58] sm:$0xf]
  %v1380 = vld [vmem:[%s0 + $0x5c] sm:$0xf]
  %v1381 = vld [vmem:[%s0 + $0x60] sm:$0xf]
  %v1382 = vld [vmem:[%s0 + $0x64] sm:$0xf]
  %v1383 = vld [vmem:[%s0 + $0x68] sm:$0xf]
  %v1384 = vld [vmem:[%s0 + $0x6c] sm:$0xf]
  %v1385 = vld [vmem:[%s0 + $0x70] sm:$0xf]
  %v1386 = vld [vmem:[%s0 + $0x74] sm:$0xf]
  %v1387 = vld [vmem:[%s0 + $0x78] sm:$0xf]
  %v1388 = vld [vmem:[%s0 + $0x7c] sm:$0xf]
  %v1389 = vld [vmem:[%s0 + $0x80] sm:$0xf]
  %v1390 = vld [vmem:[%s0 + $0x84] sm:$0xf]
  %v1391 = vld [vmem:[%s0 + $0x88] sm:$0xf]
  %v1392 = vld [vmem:[%s0 + $0x8c] sm:$0xf]
  %v1393 = vld [vmem:[%s0 + $0x90] sm:$0xf]
  %v1394 = vld [vmem:[%s0 + $0x94] sm:$0xf]
  %v1395 = vld [vmem:[%s0 + $0x98] sm:$0xf]
  %v1396 = vld [vmem:[%s0 + $0x9c] sm:$0xf]
  %v1397 = vld [vmem:[%s0 + $0xa0] sm:$0xf]
  %v1398 = vld [vmem:[%s0 + $0xa4] sm:$0xf]
  %v1399 = vld [vmem:[%s0 + $0xa8] sm:$0xf]
  %v1400 = vld [vmem:[%s0 + $0xac] sm:$0xf]
  %v1401 = vld [vmem:[%s0 + $0xb0] sm:$0xf]
  %v1402 = vld [vmem:[%s0 + $0xb4] sm:$0xf]
  %v1403 = vld [vmem:[%s0 + $0xb8] sm:$0xf]
  %v1404 = vld [vmem:[%s0 + $0xbc] sm:$0xf]
  %v1405 = vld [vmem:[%s0 + $0xc0] sm:$0xf]
  %v1406 = vld [vmem:[%s0 + $0xc4] sm:$0xf]
  %v1407 = vld [vmem:[%s0 + $0xc8] sm:$0xf]
  %v1408 = vld [vmem:[%s0 + $0xcc] sm:$0xf]
  %v1409 = vld [vmem:[%s0 + $0xd0] sm:$0xf]
  %v1410 = vld [vmem:[%s0 + $0xd4] sm:$0xf]
  %v1411 = vld [vmem:[%s0 + $0xd8] sm:$0xf]
  %v1412 = vld [vmem:[%s0 + $0xdc] sm:$0xf]
  %v1413 = vld [vmem:[%s0 + $0xe0] sm:$0xf]
  %v1414 = vld [vmem:[%s0 + $0xe4] sm:$0xf]
  %v1415 = vld [vmem:[%s0 + $0xe8] sm:$0xf]
  %v1416 = vld [vmem:[%s0 + $0xec] sm:$0xf]
  %v1417 = vld [vmem:[%s0 + $0xf0] sm:$0xf]
  %v1418 = vld [vmem:[%s0 + $0xf4] sm:$0xf]
  %v1419 = vld [vmem:[%s0 + $0xf8] sm:$0xf]
  %v1420 = vld [vmem:[%s0 + $0xfc] sm:$0xf]
  %s1421 = scalar_lea.vmem %s2, 64
  %v1422 = vld [vmem:[%s1421] sm:$0xff]
  %v1423 = vld [vmem:[%s1421 + $0x8] sm:$0xff]
  %v1424 = vld [vmem:[%s1421 + $0x10] sm:$0xff]
  %v1425 = vld [vmem:[%s1421 + $0x18] sm:$0x33]
  %v1486 = vunpack.c.l.b16 %v1361
  %v1487 = vunpack.c.l.b16 %v1362
  %v1488 = vunpack.c.l.b16 %v1363
  %v1489 = vunpack.c.l.b16 %v1364
  %v1490 = vunpack.c.l.b16 %v1365
  %v1491 = vunpack.c.l.b16 %v1366
  %v1492 = vunpack.c.l.b16 %v1367
  %v1493 = vunpack.c.l.b16 %v1368
  %v1494 = vunpack.c.l.b16 %v1369
  %v1495 = vunpack.c.l.b16 %v1370
  %v1496 = vunpack.c.l.b16 %v1371
  %v1497 = vunpack.c.l.b16 %v1372
  %v1498 = vunpack.c.l.b16 %v1373
  %v1499 = vunpack.c.l.b16 %v1374
  %v1500 = vunpack.c.l.b16 %v1375
  %v1501 = vunpack.c.l.b16 %v1376
  %v1502 = vunpack.c.l.b16 %v1377
  %v1503 = vunpack.c.l.b16 %v1378
  %v1504 = vunpack.c.l.b16 %v1379
  %v1505 = vunpack.c.l.b16 %v1380
  %v1506 = vunpack.c.l.b16 %v1381
  %v1507 = vunpack.c.l.b16 %v1382
  %v1508 = vunpack.c.l.b16 %v1383
  %v1509 = vunpack.c.l.b16 %v1384
  %v1510 = vunpack.c.l.b16 %v1385
  %v1511 = vunpack.c.l.b16 %v1386
  %v1512 = vunpack.c.l.b16 %v1387
  %v1513 = vunpack.c.l.b16 %v1388
  %v1514 = vunpack.c.l.b16 %v1389
  %v1515 = vunpack.c.l.b16 %v1390
  %v1516 = vunpack.c.l.b16 %v1391
  %v1517 = vunpack.c.l.b16 %v1392
  %v1518 = vunpack.c.l.b16 %v1393
  %v1519 = vunpack.c.l.b16 %v1394
  %v1520 = vunpack.c.l.b16 %v1395
  %v1521 = vunpack.c.l.b16 %v1396
  %v1522 = vunpack.c.l.b16 %v1397
  %v1523 = vunpack.c.l.b16 %v1398
  %v1524 = vunpack.c.l.b16 %v1399
  %v1525 = vunpack.c.l.b16 %v1400
  %v1526 = vunpack.c.l.b16 %v1401
  %v1527 = vunpack.c.l.b16 %v1402
  %v1528 = vunpack.c.l.b16 %v1403
  %v1529 = vunpack.c.l.b16 %v1404
  %v1530 = vunpack.c.l.b16 %v1405
  %v1531 = vunpack.c.l.b16 %v1406
  %v1532 = vunpack.c.l.b16 %v1407
  %v1533 = vunpack.c.l.b16 %v1408
  %v1534 = vunpack.c.l.b16 %v1409
  %v1535 = vunpack.c.l.b16 %v1410
  %v1536 = vunpack.c.l.b16 %v1411
  %v1537 = vunpack.c.l.b16 %v1412
  %v1538 = vunpack.c.l.b16 %v1413
  %v1539 = vunpack.c.l.b16 %v1414
  %v1540 = vunpack.c.l.b16 %v1415
  %v1541 = vunpack.c.l.b16 %v1416
  %v1542 = vunpack.c.l.b16 %v1417
  %v1543 = vunpack.c.l.b16 %v1418
  %v1544 = vunpack.c.l.b16 %v1419
  %v1545 = vunpack.c.l.b16 %v1420
  %v1546 = vpack.c.b16 %v1487, %v1486
  %v1547 = vpack.c.b16 %v1489, %v1488
  %v1548 = vpack.c.b16 %v1491, %v1490
  %v1549 = vpack.c.b16 %v1493, %v1492
  %v1550 = vpack.c.b16 %v1495, %v1494
  %v1551 = vpack.c.b16 %v1497, %v1496
  %v1552 = vpack.c.b16 %v1499, %v1498
  %v1553 = vpack.c.b16 %v1501, %v1500
  %v1554 = vpack.c.b16 %v1503, %v1502
  %v1555 = vpack.c.b16 %v1505, %v1504
  %v1556 = vpack.c.b16 %v1507, %v1506
  %v1557 = vpack.c.b16 %v1509, %v1508
  %v1558 = vpack.c.b16 %v1511, %v1510
  %v1559 = vpack.c.b16 %v1513, %v1512
  %v1560 = vpack.c.b16 %v1515, %v1514
  %v1561 = vpack.c.b16 %v1517, %v1516
  %v1562 = vpack.c.b16 %v1519, %v1518
  %v1563 = vpack.c.b16 %v1521, %v1520
  %v1564 = vpack.c.b16 %v1523, %v1522
  %v1565 = vpack.c.b16 %v1525, %v1524
  %v1566 = vpack.c.b16 %v1527, %v1526
  %v1567 = vpack.c.b16 %v1529, %v1528
  %v1568 = vpack.c.b16 %v1531, %v1530
  %v1569 = vpack.c.b16 %v1533, %v1532
  %v1570 = vpack.c.b16 %v1535, %v1534
  %v1571 = vpack.c.b16 %v1537, %v1536
  %v1572 = vpack.c.b16 %v1539, %v1538
  %v1573 = vpack.c.b16 %v1541, %v1540
  %v1574 = vpack.c.b16 %v1543, %v1542
  %v1575 = vpack.c.b16 %v1545, %v1544
  %v1580 = vunpack.c.l.b16 %v1422
  %v1581 = vunpack.c.h.b16 %v1422
  %v1582 = vunpack.c.l.b16 %v1423
  %v1583 = vunpack.c.h.b16 %v1423
  %v1584 = vunpack.c.l.b16 %v1424
  %v1585 = vunpack.c.h.b16 %v1424
  %v1586 = vunpack.c.l.b16 %v1425
  %v1587 = vunpack.c.h.b16 %v1425
  %v1588 = vpack.c.b16 %v1582, %v1580
  %v1589 = vpack.c.b16 %v1583, %v1581
  %v1590 = vpack.c.b16 %v1586, %v1584
  %v1591 = vpack.c.b16 %v1587, %v1585
  %v1595 = vsel %vm333, %v1546, 0
  %v1598 = vsel %vm333, %v1547, 0
  %v1601 = vsel %vm333, %v1548, 0
  %v1604 = vsel %vm333, %v1549, 0
  %v1607 = vsel %vm333, %v1550, 0
  %v1610 = vsel %vm333, %v1551, 0
  %v1613 = vsel %vm333, %v1552, 0
  %v1616 = vsel %vm333, %v1553, 0
  %v1619 = vsel %vm333, %v1554, 0
  %v1622 = vsel %vm333, %v1555, 0
  %v1625 = vsel %vm333, %v1556, 0
  %v1628 = vsel %vm333, %v1557, 0
  %v1631 = vsel %vm333, %v1558, 0
  %v1634 = vsel %vm333, %v1559, 0
  %v1637 = vsel %vm333, %v1560, 0
  %v1640 = vsel %vm333, %v1561, 0
  %v1643 = vsel %vm333, %v1562, 0
  %v1646 = vsel %vm333, %v1563, 0
  %v1649 = vsel %vm333, %v1564, 0
  %v1652 = vsel %vm333, %v1565, 0
  %v1655 = vsel %vm333, %v1566, 0
  %v1658 = vsel %vm333, %v1567, 0
  %v1661 = vsel %vm333, %v1568, 0
  %v1664 = vsel %vm333, %v1569, 0
  %v1667 = vsel %vm333, %v1570, 0
  %v1670 = vsel %vm333, %v1571, 0
  %v1673 = vsel %vm333, %v1572, 0
  %v1676 = vsel %vm333, %v1573, 0
  %v1679 = vsel %vm333, %v1574, 0
  %v1682 = vsel %vm333, %v1575, 0
  %v1685 = vsel %vm424, %v1590, 0
  %v1688 = vsel %vm424, %v1591, 0
  %1690 = vmatprep.subr.bf16.mxu0 %v1589
  %1691 = vmatpush1.bf16.msra.mxu0 %v1588
  %1692 = vmatprep.subr.bf16.mxu0 %v1688
  %1693 = vmatpush1.bf16.msra.mxu0 %v1685
  %1694 = vmatprep.subr.bf16.mxu0 0
  %1695 = vmatpush1.bf16.msra.mxu0 0
  %1696 = vmatprep.subr.bf16.mxu0 0
  %1697 = vmatpush1.bf16.msra.mxu0 0
  %1698 = vmatprep.subr.bf16.mxu0 0
  %1699 = vmatpush1.bf16.msra.mxu0 0
  %1700 = vmatprep.subr.bf16.mxu0 0
  %1701 = vmatpush1.bf16.msra.mxu0 0
  %1702 = vmatprep.subr.bf16.mxu0 0
  %1703 = vmatpush1.bf16.msra.mxu0 0
  %1704 = vmatprep.subr.bf16.mxu0 0
  %1705 = vmatpush1.bf16.msra.mxu0 0
  %1706 = vmatprep.subr.bf16.mxu0 0
  %1707 = vmatpush1.bf16.msra.mxu0 0
  %1708 = vmatprep.subr.bf16.mxu0 0
  %1709 = vmatpush1.bf16.msra.mxu0 0
  %1710 = vmatprep.subr.bf16.mxu0 0
  %1711 = vmatpush1.bf16.msra.mxu0 0
  %1712 = vmatprep.subr.bf16.mxu0 0
  %1713 = vmatpush1.bf16.msra.mxu0 0
  %1714 = vmatprep.subr.bf16.mxu0 0
  %1715 = vmatpush1.bf16.msra.mxu0 0
  %1716 = vmatprep.subr.bf16.mxu0 0
  %1717 = vmatpush1.bf16.msra.mxu0 0
  %1718 = vmatprep.subr.bf16.mxu0 0
  %1719 = vmatpush1.bf16.msra.mxu0 0
  %1720 = vmatprep.subr.bf16.mxu0 0
  %1721 = vmatpush1.bf16.msra.mxu0 0
  %1722 = vmatprep.mubr.bf16.mxu0 0
  %1723 = vmatmul.mubr.bf16.gmra.mrb[0].mxu0 %v1595
  %v1724 = vpop.f32.mrb[0].mxu0
  %v1725 = vadd.f32 0.0, %v1724
  %v1726 = vpop.f32.mrb[0].mxu0
  %v1727 = vadd.f32 0.0, %v1726
  %v1728 = vpop.f32.mrb[0].mxu0
  %v1729 = vadd.f32 0.0, %v1728
  %v1730 = vpop.f32.mrb[0].mxu0
  %v1731 = vadd.f32 0.0, %v1730
  %1732 = vmatprep.mubr.bf16.mxu0 0
  %1733 = vmatmul.mubr.bf16.gmra.mrb[0].mxu0 %v1598
  %v1734 = vpop.f32.mrb[0].mxu0
  %v1735 = vadd.f32 0.0, %v1734
  %v1736 = vpop.f32.mrb[0].mxu0
  %v1737 = vadd.f32 0.0, %v1736
  %v1738 = vpop.f32.mrb[0].mxu0
  %v1739 = vadd.f32 0.0, %v1738
  %v1740 = vpop.f32.mrb[0].mxu0
  %v1741 = vadd.f32 0.0, %v1740
  %1742 = vmatprep.mubr.bf16.mxu0 0
  %1743 = vmatmul.mubr.bf16.gmra.mrb[0].mxu0 %v1601
  %v1744 = vpop.f32.mrb[0].mxu0
  %v1745 = vadd.f32 0.0, %v1744
  %v1746 = vpop.f32.mrb[0].mxu0
  %v1747 = vadd.f32 0.0, %v1746
  %v1748 = vpop.f32.mrb[0].mxu0
  %v1749 = vadd.f32 0.0, %v1748
  %v1750 = vpop.f32.mrb[0].mxu0
  %v1751 = vadd.f32 0.0, %v1750
  %1752 = vmatprep.mubr.bf16.mxu0 0
  %1753 = vmatmul.mubr.bf16.gmra.mrb[0].mxu0 %v1604
  %v1754 = vpop.f32.mrb[0].mxu0
  %v1755 = vadd.f32 0.0, %v1754
  %v1756 = vpop.f32.mrb[0].mxu0
  %v1757 = vadd.f32 0.0, %v1756
  %v1758 = vpop.f32.mrb[0].mxu0
  %v1759 = vadd.f32 0.0, %v1758
  %v1760 = vpop.f32.mrb[0].mxu0
  %v1761 = vadd.f32 0.0, %v1760
  %1762 = vmatprep.mubr.bf16.mxu0 0
  %1763 = vmatmul.mubr.bf16.gmra.mrb[0].mxu0 %v1607
  %v1764 = vpop.f32.mrb[0].mxu0
  %v1765 = vadd.f32 0.0, %v1764
  %v1766 = vpop.f32.mrb[0].mxu0
  %v1767 = vadd.f32 0.0, %v1766
  %v1768 = vpop.f32.mrb[0].mxu0
  %v1769 = vadd.f32 0.0, %v1768
  %v1770 = vpop.f32.mrb[0].mxu0
  %v1771 = vadd.f32 0.0, %v1770
  %1772 = vmatprep.mubr.bf16.mxu0 0
  %1773 = vmatmul.mubr.bf16.gmra.mrb[0].mxu0 %v1610
  %v1774 = vpop.f32.mrb[0].mxu0
  %v1775 = vadd.f32 0.0, %v1774
  %v1776 = vpop.f32.mrb[0].mxu0
  %v1777 = vadd.f32 0.0, %v1776
  %v1778 = vpop.f32.mrb[0].mxu0
  %v1779 = vadd.f32 0.0, %v1778
  %v1780 = vpop.f32.mrb[0].mxu0
  %v1781 = vadd.f32 0.0, %v1780
  %1782 = vmatprep.mubr.bf16.mxu0 0
  %1783 = vmatmul.mubr.bf16.gmra.mrb[0].mxu0 %v1613
  %v1784 = vpop.f32.mrb[0].mxu0
  %v1785 = vadd.f32 0.0, %v1784
  %v1786 = vpop.f32.mrb[0].mxu0
  %v1787 = vadd.f32 0.0, %v1786
  %v1788 = vpop.f32.mrb[0].mxu0
  %v1789 = vadd.f32 0.0, %v1788
  %v1790 = vpop.f32.mrb[0].mxu0
  %v1791 = vadd.f32 0.0, %v1790
  %1792 = vmatprep.mubr.bf16.mxu0 0
  %1793 = vmatmul.mubr.bf16.gmra.mrb[0].mxu0 %v1616
  %v1794 = vpop.f32.mrb[0].mxu0
  %v1795 = vadd.f32 0.0, %v1794
  %v1796 = vpop.f32.mrb[0].mxu0
  %v1797 = vadd.f32 0.0, %v1796
  %v1798 = vpop.f32.mrb[0].mxu0
  %v1799 = vadd.f32 0.0, %v1798
  %v1800 = vpop.f32.mrb[0].mxu0
  %v1801 = vadd.f32 0.0, %v1800
  %1802 = vmatprep.mubr.bf16.mxu0 0
  %1803 = vmatmul.mubr.bf16.gmra.mrb[0].mxu0 %v1619
  %v1804 = vpop.f32.mrb[0].mxu0
  %v1805 = vadd.f32 0.0, %v1804
  %v1806 = vpop.f32.mrb[0].mxu0
  %v1807 = vadd.f32 0.0, %v1806
  %v1808 = vpop.f32.mrb[0].mxu0
  %v1809 = vadd.f32 0.0, %v1808
  %v1810 = vpop.f32.mrb[0].mxu0
  %v1811 = vadd.f32 0.0, %v1810
  %1812 = vmatprep.mubr.bf16.mxu0 0
  %1813 = vmatmul.mubr.bf16.gmra.mrb[0].mxu0 %v1622
  %v1814 = vpop.f32.mrb[0].mxu0
  %v1815 = vadd.f32 0.0, %v1814
  %v1816 = vpop.f32.mrb[0].mxu0
  %v1817 = vadd.f32 0.0, %v1816
  %v1818 = vpop.f32.mrb[0].mxu0
  %v1819 = vadd.f32 0.0, %v1818
  %v1820 = vpop.f32.mrb[0].mxu0
  %v1821 = vadd.f32 0.0, %v1820
  %1822 = vmatprep.mubr.bf16.mxu0 0
  %1823 = vmatmul.mubr.bf16.gmra.mrb[0].mxu0 %v1625
  %v1824 = vpop.f32.mrb[0].mxu0
  %v1825 = vadd.f32 0.0, %v1824
  %v1826 = vpop.f32.mrb[0].mxu0
  %v1827 = vadd.f32 0.0, %v1826
  %v1828 = vpop.f32.mrb[0].mxu0
  %v1829 = vadd.f32 0.0, %v1828
  %v1830 = vpop.f32.mrb[0].mxu0
  %v1831 = vadd.f32 0.0, %v1830
  %1832 = vmatprep.mubr.bf16.mxu0 0
  %1833 = vmatmul.mubr.bf16.gmra.mrb[0].mxu0 %v1628
  %v1834 = vpop.f32.mrb[0].mxu0
  %v1835 = vadd.f32 0.0, %v1834
  %v1836 = vpop.f32.mrb[0].mxu0
  %v1837 = vadd.f32 0.0, %v1836
  %v1838 = vpop.f32.mrb[0].mxu0
  %v1839 = vadd.f32 0.0, %v1838
  %v1840 = vpop.f32.mrb[0].mxu0
  %v1841 = vadd.f32 0.0, %v1840
  %1842 = vmatprep.mubr.bf16.mxu0 0
  %1843 = vmatmul.mubr.bf16.gmra.mrb[0].mxu0 %v1631
  %v1844 = vpop.f32.mrb[0].mxu0
  %v1845 = vadd.f32 0.0, %v1844
  %v1846 = vpop.f32.mrb[0].mxu0
  %v1847 = vadd.f32 0.0, %v1846
  %v1848 = vpop.f32.mrb[0].mxu0
  %v1849 = vadd.f32 0.0, %v1848
  %v1850 = vpop.f32.mrb[0].mxu0
  %v1851 = vadd.f32 0.0, %v1850
  %1852 = vmatprep.mubr.bf16.mxu0 0
  %1853 = vmatmul.mubr.bf16.gmra.mrb[0].mxu0 %v1634
  %v1854 = vpop.f32.mrb[0].mxu0
  %v1855 = vadd.f32 0.0, %v1854
  %v1856 = vpop.f32.mrb[0].mxu0
  %v1857 = vadd.f32 0.0, %v1856
  %v1858 = vpop.f32.mrb[0].mxu0
  %v1859 = vadd.f32 0.0, %v1858
  %v1860 = vpop.f32.mrb[0].mxu0
  %v1861 = vadd.f32 0.0, %v1860
  %1862 = vmatprep.mubr.bf16.mxu0 0
  %1863 = vmatmul.mubr.bf16.gmra.mrb[0].mxu0 %v1637
  %v1864 = vpop.f32.mrb[0].mxu0
  %v1865 = vadd.f32 0.0, %v1864
  %v1866 = vpop.f32.mrb[0].mxu0
  %v1867 = vadd.f32 0.0, %v1866
  %v1868 = vpop.f32.mrb[0].mxu0
  %v1869 = vadd.f32 0.0, %v1868
  %v1870 = vpop.f32.mrb[0].mxu0
  %v1871 = vadd.f32 0.0, %v1870
  %1872 = vmatprep.mubr.bf16.mxu0 0
  %1873 = vmatmul.mubr.bf16.gmra.mrb[0].mxu0 %v1640
  %v1874 = vpop.f32.mrb[0].mxu0
  %v1875 = vadd.f32 0.0, %v1874
  %v1876 = vpop.f32.mrb[0].mxu0
  %v1877 = vadd.f32 0.0, %v1876
  %v1878 = vpop.f32.mrb[0].mxu0
  %v1879 = vadd.f32 0.0, %v1878
  %v1880 = vpop.f32.mrb[0].mxu0
  %v1881 = vadd.f32 0.0, %v1880
  %1882 = vmatprep.mubr.bf16.mxu0 0
  %1883 = vmatmul.mubr.bf16.gmra.mrb[0].mxu0 %v1643
  %v1884 = vpop.f32.mrb[0].mxu0
  %v1885 = vadd.f32 0.0, %v1884
  %v1886 = vpop.f32.mrb[0].mxu0
  %v1887 = vadd.f32 0.0, %v1886
  %v1888 = vpop.f32.mrb[0].mxu0
  %v1889 = vadd.f32 0.0, %v1888
  %v1890 = vpop.f32.mrb[0].mxu0
  %v1891 = vadd.f32 0.0, %v1890
  %1892 = vmatprep.mubr.bf16.mxu0 0
  %1893 = vmatmul.mubr.bf16.gmra.mrb[0].mxu0 %v1646
  %v1894 = vpop.f32.mrb[0].mxu0
  %v1895 = vadd.f32 0.0, %v1894
  %v1896 = vpop.f32.mrb[0].mxu0
  %v1897 = vadd.f32 0.0, %v1896
  %v1898 = vpop.f32.mrb[0].mxu0
  %v1899 = vadd.f32 0.0, %v1898
  %v1900 = vpop.f32.mrb[0].mxu0
  %v1901 = vadd.f32 0.0, %v1900
  %1902 = vmatprep.mubr.bf16.mxu0 0
  %1903 = vmatmul.mubr.bf16.gmra.mrb[0].mxu0 %v1649
  %v1904 = vpop.f32.mrb[0].mxu0
  %v1905 = vadd.f32 0.0, %v1904
  %v1906 = vpop.f32.mrb[0].mxu0
  %v1907 = vadd.f32 0.0, %v1906
  %v1908 = vpop.f32.mrb[0].mxu0
  %v1909 = vadd.f32 0.0, %v1908
  %v1910 = vpop.f32.mrb[0].mxu0
  %v1911 = vadd.f32 0.0, %v1910
  %1912 = vmatprep.mubr.bf16.mxu0 0
  %1913 = vmatmul.mubr.bf16.gmra.mrb[0].mxu0 %v1652
  %v1914 = vpop.f32.mrb[0].mxu0
  %v1915 = vadd.f32 0.0, %v1914
  %v1916 = vpop.f32.mrb[0].mxu0
  %v1917 = vadd.f32 0.0, %v1916
  %v1918 = vpop.f32.mrb[0].mxu0
  %v1919 = vadd.f32 0.0, %v1918
  %v1920 = vpop.f32.mrb[0].mxu0
  %v1921 = vadd.f32 0.0, %v1920
  %1922 = vmatprep.mubr.bf16.mxu0 0
  %1923 = vmatmul.mubr.bf16.gmra.mrb[0].mxu0 %v1655
  %v1924 = vpop.f32.mrb[0].mxu0
  %v1925 = vadd.f32 0.0, %v1924
  %v1926 = vpop.f32.mrb[0].mxu0
  %v1927 = vadd.f32 0.0, %v1926
  %v1928 = vpop.f32.mrb[0].mxu0
  %v1929 = vadd.f32 0.0, %v1928
  %v1930 = vpop.f32.mrb[0].mxu0
  %v1931 = vadd.f32 0.0, %v1930
  %1932 = vmatprep.mubr.bf16.mxu0 0
  %1933 = vmatmul.mubr.bf16.gmra.mrb[0].mxu0 %v1658
  %v1934 = vpop.f32.mrb[0].mxu0
  %v1935 = vadd.f32 0.0, %v1934
  %v1936 = vpop.f32.mrb[0].mxu0
  %v1937 = vadd.f32 0.0, %v1936
  %v1938 = vpop.f32.mrb[0].mxu0
  %v1939 = vadd.f32 0.0, %v1938
  %v1940 = vpop.f32.mrb[0].mxu0
  %v1941 = vadd.f32 0.0, %v1940
  %1942 = vmatprep.mubr.bf16.mxu0 0
  %1943 = vmatmul.mubr.bf16.gmra.mrb[0].mxu0 %v1661
  %v1944 = vpop.f32.mrb[0].mxu0
  %v1945 = vadd.f32 0.0, %v1944
  %v1946 = vpop.f32.mrb[0].mxu0
  %v1947 = vadd.f32 0.0, %v1946
  %v1948 = vpop.f32.mrb[0].mxu0
  %v1949 = vadd.f32 0.0, %v1948
  %v1950 = vpop.f32.mrb[0].mxu0
  %v1951 = vadd.f32 0.0, %v1950
  %1952 = vmatprep.mubr.bf16.mxu0 0
  %1953 = vmatmul.mubr.bf16.gmra.mrb[0].mxu0 %v1664
  %v1954 = vpop.f32.mrb[0].mxu0
  %v1955 = vadd.f32 0.0, %v1954
  %v1956 = vpop.f32.mrb[0].mxu0
  %v1957 = vadd.f32 0.0, %v1956
  %v1958 = vpop.f32.mrb[0].mxu0
  %v1959 = vadd.f32 0.0, %v1958
  %v1960 = vpop.f32.mrb[0].mxu0
  %v1961 = vadd.f32 0.0, %v1960
  %1962 = vmatprep.mubr.bf16.mxu0 0
  %1963 = vmatmul.mubr.bf16.gmra.mrb[0].mxu0 %v1667
  %v1964 = vpop.f32.mrb[0].mxu0
  %v1965 = vadd.f32 0.0, %v1964
  %v1966 = vpop.f32.mrb[0].mxu0
  %v1967 = vadd.f32 0.0, %v1966
  %v1968 = vpop.f32.mrb[0].mxu0
  %v1969 = vadd.f32 0.0, %v1968
  %v1970 = vpop.f32.mrb[0].mxu0
  %v1971 = vadd.f32 0.0, %v1970
  %1972 = vmatprep.mubr.bf16.mxu0 0
  %1973 = vmatmul.mubr.bf16.gmra.mrb[0].mxu0 %v1670
  %v1974 = vpop.f32.mrb[0].mxu0
  %v1975 = vadd.f32 0.0, %v1974
  %v1976 = vpop.f32.mrb[0].mxu0
  %v1977 = vadd.f32 0.0, %v1976
  %v1978 = vpop.f32.mrb[0].mxu0
  %v1979 = vadd.f32 0.0, %v1978
  %v1980 = vpop.f32.mrb[0].mxu0
  %v1981 = vadd.f32 0.0, %v1980
  %1982 = vmatprep.mubr.bf16.mxu0 0
  %1983 = vmatmul.mubr.bf16.gmra.mrb[0].mxu0 %v1673
  %v1984 = vpop.f32.mrb[0].mxu0
  %v1985 = vadd.f32 0.0, %v1984
  %v1986 = vpop.f32.mrb[0].mxu0
  %v1987 = vadd.f32 0.0, %v1986
  %v1988 = vpop.f32.mrb[0].mxu0
  %v1989 = vadd.f32 0.0, %v1988
  %v1990 = vpop.f32.mrb[0].mxu0
  %v1991 = vadd.f32 0.0, %v1990
  %1992 = vmatprep.mubr.bf16.mxu0 0
  %1993 = vmatmul.mubr.bf16.gmra.mrb[0].mxu0 %v1676
  %v1994 = vpop.f32.mrb[0].mxu0
  %v1995 = vadd.f32 0.0, %v1994
  %v1996 = vpop.f32.mrb[0].mxu0
  %v1997 = vadd.f32 0.0, %v1996
  %v1998 = vpop.f32.mrb[0].mxu0
  %v1999 = vadd.f32 0.0, %v1998
  %v2000 = vpop.f32.mrb[0].mxu0
  %v2001 = vadd.f32 0.0, %v2000
  %2002 = vmatprep.mubr.bf16.mxu0 0
  %2003 = vmatmul.mubr.bf16.gmra.mrb[0].mxu0 %v1679
  %v2004 = vpop.f32.mrb[0].mxu0
  %v2005 = vadd.f32 0.0, %v2004
  %v2006 = vpop.f32.mrb[0].mxu0
  %v2007 = vadd.f32 0.0, %v2006
  %v2008 = vpop.f32.mrb[0].mxu0
  %v2009 = vadd.f32 0.0, %v2008
  %v2010 = vpop.f32.mrb[0].mxu0
  %v2011 = vadd.f32 0.0, %v2010
  %2012 = vmatprep.mubr.bf16.mxu0 0
  %2013 = vmatmul.mubr.bf16.gmra.mrb[0].mxu0 %v1682
  %v2014 = vpop.f32.mrb[0].mxu0
  %v2015 = vadd.f32 0.0, %v2014
  %v2016 = vpop.f32.mrb[0].mxu0
  %v2017 = vadd.f32 0.0, %v2016
  %v2018 = vpop.f32.mrb[0].mxu0
  %v2019 = vadd.f32 0.0, %v2018
  %v2020 = vpop.f32.mrb[0].mxu0
  %v2021 = vadd.f32 0.0, %v2020
  %2022 = vdwg.mxu0
  %v2023 = vadd.f32 %v1063, %v1725
  %v2024 = vadd.f32 %v1065, %v1727
  %v2025 = vadd.f32 %v1067, %v1729
  %v2026 = vadd.f32 %v1069, %v1731
  %v2027 = vadd.f32 %v1073, %v1735
  %v2028 = vadd.f32 %v1075, %v1737
  %v2029 = vadd.f32 %v1077, %v1739
  %v2030 = vadd.f32 %v1079, %v1741
  %v2031 = vadd.f32 %v1083, %v1745
  %v2032 = vadd.f32 %v1085, %v1747
  %v2033 = vadd.f32 %v1087, %v1749
  %v2034 = vadd.f32 %v1089, %v1751
  %v2035 = vadd.f32 %v1093, %v1755
  %v2036 = vadd.f32 %v1095, %v1757
  %v2037 = vadd.f32 %v1097, %v1759
  %v2038 = vadd.f32 %v1099, %v1761
  %v2039 = vadd.f32 %v1103, %v1765
  %v2040 = vadd.f32 %v1105, %v1767
  %v2041 = vadd.f32 %v1107, %v1769
  %v2042 = vadd.f32 %v1109, %v1771
  %v2043 = vadd.f32 %v1113, %v1775
  %v2044 = vadd.f32 %v1115, %v1777
  %v2045 = vadd.f32 %v1117, %v1779
  %v2046 = vadd.f32 %v1119, %v1781
  %v2047 = vadd.f32 %v1123, %v1785
  %v2048 = vadd.f32 %v1125, %v1787
  %v2049 = vadd.f32 %v1127, %v1789
  %v2050 = vadd.f32 %v1129, %v1791
  %v2051 = vadd.f32 %v1133, %v1795
  %v2052 = vadd.f32 %v1135, %v1797
  %v2053 = vadd.f32 %v1137, %v1799
  %v2054 = vadd.f32 %v1139, %v1801
  %v2055 = vadd.f32 %v1143, %v1805
  %v2056 = vadd.f32 %v1145, %v1807
  %v2057 = vadd.f32 %v1147, %v1809
  %v2058 = vadd.f32 %v1149, %v1811
  %v2059 = vadd.f32 %v1153, %v1815
  %v2060 = vadd.f32 %v1155, %v1817
  %v2061 = vadd.f32 %v1157, %v1819
  %v2062 = vadd.f32 %v1159, %v1821
  %v2063 = vadd.f32 %v1163, %v1825
  %v2064 = vadd.f32 %v1165, %v1827
  %v2065 = vadd.f32 %v1167, %v1829
  %v2066 = vadd.f32 %v1169, %v1831
  %v2067 = vadd.f32 %v1173, %v1835
  %v2068 = vadd.f32 %v1175, %v1837
  %v2069 = vadd.f32 %v1177, %v1839
  %v2070 = vadd.f32 %v1179, %v1841
  %v2071 = vadd.f32 %v1183, %v1845
  %v2072 = vadd.f32 %v1185, %v1847
  %v2073 = vadd.f32 %v1187, %v1849
  %v2074 = vadd.f32 %v1189, %v1851
  %v2075 = vadd.f32 %v1193, %v1855
  %v2076 = vadd.f32 %v1195, %v1857
  %v2077 = vadd.f32 %v1197, %v1859
  %v2078 = vadd.f32 %v1199, %v1861
  %v2079 = vadd.f32 %v1203, %v1865
  %v2080 = vadd.f32 %v1205, %v1867
  %v2081 = vadd.f32 %v1207, %v1869
  %v2082 = vadd.f32 %v1209, %v1871
  %v2083 = vadd.f32 %v1213, %v1875
  %v2084 = vadd.f32 %v1215, %v1877
  %v2085 = vadd.f32 %v1217, %v1879
  %v2086 = vadd.f32 %v1219, %v1881
  %v2087 = vadd.f32 %v1223, %v1885
  %v2088 = vadd.f32 %v1225, %v1887
  %v2089 = vadd.f32 %v1227, %v1889
  %v2090 = vadd.f32 %v1229, %v1891
  %v2091 = vadd.f32 %v1233, %v1895
  %v2092 = vadd.f32 %v1235, %v1897
  %v2093 = vadd.f32 %v1237, %v1899
  %v2094 = vadd.f32 %v1239, %v1901
  %v2095 = vadd.f32 %v1243, %v1905
  %v2096 = vadd.f32 %v1245, %v1907
  %v2097 = vadd.f32 %v1247, %v1909
  %v2098 = vadd.f32 %v1249, %v1911
  %v2099 = vadd.f32 %v1253, %v1915
  %v2100 = vadd.f32 %v1255, %v1917
  %v2101 = vadd.f32 %v1257, %v1919
  %v2102 = vadd.f32 %v1259, %v1921
  %v2103 = vadd.f32 %v1263, %v1925
  %v2104 = vadd.f32 %v1265, %v1927
  %v2105 = vadd.f32 %v1267, %v1929
  %v2106 = vadd.f32 %v1269, %v1931
  %v2107 = vadd.f32 %v1273, %v1935
  %v2108 = vadd.f32 %v1275, %v1937
  %v2109 = vadd.f32 %v1277, %v1939
  %v2110 = vadd.f32 %v1279, %v1941
  %v2111 = vadd.f32 %v1283, %v1945
  %v2112 = vadd.f32 %v1285, %v1947
  %v2113 = vadd.f32 %v1287, %v1949
  %v2114 = vadd.f32 %v1289, %v1951
  %v2115 = vadd.f32 %v1293, %v1955
  %v2116 = vadd.f32 %v1295, %v1957
  %v2117 = vadd.f32 %v1297, %v1959
  %v2118 = vadd.f32 %v1299, %v1961
  %v2119 = vadd.f32 %v1303, %v1965
  %v2120 = vadd.f32 %v1305, %v1967
  %v2121 = vadd.f32 %v1307, %v1969
  %v2122 = vadd.f32 %v1309, %v1971
  %v2123 = vadd.f32 %v1313, %v1975
  %v2124 = vadd.f32 %v1315, %v1977
  %v2125 = vadd.f32 %v1317, %v1979
  %v2126 = vadd.f32 %v1319, %v1981
  %v2127 = vadd.f32 %v1323, %v1985
  %v2128 = vadd.f32 %v1325, %v1987
  %v2129 = vadd.f32 %v1327, %v1989
  %v2130 = vadd.f32 %v1329, %v1991
  %v2131 = vadd.f32 %v1333, %v1995
  %v2132 = vadd.f32 %v1335, %v1997
  %v2133 = vadd.f32 %v1337, %v1999
  %v2134 = vadd.f32 %v1339, %v2001
  %v2135 = vadd.f32 %v1343, %v2005
  %v2136 = vadd.f32 %v1345, %v2007
  %v2137 = vadd.f32 %v1347, %v2009
  %v2138 = vadd.f32 %v1349, %v2011
  %v2139 = vadd.f32 %v1353, %v2015
  %v2140 = vadd.f32 %v1355, %v2017
  %v2141 = vadd.f32 %v1357, %v2019
  %v2142 = vadd.f32 %v1359, %v2021
  %v2143 = vmax.f32 %v2023, %v2024
  %v2144 = vmax.f32 %v2025, %v2026
  %v2145 = vmax.f32 %v2027, %v2028
  %v2146 = vmax.f32 %v2029, %v2030
  %v2147 = vmax.f32 %v2031, %v2032
  %v2148 = vmax.f32 %v2033, %v2034
  %v2149 = vmax.f32 %v2035, %v2036
  %v2150 = vmax.f32 %v2037, %v2038
  %v2151 = vmax.f32 %v2039, %v2040
  %v2152 = vmax.f32 %v2041, %v2042
  %v2153 = vmax.f32 %v2043, %v2044
  %v2154 = vmax.f32 %v2045, %v2046
  %v2155 = vmax.f32 %v2047, %v2048
  %v2156 = vmax.f32 %v2049, %v2050
  %v2157 = vmax.f32 %v2051, %v2052
  %v2158 = vmax.f32 %v2053, %v2054
  %v2159 = vmax.f32 %v2055, %v2056
  %v2160 = vmax.f32 %v2057, %v2058
  %v2161 = vmax.f32 %v2059, %v2060
  %v2162 = vmax.f32 %v2061, %v2062
  %v2163 = vmax.f32 %v2063, %v2064
  %v2164 = vmax.f32 %v2065, %v2066
  %v2165 = vmax.f32 %v2067, %v2068
  %v2166 = vmax.f32 %v2069, %v2070
  %v2167 = vmax.f32 %v2071, %v2072
  %v2168 = vmax.f32 %v2073, %v2074
  %v2169 = vmax.f32 %v2075, %v2076
  %v2170 = vmax.f32 %v2077, %v2078
  %v2171 = vmax.f32 %v2079, %v2080
  %v2172 = vmax.f32 %v2081, %v2082
  %v2173 = vmax.f32 %v2083, %v2084
  %v2174 = vmax.f32 %v2085, %v2086
  %v2175 = vmax.f32 %v2087, %v2088
  %v2176 = vmax.f32 %v2089, %v2090
  %v2177 = vmax.f32 %v2091, %v2092
  %v2178 = vmax.f32 %v2093, %v2094
  %v2179 = vmax.f32 %v2095, %v2096
  %v2180 = vmax.f32 %v2097, %v2098
  %v2181 = vmax.f32 %v2099, %v2100
  %v2182 = vmax.f32 %v2101, %v2102
  %v2183 = vmax.f32 %v2103, %v2104
  %v2184 = vmax.f32 %v2105, %v2106
  %v2185 = vmax.f32 %v2107, %v2108
  %v2186 = vmax.f32 %v2109, %v2110
  %v2187 = vmax.f32 %v2111, %v2112
  %v2188 = vmax.f32 %v2113, %v2114
  %v2189 = vmax.f32 %v2115, %v2116
  %v2190 = vmax.f32 %v2117, %v2118
  %v2191 = vmax.f32 %v2119, %v2120
  %v2192 = vmax.f32 %v2121, %v2122
  %v2193 = vmax.f32 %v2123, %v2124
  %v2194 = vmax.f32 %v2125, %v2126
  %v2195 = vmax.f32 %v2127, %v2128
  %v2196 = vmax.f32 %v2129, %v2130
  %v2197 = vmax.f32 %v2131, %v2132
  %v2198 = vmax.f32 %v2133, %v2134
  %v2199 = vmax.f32 %v2135, %v2136
  %v2200 = vmax.f32 %v2137, %v2138
  %v2201 = vmax.f32 %v2139, %v2140
  %v2202 = vmax.f32 %v2141, %v2142
  %2203 = vmatprep.subr.bf16.mxu0 %v328
  %2204 = vmatpush1.bf16.msra.mxu0 %v327
  %2205 = vmatprep.subr.bf16.mxu0 %v429
  %2206 = vmatpush1.bf16.msra.mxu0 %v426
  %2207 = vmatprep.subr.bf16.mxu0 0
  %2208 = vmatpush1.bf16.msra.mxu0 0
  %2209 = vmatprep.subr.bf16.mxu0 0
  %2210 = vmatpush1.bf16.msra.mxu0 0
  %2211 = vmatprep.subr.bf16.mxu0 0
  %2212 = vmatpush1.bf16.msra.mxu0 0
  %2213 = vmatprep.subr.bf16.mxu0 0
  %2214 = vmatpush1.bf16.msra.mxu0 0
  %2215 = vmatprep.subr.bf16.mxu0 0
  %2216 = vmatpush1.bf16.msra.mxu0 0
  %2217 = vmatprep.subr.bf16.mxu0 0
  %2218 = vmatpush1.bf16.msra.mxu0 0
  %2219 = vmatprep.subr.bf16.mxu0 0
  %2220 = vmatpush1.bf16.msra.mxu0 0
  %2221 = vmatprep.subr.bf16.mxu0 0
  %2222 = vmatpush1.bf16.msra.mxu0 0
  %2223 = vmatprep.subr.bf16.mxu0 0
  %2224 = vmatpush1.bf16.msra.mxu0 0
  %2225 = vmatprep.subr.bf16.mxu0 0
  %2226 = vmatpush1.bf16.msra.mxu0 0
  %2227 = vmatprep.subr.bf16.mxu0 0
  %2228 = vmatpush1.bf16.msra.mxu0 0
  %2229 = vmatprep.subr.bf16.mxu0 0
  %2230 = vmatpush1.bf16.msra.mxu0 0
  %2231 = vmatprep.subr.bf16.mxu0 0
  %2232 = vmatpush1.bf16.msra.mxu0 0
  %2233 = vmatprep.subr.bf16.mxu0 0
  %2234 = vmatpush1.bf16.msra.mxu0 0
  %2235 = vmatprep.mubr.bf16.mxu0 0
  %2236 = vmatmul.mubr.bf16.gmra.mrb[0].mxu0 %v1595
  %v2237 = vpop.f32.mrb[0].mxu0
  %v2238 = vadd.f32 0.0, %v2237
  %v2239 = vpop.f32.mrb[0].mxu0
  %v2240 = vadd.f32 0.0, %v2239
  %v2241 = vpop.f32.mrb[0].mxu0
  %v2242 = vadd.f32 0.0, %v2241
  %v2243 = vpop.f32.mrb[0].mxu0
  %v2244 = vadd.f32 0.0, %v2243
  %2245 = vmatprep.mubr.bf16.mxu0 0
  %2246 = vmatmul.mubr.bf16.gmra.mrb[0].mxu0 %v1598
  %v2247 = vpop.f32.mrb[0].mxu0
  %v2248 = vadd.f32 0.0, %v2247
  %v2249 = vpop.f32.mrb[0].mxu0
  %v2250 = vadd.f32 0.0, %v2249
  %v2251 = vpop.f32.mrb[0].mxu0
  %v2252 = vadd.f32 0.0, %v2251
  %v2253 = vpop.f32.mrb[0].mxu0
  %v2254 = vadd.f32 0.0, %v2253
  %2255 = vmatprep.mubr.bf16.mxu0 0
  %2256 = vmatmul.mubr.bf16.gmra.mrb[0].mxu0 %v1601
  %v2257 = vpop.f32.mrb[0].mxu0
  %v2258 = vadd.f32 0.0, %v2257
  %v2259 = vpop.f32.mrb[0].mxu0
  %v2260 = vadd.f32 0.0, %v2259
  %v2261 = vpop.f32.mrb[0].mxu0
  %v2262 = vadd.f32 0.0, %v2261
  %v2263 = vpop.f32.mrb[0].mxu0
  %v2264 = vadd.f32 0.0, %v2263
  %2265 = vmatprep.mubr.bf16.mxu0 0
  %2266 = vmatmul.mubr.bf16.gmra.mrb[0].mxu0 %v1604
  %v2267 = vpop.f32.mrb[0].mxu0
  %v2268 = vadd.f32 0.0, %v2267
  %v2269 = vpop.f32.mrb[0].mxu0
  %v2270 = vadd.f32 0.0, %v2269
  %v2271 = vpop.f32.mrb[0].mxu0
  %v2272 = vadd.f32 0.0, %v2271
  %v2273 = vpop.f32.mrb[0].mxu0
  %v2274 = vadd.f32 0.0, %v2273
  %2275 = vmatprep.mubr.bf16.mxu0 0
  %2276 = vmatmul.mubr.bf16.gmra.mrb[0].mxu0 %v1607
  %v2277 = vpop.f32.mrb[0].mxu0
  %v2278 = vadd.f32 0.0, %v2277
  %v2279 = vpop.f32.mrb[0].mxu0
  %v2280 = vadd.f32 0.0, %v2279
  %v2281 = vpop.f32.mrb[0].mxu0
  %v2282 = vadd.f32 0.0, %v2281
  %v2283 = vpop.f32.mrb[0].mxu0
  %v2284 = vadd.f32 0.0, %v2283
  %2285 = vmatprep.mubr.bf16.mxu0 0
  %2286 = vmatmul.mubr.bf16.gmra.mrb[0].mxu0 %v1610
  %v2287 = vpop.f32.mrb[0].mxu0
  %v2288 = vadd.f32 0.0, %v2287
  %v2289 = vpop.f32.mrb[0].mxu0
  %v2290 = vadd.f32 0.0, %v2289
  %v2291 = vpop.f32.mrb[0].mxu0
  %v2292 = vadd.f32 0.0, %v2291
  %v2293 = vpop.f32.mrb[0].mxu0
  %v2294 = vadd.f32 0.0, %v2293
  %2295 = vmatprep.mubr.bf16.mxu0 0
  %2296 = vmatmul.mubr.bf16.gmra.mrb[0].mxu0 %v1613
  %v2297 = vpop.f32.mrb[0].mxu0
  %v2298 = vadd.f32 0.0, %v2297
  %v2299 = vpop.f32.mrb[0].mxu0
  %v2300 = vadd.f32 0.0, %v2299
  %v2301 = vpop.f32.mrb[0].mxu0
  %v2302 = vadd.f32 0.0, %v2301
  %v2303 = vpop.f32.mrb[0].mxu0
  %v2304 = vadd.f32 0.0, %v2303
  %2305 = vmatprep.mubr.bf16.mxu0 0
  %2306 = vmatmul.mubr.bf16.gmra.mrb[0].mxu0 %v1616
  %v2307 = vpop.f32.mrb[0].mxu0
  %v2308 = vadd.f32 0.0, %v2307
  %v2309 = vpop.f32.mrb[0].mxu0
  %v2310 = vadd.f32 0.0, %v2309
  %v2311 = vpop.f32.mrb[0].mxu0
  %v2312 = vadd.f32 0.0, %v2311
  %v2313 = vpop.f32.mrb[0].mxu0
  %v2314 = vadd.f32 0.0, %v2313
  %2315 = vmatprep.mubr.bf16.mxu0 0
  %2316 = vmatmul.mubr.bf16.gmra.mrb[0].mxu0 %v1619
  %v2317 = vpop.f32.mrb[0].mxu0
  %v2318 = vadd.f32 0.0, %v2317
  %v2319 = vpop.f32.mrb[0].mxu0
  %v2320 = vadd.f32 0.0, %v2319
  %v2321 = vpop.f32.mrb[0].mxu0
  %v2322 = vadd.f32 0.0, %v2321
  %v2323 = vpop.f32.mrb[0].mxu0
  %v2324 = vadd.f32 0.0, %v2323
  %2325 = vmatprep.mubr.bf16.mxu0 0
  %2326 = vmatmul.mubr.bf16.gmra.mrb[0].mxu0 %v1622
  %v2327 = vpop.f32.mrb[0].mxu0
  %v2328 = vadd.f32 0.0, %v2327
  %v2329 = vpop.f32.mrb[0].mxu0
  %v2330 = vadd.f32 0.0, %v2329
  %v2331 = vpop.f32.mrb[0].mxu0
  %v2332 = vadd.f32 0.0, %v2331
  %v2333 = vpop.f32.mrb[0].mxu0
  %v2334 = vadd.f32 0.0, %v2333
  %2335 = vmatprep.mubr.bf16.mxu0 0
  %2336 = vmatmul.mubr.bf16.gmra.mrb[0].mxu0 %v1625
  %v2337 = vpop.f32.mrb[0].mxu0
  %v2338 = vadd.f32 0.0, %v2337
  %v2339 = vpop.f32.mrb[0].mxu0
  %v2340 = vadd.f32 0.0, %v2339
  %v2341 = vpop.f32.mrb[0].mxu0
  %v2342 = vadd.f32 0.0, %v2341
  %v2343 = vpop.f32.mrb[0].mxu0
  %v2344 = vadd.f32 0.0, %v2343
  %2345 = vmatprep.mubr.bf16.mxu0 0
  %2346 = vmatmul.mubr.bf16.gmra.mrb[0].mxu0 %v1628
  %v2347 = vpop.f32.mrb[0].mxu0
  %v2348 = vadd.f32 0.0, %v2347
  %v2349 = vpop.f32.mrb[0].mxu0
  %v2350 = vadd.f32 0.0, %v2349
  %v2351 = vpop.f32.mrb[0].mxu0
  %v2352 = vadd.f32 0.0, %v2351
  %v2353 = vpop.f32.mrb[0].mxu0
  %v2354 = vadd.f32 0.0, %v2353
  %2355 = vmatprep.mubr.bf16.mxu0 0
  %2356 = vmatmul.mubr.bf16.gmra.mrb[0].mxu0 %v1631
  %v2357 = vpop.f32.mrb[0].mxu0
  %v2358 = vadd.f32 0.0, %v2357
  %v2359 = vpop.f32.mrb[0].mxu0
  %v2360 = vadd.f32 0.0, %v2359
  %v2361 = vpop.f32.mrb[0].mxu0
  %v2362 = vadd.f32 0.0, %v2361
  %v2363 = vpop.f32.mrb[0].mxu0
  %v2364 = vadd.f32 0.0, %v2363
  %2365 = vmatprep.mubr.bf16.mxu0 0
  %2366 = vmatmul.mubr.bf16.gmra.mrb[0].mxu0 %v1634
  %v2367 = vpop.f32.mrb[0].mxu0
  %v2368 = vadd.f32 0.0, %v2367
  %v2369 = vpop.f32.mrb[0].mxu0
  %v2370 = vadd.f32 0.0, %v2369
  %v2371 = vpop.f32.mrb[0].mxu0
  %v2372 = vadd.f32 0.0, %v2371
  %v2373 = vpop.f32.mrb[0].mxu0
  %v2374 = vadd.f32 0.0, %v2373
  %2375 = vmatprep.mubr.bf16.mxu0 0
  %2376 = vmatmul.mubr.bf16.gmra.mrb[0].mxu0 %v1637
  %v2377 = vpop.f32.mrb[0].mxu0
  %v2378 = vadd.f32 0.0, %v2377
  %v2379 = vpop.f32.mrb[0].mxu0
  %v2380 = vadd.f32 0.0, %v2379
  %v2381 = vpop.f32.mrb[0].mxu0
  %v2382 = vadd.f32 0.0, %v2381
  %v2383 = vpop.f32.mrb[0].mxu0
  %v2384 = vadd.f32 0.0, %v2383
  %2385 = vmatprep.mubr.bf16.mxu0 0
  %2386 = vmatmul.mubr.bf16.gmra.mrb[0].mxu0 %v1640
  %v2387 = vpop.f32.mrb[0].mxu0
  %v2388 = vadd.f32 0.0, %v2387
  %v2389 = vpop.f32.mrb[0].mxu0
  %v2390 = vadd.f32 0.0, %v2389
  %v2391 = vpop.f32.mrb[0].mxu0
  %v2392 = vadd.f32 0.0, %v2391
  %v2393 = vpop.f32.mrb[0].mxu0
  %v2394 = vadd.f32 0.0, %v2393
  %2395 = vmatprep.mubr.bf16.mxu0 0
  %2396 = vmatmul.mubr.bf16.gmra.mrb[0].mxu0 %v1643
  %v2397 = vpop.f32.mrb[0].mxu0
  %v2398 = vadd.f32 0.0, %v2397
  %v2399 = vpop.f32.mrb[0].mxu0
  %v2400 = vadd.f32 0.0, %v2399
  %v2401 = vpop.f32.mrb[0].mxu0
  %v2402 = vadd.f32 0.0, %v2401
  %v2403 = vpop.f32.mrb[0].mxu0
  %v2404 = vadd.f32 0.0, %v2403
  %2405 = vmatprep.mubr.bf16.mxu0 0
  %2406 = vmatmul.mubr.bf16.gmra.mrb[0].mxu0 %v1646
  %v2407 = vpop.f32.mrb[0].mxu0
  %v2408 = vadd.f32 0.0, %v2407
  %v2409 = vpop.f32.mrb[0].mxu0
  %v2410 = vadd.f32 0.0, %v2409
  %v2411 = vpop.f32.mrb[0].mxu0
  %v2412 = vadd.f32 0.0, %v2411
  %v2413 = vpop.f32.mrb[0].mxu0
  %v2414 = vadd.f32 0.0, %v2413
  %2415 = vmatprep.mubr.bf16.mxu0 0
  %2416 = vmatmul.mubr.bf16.gmra.mrb[0].mxu0 %v1649
  %v2417 = vpop.f32.mrb[0].mxu0
  %v2418 = vadd.f32 0.0, %v2417
  %v2419 = vpop.f32.mrb[0].mxu0
  %v2420 = vadd.f32 0.0, %v2419
  %v2421 = vpop.f32.mrb[0].mxu0
  %v2422 = vadd.f32 0.0, %v2421
  %v2423 = vpop.f32.mrb[0].mxu0
  %v2424 = vadd.f32 0.0, %v2423
  %2425 = vmatprep.mubr.bf16.mxu0 0
  %2426 = vmatmul.mubr.bf16.gmra.mrb[0].mxu0 %v1652
  %v2427 = vpop.f32.mrb[0].mxu0
  %v2428 = vadd.f32 0.0, %v2427
  %v2429 = vpop.f32.mrb[0].mxu0
  %v2430 = vadd.f32 0.0, %v2429
  %v2431 = vpop.f32.mrb[0].mxu0
  %v2432 = vadd.f32 0.0, %v2431
  %v2433 = vpop.f32.mrb[0].mxu0
  %v2434 = vadd.f32 0.0, %v2433
  %2435 = vmatprep.mubr.bf16.mxu0 0
  %2436 = vmatmul.mubr.bf16.gmra.mrb[0].mxu0 %v1655
  %v2437 = vpop.f32.mrb[0].mxu0
  %v2438 = vadd.f32 0.0, %v2437
  %v2439 = vpop.f32.mrb[0].mxu0
  %v2440 = vadd.f32 0.0, %v2439
  %v2441 = vpop.f32.mrb[0].mxu0
  %v2442 = vadd.f32 0.0, %v2441
  %v2443 = vpop.f32.mrb[0].mxu0
  %v2444 = vadd.f32 0.0, %v2443
  %2445 = vmatprep.mubr.bf16.mxu0 0
  %2446 = vmatmul.mubr.bf16.gmra.mrb[0].mxu0 %v1658
  %v2447 = vpop.f32.mrb[0].mxu0
  %v2448 = vadd.f32 0.0, %v2447
  %v2449 = vpop.f32.mrb[0].mxu0
  %v2450 = vadd.f32 0.0, %v2449
  %v2451 = vpop.f32.mrb[0].mxu0
  %v2452 = vadd.f32 0.0, %v2451
  %v2453 = vpop.f32.mrb[0].mxu0
  %v2454 = vadd.f32 0.0, %v2453
  %2455 = vmatprep.mubr.bf16.mxu0 0
  %2456 = vmatmul.mubr.bf16.gmra.mrb[0].mxu0 %v1661
  %v2457 = vpop.f32.mrb[0].mxu0
  %v2458 = vadd.f32 0.0, %v2457
  %v2459 = vpop.f32.mrb[0].mxu0
  %v2460 = vadd.f32 0.0, %v2459
  %v2461 = vpop.f32.mrb[0].mxu0
  %v2462 = vadd.f32 0.0, %v2461
  %v2463 = vpop.f32.mrb[0].mxu0
  %v2464 = vadd.f32 0.0, %v2463
  %2465 = vmatprep.mubr.bf16.mxu0 0
  %2466 = vmatmul.mubr.bf16.gmra.mrb[0].mxu0 %v1664
  %v2467 = vpop.f32.mrb[0].mxu0
  %v2468 = vadd.f32 0.0, %v2467
  %v2469 = vpop.f32.mrb[0].mxu0
  %v2470 = vadd.f32 0.0, %v2469
  %v2471 = vpop.f32.mrb[0].mxu0
  %v2472 = vadd.f32 0.0, %v2471
  %v2473 = vpop.f32.mrb[0].mxu0
  %v2474 = vadd.f32 0.0, %v2473
  %2475 = vmatprep.mubr.bf16.mxu0 0
  %2476 = vmatmul.mubr.bf16.gmra.mrb[0].mxu0 %v1667
  %v2477 = vpop.f32.mrb[0].mxu0
  %v2478 = vadd.f32 0.0, %v2477
  %v2479 = vpop.f32.mrb[0].mxu0
  %v2480 = vadd.f32 0.0, %v2479
  %v2481 = vpop.f32.mrb[0].mxu0
  %v2482 = vadd.f32 0.0, %v2481
  %v2483 = vpop.f32.mrb[0].mxu0
  %v2484 = vadd.f32 0.0, %v2483
  %2485 = vmatprep.mubr.bf16.mxu0 0
  %2486 = vmatmul.mubr.bf16.gmra.mrb[0].mxu0 %v1670
  %v2487 = vpop.f32.mrb[0].mxu0
  %v2488 = vadd.f32 0.0, %v2487
  %v2489 = vpop.f32.mrb[0].mxu0
  %v2490 = vadd.f32 0.0, %v2489
  %v2491 = vpop.f32.mrb[0].mxu0
  %v2492 = vadd.f32 0.0, %v2491
  %v2493 = vpop.f32.mrb[0].mxu0
  %v2494 = vadd.f32 0.0, %v2493
  %2495 = vmatprep.mubr.bf16.mxu0 0
  %2496 = vmatmul.mubr.bf16.gmra.mrb[0].mxu0 %v1673
  %v2497 = vpop.f32.mrb[0].mxu0
  %v2498 = vadd.f32 0.0, %v2497
  %v2499 = vpop.f32.mrb[0].mxu0
  %v2500 = vadd.f32 0.0, %v2499
  %v2501 = vpop.f32.mrb[0].mxu0
  %v2502 = vadd.f32 0.0, %v2501
  %v2503 = vpop.f32.mrb[0].mxu0
  %v2504 = vadd.f32 0.0, %v2503
  %2505 = vmatprep.mubr.bf16.mxu0 0
  %2506 = vmatmul.mubr.bf16.gmra.mrb[0].mxu0 %v1676
  %v2507 = vpop.f32.mrb[0].mxu0
  %v2508 = vadd.f32 0.0, %v2507
  %v2509 = vpop.f32.mrb[0].mxu0
  %v2510 = vadd.f32 0.0, %v2509
  %v2511 = vpop.f32.mrb[0].mxu0
  %v2512 = vadd.f32 0.0, %v2511
  %v2513 = vpop.f32.mrb[0].mxu0
  %v2514 = vadd.f32 0.0, %v2513
  %2515 = vmatprep.mubr.bf16.mxu0 0
  %2516 = vmatmul.mubr.bf16.gmra.mrb[0].mxu0 %v1679
  %v2517 = vpop.f32.mrb[0].mxu0
  %v2518 = vadd.f32 0.0, %v2517
  %v2519 = vpop.f32.mrb[0].mxu0
  %v2520 = vadd.f32 0.0, %v2519
  %v2521 = vpop.f32.mrb[0].mxu0
  %v2522 = vadd.f32 0.0, %v2521
  %v2523 = vpop.f32.mrb[0].mxu0
  %v2524 = vadd.f32 0.0, %v2523
  %2525 = vmatprep.mubr.bf16.mxu0 0
  %2526 = vmatmul.mubr.bf16.gmra.mrb[0].mxu0 %v1682
  %v2527 = vpop.f32.mrb[0].mxu0
  %v2528 = vadd.f32 0.0, %v2527
  %v2529 = vpop.f32.mrb[0].mxu0
  %v2530 = vadd.f32 0.0, %v2529
  %v2531 = vpop.f32.mrb[0].mxu0
  %v2532 = vadd.f32 0.0, %v2531
  %v2533 = vpop.f32.mrb[0].mxu0
  %v2534 = vadd.f32 0.0, %v2533
  %2535 = vdwg.mxu0
  %2536 = vmatprep.subr.bf16.mxu0 %v927
  %2537 = vmatpush1.bf16.msra.mxu0 %v926
  %2538 = vmatprep.subr.bf16.mxu0 %v1026
  %2539 = vmatpush1.bf16.msra.mxu0 %v1023
  %2540 = vmatprep.subr.bf16.mxu0 0
  %2541 = vmatpush1.bf16.msra.mxu0 0
  %2542 = vmatprep.subr.bf16.mxu0 0
  %2543 = vmatpush1.bf16.msra.mxu0 0
  %2544 = vmatprep.subr.bf16.mxu0 0
  %2545 = vmatpush1.bf16.msra.mxu0 0
  %2546 = vmatprep.subr.bf16.mxu0 0
  %2547 = vmatpush1.bf16.msra.mxu0 0
  %2548 = vmatprep.subr.bf16.mxu0 0
  %2549 = vmatpush1.bf16.msra.mxu0 0
  %2550 = vmatprep.subr.bf16.mxu0 0
  %2551 = vmatpush1.bf16.msra.mxu0 0
  %2552 = vmatprep.subr.bf16.mxu0 0
  %2553 = vmatpush1.bf16.msra.mxu0 0
  %2554 = vmatprep.subr.bf16.mxu0 0
  %2555 = vmatpush1.bf16.msra.mxu0 0
  %2556 = vmatprep.subr.bf16.mxu0 0
  %2557 = vmatpush1.bf16.msra.mxu0 0
  %2558 = vmatprep.subr.bf16.mxu0 0
  %2559 = vmatpush1.bf16.msra.mxu0 0
  %2560 = vmatprep.subr.bf16.mxu0 0
  %2561 = vmatpush1.bf16.msra.mxu0 0
  %2562 = vmatprep.subr.bf16.mxu0 0
  %2563 = vmatpush1.bf16.msra.mxu0 0
  %2564 = vmatprep.subr.bf16.mxu0 0
  %2565 = vmatpush1.bf16.msra.mxu0 0
  %2566 = vmatprep.subr.bf16.mxu0 0
  %2567 = vmatpush1.bf16.msra.mxu0 0
  %2568 = vmatprep.mubr.bf16.mxu0 0
  %2569 = vmatmul.mubr.bf16.gmra.mrb[0].mxu0 %v335
  %v2570 = vpop.f32.mrb[0].mxu0
  %v2571 = vadd.f32 %v2238, %v2570
  %v2572 = vpop.f32.mrb[0].mxu0
  %v2573 = vadd.f32 %v2240, %v2572
  %v2574 = vpop.f32.mrb[0].mxu0
  %v2575 = vadd.f32 %v2242, %v2574
  %v2576 = vpop.f32.mrb[0].mxu0
  %v2577 = vadd.f32 %v2244, %v2576
  %2578 = vmatprep.mubr.bf16.mxu0 0
  %2579 = vmatmul.mubr.bf16.gmra.mrb[0].mxu0 %v338
  %v2580 = vpop.f32.mrb[0].mxu0
  %v2581 = vadd.f32 %v2248, %v2580
  %v2582 = vpop.f32.mrb[0].mxu0
  %v2583 = vadd.f32 %v2250, %v2582
  %v2584 = vpop.f32.mrb[0].mxu0
  %v2585 = vadd.f32 %v2252, %v2584
  %v2586 = vpop.f32.mrb[0].mxu0
  %v2587 = vadd.f32 %v2254, %v2586
  %2588 = vmatprep.mubr.bf16.mxu0 0
  %2589 = vmatmul.mubr.bf16.gmra.mrb[0].mxu0 %v341
  %v2590 = vpop.f32.mrb[0].mxu0
  %v2591 = vadd.f32 %v2258, %v2590
  %v2592 = vpop.f32.mrb[0].mxu0
  %v2593 = vadd.f32 %v2260, %v2592
  %v2594 = vpop.f32.mrb[0].mxu0
  %v2595 = vadd.f32 %v2262, %v2594
  %v2596 = vpop.f32.mrb[0].mxu0
  %v2597 = vadd.f32 %v2264, %v2596
  %2598 = vmatprep.mubr.bf16.mxu0 0
  %2599 = vmatmul.mubr.bf16.gmra.mrb[0].mxu0 %v344
  %v2600 = vpop.f32.mrb[0].mxu0
  %v2601 = vadd.f32 %v2268, %v2600
  %v2602 = vpop.f32.mrb[0].mxu0
  %v2603 = vadd.f32 %v2270, %v2602
  %v2604 = vpop.f32.mrb[0].mxu0
  %v2605 = vadd.f32 %v2272, %v2604
  %v2606 = vpop.f32.mrb[0].mxu0
  %v2607 = vadd.f32 %v2274, %v2606
  %2608 = vmatprep.mubr.bf16.mxu0 0
  %2609 = vmatmul.mubr.bf16.gmra.mrb[0].mxu0 %v347
  %v2610 = vpop.f32.mrb[0].mxu0
  %v2611 = vadd.f32 %v2278, %v2610
  %v2612 = vpop.f32.mrb[0].mxu0
  %v2613 = vadd.f32 %v2280, %v2612
  %v2614 = vpop.f32.mrb[0].mxu0
  %v2615 = vadd.f32 %v2282, %v2614
  %v2616 = vpop.f32.mrb[0].mxu0
  %v2617 = vadd.f32 %v2284, %v2616
  %2618 = vmatprep.mubr.bf16.mxu0 0
  %2619 = vmatmul.mubr.bf16.gmra.mrb[0].mxu0 %v350
  %v2620 = vpop.f32.mrb[0].mxu0
  %v2621 = vadd.f32 %v2288, %v2620
  %v2622 = vpop.f32.mrb[0].mxu0
  %v2623 = vadd.f32 %v2290, %v2622
  %v2624 = vpop.f32.mrb[0].mxu0
  %v2625 = vadd.f32 %v2292, %v2624
  %v2626 = vpop.f32.mrb[0].mxu0
  %v2627 = vadd.f32 %v2294, %v2626
  %2628 = vmatprep.mubr.bf16.mxu0 0
  %2629 = vmatmul.mubr.bf16.gmra.mrb[0].mxu0 %v353
  %v2630 = vpop.f32.mrb[0].mxu0
  %v2631 = vadd.f32 %v2298, %v2630
  %v2632 = vpop.f32.mrb[0].mxu0
  %v2633 = vadd.f32 %v2300, %v2632
  %v2634 = vpop.f32.mrb[0].mxu0
  %v2635 = vadd.f32 %v2302, %v2634
  %v2636 = vpop.f32.mrb[0].mxu0
  %v2637 = vadd.f32 %v2304, %v2636
  %2638 = vmatprep.mubr.bf16.mxu0 0
  %2639 = vmatmul.mubr.bf16.gmra.mrb[0].mxu0 %v356
  %v2640 = vpop.f32.mrb[0].mxu0
  %v2641 = vadd.f32 %v2308, %v2640
  %v2642 = vpop.f32.mrb[0].mxu0
  %v2643 = vadd.f32 %v2310, %v2642
  %v2644 = vpop.f32.mrb[0].mxu0
  %v2645 = vadd.f32 %v2312, %v2644
  %v2646 = vpop.f32.mrb[0].mxu0
  %v2647 = vadd.f32 %v2314, %v2646
  %2648 = vmatprep.mubr.bf16.mxu0 0
  %2649 = vmatmul.mubr.bf16.gmra.mrb[0].mxu0 %v359
  %v2650 = vpop.f32.mrb[0].mxu0
  %v2651 = vadd.f32 %v2318, %v2650
  %v2652 = vpop.f32.mrb[0].mxu0
  %v2653 = vadd.f32 %v2320, %v2652
  %v2654 = vpop.f32.mrb[0].mxu0
  %v2655 = vadd.f32 %v2322, %v2654
  %v2656 = vpop.f32.mrb[0].mxu0
  %v2657 = vadd.f32 %v2324, %v2656
  %2658 = vmatprep.mubr.bf16.mxu0 0
  %2659 = vmatmul.mubr.bf16.gmra.mrb[0].mxu0 %v362
  %v2660 = vpop.f32.mrb[0].mxu0
  %v2661 = vadd.f32 %v2328, %v2660
  %v2662 = vpop.f32.mrb[0].mxu0
  %v2663 = vadd.f32 %v2330, %v2662
  %v2664 = vpop.f32.mrb[0].mxu0
  %v2665 = vadd.f32 %v2332, %v2664
  %v2666 = vpop.f32.mrb[0].mxu0
  %v2667 = vadd.f32 %v2334, %v2666
  %2668 = vmatprep.mubr.bf16.mxu0 0
  %2669 = vmatmul.mubr.bf16.gmra.mrb[0].mxu0 %v365
  %v2670 = vpop.f32.mrb[0].mxu0
  %v2671 = vadd.f32 %v2338, %v2670
  %v2672 = vpop.f32.mrb[0].mxu0
  %v2673 = vadd.f32 %v2340, %v2672
  %v2674 = vpop.f32.mrb[0].mxu0
  %v2675 = vadd.f32 %v2342, %v2674
  %v2676 = vpop.f32.mrb[0].mxu0
  %v2677 = vadd.f32 %v2344, %v2676
  %2678 = vmatprep.mubr.bf16.mxu0 0
  %2679 = vmatmul.mubr.bf16.gmra.mrb[0].mxu0 %v368
  %v2680 = vpop.f32.mrb[0].mxu0
  %v2681 = vadd.f32 %v2348, %v2680
  %v2682 = vpop.f32.mrb[0].mxu0
  %v2683 = vadd.f32 %v2350, %v2682
  %v2684 = vpop.f32.mrb[0].mxu0
  %v2685 = vadd.f32 %v2352, %v2684
  %v2686 = vpop.f32.mrb[0].mxu0
  %v2687 = vadd.f32 %v2354, %v2686
  %2688 = vmatprep.mubr.bf16.mxu0 0
  %2689 = vmatmul.mubr.bf16.gmra.mrb[0].mxu0 %v371
  %v2690 = vpop.f32.mrb[0].mxu0
  %v2691 = vadd.f32 %v2358, %v2690
  %v2692 = vpop.f32.mrb[0].mxu0
  %v2693 = vadd.f32 %v2360, %v2692
  %v2694 = vpop.f32.mrb[0].mxu0
  %v2695 = vadd.f32 %v2362, %v2694
  %v2696 = vpop.f32.mrb[0].mxu0
  %v2697 = vadd.f32 %v2364, %v2696
  %2698 = vmatprep.mubr.bf16.mxu0 0
  %2699 = vmatmul.mubr.bf16.gmra.mrb[0].mxu0 %v374
  %v2700 = vpop.f32.mrb[0].mxu0
  %v2701 = vadd.f32 %v2368, %v2700
  %v2702 = vpop.f32.mrb[0].mxu0
  %v2703 = vadd.f32 %v2370, %v2702
  %v2704 = vpop.f32.mrb[0].mxu0
  %v2705 = vadd.f32 %v2372, %v2704
  %v2706 = vpop.f32.mrb[0].mxu0
  %v2707 = vadd.f32 %v2374, %v2706
  %2708 = vmatprep.mubr.bf16.mxu0 0
  %2709 = vmatmul.mubr.bf16.gmra.mrb[0].mxu0 %v377
  %v2710 = vpop.f32.mrb[0].mxu0
  %v2711 = vadd.f32 %v2378, %v2710
  %v2712 = vpop.f32.mrb[0].mxu0
  %v2713 = vadd.f32 %v2380, %v2712
  %v2714 = vpop.f32.mrb[0].mxu0
  %v2715 = vadd.f32 %v2382, %v2714
  %v2716 = vpop.f32.mrb[0].mxu0
  %v2717 = vadd.f32 %v2384, %v2716
  %2718 = vmatprep.mubr.bf16.mxu0 0
  %2719 = vmatmul.mubr.bf16.gmra.mrb[0].mxu0 %v380
  %v2720 = vpop.f32.mrb[0].mxu0
  %v2721 = vadd.f32 %v2388, %v2720
  %v2722 = vpop.f32.mrb[0].mxu0
  %v2723 = vadd.f32 %v2390, %v2722
  %v2724 = vpop.f32.mrb[0].mxu0
  %v2725 = vadd.f32 %v2392, %v2724
  %v2726 = vpop.f32.mrb[0].mxu0
  %v2727 = vadd.f32 %v2394, %v2726
  %2728 = vmatprep.mubr.bf16.mxu0 0
  %2729 = vmatmul.mubr.bf16.gmra.mrb[0].mxu0 %v383
  %v2730 = vpop.f32.mrb[0].mxu0
  %v2731 = vadd.f32 %v2398, %v2730
  %v2732 = vpop.f32.mrb[0].mxu0
  %v2733 = vadd.f32 %v2400, %v2732
  %v2734 = vpop.f32.mrb[0].mxu0
  %v2735 = vadd.f32 %v2402, %v2734
  %v2736 = vpop.f32.mrb[0].mxu0
  %v2737 = vadd.f32 %v2404, %v2736
  %2738 = vmatprep.mubr.bf16.mxu0 0
  %2739 = vmatmul.mubr.bf16.gmra.mrb[0].mxu0 %v386
  %v2740 = vpop.f32.mrb[0].mxu0
  %v2741 = vadd.f32 %v2408, %v2740
  %v2742 = vpop.f32.mrb[0].mxu0
  %v2743 = vadd.f32 %v2410, %v2742
  %v2744 = vpop.f32.mrb[0].mxu0
  %v2745 = vadd.f32 %v2412, %v2744
  %v2746 = vpop.f32.mrb[0].mxu0
  %v2747 = vadd.f32 %v2414, %v2746
  %2748 = vmatprep.mubr.bf16.mxu0 0
  %2749 = vmatmul.mubr.bf16.gmra.mrb[0].mxu0 %v389
  %v2750 = vpop.f32.mrb[0].mxu0
  %v2751 = vadd.f32 %v2418, %v2750
  %v2752 = vpop.f32.mrb[0].mxu0
  %v2753 = vadd.f32 %v2420, %v2752
  %v2754 = vpop.f32.mrb[0].mxu0
  %v2755 = vadd.f32 %v2422, %v2754
  %v2756 = vpop.f32.mrb[0].mxu0
  %v2757 = vadd.f32 %v2424, %v2756
  %2758 = vmatprep.mubr.bf16.mxu0 0
  %2759 = vmatmul.mubr.bf16.gmra.mrb[0].mxu0 %v392
  %v2760 = vpop.f32.mrb[0].mxu0
  %v2761 = vadd.f32 %v2428, %v2760
  %v2762 = vpop.f32.mrb[0].mxu0
  %v2763 = vadd.f32 %v2430, %v2762
  %v2764 = vpop.f32.mrb[0].mxu0
  %v2765 = vadd.f32 %v2432, %v2764
  %v2766 = vpop.f32.mrb[0].mxu0
  %v2767 = vadd.f32 %v2434, %v2766
  %2768 = vmatprep.mubr.bf16.mxu0 0
  %2769 = vmatmul.mubr.bf16.gmra.mrb[0].mxu0 %v395
  %v2770 = vpop.f32.mrb[0].mxu0
  %v2771 = vadd.f32 %v2438, %v2770
  %v2772 = vpop.f32.mrb[0].mxu0
  %v2773 = vadd.f32 %v2440, %v2772
  %v2774 = vpop.f32.mrb[0].mxu0
  %v2775 = vadd.f32 %v2442, %v2774
  %v2776 = vpop.f32.mrb[0].mxu0
  %v2777 = vadd.f32 %v2444, %v2776
  %2778 = vmatprep.mubr.bf16.mxu0 0
  %2779 = vmatmul.mubr.bf16.gmra.mrb[0].mxu0 %v398
  %v2780 = vpop.f32.mrb[0].mxu0
  %v2781 = vadd.f32 %v2448, %v2780
  %v2782 = vpop.f32.mrb[0].mxu0
  %v2783 = vadd.f32 %v2450, %v2782
  %v2784 = vpop.f32.mrb[0].mxu0
  %v2785 = vadd.f32 %v2452, %v2784
  %v2786 = vpop.f32.mrb[0].mxu0
  %v2787 = vadd.f32 %v2454, %v2786
  %2788 = vmatprep.mubr.bf16.mxu0 0
  %2789 = vmatmul.mubr.bf16.gmra.mrb[0].mxu0 %v401
  %v2790 = vpop.f32.mrb[0].mxu0
  %v2791 = vadd.f32 %v2458, %v2790
  %v2792 = vpop.f32.mrb[0].mxu0
  %v2793 = vadd.f32 %v2460, %v2792
  %v2794 = vpop.f32.mrb[0].mxu0
  %v2795 = vadd.f32 %v2462, %v2794
  %v2796 = vpop.f32.mrb[0].mxu0
  %v2797 = vadd.f32 %v2464, %v2796
  %2798 = vmatprep.mubr.bf16.mxu0 0
  %2799 = vmatmul.mubr.bf16.gmra.mrb[0].mxu0 %v404
  %v2800 = vpop.f32.mrb[0].mxu0
  %v2801 = vadd.f32 %v2468, %v2800
  %v2802 = vpop.f32.mrb[0].mxu0
  %v2803 = vadd.f32 %v2470, %v2802
  %v2804 = vpop.f32.mrb[0].mxu0
  %v2805 = vadd.f32 %v2472, %v2804
  %v2806 = vpop.f32.mrb[0].mxu0
  %v2807 = vadd.f32 %v2474, %v2806
  %2808 = vmatprep.mubr.bf16.mxu0 0
  %2809 = vmatmul.mubr.bf16.gmra.mrb[0].mxu0 %v407
  %v2810 = vpop.f32.mrb[0].mxu0
  %v2811 = vadd.f32 %v2478, %v2810
  %v2812 = vpop.f32.mrb[0].mxu0
  %v2813 = vadd.f32 %v2480, %v2812
  %v2814 = vpop.f32.mrb[0].mxu0
  %v2815 = vadd.f32 %v2482, %v2814
  %v2816 = vpop.f32.mrb[0].mxu0
  %v2817 = vadd.f32 %v2484, %v2816
  %2818 = vmatprep.mubr.bf16.mxu0 0
  %2819 = vmatmul.mubr.bf16.gmra.mrb[0].mxu0 %v410
  %v2820 = vpop.f32.mrb[0].mxu0
  %v2821 = vadd.f32 %v2488, %v2820
  %v2822 = vpop.f32.mrb[0].mxu0
  %v2823 = vadd.f32 %v2490, %v2822
  %v2824 = vpop.f32.mrb[0].mxu0
  %v2825 = vadd.f32 %v2492, %v2824
  %v2826 = vpop.f32.mrb[0].mxu0
  %v2827 = vadd.f32 %v2494, %v2826
  %2828 = vmatprep.mubr.bf16.mxu0 0
  %2829 = vmatmul.mubr.bf16.gmra.mrb[0].mxu0 %v413
  %v2830 = vpop.f32.mrb[0].mxu0
  %v2831 = vadd.f32 %v2498, %v2830
  %v2832 = vpop.f32.mrb[0].mxu0
  %v2833 = vadd.f32 %v2500, %v2832
  %v2834 = vpop.f32.mrb[0].mxu0
  %v2835 = vadd.f32 %v2502, %v2834
  %v2836 = vpop.f32.mrb[0].mxu0
  %v2837 = vadd.f32 %v2504, %v2836
  %2838 = vmatprep.mubr.bf16.mxu0 0
  %2839 = vmatmul.mubr.bf16.gmra.mrb[0].mxu0 %v416
  %v2840 = vpop.f32.mrb[0].mxu0
  %v2841 = vadd.f32 %v2508, %v2840
  %v2842 = vpop.f32.mrb[0].mxu0
  %v2843 = vadd.f32 %v2510, %v2842
  %v2844 = vpop.f32.mrb[0].mxu0
  %v2845 = vadd.f32 %v2512, %v2844
  %v2846 = vpop.f32.mrb[0].mxu0
  %v2847 = vadd.f32 %v2514, %v2846
  %2848 = vmatprep.mubr.bf16.mxu0 0
  %2849 = vmatmul.mubr.bf16.gmra.mrb[0].mxu0 %v419
  %v2850 = vpop.f32.mrb[0].mxu0
  %v2851 = vadd.f32 %v2518, %v2850
  %v2852 = vpop.f32.mrb[0].mxu0
  %v2853 = vadd.f32 %v2520, %v2852
  %v2854 = vpop.f32.mrb[0].mxu0
  %v2855 = vadd.f32 %v2522, %v2854
  %v2856 = vpop.f32.mrb[0].mxu0
  %v2857 = vadd.f32 %v2524, %v2856
  %2858 = vmatprep.mubr.bf16.mxu0 0
  %2859 = vmatmul.mubr.bf16.gmra.mrb[0].mxu0 %v422
  %v2860 = vpop.f32.mrb[0].mxu0
  %v2861 = vadd.f32 %v2528, %v2860
  %v2862 = vpop.f32.mrb[0].mxu0
  %v2863 = vadd.f32 %v2530, %v2862
  %v2864 = vpop.f32.mrb[0].mxu0
  %v2865 = vadd.f32 %v2532, %v2864
  %v2866 = vpop.f32.mrb[0].mxu0
  %v2867 = vadd.f32 %v2534, %v2866
  %2868 = vdwg.mxu0
  %v2869 = vld [vmem:[%s1 + $0x10] sm:$0xf]
  %v2870 = vld [vmem:[%s1 + $0x14] sm:$0xf]
  %v2871 = vld [vmem:[%s1 + $0x18] sm:$0xf]
  %v2872 = vld [vmem:[%s1 + $0x1c] sm:$0xf]
  %v2873 = vld [vmem:[%s1 + $0x20] sm:$0xf]
  %v2874 = vld [vmem:[%s1 + $0x24] sm:$0xf]
  %v2875 = vld [vmem:[%s1 + $0x28] sm:$0xf]
  %v2876 = vld [vmem:[%s1 + $0x2c] sm:$0xf]
  %v2877 = vld [vmem:[%s1 + $0x30] sm:$0xf]
  %v2878 = vld [vmem:[%s1 + $0x34] sm:$0xf]
  %v2879 = vld [vmem:[%s1 + $0x38] sm:$0xf]
  %v2880 = vld [vmem:[%s1 + $0x3c] sm:$0xf]
  %v2881 = vld [vmem:[%s1 + $0x40] sm:$0xf]
  %v2882 = vld [vmem:[%s1 + $0x44] sm:$0xf]
  %v2883 = vld [vmem:[%s1 + $0x48] sm:$0xf]
  %v2884 = vld [vmem:[%s1 + $0x4c] sm:$0xf]
  %v2885 = vld [vmem:[%s1 + $0x50] sm:$0xf]
  %v2886 = vld [vmem:[%s1 + $0x54] sm:$0xf]
  %v2887 = vld [vmem:[%s1 + $0x58] sm:$0xf]
  %v2888 = vld [vmem:[%s1 + $0x5c] sm:$0xf]
  %v2889 = vld [vmem:[%s1 + $0x60] sm:$0xf]
  %v2890 = vld [vmem:[%s1 + $0x64] sm:$0xf]
  %v2891 = vld [vmem:[%s1 + $0x68] sm:$0xf]
  %v2892 = vld [vmem:[%s1 + $0x6c] sm:$0xf]
  %v2893 = vld [vmem:[%s1 + $0x70] sm:$0xf]
  %v2894 = vld [vmem:[%s1 + $0x74] sm:$0xf]
  %v2895 = vld [vmem:[%s1 + $0x78] sm:$0xf]
  %v2896 = vld [vmem:[%s1 + $0x7c] sm:$0xf]
  %v2897 = vld [vmem:[%s1 + $0x80] sm:$0xf]
  %v2898 = vld [vmem:[%s1 + $0x84] sm:$0xf]
  %v2899 = vld [vmem:[%s1 + $0x88] sm:$0xf]
  %v2900 = vld [vmem:[%s1 + $0x8c] sm:$0xf]
  %v2901 = vld [vmem:[%s1 + $0x90] sm:$0xf]
  %v2902 = vld [vmem:[%s1 + $0x94] sm:$0xf]
  %v2903 = vld [vmem:[%s1 + $0x98] sm:$0xf]
  %v2904 = vld [vmem:[%s1 + $0x9c] sm:$0xf]
  %v2905 = vld [vmem:[%s1 + $0xa0] sm:$0xf]
  %v2906 = vld [vmem:[%s1 + $0xa4] sm:$0xf]
  %v2907 = vld [vmem:[%s1 + $0xa8] sm:$0xf]
  %v2908 = vld [vmem:[%s1 + $0xac] sm:$0xf]
  %v2909 = vld [vmem:[%s1 + $0xb0] sm:$0xf]
  %v2910 = vld [vmem:[%s1 + $0xb4] sm:$0xf]
  %v2911 = vld [vmem:[%s1 + $0xb8] sm:$0xf]
  %v2912 = vld [vmem:[%s1 + $0xbc] sm:$0xf]
  %v2913 = vld [vmem:[%s1 + $0xc0] sm:$0xf]
  %v2914 = vld [vmem:[%s1 + $0xc4] sm:$0xf]
  %v2915 = vld [vmem:[%s1 + $0xc8] sm:$0xf]
  %v2916 = vld [vmem:[%s1 + $0xcc] sm:$0xf]
  %v2917 = vld [vmem:[%s1 + $0xd0] sm:$0xf]
  %v2918 = vld [vmem:[%s1 + $0xd4] sm:$0xf]
  %v2919 = vld [vmem:[%s1 + $0xd8] sm:$0xf]
  %v2920 = vld [vmem:[%s1 + $0xdc] sm:$0xf]
  %v2921 = vld [vmem:[%s1 + $0xe0] sm:$0xf]
  %v2922 = vld [vmem:[%s1 + $0xe4] sm:$0xf]
  %v2923 = vld [vmem:[%s1 + $0xe8] sm:$0xf]
  %v2924 = vld [vmem:[%s1 + $0xec] sm:$0xf]
  %v2925 = vld [vmem:[%s1 + $0xf0] sm:$0xf]
  %v2926 = vld [vmem:[%s1 + $0xf4] sm:$0xf]
  %v2927 = vld [vmem:[%s1 + $0xf8] sm:$0xf]
  %v2928 = vld [vmem:[%s1 + $0xfc] sm:$0xf]
  %v2989 = vunpack.c.l.b16 %v2869
  %v2990 = vunpack.c.l.b16 %v2870
  %v2991 = vunpack.c.l.b16 %v2871
  %v2992 = vunpack.c.l.b16 %v2872
  %v2993 = vunpack.c.l.b16 %v2873
  %v2994 = vunpack.c.l.b16 %v2874
  %v2995 = vunpack.c.l.b16 %v2875
  %v2996 = vunpack.c.l.b16 %v2876
  %v2997 = vunpack.c.l.b16 %v2877
  %v2998 = vunpack.c.l.b16 %v2878
  %v2999 = vunpack.c.l.b16 %v2879
  %v3000 = vunpack.c.l.b16 %v2880
  %v3001 = vunpack.c.l.b16 %v2881
  %v3002 = vunpack.c.l.b16 %v2882
  %v3003 = vunpack.c.l.b16 %v2883
  %v3004 = vunpack.c.l.b16 %v2884
  %v3005 = vunpack.c.l.b16 %v2885
  %v3006 = vunpack.c.l.b16 %v2886
  %v3007 = vunpack.c.l.b16 %v2887
  %v3008 = vunpack.c.l.b16 %v2888
  %v3009 = vunpack.c.l.b16 %v2889
  %v3010 = vunpack.c.l.b16 %v2890
  %v3011 = vunpack.c.l.b16 %v2891
  %v3012 = vunpack.c.l.b16 %v2892
  %v3013 = vunpack.c.l.b16 %v2893
  %v3014 = vunpack.c.l.b16 %v2894
  %v3015 = vunpack.c.l.b16 %v2895
  %v3016 = vunpack.c.l.b16 %v2896
  %v3017 = vunpack.c.l.b16 %v2897
  %v3018 = vunpack.c.l.b16 %v2898
  %v3019 = vunpack.c.l.b16 %v2899
  %v3020 = vunpack.c.l.b16 %v2900
  %v3021 = vunpack.c.l.b16 %v2901
  %v3022 = vunpack.c.l.b16 %v2902
  %v3023 = vunpack.c.l.b16 %v2903
  %v3024 = vunpack.c.l.b16 %v2904
  %v3025 = vunpack.c.l.b16 %v2905
  %v3026 = vunpack.c.l.b16 %v2906
  %v3027 = vunpack.c.l.b16 %v2907
  %v3028 = vunpack.c.l.b16 %v2908
  %v3029 = vunpack.c.l.b16 %v2909
  %v3030 = vunpack.c.l.b16 %v2910
  %v3031 = vunpack.c.l.b16 %v2911
  %v3032 = vunpack.c.l.b16 %v2912
  %v3033 = vunpack.c.l.b16 %v2913
  %v3034 = vunpack.c.l.b16 %v2914
  %v3035 = vunpack.c.l.b16 %v2915
  %v3036 = vunpack.c.l.b16 %v2916
  %v3037 = vunpack.c.l.b16 %v2917
  %v3038 = vunpack.c.l.b16 %v2918
  %v3039 = vunpack.c.l.b16 %v2919
  %v3040 = vunpack.c.l.b16 %v2920
  %v3041 = vunpack.c.l.b16 %v2921
  %v3042 = vunpack.c.l.b16 %v2922
  %v3043 = vunpack.c.l.b16 %v2923
  %v3044 = vunpack.c.l.b16 %v2924
  %v3045 = vunpack.c.l.b16 %v2925
  %v3046 = vunpack.c.l.b16 %v2926
  %v3047 = vunpack.c.l.b16 %v2927
  %v3048 = vunpack.c.l.b16 %v2928
  %v3049 = vpack.c.b16 %v2990, %v2989
  %v3050 = vpack.c.b16 %v2992, %v2991
  %v3051 = vpack.c.b16 %v2994, %v2993
  %v3052 = vpack.c.b16 %v2996, %v2995
  %v3053 = vpack.c.b16 %v2998, %v2997
  %v3054 = vpack.c.b16 %v3000, %v2999
  %v3055 = vpack.c.b16 %v3002, %v3001
  %v3056 = vpack.c.b16 %v3004, %v3003
  %v3057 = vpack.c.b16 %v3006, %v3005
  %v3058 = vpack.c.b16 %v3008, %v3007
  %v3059 = vpack.c.b16 %v3010, %v3009
  %v3060 = vpack.c.b16 %v3012, %v3011
  %v3061 = vpack.c.b16 %v3014, %v3013
  %v3062 = vpack.c.b16 %v3016, %v3015
  %v3063 = vpack.c.b16 %v3018, %v3017
  %v3064 = vpack.c.b16 %v3020, %v3019
  %v3065 = vpack.c.b16 %v3022, %v3021
  %v3066 = vpack.c.b16 %v3024, %v3023
  %v3067 = vpack.c.b16 %v3026, %v3025
  %v3068 = vpack.c.b16 %v3028, %v3027
  %v3069 = vpack.c.b16 %v3030, %v3029
  %v3070 = vpack.c.b16 %v3032, %v3031
  %v3071 = vpack.c.b16 %v3034, %v3033
  %v3072 = vpack.c.b16 %v3036, %v3035
  %v3073 = vpack.c.b16 %v3038, %v3037
  %v3074 = vpack.c.b16 %v3040, %v3039
  %v3075 = vpack.c.b16 %v3042, %v3041
  %v3076 = vpack.c.b16 %v3044, %v3043
  %v3077 = vpack.c.b16 %v3046, %v3045
  %v3078 = vpack.c.b16 %v3048, %v3047
  %v3080 = vsel %vm333, %v3049, 0
  %v3083 = vsel %vm333, %v3050, 0
  %v3086 = vsel %vm333, %v3051, 0
  %v3089 = vsel %vm333, %v3052, 0
  %v3092 = vsel %vm333, %v3053, 0
  %v3095 = vsel %vm333, %v3054, 0
  %v3098 = vsel %vm333, %v3055, 0
  %v3101 = vsel %vm333, %v3056, 0
  %v3104 = vsel %vm333, %v3057, 0
  %v3107 = vsel %vm333, %v3058, 0
  %v3110 = vsel %vm333, %v3059, 0
  %v3113 = vsel %vm333, %v3060, 0
  %v3116 = vsel %vm333, %v3061, 0
  %v3119 = vsel %vm333, %v3062, 0
  %v3122 = vsel %vm333, %v3063, 0
  %v3125 = vsel %vm333, %v3064, 0
  %v3128 = vsel %vm333, %v3065, 0
  %v3131 = vsel %vm333, %v3066, 0
  %v3134 = vsel %vm333, %v3067, 0
  %v3137 = vsel %vm333, %v3068, 0
  %v3140 = vsel %vm333, %v3069, 0
  %v3143 = vsel %vm333, %v3070, 0
  %v3146 = vsel %vm333, %v3071, 0
  %v3149 = vsel %vm333, %v3072, 0
  %v3152 = vsel %vm333, %v3073, 0
  %v3155 = vsel %vm333, %v3074, 0
  %v3158 = vsel %vm333, %v3075, 0
  %v3161 = vsel %vm333, %v3076, 0
  %v3164 = vsel %vm333, %v3077, 0
  %v3167 = vsel %vm333, %v3078, 0
  %3169 = vmatprep.subr.bf16.mxu0 %v1589
  %3170 = vmatpush1.bf16.msra.mxu0 %v1588
  %3171 = vmatprep.subr.bf16.mxu0 %v1688
  %3172 = vmatpush1.bf16.msra.mxu0 %v1685
  %3173 = vmatprep.subr.bf16.mxu0 0
  %3174 = vmatpush1.bf16.msra.mxu0 0
  %3175 = vmatprep.subr.bf16.mxu0 0
  %3176 = vmatpush1.bf16.msra.mxu0 0
  %3177 = vmatprep.subr.bf16.mxu0 0
  %3178 = vmatpush1.bf16.msra.mxu0 0
  %3179 = vmatprep.subr.bf16.mxu0 0
  %3180 = vmatpush1.bf16.msra.mxu0 0
  %3181 = vmatprep.subr.bf16.mxu0 0
  %3182 = vmatpush1.bf16.msra.mxu0 0
  %3183 = vmatprep.subr.bf16.mxu0 0
  %3184 = vmatpush1.bf16.msra.mxu0 0
  %3185 = vmatprep.subr.bf16.mxu0 0
  %3186 = vmatpush1.bf16.msra.mxu0 0
  %3187 = vmatprep.subr.bf16.mxu0 0
  %3188 = vmatpush1.bf16.msra.mxu0 0
  %3189 = vmatprep.subr.bf16.mxu0 0
  %3190 = vmatpush1.bf16.msra.mxu0 0
  %3191 = vmatprep.subr.bf16.mxu0 0
  %3192 = vmatpush1.bf16.msra.mxu0 0
  %3193 = vmatprep.subr.bf16.mxu0 0
  %3194 = vmatpush1.bf16.msra.mxu0 0
  %3195 = vmatprep.subr.bf16.mxu0 0
  %3196 = vmatpush1.bf16.msra.mxu0 0
  %3197 = vmatprep.subr.bf16.mxu0 0
  %3198 = vmatpush1.bf16.msra.mxu0 0
  %3199 = vmatprep.subr.bf16.mxu0 0
  %3200 = vmatpush1.bf16.msra.mxu0 0
  %3201 = vmatprep.mubr.bf16.mxu0 0
  %3202 = vmatmul.mubr.bf16.gmra.mrb[0].mxu0 %v3080
  %v3203 = vpop.f32.mrb[0].mxu0
  %v3204 = vadd.f32 0.0, %v3203
  %v3205 = vpop.f32.mrb[0].mxu0
  %v3206 = vadd.f32 0.0, %v3205
  %v3207 = vpop.f32.mrb[0].mxu0
  %v3208 = vadd.f32 0.0, %v3207
  %v3209 = vpop.f32.mrb[0].mxu0
  %v3210 = vadd.f32 0.0, %v3209
  %3211 = vmatprep.mubr.bf16.mxu0 0
  %3212 = vmatmul.mubr.bf16.gmra.mrb[0].mxu0 %v3083
  %v3213 = vpop.f32.mrb[0].mxu0
  %v3214 = vadd.f32 0.0, %v3213
  %v3215 = vpop.f32.mrb[0].mxu0
  %v3216 = vadd.f32 0.0, %v3215
  %v3217 = vpop.f32.mrb[0].mxu0
  %v3218 = vadd.f32 0.0, %v3217
  %v3219 = vpop.f32.mrb[0].mxu0
  %v3220 = vadd.f32 0.0, %v3219
  %3221 = vmatprep.mubr.bf16.mxu0 0
  %3222 = vmatmul.mubr.bf16.gmra.mrb[0].mxu0 %v3086
  %v3223 = vpop.f32.mrb[0].mxu0
  %v3224 = vadd.f32 0.0, %v3223
  %v3225 = vpop.f32.mrb[0].mxu0
  %v3226 = vadd.f32 0.0, %v3225
  %v3227 = vpop.f32.mrb[0].mxu0
  %v3228 = vadd.f32 0.0, %v3227
  %v3229 = vpop.f32.mrb[0].mxu0
  %v3230 = vadd.f32 0.0, %v3229
  %3231 = vmatprep.mubr.bf16.mxu0 0
  %3232 = vmatmul.mubr.bf16.gmra.mrb[0].mxu0 %v3089
  %v3233 = vpop.f32.mrb[0].mxu0
  %v3234 = vadd.f32 0.0, %v3233
  %v3235 = vpop.f32.mrb[0].mxu0
  %v3236 = vadd.f32 0.0, %v3235
  %v3237 = vpop.f32.mrb[0].mxu0
  %v3238 = vadd.f32 0.0, %v3237
  %v3239 = vpop.f32.mrb[0].mxu0
  %v3240 = vadd.f32 0.0, %v3239
  %3241 = vmatprep.mubr.bf16.mxu0 0
  %3242 = vmatmul.mubr.bf16.gmra.mrb[0].mxu0 %v3092
  %v3243 = vpop.f32.mrb[0].mxu0
  %v3244 = vadd.f32 0.0, %v3243
  %v3245 = vpop.f32.mrb[0].mxu0
  %v3246 = vadd.f32 0.0, %v3245
  %v3247 = vpop.f32.mrb[0].mxu0
  %v3248 = vadd.f32 0.0, %v3247
  %v3249 = vpop.f32.mrb[0].mxu0
  %v3250 = vadd.f32 0.0, %v3249
  %3251 = vmatprep.mubr.bf16.mxu0 0
  %3252 = vmatmul.mubr.bf16.gmra.mrb[0].mxu0 %v3095
  %v3253 = vpop.f32.mrb[0].mxu0
  %v3254 = vadd.f32 0.0, %v3253
  %v3255 = vpop.f32.mrb[0].mxu0
  %v3256 = vadd.f32 0.0, %v3255
  %v3257 = vpop.f32.mrb[0].mxu0
  %v3258 = vadd.f32 0.0, %v3257
  %v3259 = vpop.f32.mrb[0].mxu0
  %v3260 = vadd.f32 0.0, %v3259
  %3261 = vmatprep.mubr.bf16.mxu0 0
  %3262 = vmatmul.mubr.bf16.gmra.mrb[0].mxu0 %v3098
  %v3263 = vpop.f32.mrb[0].mxu0
  %v3264 = vadd.f32 0.0, %v3263
  %v3265 = vpop.f32.mrb[0].mxu0
  %v3266 = vadd.f32 0.0, %v3265
  %v3267 = vpop.f32.mrb[0].mxu0
  %v3268 = vadd.f32 0.0, %v3267
  %v3269 = vpop.f32.mrb[0].mxu0
  %v3270 = vadd.f32 0.0, %v3269
  %3271 = vmatprep.mubr.bf16.mxu0 0
  %3272 = vmatmul.mubr.bf16.gmra.mrb[0].mxu0 %v3101
  %v3273 = vpop.f32.mrb[0].mxu0
  %v3274 = vadd.f32 0.0, %v3273
  %v3275 = vpop.f32.mrb[0].mxu0
  %v3276 = vadd.f32 0.0, %v3275
  %v3277 = vpop.f32.mrb[0].mxu0
  %v3278 = vadd.f32 0.0, %v3277
  %v3279 = vpop.f32.mrb[0].mxu0
  %v3280 = vadd.f32 0.0, %v3279
  %3281 = vmatprep.mubr.bf16.mxu0 0
  %3282 = vmatmul.mubr.bf16.gmra.mrb[0].mxu0 %v3104
  %v3283 = vpop.f32.mrb[0].mxu0
  %v3284 = vadd.f32 0.0, %v3283
  %v3285 = vpop.f32.mrb[0].mxu0
  %v3286 = vadd.f32 0.0, %v3285
  %v3287 = vpop.f32.mrb[0].mxu0
  %v3288 = vadd.f32 0.0, %v3287
  %v3289 = vpop.f32.mrb[0].mxu0
  %v3290 = vadd.f32 0.0, %v3289
  %3291 = vmatprep.mubr.bf16.mxu0 0
  %3292 = vmatmul.mubr.bf16.gmra.mrb[0].mxu0 %v3107
  %v3293 = vpop.f32.mrb[0].mxu0
  %v3294 = vadd.f32 0.0, %v3293
  %v3295 = vpop.f32.mrb[0].mxu0
  %v3296 = vadd.f32 0.0, %v3295
  %v3297 = vpop.f32.mrb[0].mxu0
  %v3298 = vadd.f32 0.0, %v3297
  %v3299 = vpop.f32.mrb[0].mxu0
  %v3300 = vadd.f32 0.0, %v3299
  %3301 = vmatprep.mubr.bf16.mxu0 0
  %3302 = vmatmul.mubr.bf16.gmra.mrb[0].mxu0 %v3110
  %v3303 = vpop.f32.mrb[0].mxu0
  %v3304 = vadd.f32 0.0, %v3303
  %v3305 = vpop.f32.mrb[0].mxu0
  %v3306 = vadd.f32 0.0, %v3305
  %v3307 = vpop.f32.mrb[0].mxu0
  %v3308 = vadd.f32 0.0, %v3307
  %v3309 = vpop.f32.mrb[0].mxu0
  %v3310 = vadd.f32 0.0, %v3309
  %3311 = vmatprep.mubr.bf16.mxu0 0
  %3312 = vmatmul.mubr.bf16.gmra.mrb[0].mxu0 %v3113
  %v3313 = vpop.f32.mrb[0].mxu0
  %v3314 = vadd.f32 0.0, %v3313
  %v3315 = vpop.f32.mrb[0].mxu0
  %v3316 = vadd.f32 0.0, %v3315
  %v3317 = vpop.f32.mrb[0].mxu0
  %v3318 = vadd.f32 0.0, %v3317
  %v3319 = vpop.f32.mrb[0].mxu0
  %v3320 = vadd.f32 0.0, %v3319
  %3321 = vmatprep.mubr.bf16.mxu0 0
  %3322 = vmatmul.mubr.bf16.gmra.mrb[0].mxu0 %v3116
  %v3323 = vpop.f32.mrb[0].mxu0
  %v3324 = vadd.f32 0.0, %v3323
  %v3325 = vpop.f32.mrb[0].mxu0
  %v3326 = vadd.f32 0.0, %v3325
  %v3327 = vpop.f32.mrb[0].mxu0
  %v3328 = vadd.f32 0.0, %v3327
  %v3329 = vpop.f32.mrb[0].mxu0
  %v3330 = vadd.f32 0.0, %v3329
  %3331 = vmatprep.mubr.bf16.mxu0 0
  %3332 = vmatmul.mubr.bf16.gmra.mrb[0].mxu0 %v3119
  %v3333 = vpop.f32.mrb[0].mxu0
  %v3334 = vadd.f32 0.0, %v3333
  %v3335 = vpop.f32.mrb[0].mxu0
  %v3336 = vadd.f32 0.0, %v3335
  %v3337 = vpop.f32.mrb[0].mxu0
  %v3338 = vadd.f32 0.0, %v3337
  %v3339 = vpop.f32.mrb[0].mxu0
  %v3340 = vadd.f32 0.0, %v3339
  %3341 = vmatprep.mubr.bf16.mxu0 0
  %3342 = vmatmul.mubr.bf16.gmra.mrb[0].mxu0 %v3122
  %v3343 = vpop.f32.mrb[0].mxu0
  %v3344 = vadd.f32 0.0, %v3343
  %v3345 = vpop.f32.mrb[0].mxu0
  %v3346 = vadd.f32 0.0, %v3345
  %v3347 = vpop.f32.mrb[0].mxu0
  %v3348 = vadd.f32 0.0, %v3347
  %v3349 = vpop.f32.mrb[0].mxu0
  %v3350 = vadd.f32 0.0, %v3349
  %3351 = vmatprep.mubr.bf16.mxu0 0
  %3352 = vmatmul.mubr.bf16.gmra.mrb[0].mxu0 %v3125
  %v3353 = vpop.f32.mrb[0].mxu0
  %v3354 = vadd.f32 0.0, %v3353
  %v3355 = vpop.f32.mrb[0].mxu0
  %v3356 = vadd.f32 0.0, %v3355
  %v3357 = vpop.f32.mrb[0].mxu0
  %v3358 = vadd.f32 0.0, %v3357
  %v3359 = vpop.f32.mrb[0].mxu0
  %v3360 = vadd.f32 0.0, %v3359
  %3361 = vmatprep.mubr.bf16.mxu0 0
  %3362 = vmatmul.mubr.bf16.gmra.mrb[0].mxu0 %v3128
  %v3363 = vpop.f32.mrb[0].mxu0
  %v3364 = vadd.f32 0.0, %v3363
  %v3365 = vpop.f32.mrb[0].mxu0
  %v3366 = vadd.f32 0.0, %v3365
  %v3367 = vpop.f32.mrb[0].mxu0
  %v3368 = vadd.f32 0.0, %v3367
  %v3369 = vpop.f32.mrb[0].mxu0
  %v3370 = vadd.f32 0.0, %v3369
  %3371 = vmatprep.mubr.bf16.mxu0 0
  %3372 = vmatmul.mubr.bf16.gmra.mrb[0].mxu0 %v3131
  %v3373 = vpop.f32.mrb[0].mxu0
  %v3374 = vadd.f32 0.0, %v3373
  %v3375 = vpop.f32.mrb[0].mxu0
  %v3376 = vadd.f32 0.0, %v3375
  %v3377 = vpop.f32.mrb[0].mxu0
  %v3378 = vadd.f32 0.0, %v3377
  %v3379 = vpop.f32.mrb[0].mxu0
  %v3380 = vadd.f32 0.0, %v3379
  %3381 = vmatprep.mubr.bf16.mxu0 0
  %3382 = vmatmul.mubr.bf16.gmra.mrb[0].mxu0 %v3134
  %v3383 = vpop.f32.mrb[0].mxu0
  %v3384 = vadd.f32 0.0, %v3383
  %v3385 = vpop.f32.mrb[0].mxu0
  %v3386 = vadd.f32 0.0, %v3385
  %v3387 = vpop.f32.mrb[0].mxu0
  %v3388 = vadd.f32 0.0, %v3387
  %v3389 = vpop.f32.mrb[0].mxu0
  %v3390 = vadd.f32 0.0, %v3389
  %3391 = vmatprep.mubr.bf16.mxu0 0
  %3392 = vmatmul.mubr.bf16.gmra.mrb[0].mxu0 %v3137
  %v3393 = vpop.f32.mrb[0].mxu0
  %v3394 = vadd.f32 0.0, %v3393
  %v3395 = vpop.f32.mrb[0].mxu0
  %v3396 = vadd.f32 0.0, %v3395
  %v3397 = vpop.f32.mrb[0].mxu0
  %v3398 = vadd.f32 0.0, %v3397
  %v3399 = vpop.f32.mrb[0].mxu0
  %v3400 = vadd.f32 0.0, %v3399
  %3401 = vmatprep.mubr.bf16.mxu0 0
  %3402 = vmatmul.mubr.bf16.gmra.mrb[0].mxu0 %v3140
  %v3403 = vpop.f32.mrb[0].mxu0
  %v3404 = vadd.f32 0.0, %v3403
  %v3405 = vpop.f32.mrb[0].mxu0
  %v3406 = vadd.f32 0.0, %v3405
  %v3407 = vpop.f32.mrb[0].mxu0
  %v3408 = vadd.f32 0.0, %v3407
  %v3409 = vpop.f32.mrb[0].mxu0
  %v3410 = vadd.f32 0.0, %v3409
  %3411 = vmatprep.mubr.bf16.mxu0 0
  %3412 = vmatmul.mubr.bf16.gmra.mrb[0].mxu0 %v3143
  %v3413 = vpop.f32.mrb[0].mxu0
  %v3414 = vadd.f32 0.0, %v3413
  %v3415 = vpop.f32.mrb[0].mxu0
  %v3416 = vadd.f32 0.0, %v3415
  %v3417 = vpop.f32.mrb[0].mxu0
  %v3418 = vadd.f32 0.0, %v3417
  %v3419 = vpop.f32.mrb[0].mxu0
  %v3420 = vadd.f32 0.0, %v3419
  %3421 = vmatprep.mubr.bf16.mxu0 0
  %3422 = vmatmul.mubr.bf16.gmra.mrb[0].mxu0 %v3146
  %v3423 = vpop.f32.mrb[0].mxu0
  %v3424 = vadd.f32 0.0, %v3423
  %v3425 = vpop.f32.mrb[0].mxu0
  %v3426 = vadd.f32 0.0, %v3425
  %v3427 = vpop.f32.mrb[0].mxu0
  %v3428 = vadd.f32 0.0, %v3427
  %v3429 = vpop.f32.mrb[0].mxu0
  %v3430 = vadd.f32 0.0, %v3429
  %3431 = vmatprep.mubr.bf16.mxu0 0
  %3432 = vmatmul.mubr.bf16.gmra.mrb[0].mxu0 %v3149
  %v3433 = vpop.f32.mrb[0].mxu0
  %v3434 = vadd.f32 0.0, %v3433
  %v3435 = vpop.f32.mrb[0].mxu0
  %v3436 = vadd.f32 0.0, %v3435
  %v3437 = vpop.f32.mrb[0].mxu0
  %v3438 = vadd.f32 0.0, %v3437
  %v3439 = vpop.f32.mrb[0].mxu0
  %v3440 = vadd.f32 0.0, %v3439
  %3441 = vmatprep.mubr.bf16.mxu0 0
  %3442 = vmatmul.mubr.bf16.gmra.mrb[0].mxu0 %v3152
  %v3443 = vpop.f32.mrb[0].mxu0
  %v3444 = vadd.f32 0.0, %v3443
  %v3445 = vpop.f32.mrb[0].mxu0
  %v3446 = vadd.f32 0.0, %v3445
  %v3447 = vpop.f32.mrb[0].mxu0
  %v3448 = vadd.f32 0.0, %v3447
  %v3449 = vpop.f32.mrb[0].mxu0
  %v3450 = vadd.f32 0.0, %v3449
  %3451 = vmatprep.mubr.bf16.mxu0 0
  %3452 = vmatmul.mubr.bf16.gmra.mrb[0].mxu0 %v3155
  %v3453 = vpop.f32.mrb[0].mxu0
  %v3454 = vadd.f32 0.0, %v3453
  %v3455 = vpop.f32.mrb[0].mxu0
  %v3456 = vadd.f32 0.0, %v3455
  %v3457 = vpop.f32.mrb[0].mxu0
  %v3458 = vadd.f32 0.0, %v3457
  %v3459 = vpop.f32.mrb[0].mxu0
  %v3460 = vadd.f32 0.0, %v3459
  %3461 = vmatprep.mubr.bf16.mxu0 0
  %3462 = vmatmul.mubr.bf16.gmra.mrb[0].mxu0 %v3158
  %v3463 = vpop.f32.mrb[0].mxu0
  %v3464 = vadd.f32 0.0, %v3463
  %v3465 = vpop.f32.mrb[0].mxu0
  %v3466 = vadd.f32 0.0, %v3465
  %v3467 = vpop.f32.mrb[0].mxu0
  %v3468 = vadd.f32 0.0, %v3467
  %v3469 = vpop.f32.mrb[0].mxu0
  %v3470 = vadd.f32 0.0, %v3469
  %3471 = vmatprep.mubr.bf16.mxu0 0
  %3472 = vmatmul.mubr.bf16.gmra.mrb[0].mxu0 %v3161
  %v3473 = vpop.f32.mrb[0].mxu0
  %v3474 = vadd.f32 0.0, %v3473
  %v3475 = vpop.f32.mrb[0].mxu0
  %v3476 = vadd.f32 0.0, %v3475
  %v3477 = vpop.f32.mrb[0].mxu0
  %v3478 = vadd.f32 0.0, %v3477
  %v3479 = vpop.f32.mrb[0].mxu0
  %v3480 = vadd.f32 0.0, %v3479
  %3481 = vmatprep.mubr.bf16.mxu0 0
  %3482 = vmatmul.mubr.bf16.gmra.mrb[0].mxu0 %v3164
  %v3483 = vpop.f32.mrb[0].mxu0
  %v3484 = vadd.f32 0.0, %v3483
  %v3485 = vpop.f32.mrb[0].mxu0
  %v3486 = vadd.f32 0.0, %v3485
  %v3487 = vpop.f32.mrb[0].mxu0
  %v3488 = vadd.f32 0.0, %v3487
  %v3489 = vpop.f32.mrb[0].mxu0
  %v3490 = vadd.f32 0.0, %v3489
  %3491 = vmatprep.mubr.bf16.mxu0 0
  %3492 = vmatmul.mubr.bf16.gmra.mrb[0].mxu0 %v3167
  %v3493 = vpop.f32.mrb[0].mxu0
  %v3494 = vadd.f32 0.0, %v3493
  %v3495 = vpop.f32.mrb[0].mxu0
  %v3496 = vadd.f32 0.0, %v3495
  %v3497 = vpop.f32.mrb[0].mxu0
  %v3498 = vadd.f32 0.0, %v3497
  %v3499 = vpop.f32.mrb[0].mxu0
  %v3500 = vadd.f32 0.0, %v3499
  %3501 = vdwg.mxu0
  %v3502 = vadd.f32 %v2571, %v3204
  %v3503 = vadd.f32 %v2573, %v3206
  %v3504 = vadd.f32 %v2575, %v3208
  %v3505 = vadd.f32 %v2577, %v3210
  %v3506 = vadd.f32 %v2581, %v3214
  %v3507 = vadd.f32 %v2583, %v3216
  %v3508 = vadd.f32 %v2585, %v3218
  %v3509 = vadd.f32 %v2587, %v3220
  %v3510 = vadd.f32 %v2591, %v3224
  %v3511 = vadd.f32 %v2593, %v3226
  %v3512 = vadd.f32 %v2595, %v3228
  %v3513 = vadd.f32 %v2597, %v3230
  %v3514 = vadd.f32 %v2601, %v3234
  %v3515 = vadd.f32 %v2603, %v3236
  %v3516 = vadd.f32 %v2605, %v3238
  %v3517 = vadd.f32 %v2607, %v3240
  %v3518 = vadd.f32 %v2611, %v3244
  %v3519 = vadd.f32 %v2613, %v3246
  %v3520 = vadd.f32 %v2615, %v3248
  %v3521 = vadd.f32 %v2617, %v3250
  %v3522 = vadd.f32 %v2621, %v3254
  %v3523 = vadd.f32 %v2623, %v3256
  %v3524 = vadd.f32 %v2625, %v3258
  %v3525 = vadd.f32 %v2627, %v3260
  %v3526 = vadd.f32 %v2631, %v3264
  %v3527 = vadd.f32 %v2633, %v3266
  %v3528 = vadd.f32 %v2635, %v3268
  %v3529 = vadd.f32 %v2637, %v3270
  %v3530 = vadd.f32 %v2641, %v3274
  %v3531 = vadd.f32 %v2643, %v3276
  %v3532 = vadd.f32 %v2645, %v3278
  %v3533 = vadd.f32 %v2647, %v3280
  %v3534 = vadd.f32 %v2651, %v3284
  %v3535 = vadd.f32 %v2653, %v3286
  %v3536 = vadd.f32 %v2655, %v3288
  %v3537 = vadd.f32 %v2657, %v3290
  %v3538 = vadd.f32 %v2661, %v3294
  %v3539 = vadd.f32 %v2663, %v3296
  %v3540 = vadd.f32 %v2665, %v3298
  %v3541 = vadd.f32 %v2667, %v3300
  %v3542 = vadd.f32 %v2671, %v3304
  %v3543 = vadd.f32 %v2673, %v3306
  %v3544 = vadd.f32 %v2675, %v3308
  %v3545 = vadd.f32 %v2677, %v3310
  %v3546 = vadd.f32 %v2681, %v3314
  %v3547 = vadd.f32 %v2683, %v3316
  %v3548 = vadd.f32 %v2685, %v3318
  %v3549 = vadd.f32 %v2687, %v3320
  %v3550 = vadd.f32 %v2691, %v3324
  %v3551 = vadd.f32 %v2693, %v3326
  %v3552 = vadd.f32 %v2695, %v3328
  %v3553 = vadd.f32 %v2697, %v3330
  %v3554 = vadd.f32 %v2701, %v3334
  %v3555 = vadd.f32 %v2703, %v3336
  %v3556 = vadd.f32 %v2705, %v3338
  %v3557 = vadd.f32 %v2707, %v3340
  %v3558 = vadd.f32 %v2711, %v3344
  %v3559 = vadd.f32 %v2713, %v3346
  %v3560 = vadd.f32 %v2715, %v3348
  %v3561 = vadd.f32 %v2717, %v3350
  %v3562 = vadd.f32 %v2721, %v3354
  %v3563 = vadd.f32 %v2723, %v3356
  %v3564 = vadd.f32 %v2725, %v3358
  %v3565 = vadd.f32 %v2727, %v3360
  %v3566 = vadd.f32 %v2731, %v3364
  %v3567 = vadd.f32 %v2733, %v3366
  %v3568 = vadd.f32 %v2735, %v3368
  %v3569 = vadd.f32 %v2737, %v3370
  %v3570 = vadd.f32 %v2741, %v3374
  %v3571 = vadd.f32 %v2743, %v3376
  %v3572 = vadd.f32 %v2745, %v3378
  %v3573 = vadd.f32 %v2747, %v3380
  %v3574 = vadd.f32 %v2751, %v3384
  %v3575 = vadd.f32 %v2753, %v3386
  %v3576 = vadd.f32 %v2755, %v3388
  %v3577 = vadd.f32 %v2757, %v3390
  %v3578 = vadd.f32 %v2761, %v3394
  %v3579 = vadd.f32 %v2763, %v3396
  %v3580 = vadd.f32 %v2765, %v3398
  %v3581 = vadd.f32 %v2767, %v3400
  %v3582 = vadd.f32 %v2771, %v3404
  %v3583 = vadd.f32 %v2773, %v3406
  %v3584 = vadd.f32 %v2775, %v3408
  %v3585 = vadd.f32 %v2777, %v3410
  %v3586 = vadd.f32 %v2781, %v3414
  %v3587 = vadd.f32 %v2783, %v3416
  %v3588 = vadd.f32 %v2785, %v3418
  %v3589 = vadd.f32 %v2787, %v3420
  %v3590 = vadd.f32 %v2791, %v3424
  %v3591 = vadd.f32 %v2793, %v3426
  %v3592 = vadd.f32 %v2795, %v3428
  %v3593 = vadd.f32 %v2797, %v3430
  %v3594 = vadd.f32 %v2801, %v3434
  %v3595 = vadd.f32 %v2803, %v3436
  %v3596 = vadd.f32 %v2805, %v3438
  %v3597 = vadd.f32 %v2807, %v3440
  %v3598 = vadd.f32 %v2811, %v3444
  %v3599 = vadd.f32 %v2813, %v3446
  %v3600 = vadd.f32 %v2815, %v3448
  %v3601 = vadd.f32 %v2817, %v3450
  %v3602 = vadd.f32 %v2821, %v3454
  %v3603 = vadd.f32 %v2823, %v3456
  %v3604 = vadd.f32 %v2825, %v3458
  %v3605 = vadd.f32 %v2827, %v3460
  %v3606 = vadd.f32 %v2831, %v3464
  %v3607 = vadd.f32 %v2833, %v3466
  %v3608 = vadd.f32 %v2835, %v3468
  %v3609 = vadd.f32 %v2837, %v3470
  %v3610 = vadd.f32 %v2841, %v3474
  %v3611 = vadd.f32 %v2843, %v3476
  %v3612 = vadd.f32 %v2845, %v3478
  %v3613 = vadd.f32 %v2847, %v3480
  %v3614 = vadd.f32 %v2851, %v3484
  %v3615 = vadd.f32 %v2853, %v3486
  %v3616 = vadd.f32 %v2855, %v3488
  %v3617 = vadd.f32 %v2857, %v3490
  %v3618 = vadd.f32 %v2861, %v3494
  %v3619 = vadd.f32 %v2863, %v3496
  %v3620 = vadd.f32 %v2865, %v3498
  %v3621 = vadd.f32 %v2867, %v3500
  %v3622 = vmax.f32 %v3502, %v3503
  %v3623 = vmax.f32 %v3504, %v3505
  %v3624 = vmax.f32 %v3506, %v3507
  %v3625 = vmax.f32 %v3508, %v3509
  %v3626 = vmax.f32 %v3510, %v3511
  %v3627 = vmax.f32 %v3512, %v3513
  %v3628 = vmax.f32 %v3514, %v3515
  %v3629 = vmax.f32 %v3516, %v3517
  %v3630 = vmax.f32 %v3518, %v3519
  %v3631 = vmax.f32 %v3520, %v3521
  %v3632 = vmax.f32 %v3522, %v3523
  %v3633 = vmax.f32 %v3524, %v3525
  %v3634 = vmax.f32 %v3526, %v3527
  %v3635 = vmax.f32 %v3528, %v3529
  %v3636 = vmax.f32 %v3530, %v3531
  %v3637 = vmax.f32 %v3532, %v3533
  %v3638 = vmax.f32 %v3534, %v3535
  %v3639 = vmax.f32 %v3536, %v3537
  %v3640 = vmax.f32 %v3538, %v3539
  %v3641 = vmax.f32 %v3540, %v3541
  %v3642 = vmax.f32 %v3542, %v3543
  %v3643 = vmax.f32 %v3544, %v3545
  %v3644 = vmax.f32 %v3546, %v3547
  %v3645 = vmax.f32 %v3548, %v3549
  %v3646 = vmax.f32 %v3550, %v3551
  %v3647 = vmax.f32 %v3552, %v3553
  %v3648 = vmax.f32 %v3554, %v3555
  %v3649 = vmax.f32 %v3556, %v3557
  %v3650 = vmax.f32 %v3558, %v3559
  %v3651 = vmax.f32 %v3560, %v3561
  %v3652 = vmax.f32 %v3562, %v3563
  %v3653 = vmax.f32 %v3564, %v3565
  %v3654 = vmax.f32 %v3566, %v3567
  %v3655 = vmax.f32 %v3568, %v3569
  %v3656 = vmax.f32 %v3570, %v3571
  %v3657 = vmax.f32 %v3572, %v3573
  %v3658 = vmax.f32 %v3574, %v3575
  %v3659 = vmax.f32 %v3576, %v3577
  %v3660 = vmax.f32 %v3578, %v3579
  %v3661 = vmax.f32 %v3580, %v3581
  %v3662 = vmax.f32 %v3582, %v3583
  %v3663 = vmax.f32 %v3584, %v3585
  %v3664 = vmax.f32 %v3586, %v3587
  %v3665 = vmax.f32 %v3588, %v3589
  %v3666 = vmax.f32 %v3590, %v3591
  %v3667 = vmax.f32 %v3592, %v3593
  %v3668 = vmax.f32 %v3594, %v3595
  %v3669 = vmax.f32 %v3596, %v3597
  %v3670 = vmax.f32 %v3598, %v3599
  %v3671 = vmax.f32 %v3600, %v3601
  %v3672 = vmax.f32 %v3602, %v3603
  %v3673 = vmax.f32 %v3604, %v3605
  %v3674 = vmax.f32 %v3606, %v3607
  %v3675 = vmax.f32 %v3608, %v3609
  %v3676 = vmax.f32 %v3610, %v3611
  %v3677 = vmax.f32 %v3612, %v3613
  %v3678 = vmax.f32 %v3614, %v3615
  %v3679 = vmax.f32 %v3616, %v3617
  %v3680 = vmax.f32 %v3618, %v3619
  %v3681 = vmax.f32 %v3620, %v3621
  %v3682 = vmax.f32 %v2143, %v3622
  %v3683 = vmax.f32 %v2144, %v3623
  %v3684 = vmax.f32 %v2145, %v3624
  %v3685 = vmax.f32 %v2146, %v3625
  %v3686 = vmax.f32 %v2147, %v3626
  %v3687 = vmax.f32 %v2148, %v3627
  %v3688 = vmax.f32 %v2149, %v3628
  %v3689 = vmax.f32 %v2150, %v3629
  %v3690 = vmax.f32 %v2151, %v3630
  %v3691 = vmax.f32 %v2152, %v3631
  %v3692 = vmax.f32 %v2153, %v3632
  %v3693 = vmax.f32 %v2154, %v3633
  %v3694 = vmax.f32 %v2155, %v3634
  %v3695 = vmax.f32 %v2156, %v3635
  %v3696 = vmax.f32 %v2157, %v3636
  %v3697 = vmax.f32 %v2158, %v3637
  %v3698 = vmax.f32 %v2159, %v3638
  %v3699 = vmax.f32 %v2160, %v3639
  %v3700 = vmax.f32 %v2161, %v3640
  %v3701 = vmax.f32 %v2162, %v3641
  %v3702 = vmax.f32 %v2163, %v3642
  %v3703 = vmax.f32 %v2164, %v3643
  %v3704 = vmax.f32 %v2165, %v3644
  %v3705 = vmax.f32 %v2166, %v3645
  %v3706 = vmax.f32 %v2167, %v3646
  %v3707 = vmax.f32 %v2168, %v3647
  %v3708 = vmax.f32 %v2169, %v3648
  %v3709 = vmax.f32 %v2170, %v3649
  %v3710 = vmax.f32 %v2171, %v3650
  %v3711 = vmax.f32 %v2172, %v3651
  %v3712 = vmax.f32 %v2173, %v3652
  %v3713 = vmax.f32 %v2174, %v3653
  %v3714 = vmax.f32 %v2175, %v3654
  %v3715 = vmax.f32 %v2176, %v3655
  %v3716 = vmax.f32 %v2177, %v3656
  %v3717 = vmax.f32 %v2178, %v3657
  %v3718 = vmax.f32 %v2179, %v3658
  %v3719 = vmax.f32 %v2180, %v3659
  %v3720 = vmax.f32 %v2181, %v3660
  %v3721 = vmax.f32 %v2182, %v3661
  %v3722 = vmax.f32 %v2183, %v3662
  %v3723 = vmax.f32 %v2184, %v3663
  %v3724 = vmax.f32 %v2185, %v3664
  %v3725 = vmax.f32 %v2186, %v3665
  %v3726 = vmax.f32 %v2187, %v3666
  %v3727 = vmax.f32 %v2188, %v3667
  %v3728 = vmax.f32 %v2189, %v3668
  %v3729 = vmax.f32 %v2190, %v3669
  %v3730 = vmax.f32 %v2191, %v3670
  %v3731 = vmax.f32 %v2192, %v3671
  %v3732 = vmax.f32 %v2193, %v3672
  %v3733 = vmax.f32 %v2194, %v3673
  %v3734 = vmax.f32 %v2195, %v3674
  %v3735 = vmax.f32 %v2196, %v3675
  %v3736 = vmax.f32 %v2197, %v3676
  %v3737 = vmax.f32 %v2198, %v3677
  %v3738 = vmax.f32 %v2199, %v3678
  %v3739 = vmax.f32 %v2200, %v3679
  %v3740 = vmax.f32 %v2201, %v3680
  %v3741 = vmax.f32 %v2202, %v3681
  %v3742 = vld [vmem:[%s3] sm:$0x1]
  %v3744 = vlaneseq
  %v3745 = vshrl.u32 %v3744, 7
  %v3746 = vsub.s32 0, %v3745
  %v3747 = vrot.slane %v3742, %v3746
  %v3749 = vadd.f32 %v3682, %v3747
  %v3750 = vadd.f32 %v3683, %v3747
  %v3751 = vadd.f32 %v3684, %v3747
  %v3752 = vadd.f32 %v3685, %v3747
  %v3753 = vadd.f32 %v3686, %v3747
  %v3754 = vadd.f32 %v3687, %v3747
  %v3755 = vadd.f32 %v3688, %v3747
  %v3756 = vadd.f32 %v3689, %v3747
  %v3757 = vadd.f32 %v3690, %v3747
  %v3758 = vadd.f32 %v3691, %v3747
  %v3759 = vadd.f32 %v3692, %v3747
  %v3760 = vadd.f32 %v3693, %v3747
  %v3761 = vadd.f32 %v3694, %v3747
  %v3762 = vadd.f32 %v3695, %v3747
  %v3763 = vadd.f32 %v3696, %v3747
  %v3764 = vadd.f32 %v3697, %v3747
  %v3765 = vadd.f32 %v3698, %v3747
  %v3766 = vadd.f32 %v3699, %v3747
  %v3767 = vadd.f32 %v3700, %v3747
  %v3768 = vadd.f32 %v3701, %v3747
  %v3769 = vadd.f32 %v3702, %v3747
  %v3770 = vadd.f32 %v3703, %v3747
  %v3771 = vadd.f32 %v3704, %v3747
  %v3772 = vadd.f32 %v3705, %v3747
  %v3773 = vadd.f32 %v3706, %v3747
  %v3774 = vadd.f32 %v3707, %v3747
  %v3775 = vadd.f32 %v3708, %v3747
  %v3776 = vadd.f32 %v3709, %v3747
  %v3777 = vadd.f32 %v3710, %v3747
  %v3778 = vadd.f32 %v3711, %v3747
  %v3779 = vadd.f32 %v3712, %v3747
  %v3780 = vadd.f32 %v3713, %v3747
  %v3781 = vadd.f32 %v3714, %v3747
  %v3782 = vadd.f32 %v3715, %v3747
  %v3783 = vadd.f32 %v3716, %v3747
  %v3784 = vadd.f32 %v3717, %v3747
  %v3785 = vadd.f32 %v3718, %v3747
  %v3786 = vadd.f32 %v3719, %v3747
  %v3787 = vadd.f32 %v3720, %v3747
  %v3788 = vadd.f32 %v3721, %v3747
  %v3789 = vadd.f32 %v3722, %v3747
  %v3790 = vadd.f32 %v3723, %v3747
  %v3791 = vadd.f32 %v3724, %v3747
  %v3792 = vadd.f32 %v3725, %v3747
  %v3793 = vadd.f32 %v3726, %v3747
  %v3794 = vadd.f32 %v3727, %v3747
  %v3795 = vadd.f32 %v3728, %v3747
  %v3796 = vadd.f32 %v3729, %v3747
  %v3797 = vadd.f32 %v3730, %v3747
  %v3798 = vadd.f32 %v3731, %v3747
  %v3799 = vadd.f32 %v3732, %v3747
  %v3800 = vadd.f32 %v3733, %v3747
  %v3801 = vadd.f32 %v3734, %v3747
  %v3802 = vadd.f32 %v3735, %v3747
  %v3803 = vadd.f32 %v3736, %v3747
  %v3804 = vadd.f32 %v3737, %v3747
  %v3805 = vadd.f32 %v3738, %v3747
  %v3806 = vadd.f32 %v3739, %v3747
  %v3807 = vadd.f32 %v3740, %v3747
  %v3808 = vadd.f32 %v3741, %v3747
  %v3809 = vmax.f32 %v3749, 0.0
  %v3810 = vmax.f32 %v3750, 0.0
  %v3811 = vmax.f32 %v3751, 0.0
  %v3812 = vmax.f32 %v3752, 0.0
  %v3813 = vmax.f32 %v3753, 0.0
  %v3814 = vmax.f32 %v3754, 0.0
  %v3815 = vmax.f32 %v3755, 0.0
  %v3816 = vmax.f32 %v3756, 0.0
  %v3817 = vmax.f32 %v3757, 0.0
  %v3818 = vmax.f32 %v3758, 0.0
  %v3819 = vmax.f32 %v3759, 0.0
  %v3820 = vmax.f32 %v3760, 0.0
  %v3821 = vmax.f32 %v3761, 0.0
  %v3822 = vmax.f32 %v3762, 0.0
  %v3823 = vmax.f32 %v3763, 0.0
  %v3824 = vmax.f32 %v3764, 0.0
  %v3825 = vmax.f32 %v3765, 0.0
  %v3826 = vmax.f32 %v3766, 0.0
  %v3827 = vmax.f32 %v3767, 0.0
  %v3828 = vmax.f32 %v3768, 0.0
  %v3829 = vmax.f32 %v3769, 0.0
  %v3830 = vmax.f32 %v3770, 0.0
  %v3831 = vmax.f32 %v3771, 0.0
  %v3832 = vmax.f32 %v3772, 0.0
  %v3833 = vmax.f32 %v3773, 0.0
  %v3834 = vmax.f32 %v3774, 0.0
  %v3835 = vmax.f32 %v3775, 0.0
  %v3836 = vmax.f32 %v3776, 0.0
  %v3837 = vmax.f32 %v3777, 0.0
  %v3838 = vmax.f32 %v3778, 0.0
  %v3839 = vmax.f32 %v3779, 0.0
  %v3840 = vmax.f32 %v3780, 0.0
  %v3841 = vmax.f32 %v3781, 0.0
  %v3842 = vmax.f32 %v3782, 0.0
  %v3843 = vmax.f32 %v3783, 0.0
  %v3844 = vmax.f32 %v3784, 0.0
  %v3845 = vmax.f32 %v3785, 0.0
  %v3846 = vmax.f32 %v3786, 0.0
  %v3847 = vmax.f32 %v3787, 0.0
  %v3848 = vmax.f32 %v3788, 0.0
  %v3849 = vmax.f32 %v3789, 0.0
  %v3850 = vmax.f32 %v3790, 0.0
  %v3851 = vmax.f32 %v3791, 0.0
  %v3852 = vmax.f32 %v3792, 0.0
  %v3853 = vmax.f32 %v3793, 0.0
  %v3854 = vmax.f32 %v3794, 0.0
  %v3855 = vmax.f32 %v3795, 0.0
  %v3856 = vmax.f32 %v3796, 0.0
  %v3857 = vmax.f32 %v3797, 0.0
  %v3858 = vmax.f32 %v3798, 0.0
  %v3859 = vmax.f32 %v3799, 0.0
  %v3860 = vmax.f32 %v3800, 0.0
  %v3861 = vmax.f32 %v3801, 0.0
  %v3862 = vmax.f32 %v3802, 0.0
  %v3863 = vmax.f32 %v3803, 0.0
  %v3864 = vmax.f32 %v3804, 0.0
  %v3865 = vmax.f32 %v3805, 0.0
  %v3866 = vmax.f32 %v3806, 0.0
  %v3867 = vmax.f32 %v3807, 0.0
  %v3868 = vmax.f32 %v3808, 0.0
  %v3869 = vpack.c.bf16 %v3810, %v3809
  %v3870 = vpack.c.bf16 %v3812, %v3811
  %v3871 = vpack.c.bf16 %v3814, %v3813
  %v3872 = vpack.c.bf16 %v3816, %v3815
  %v3873 = vpack.c.bf16 %v3818, %v3817
  %v3874 = vpack.c.bf16 %v3820, %v3819
  %v3875 = vpack.c.bf16 %v3822, %v3821
  %v3876 = vpack.c.bf16 %v3824, %v3823
  %v3877 = vpack.c.bf16 %v3826, %v3825
  %v3878 = vpack.c.bf16 %v3828, %v3827
  %v3879 = vpack.c.bf16 %v3830, %v3829
  %v3880 = vpack.c.bf16 %v3832, %v3831
  %v3881 = vpack.c.bf16 %v3834, %v3833
  %v3882 = vpack.c.bf16 %v3836, %v3835
  %v3883 = vpack.c.bf16 %v3838, %v3837
  %v3884 = vpack.c.bf16 %v3840, %v3839
  %v3885 = vpack.c.bf16 %v3842, %v3841
  %v3886 = vpack.c.bf16 %v3844, %v3843
  %v3887 = vpack.c.bf16 %v3846, %v3845
  %v3888 = vpack.c.bf16 %v3848, %v3847
  %v3889 = vpack.c.bf16 %v3850, %v3849
  %v3890 = vpack.c.bf16 %v3852, %v3851
  %v3891 = vpack.c.bf16 %v3854, %v3853
  %v3892 = vpack.c.bf16 %v3856, %v3855
  %v3893 = vpack.c.bf16 %v3858, %v3857
  %v3894 = vpack.c.bf16 %v3860, %v3859
  %v3895 = vpack.c.bf16 %v3862, %v3861
  %v3896 = vpack.c.bf16 %v3864, %v3863
  %v3897 = vpack.c.bf16 %v3866, %v3865
  %v3898 = vpack.c.bf16 %v3868, %v3867
  %vm3899 = vcmask 982016
  %3900 = vst.msk [vmem:[#allocation2] sm:$0xff] %vm3899, 0
  %3901 = vst.msk [vmem:[#allocation2 + $0x8] sm:$0xff] %vm3899, 0
  %3902 = vst.msk [vmem:[#allocation3] sm:$0xff] %vm3899, 0
  %3903 = vst.msk [vmem:[#allocation3 + $0x8] sm:$0xff] %vm3899, 0
  %3904 = vst.msk [vmem:[#allocation3 + $0x80] sm:$0xff] %vm3899, 0
  %3905 = vst.msk [vmem:[#allocation3 + $0x88] sm:$0xff] %vm3899, 0
  %3906 = vst.msk [vmem:[#allocation2 + $0x10] sm:$0xff] %vm3899, %v3869
  %3907 = vst.msk [vmem:[#allocation2 + $0x18] sm:$0xff] %vm3899, %v3870
  %3908 = vst.msk [vmem:[#allocation2 + $0x20] sm:$0xff] %vm3899, %v3873
  %3909 = vst.msk [vmem:[#allocation2 + $0x28] sm:$0xff] %vm3899, %v3874
  %3910 = vst.msk [vmem:[#allocation2 + $0x30] sm:$0xff] %vm3899, %v3877
  %3911 = vst.msk [vmem:[#allocation2 + $0x38] sm:$0xff] %vm3899, %v3878
  %3912 = vst.msk [vmem:[#allocation2 + $0x40] sm:$0xff] %vm3899, %v3881
  %3913 = vst.msk [vmem:[#allocation2 + $0x48] sm:$0xff] %vm3899, %v3882
  %3914 = vst.msk [vmem:[#allocation2 + $0x50] sm:$0xff] %vm3899, %v3885
  %3915 = vst.msk [vmem:[#allocation2 + $0x58] sm:$0xff] %vm3899, %v3886
  %3916 = vst.msk [vmem:[#allocation2 + $0x60] sm:$0xff] %vm3899, %v3889
  %3917 = vst.msk [vmem:[#allocation2 + $0x68] sm:$0xff] %vm3899, %v3890
  %3918 = vst.msk [vmem:[#allocation2 + $0x70] sm:$0xff] %vm3899, %v3893
  %3919 = vst.msk [vmem:[#allocation2 + $0x78] sm:$0xff] %vm3899, %v3894
  %3920 = vst.msk [vmem:[#allocation2 + $0x80] sm:$0xff] %vm3899, %v3897
  %3921 = vst.msk [vmem:[#allocation2 + $0x88] sm:$0xff] %vm3899, %v3898
  %3922 = vst.msk [vmem:[#allocation3 + $0x10] sm:$0xff] %vm3899, %v3871
  %3923 = vst.msk [vmem:[#allocation3 + $0x18] sm:$0xff] %vm3899, %v3872
  %3924 = vst.msk [vmem:[#allocation3 + $0x20] sm:$0xff] %vm3899, %v3875
  %3925 = vst.msk [vmem:[#allocation3 + $0x28] sm:$0xff] %vm3899, %v3876
  %3926 = vst.msk [vmem:[#allocation3 + $0x30] sm:$0xff] %vm3899, %v3879
  %3927 = vst.msk [vmem:[#allocation3 + $0x38] sm:$0xff] %vm3899, %v3880
  %3928 = vst.msk [vmem:[#allocation3 + $0x40] sm:$0xff] %vm3899, %v3883
  %3929 = vst.msk [vmem:[#allocation3 + $0x48] sm:$0xff] %vm3899, %v3884
  %3930 = vst.msk [vmem:[#allocation3 + $0x50] sm:$0xff] %vm3899, %v3887
  %3931 = vst.msk [vmem:[#allocation3 + $0x58] sm:$0xff] %vm3899, %v3888
  %3932 = vst.msk [vmem:[#allocation3 + $0x60] sm:$0xff] %vm3899, %v3891
  %3933 = vst.msk [vmem:[#allocation3 + $0x68] sm:$0xff] %vm3899, %v3892
  %3934 = vst.msk [vmem:[#allocation3 + $0x70] sm:$0xff] %vm3899, %v3895
  %3935 = vst.msk [vmem:[#allocation3 + $0x78] sm:$0xff] %vm3899, %v3896
  %v3936 = vld [vmem:[#allocation2] sm:$0xff]
  %v3937 = vld [vmem:[#allocation2 + $0x8] sm:$0xff]
  %v3938 = vld [vmem:[#allocation2 + $0x10] sm:$0xff]
  %v3939 = vld [vmem:[#allocation2 + $0x18] sm:$0xff]
  %v3940 = vld [vmem:[#allocation2 + $0x20] sm:$0xff]
  %v3941 = vld [vmem:[#allocation2 + $0x28] sm:$0xff]
  %v3942 = vld [vmem:[#allocation2 + $0x30] sm:$0xff]
  %v3943 = vld [vmem:[#allocation2 + $0x38] sm:$0xff]
  %v3944 = vld [vmem:[#allocation2 + $0x40] sm:$0xff]
  %v3945 = vld [vmem:[#allocation2 + $0x48] sm:$0xff]
  %v3946 = vld [vmem:[#allocation2 + $0x50] sm:$0xff]
  %v3947 = vld [vmem:[#allocation2 + $0x58] sm:$0xff]
  %v3948 = vld [vmem:[#allocation2 + $0x60] sm:$0xff]
  %v3949 = vld [vmem:[#allocation2 + $0x68] sm:$0xff]
  %v3950 = vld [vmem:[%s4] sm:$0xff]
  %v3951 = vld [vmem:[%s4 + $0x8] sm:$0xff]
  %v3952 = vld [vmem:[%s4 + $0x10] sm:$0xff]
  %v3953 = vld [vmem:[%s4 + $0x18] sm:$0xff]
  %v3954 = vld [vmem:[%s4 + $0x20] sm:$0xff]
  %v3955 = vld [vmem:[%s4 + $0x28] sm:$0xff]
  %v3956 = vld [vmem:[%s4 + $0x30] sm:$0xff]
  %v3957 = vld [vmem:[%s4 + $0x38] sm:$0xff]
  %v3958 = vld [vmem:[%s4 + $0x40] sm:$0xff]
  %v3959 = vld [vmem:[%s4 + $0x48] sm:$0xff]
  %v3960 = vld [vmem:[%s4 + $0x50] sm:$0xff]
  %v3961 = vld [vmem:[%s4 + $0x58] sm:$0xff]
  %v3962 = vld [vmem:[%s4 + $0x60] sm:$0xff]
  %v3963 = vld [vmem:[%s4 + $0x68] sm:$0xff]
  %v3964 = vld [vmem:[%s4 + $0x70] sm:$0xff]
  %v3965 = vld [vmem:[#allocation3] sm:$0xff]
  %v3966 = vld [vmem:[#allocation3 + $0x8] sm:$0xff]
  %v3967 = vld [vmem:[#allocation3 + $0x10] sm:$0xff]
  %v3968 = vld [vmem:[#allocation3 + $0x18] sm:$0xff]
  %v3969 = vld [vmem:[#allocation3 + $0x20] sm:$0xff]
  %v3970 = vld [vmem:[#allocation3 + $0x28] sm:$0xff]
  %v3971 = vld [vmem:[#allocation3 + $0x30] sm:$0xff]
  %v3972 = vld [vmem:[#allocation3 + $0x38] sm:$0xff]
  %v3973 = vld [vmem:[#allocation3 + $0x40] sm:$0xff]
  %v3974 = vld [vmem:[#allocation3 + $0x48] sm:$0xff]
  %v3975 = vld [vmem:[#allocation3 + $0x50] sm:$0xff]
  %v3976 = vld [vmem:[#allocation3 + $0x58] sm:$0xff]
  %v3977 = vld [vmem:[#allocation3 + $0x60] sm:$0xff]
  %v3978 = vld [vmem:[#allocation3 + $0x68] sm:$0xff]
  %s3979 = scalar_lea.vmem %s4, 120
  %v3980 = vld [vmem:[%s3979] sm:$0xff]
  %v3981 = vld [vmem:[%s3979 + $0x8] sm:$0xff]
  %v3982 = vld [vmem:[%s3979 + $0x10] sm:$0xff]
  %v3983 = vld [vmem:[%s3979 + $0x18] sm:$0xff]
  %v3984 = vld [vmem:[%s3979 + $0x20] sm:$0xff]
  %v3985 = vld [vmem:[%s3979 + $0x28] sm:$0xff]
  %v3986 = vld [vmem:[%s3979 + $0x30] sm:$0xff]
  %v3987 = vld [vmem:[%s3979 + $0x38] sm:$0xff]
  %v3988 = vld [vmem:[%s3979 + $0x40] sm:$0xff]
  %v3989 = vld [vmem:[%s3979 + $0x48] sm:$0xff]
  %v3990 = vld [vmem:[%s3979 + $0x50] sm:$0xff]
  %v3991 = vld [vmem:[%s3979 + $0x58] sm:$0xff]
  %v3992 = vld [vmem:[%s3979 + $0x60] sm:$0xff]
  %v3993 = vld [vmem:[%s3979 + $0x68] sm:$0xff]
  %v3994 = vld [vmem:[%s3979 + $0x70] sm:$0xff]
  %v4010 = vunpack.c.l.b16 %v3980
  %v4011 = vunpack.c.h.b16 %v3980
  %v4012 = vunpack.c.l.b16 %v3981
  %v4013 = vunpack.c.h.b16 %v3981
  %v4014 = vunpack.c.l.b16 %v3982
  %v4015 = vunpack.c.h.b16 %v3982
  %v4016 = vunpack.c.l.b16 %v3983
  %v4017 = vunpack.c.h.b16 %v3983
  %v4018 = vunpack.c.l.b16 %v3984
  %v4019 = vunpack.c.h.b16 %v3984
  %v4020 = vunpack.c.l.b16 %v3985
  %v4021 = vunpack.c.h.b16 %v3985
  %v4022 = vunpack.c.l.b16 %v3986
  %v4023 = vunpack.c.h.b16 %v3986
  %v4024 = vunpack.c.l.b16 %v3987
  %v4025 = vunpack.c.h.b16 %v3987
  %v4026 = vunpack.c.l.b16 %v3988
  %v4027 = vunpack.c.h.b16 %v3988
  %v4028 = vunpack.c.l.b16 %v3989
  %v4029 = vunpack.c.h.b16 %v3989
  %v4030 = vunpack.c.l.b16 %v3990
  %v4031 = vunpack.c.h.b16 %v3990
  %v4032 = vunpack.c.l.b16 %v3991
  %v4033 = vunpack.c.h.b16 %v3991
  %v4034 = vunpack.c.l.b16 %v3992
  %v4035 = vunpack.c.h.b16 %v3992
  %v4036 = vunpack.c.l.b16 %v3993
  %v4037 = vunpack.c.h.b16 %v3993
  %v4038 = vunpack.c.l.b16 %v3994
  %v4039 = vunpack.c.h.b16 %v3994
  %v4040 = vpack.c.b16 %v4012, %v4010
  %v4041 = vpack.c.b16 %v4013, %v4011
  %v4042 = vpack.c.b16 %v4016, %v4014
  %v4043 = vpack.c.b16 %v4017, %v4015
  %v4044 = vpack.c.b16 %v4020, %v4018
  %v4045 = vpack.c.b16 %v4021, %v4019
  %v4046 = vpack.c.b16 %v4024, %v4022
  %v4047 = vpack.c.b16 %v4025, %v4023
  %v4048 = vpack.c.b16 %v4028, %v4026
  %v4049 = vpack.c.b16 %v4029, %v4027
  %v4050 = vpack.c.b16 %v4032, %v4030
  %v4051 = vpack.c.b16 %v4033, %v4031
  %v4052 = vpack.c.b16 %v4036, %v4034
  %v4053 = vpack.c.b16 %v4037, %v4035
  %v4054 = vpack.c.b16 %v4038, %v4038
  %v4055 = vpack.c.b16 %v4039, %v4039
  %v4071 = vsel %vm3899, %v3965, 0
  %v4074 = vsel %vm3899, %v3966, 0
  %v4077 = vsel %vm3899, %v3967, 0
  %v4080 = vsel %vm3899, %v3968, 0
  %v4083 = vsel %vm3899, %v3969, 0
  %v4086 = vsel %vm3899, %v3970, 0
  %v4089 = vsel %vm3899, %v3971, 0
  %v4092 = vsel %vm3899, %v3972, 0
  %v4095 = vsel %vm3899, %v3973, 0
  %v4098 = vsel %vm3899, %v3974, 0
  %v4101 = vsel %vm3899, %v3975, 0
  %v4104 = vsel %vm3899, %v3976, 0
  %v4107 = vsel %vm3899, %v3977, 0
  %v4110 = vsel %vm3899, %v3978, 0
  %vm4112 = vcmask 1043456
  %v4114 = vsel %vm4112, %v4054, 0
  %v4117 = vsel %vm4112, %v4055, 0
  %4119 = vmatprep.subr.bf16.mxu0 %v4041
  %4120 = vmatpush1.bf16.msra.mxu0 %v4040
  %4121 = vmatprep.subr.bf16.mxu0 %v4043
  %4122 = vmatpush1.bf16.msra.mxu0 %v4042
  %4123 = vmatprep.subr.bf16.mxu0 %v4045
  %4124 = vmatpush1.bf16.msra.mxu0 %v4044
  %4125 = vmatprep.subr.bf16.mxu0 %v4047
  %4126 = vmatpush1.bf16.msra.mxu0 %v4046
  %4127 = vmatprep.subr.bf16.mxu0 %v4049
  %4128 = vmatpush1.bf16.msra.mxu0 %v4048
  %4129 = vmatprep.subr.bf16.mxu0 %v4051
  %4130 = vmatpush1.bf16.msra.mxu0 %v4050
  %4131 = vmatprep.subr.bf16.mxu0 %v4053
  %4132 = vmatpush1.bf16.msra.mxu0 %v4052
  %4133 = vmatprep.subr.bf16.mxu0 %v4117
  %4134 = vmatpush1.bf16.msra.mxu0 %v4114
  %4135 = vmatprep.subr.bf16.mxu0 0
  %4136 = vmatpush1.bf16.msra.mxu0 0
  %4137 = vmatprep.subr.bf16.mxu0 0
  %4138 = vmatpush1.bf16.msra.mxu0 0
  %4139 = vmatprep.subr.bf16.mxu0 0
  %4140 = vmatpush1.bf16.msra.mxu0 0
  %4141 = vmatprep.subr.bf16.mxu0 0
  %4142 = vmatpush1.bf16.msra.mxu0 0
  %4143 = vmatprep.subr.bf16.mxu0 0
  %4144 = vmatpush1.bf16.msra.mxu0 0
  %4145 = vmatprep.subr.bf16.mxu0 0
  %4146 = vmatpush1.bf16.msra.mxu0 0
  %4147 = vmatprep.subr.bf16.mxu0 0
  %4148 = vmatpush1.bf16.msra.mxu0 0
  %4149 = vmatprep.subr.bf16.mxu0 0
  %4150 = vmatpush1.bf16.msra.mxu0 0
  %4151 = vmatprep.mubr.bf16.mxu0 0
  %4152 = vmatmul.mubr.bf16.gmra.mrb[0].mxu0 %v4071
  %v4153 = vpop.f32.mrb[0].mxu0
  %v4154 = vadd.f32 0.0, %v4153
  %v4155 = vpop.f32.mrb[0].mxu0
  %v4156 = vadd.f32 0.0, %v4155
  %v4157 = vpop.f32.mrb[0].mxu0
  %v4158 = vadd.f32 0.0, %v4157
  %v4159 = vpop.f32.mrb[0].mxu0
  %v4160 = vadd.f32 0.0, %v4159
  %4161 = vmatprep.mubr.bf16.mxu0 0
  %4162 = vmatmul.mubr.bf16.gmra.mrb[0].mxu0 %v4074
  %v4163 = vpop.f32.mrb[0].mxu0
  %v4164 = vadd.f32 0.0, %v4163
  %v4165 = vpop.f32.mrb[0].mxu0
  %v4166 = vadd.f32 0.0, %v4165
  %v4167 = vpop.f32.mrb[0].mxu0
  %v4168 = vadd.f32 0.0, %v4167
  %v4169 = vpop.f32.mrb[0].mxu0
  %v4170 = vadd.f32 0.0, %v4169
  %4171 = vmatprep.mubr.bf16.mxu0 0
  %4172 = vmatmul.mubr.bf16.gmra.mrb[0].mxu0 %v4077
  %v4173 = vpop.f32.mrb[0].mxu0
  %v4174 = vadd.f32 0.0, %v4173
  %v4175 = vpop.f32.mrb[0].mxu0
  %v4176 = vadd.f32 0.0, %v4175
  %v4177 = vpop.f32.mrb[0].mxu0
  %v4178 = vadd.f32 0.0, %v4177
  %v4179 = vpop.f32.mrb[0].mxu0
  %v4180 = vadd.f32 0.0, %v4179
  %4181 = vmatprep.mubr.bf16.mxu0 0
  %4182 = vmatmul.mubr.bf16.gmra.mrb[0].mxu0 %v4080
  %v4183 = vpop.f32.mrb[0].mxu0
  %v4184 = vadd.f32 0.0, %v4183
  %v4185 = vpop.f32.mrb[0].mxu0
  %v4186 = vadd.f32 0.0, %v4185
  %v4187 = vpop.f32.mrb[0].mxu0
  %v4188 = vadd.f32 0.0, %v4187
  %v4189 = vpop.f32.mrb[0].mxu0
  %v4190 = vadd.f32 0.0, %v4189
  %4191 = vmatprep.mubr.bf16.mxu0 0
  %4192 = vmatmul.mubr.bf16.gmra.mrb[0].mxu0 %v4083
  %v4193 = vpop.f32.mrb[0].mxu0
  %v4194 = vadd.f32 0.0, %v4193
  %v4195 = vpop.f32.mrb[0].mxu0
  %v4196 = vadd.f32 0.0, %v4195
  %v4197 = vpop.f32.mrb[0].mxu0
  %v4198 = vadd.f32 0.0, %v4197
  %v4199 = vpop.f32.mrb[0].mxu0
  %v4200 = vadd.f32 0.0, %v4199
  %4201 = vmatprep.mubr.bf16.mxu0 0
  %4202 = vmatmul.mubr.bf16.gmra.mrb[0].mxu0 %v4086
  %v4203 = vpop.f32.mrb[0].mxu0
  %v4204 = vadd.f32 0.0, %v4203
  %v4205 = vpop.f32.mrb[0].mxu0
  %v4206 = vadd.f32 0.0, %v4205
  %v4207 = vpop.f32.mrb[0].mxu0
  %v4208 = vadd.f32 0.0, %v4207
  %v4209 = vpop.f32.mrb[0].mxu0
  %v4210 = vadd.f32 0.0, %v4209
  %4211 = vmatprep.mubr.bf16.mxu0 0
  %4212 = vmatmul.mubr.bf16.gmra.mrb[0].mxu0 %v4089
  %v4213 = vpop.f32.mrb[0].mxu0
  %v4214 = vadd.f32 0.0, %v4213
  %v4215 = vpop.f32.mrb[0].mxu0
  %v4216 = vadd.f32 0.0, %v4215
  %v4217 = vpop.f32.mrb[0].mxu0
  %v4218 = vadd.f32 0.0, %v4217
  %v4219 = vpop.f32.mrb[0].mxu0
  %v4220 = vadd.f32 0.0, %v4219
  %4221 = vmatprep.mubr.bf16.mxu0 0
  %4222 = vmatmul.mubr.bf16.gmra.mrb[0].mxu0 %v4092
  %v4223 = vpop.f32.mrb[0].mxu0
  %v4224 = vadd.f32 0.0, %v4223
  %v4225 = vpop.f32.mrb[0].mxu0
  %v4226 = vadd.f32 0.0, %v4225
  %v4227 = vpop.f32.mrb[0].mxu0
  %v4228 = vadd.f32 0.0, %v4227
  %v4229 = vpop.f32.mrb[0].mxu0
  %v4230 = vadd.f32 0.0, %v4229
  %4231 = vmatprep.mubr.bf16.mxu0 0
  %4232 = vmatmul.mubr.bf16.gmra.mrb[0].mxu0 %v4095
  %v4233 = vpop.f32.mrb[0].mxu0
  %v4234 = vadd.f32 0.0, %v4233
  %v4235 = vpop.f32.mrb[0].mxu0
  %v4236 = vadd.f32 0.0, %v4235
  %v4237 = vpop.f32.mrb[0].mxu0
  %v4238 = vadd.f32 0.0, %v4237
  %v4239 = vpop.f32.mrb[0].mxu0
  %v4240 = vadd.f32 0.0, %v4239
  %4241 = vmatprep.mubr.bf16.mxu0 0
  %4242 = vmatmul.mubr.bf16.gmra.mrb[0].mxu0 %v4098
  %v4243 = vpop.f32.mrb[0].mxu0
  %v4244 = vadd.f32 0.0, %v4243
  %v4245 = vpop.f32.mrb[0].mxu0
  %v4246 = vadd.f32 0.0, %v4245
  %v4247 = vpop.f32.mrb[0].mxu0
  %v4248 = vadd.f32 0.0, %v4247
  %v4249 = vpop.f32.mrb[0].mxu0
  %v4250 = vadd.f32 0.0, %v4249
  %4251 = vmatprep.mubr.bf16.mxu0 0
  %4252 = vmatmul.mubr.bf16.gmra.mrb[0].mxu0 %v4101
  %v4253 = vpop.f32.mrb[0].mxu0
  %v4254 = vadd.f32 0.0, %v4253
  %v4255 = vpop.f32.mrb[0].mxu0
  %v4256 = vadd.f32 0.0, %v4255
  %v4257 = vpop.f32.mrb[0].mxu0
  %v4258 = vadd.f32 0.0, %v4257
  %v4259 = vpop.f32.mrb[0].mxu0
  %v4260 = vadd.f32 0.0, %v4259
  %4261 = vmatprep.mubr.bf16.mxu0 0
  %4262 = vmatmul.mubr.bf16.gmra.mrb[0].mxu0 %v4104
  %v4263 = vpop.f32.mrb[0].mxu0
  %v4264 = vadd.f32 0.0, %v4263
  %v4265 = vpop.f32.mrb[0].mxu0
  %v4266 = vadd.f32 0.0, %v4265
  %v4267 = vpop.f32.mrb[0].mxu0
  %v4268 = vadd.f32 0.0, %v4267
  %v4269 = vpop.f32.mrb[0].mxu0
  %v4270 = vadd.f32 0.0, %v4269
  %4271 = vmatprep.mubr.bf16.mxu0 0
  %4272 = vmatmul.mubr.bf16.gmra.mrb[0].mxu0 %v4107
  %v4273 = vpop.f32.mrb[0].mxu0
  %v4274 = vadd.f32 0.0, %v4273
  %v4275 = vpop.f32.mrb[0].mxu0
  %v4276 = vadd.f32 0.0, %v4275
  %v4277 = vpop.f32.mrb[0].mxu0
  %v4278 = vadd.f32 0.0, %v4277
  %v4279 = vpop.f32.mrb[0].mxu0
  %v4280 = vadd.f32 0.0, %v4279
  %4281 = vmatprep.mubr.bf16.mxu0 0
  %4282 = vmatmul.mubr.bf16.gmra.mrb[0].mxu0 %v4110
  %v4283 = vpop.f32.mrb[0].mxu0
  %v4284 = vadd.f32 0.0, %v4283
  %v4285 = vpop.f32.mrb[0].mxu0
  %v4286 = vadd.f32 0.0, %v4285
  %v4287 = vpop.f32.mrb[0].mxu0
  %v4288 = vadd.f32 0.0, %v4287
  %v4289 = vpop.f32.mrb[0].mxu0
  %v4290 = vadd.f32 0.0, %v4289
  %4291 = vdwg.mxu0
  %v4307 = vunpack.c.l.b16 %v3950
  %v4308 = vunpack.c.h.b16 %v3950
  %v4309 = vunpack.c.l.b16 %v3951
  %v4310 = vunpack.c.h.b16 %v3951
  %v4311 = vunpack.c.l.b16 %v3952
  %v4312 = vunpack.c.h.b16 %v3952
  %v4313 = vunpack.c.l.b16 %v3953
  %v4314 = vunpack.c.h.b16 %v3953
  %v4315 = vunpack.c.l.b16 %v3954
  %v4316 = vunpack.c.h.b16 %v3954
  %v4317 = vunpack.c.l.b16 %v3955
  %v4318 = vunpack.c.h.b16 %v3955
  %v4319 = vunpack.c.l.b16 %v3956
  %v4320 = vunpack.c.h.b16 %v3956
  %v4321 = vunpack.c.l.b16 %v3957
  %v4322 = vunpack.c.h.b16 %v3957
  %v4323 = vunpack.c.l.b16 %v3958
  %v4324 = vunpack.c.h.b16 %v3958
  %v4325 = vunpack.c.l.b16 %v3959
  %v4326 = vunpack.c.h.b16 %v3959
  %v4327 = vunpack.c.l.b16 %v3960
  %v4328 = vunpack.c.h.b16 %v3960
  %v4329 = vunpack.c.l.b16 %v3961
  %v4330 = vunpack.c.h.b16 %v3961
  %v4331 = vunpack.c.l.b16 %v3962
  %v4332 = vunpack.c.h.b16 %v3962
  %v4333 = vunpack.c.l.b16 %v3963
  %v4334 = vunpack.c.h.b16 %v3963
  %v4335 = vunpack.c.l.b16 %v3964
  %v4336 = vunpack.c.h.b16 %v3964
  %v4337 = vpack.c.b16 %v4309, %v4307
  %v4338 = vpack.c.b16 %v4310, %v4308
  %v4339 = vpack.c.b16 %v4313, %v4311
  %v4340 = vpack.c.b16 %v4314, %v4312
  %v4341 = vpack.c.b16 %v4317, %v4315
  %v4342 = vpack.c.b16 %v4318, %v4316
  %v4343 = vpack.c.b16 %v4321, %v4319
  %v4344 = vpack.c.b16 %v4322, %v4320
  %v4345 = vpack.c.b16 %v4325, %v4323
  %v4346 = vpack.c.b16 %v4326, %v4324
  %v4347 = vpack.c.b16 %v4329, %v4327
  %v4348 = vpack.c.b16 %v4330, %v4328
  %v4349 = vpack.c.b16 %v4333, %v4331
  %v4350 = vpack.c.b16 %v4334, %v4332
  %v4351 = vpack.c.b16 %v4335, %v4335
  %v4352 = vpack.c.b16 %v4336, %v4336
  %v4368 = vsel %vm3899, %v3936, 0
  %v4371 = vsel %vm3899, %v3937, 0
  %v4374 = vsel %vm3899, %v3938, 0
  %v4377 = vsel %vm3899, %v3939, 0
  %v4380 = vsel %vm3899, %v3940, 0
  %v4383 = vsel %vm3899, %v3941, 0
  %v4386 = vsel %vm3899, %v3942, 0
  %v4389 = vsel %vm3899, %v3943, 0
  %v4392 = vsel %vm3899, %v3944, 0
  %v4395 = vsel %vm3899, %v3945, 0
  %v4398 = vsel %vm3899, %v3946, 0
  %v4401 = vsel %vm3899, %v3947, 0
  %v4404 = vsel %vm3899, %v3948, 0
  %v4407 = vsel %vm3899, %v3949, 0
  %v4410 = vsel %vm4112, %v4351, 0
  %v4413 = vsel %vm4112, %v4352, 0
  %4415 = vmatprep.subr.bf16.mxu0 %v4338
  %4416 = vmatpush1.bf16.msra.mxu0 %v4337
  %4417 = vmatprep.subr.bf16.mxu0 %v4340
  %4418 = vmatpush1.bf16.msra.mxu0 %v4339
  %4419 = vmatprep.subr.bf16.mxu0 %v4342
  %4420 = vmatpush1.bf16.msra.mxu0 %v4341
  %4421 = vmatprep.subr.bf16.mxu0 %v4344
  %4422 = vmatpush1.bf16.msra.mxu0 %v4343
  %4423 = vmatprep.subr.bf16.mxu0 %v4346
  %4424 = vmatpush1.bf16.msra.mxu0 %v4345
  %4425 = vmatprep.subr.bf16.mxu0 %v4348
  %4426 = vmatpush1.bf16.msra.mxu0 %v4347
  %4427 = vmatprep.subr.bf16.mxu0 %v4350
  %4428 = vmatpush1.bf16.msra.mxu0 %v4349
  %4429 = vmatprep.subr.bf16.mxu0 %v4413
  %4430 = vmatpush1.bf16.msra.mxu0 %v4410
  %4431 = vmatprep.subr.bf16.mxu0 0
  %4432 = vmatpush1.bf16.msra.mxu0 0
  %4433 = vmatprep.subr.bf16.mxu0 0
  %4434 = vmatpush1.bf16.msra.mxu0 0
  %4435 = vmatprep.subr.bf16.mxu0 0
  %4436 = vmatpush1.bf16.msra.mxu0 0
  %4437 = vmatprep.subr.bf16.mxu0 0
  %4438 = vmatpush1.bf16.msra.mxu0 0
  %4439 = vmatprep.subr.bf16.mxu0 0
  %4440 = vmatpush1.bf16.msra.mxu0 0
  %4441 = vmatprep.subr.bf16.mxu0 0
  %4442 = vmatpush1.bf16.msra.mxu0 0
  %4443 = vmatprep.subr.bf16.mxu0 0
  %4444 = vmatpush1.bf16.msra.mxu0 0
  %4445 = vmatprep.subr.bf16.mxu0 0
  %4446 = vmatpush1.bf16.msra.mxu0 0
  %4447 = vmatprep.mubr.bf16.mxu0 0
  %4448 = vmatmul.mubr.bf16.gmra.mrb[0].mxu0 %v4368
  %v4449 = vpop.f32.mrb[0].mxu0
  %v4450 = vadd.f32 %v4154, %v4449
  %v4451 = vpop.f32.mrb[0].mxu0
  %v4452 = vadd.f32 %v4156, %v4451
  %v4453 = vpop.f32.mrb[0].mxu0
  %v4454 = vadd.f32 %v4158, %v4453
  %v4455 = vpop.f32.mrb[0].mxu0
  %v4456 = vadd.f32 %v4160, %v4455
  %4457 = vmatprep.mubr.bf16.mxu0 0
  %4458 = vmatmul.mubr.bf16.gmra.mrb[0].mxu0 %v4371
  %v4459 = vpop.f32.mrb[0].mxu0
  %v4460 = vadd.f32 %v4164, %v4459
  %v4461 = vpop.f32.mrb[0].mxu0
  %v4462 = vadd.f32 %v4166, %v4461
  %v4463 = vpop.f32.mrb[0].mxu0
  %v4464 = vadd.f32 %v4168, %v4463
  %v4465 = vpop.f32.mrb[0].mxu0
  %v4466 = vadd.f32 %v4170, %v4465
  %4467 = vmatprep.mubr.bf16.mxu0 0
  %4468 = vmatmul.mubr.bf16.gmra.mrb[0].mxu0 %v4374
  %v4469 = vpop.f32.mrb[0].mxu0
  %v4470 = vadd.f32 %v4174, %v4469
  %v4471 = vpop.f32.mrb[0].mxu0
  %v4472 = vadd.f32 %v4176, %v4471
  %v4473 = vpop.f32.mrb[0].mxu0
  %v4474 = vadd.f32 %v4178, %v4473
  %v4475 = vpop.f32.mrb[0].mxu0
  %v4476 = vadd.f32 %v4180, %v4475
  %4477 = vmatprep.mubr.bf16.mxu0 0
  %4478 = vmatmul.mubr.bf16.gmra.mrb[0].mxu0 %v4377
  %v4479 = vpop.f32.mrb[0].mxu0
  %v4480 = vadd.f32 %v4184, %v4479
  %v4481 = vpop.f32.mrb[0].mxu0
  %v4482 = vadd.f32 %v4186, %v4481
  %v4483 = vpop.f32.mrb[0].mxu0
  %v4484 = vadd.f32 %v4188, %v4483
  %v4485 = vpop.f32.mrb[0].mxu0
  %v4486 = vadd.f32 %v4190, %v4485
  %4487 = vmatprep.mubr.bf16.mxu0 0
  %4488 = vmatmul.mubr.bf16.gmra.mrb[0].mxu0 %v4380
  %v4489 = vpop.f32.mrb[0].mxu0
  %v4490 = vadd.f32 %v4194, %v4489
  %v4491 = vpop.f32.mrb[0].mxu0
  %v4492 = vadd.f32 %v4196, %v4491
  %v4493 = vpop.f32.mrb[0].mxu0
  %v4494 = vadd.f32 %v4198, %v4493
  %v4495 = vpop.f32.mrb[0].mxu0
  %v4496 = vadd.f32 %v4200, %v4495
  %4497 = vmatprep.mubr.bf16.mxu0 0
  %4498 = vmatmul.mubr.bf16.gmra.mrb[0].mxu0 %v4383
  %v4499 = vpop.f32.mrb[0].mxu0
  %v4500 = vadd.f32 %v4204, %v4499
  %v4501 = vpop.f32.mrb[0].mxu0
  %v4502 = vadd.f32 %v4206, %v4501
  %v4503 = vpop.f32.mrb[0].mxu0
  %v4504 = vadd.f32 %v4208, %v4503
  %v4505 = vpop.f32.mrb[0].mxu0
  %v4506 = vadd.f32 %v4210, %v4505
  %4507 = vmatprep.mubr.bf16.mxu0 0
  %4508 = vmatmul.mubr.bf16.gmra.mrb[0].mxu0 %v4386
  %v4509 = vpop.f32.mrb[0].mxu0
  %v4510 = vadd.f32 %v4214, %v4509
  %v4511 = vpop.f32.mrb[0].mxu0
  %v4512 = vadd.f32 %v4216, %v4511
  %v4513 = vpop.f32.mrb[0].mxu0
  %v4514 = vadd.f32 %v4218, %v4513
  %v4515 = vpop.f32.mrb[0].mxu0
  %v4516 = vadd.f32 %v4220, %v4515
  %4517 = vmatprep.mubr.bf16.mxu0 0
  %4518 = vmatmul.mubr.bf16.gmra.mrb[0].mxu0 %v4389
  %v4519 = vpop.f32.mrb[0].mxu0
  %v4520 = vadd.f32 %v4224, %v4519
  %v4521 = vpop.f32.mrb[0].mxu0
  %v4522 = vadd.f32 %v4226, %v4521
  %v4523 = vpop.f32.mrb[0].mxu0
  %v4524 = vadd.f32 %v4228, %v4523
  %v4525 = vpop.f32.mrb[0].mxu0
  %v4526 = vadd.f32 %v4230, %v4525
  %4527 = vmatprep.mubr.bf16.mxu0 0
  %4528 = vmatmul.mubr.bf16.gmra.mrb[0].mxu0 %v4392
  %v4529 = vpop.f32.mrb[0].mxu0
  %v4530 = vadd.f32 %v4234, %v4529
  %v4531 = vpop.f32.mrb[0].mxu0
  %v4532 = vadd.f32 %v4236, %v4531
  %v4533 = vpop.f32.mrb[0].mxu0
  %v4534 = vadd.f32 %v4238, %v4533
  %v4535 = vpop.f32.mrb[0].mxu0
  %v4536 = vadd.f32 %v4240, %v4535
  %4537 = vmatprep.mubr.bf16.mxu0 0
  %4538 = vmatmul.mubr.bf16.gmra.mrb[0].mxu0 %v4395
  %v4539 = vpop.f32.mrb[0].mxu0
  %v4540 = vadd.f32 %v4244, %v4539
  %v4541 = vpop.f32.mrb[0].mxu0
  %v4542 = vadd.f32 %v4246, %v4541
  %v4543 = vpop.f32.mrb[0].mxu0
  %v4544 = vadd.f32 %v4248, %v4543
  %v4545 = vpop.f32.mrb[0].mxu0
  %v4546 = vadd.f32 %v4250, %v4545
  %4547 = vmatprep.mubr.bf16.mxu0 0
  %4548 = vmatmul.mubr.bf16.gmra.mrb[0].mxu0 %v4398
  %v4549 = vpop.f32.mrb[0].mxu0
  %v4550 = vadd.f32 %v4254, %v4549
  %v4551 = vpop.f32.mrb[0].mxu0
  %v4552 = vadd.f32 %v4256, %v4551
  %v4553 = vpop.f32.mrb[0].mxu0
  %v4554 = vadd.f32 %v4258, %v4553
  %v4555 = vpop.f32.mrb[0].mxu0
  %v4556 = vadd.f32 %v4260, %v4555
  %4557 = vmatprep.mubr.bf16.mxu0 0
  %4558 = vmatmul.mubr.bf16.gmra.mrb[0].mxu0 %v4401
  %v4559 = vpop.f32.mrb[0].mxu0
  %v4560 = vadd.f32 %v4264, %v4559
  %v4561 = vpop.f32.mrb[0].mxu0
  %v4562 = vadd.f32 %v4266, %v4561
  %v4563 = vpop.f32.mrb[0].mxu0
  %v4564 = vadd.f32 %v4268, %v4563
  %v4565 = vpop.f32.mrb[0].mxu0
  %v4566 = vadd.f32 %v4270, %v4565
  %4567 = vmatprep.mubr.bf16.mxu0 0
  %4568 = vmatmul.mubr.bf16.gmra.mrb[0].mxu0 %v4404
  %v4569 = vpop.f32.mrb[0].mxu0
  %v4570 = vadd.f32 %v4274, %v4569
  %v4571 = vpop.f32.mrb[0].mxu0
  %v4572 = vadd.f32 %v4276, %v4571
  %v4573 = vpop.f32.mrb[0].mxu0
  %v4574 = vadd.f32 %v4278, %v4573
  %v4575 = vpop.f32.mrb[0].mxu0
  %v4576 = vadd.f32 %v4280, %v4575
  %4577 = vmatprep.mubr.bf16.mxu0 0
  %4578 = vmatmul.mubr.bf16.gmra.mrb[0].mxu0 %v4407
  %v4579 = vpop.f32.mrb[0].mxu0
  %v4580 = vadd.f32 %v4284, %v4579
  %v4581 = vpop.f32.mrb[0].mxu0
  %v4582 = vadd.f32 %v4286, %v4581
  %v4583 = vpop.f32.mrb[0].mxu0
  %v4584 = vadd.f32 %v4288, %v4583
  %v4585 = vpop.f32.mrb[0].mxu0
  %v4586 = vadd.f32 %v4290, %v4585
  %4587 = vdwg.mxu0
  %v4588 = vld [vmem:[#allocation2 + $0x10] sm:$0xff]
  %v4589 = vld [vmem:[#allocation2 + $0x18] sm:$0xff]
  %v4590 = vld [vmem:[#allocation2 + $0x20] sm:$0xff]
  %v4591 = vld [vmem:[#allocation2 + $0x28] sm:$0xff]
  %v4592 = vld [vmem:[#allocation2 + $0x30] sm:$0xff]
  %v4593 = vld [vmem:[#allocation2 + $0x38] sm:$0xff]
  %v4594 = vld [vmem:[#allocation2 + $0x40] sm:$0xff]
  %v4595 = vld [vmem:[#allocation2 + $0x48] sm:$0xff]
  %v4596 = vld [vmem:[#allocation2 + $0x50] sm:$0xff]
  %v4597 = vld [vmem:[#allocation2 + $0x58] sm:$0xff]
  %v4598 = vld [vmem:[#allocation2 + $0x60] sm:$0xff]
  %v4599 = vld [vmem:[#allocation2 + $0x68] sm:$0xff]
  %v4600 = vld [vmem:[#allocation2 + $0x70] sm:$0xff]
  %v4601 = vld [vmem:[#allocation2 + $0x78] sm:$0xff]
  %s4602 = scalar_lea.vmem %s4, 240
  %v4603 = vld [vmem:[%s4602] sm:$0xff]
  %v4604 = vld [vmem:[%s4602 + $0x8] sm:$0xff]
  %v4605 = vld [vmem:[%s4602 + $0x10] sm:$0xff]
  %v4606 = vld [vmem:[%s4602 + $0x18] sm:$0xff]
  %v4607 = vld [vmem:[%s4602 + $0x20] sm:$0xff]
  %v4608 = vld [vmem:[%s4602 + $0x28] sm:$0xff]
  %v4609 = vld [vmem:[%s4602 + $0x30] sm:$0xff]
  %v4610 = vld [vmem:[%s4602 + $0x38] sm:$0xff]
  %v4611 = vld [vmem:[%s4602 + $0x40] sm:$0xff]
  %v4612 = vld [vmem:[%s4602 + $0x48] sm:$0xff]
  %v4613 = vld [vmem:[%s4602 + $0x50] sm:$0xff]
  %v4614 = vld [vmem:[%s4602 + $0x58] sm:$0xff]
  %v4615 = vld [vmem:[%s4602 + $0x60] sm:$0xff]
  %v4616 = vld [vmem:[%s4602 + $0x68] sm:$0xff]
  %v4617 = vld [vmem:[%s4602 + $0x70] sm:$0xff]
  %v4633 = vunpack.c.l.b16 %v4603
  %v4634 = vunpack.c.h.b16 %v4603
  %v4635 = vunpack.c.l.b16 %v4604
  %v4636 = vunpack.c.h.b16 %v4604
  %v4637 = vunpack.c.l.b16 %v4605
  %v4638 = vunpack.c.h.b16 %v4605
  %v4639 = vunpack.c.l.b16 %v4606
  %v4640 = vunpack.c.h.b16 %v4606
  %v4641 = vunpack.c.l.b16 %v4607
  %v4642 = vunpack.c.h.b16 %v4607
  %v4643 = vunpack.c.l.b16 %v4608
  %v4644 = vunpack.c.h.b16 %v4608
  %v4645 = vunpack.c.l.b16 %v4609
  %v4646 = vunpack.c.h.b16 %v4609
  %v4647 = vunpack.c.l.b16 %v4610
  %v4648 = vunpack.c.h.b16 %v4610
  %v4649 = vunpack.c.l.b16 %v4611
  %v4650 = vunpack.c.h.b16 %v4611
  %v4651 = vunpack.c.l.b16 %v4612
  %v4652 = vunpack.c.h.b16 %v4612
  %v4653 = vunpack.c.l.b16 %v4613
  %v4654 = vunpack.c.h.b16 %v4613
  %v4655 = vunpack.c.l.b16 %v4614
  %v4656 = vunpack.c.h.b16 %v4614
  %v4657 = vunpack.c.l.b16 %v4615
  %v4658 = vunpack.c.h.b16 %v4615
  %v4659 = vunpack.c.l.b16 %v4616
  %v4660 = vunpack.c.h.b16 %v4616
  %v4661 = vunpack.c.l.b16 %v4617
  %v4662 = vunpack.c.h.b16 %v4617
  %v4663 = vpack.c.b16 %v4635, %v4633
  %v4664 = vpack.c.b16 %v4636, %v4634
  %v4665 = vpack.c.b16 %v4639, %v4637
  %v4666 = vpack.c.b16 %v4640, %v4638
  %v4667 = vpack.c.b16 %v4643, %v4641
  %v4668 = vpack.c.b16 %v4644, %v4642
  %v4669 = vpack.c.b16 %v4647, %v4645
  %v4670 = vpack.c.b16 %v4648, %v4646
  %v4671 = vpack.c.b16 %v4651, %v4649
  %v4672 = vpack.c.b16 %v4652, %v4650
  %v4673 = vpack.c.b16 %v4655, %v4653
  %v4674 = vpack.c.b16 %v4656, %v4654
  %v4675 = vpack.c.b16 %v4659, %v4657
  %v4676 = vpack.c.b16 %v4660, %v4658
  %v4677 = vpack.c.b16 %v4661, %v4661
  %v4678 = vpack.c.b16 %v4662, %v4662
  %v4694 = vsel %vm3899, %v4588, 0
  %v4697 = vsel %vm3899, %v4589, 0
  %v4700 = vsel %vm3899, %v4590, 0
  %v4703 = vsel %vm3899, %v4591, 0
  %v4706 = vsel %vm3899, %v4592, 0
  %v4709 = vsel %vm3899, %v4593, 0
  %v4712 = vsel %vm3899, %v4594, 0
  %v4715 = vsel %vm3899, %v4595, 0
  %v4718 = vsel %vm3899, %v4596, 0
  %v4721 = vsel %vm3899, %v4597, 0
  %v4724 = vsel %vm3899, %v4598, 0
  %v4727 = vsel %vm3899, %v4599, 0
  %v4730 = vsel %vm3899, %v4600, 0
  %v4733 = vsel %vm3899, %v4601, 0
  %v4736 = vsel %vm4112, %v4677, 0
  %v4739 = vsel %vm4112, %v4678, 0
  %4741 = vmatprep.subr.bf16.mxu0 %v4664
  %4742 = vmatpush1.bf16.msra.mxu0 %v4663
  %4743 = vmatprep.subr.bf16.mxu0 %v4666
  %4744 = vmatpush1.bf16.msra.mxu0 %v4665
  %4745 = vmatprep.subr.bf16.mxu0 %v4668
  %4746 = vmatpush1.bf16.msra.mxu0 %v4667
  %4747 = vmatprep.subr.bf16.mxu0 %v4670
  %4748 = vmatpush1.bf16.msra.mxu0 %v4669
  %4749 = vmatprep.subr.bf16.mxu0 %v4672
  %4750 = vmatpush1.bf16.msra.mxu0 %v4671
  %4751 = vmatprep.subr.bf16.mxu0 %v4674
  %4752 = vmatpush1.bf16.msra.mxu0 %v4673
  %4753 = vmatprep.subr.bf16.mxu0 %v4676
  %4754 = vmatpush1.bf16.msra.mxu0 %v4675
  %4755 = vmatprep.subr.bf16.mxu0 %v4739
  %4756 = vmatpush1.bf16.msra.mxu0 %v4736
  %4757 = vmatprep.subr.bf16.mxu0 0
  %4758 = vmatpush1.bf16.msra.mxu0 0
  %4759 = vmatprep.subr.bf16.mxu0 0
  %4760 = vmatpush1.bf16.msra.mxu0 0
  %4761 = vmatprep.subr.bf16.mxu0 0
  %4762 = vmatpush1.bf16.msra.mxu0 0
  %4763 = vmatprep.subr.bf16.mxu0 0
  %4764 = vmatpush1.bf16.msra.mxu0 0
  %4765 = vmatprep.subr.bf16.mxu0 0
  %4766 = vmatpush1.bf16.msra.mxu0 0
  %4767 = vmatprep.subr.bf16.mxu0 0
  %4768 = vmatpush1.bf16.msra.mxu0 0
  %4769 = vmatprep.subr.bf16.mxu0 0
  %4770 = vmatpush1.bf16.msra.mxu0 0
  %4771 = vmatprep.subr.bf16.mxu0 0
  %4772 = vmatpush1.bf16.msra.mxu0 0
  %4773 = vmatprep.mubr.bf16.mxu0 0
  %4774 = vmatmul.mubr.bf16.gmra.mrb[0].mxu0 %v4694
  %v4775 = vpop.f32.mrb[0].mxu0
  %v4776 = vadd.f32 0.0, %v4775
  %v4777 = vpop.f32.mrb[0].mxu0
  %v4778 = vadd.f32 0.0, %v4777
  %v4779 = vpop.f32.mrb[0].mxu0
  %v4780 = vadd.f32 0.0, %v4779
  %v4781 = vpop.f32.mrb[0].mxu0
  %v4782 = vadd.f32 0.0, %v4781
  %4783 = vmatprep.mubr.bf16.mxu0 0
  %4784 = vmatmul.mubr.bf16.gmra.mrb[0].mxu0 %v4697
  %v4785 = vpop.f32.mrb[0].mxu0
  %v4786 = vadd.f32 0.0, %v4785
  %v4787 = vpop.f32.mrb[0].mxu0
  %v4788 = vadd.f32 0.0, %v4787
  %v4789 = vpop.f32.mrb[0].mxu0
  %v4790 = vadd.f32 0.0, %v4789
  %v4791 = vpop.f32.mrb[0].mxu0
  %v4792 = vadd.f32 0.0, %v4791
  %4793 = vmatprep.mubr.bf16.mxu0 0
  %4794 = vmatmul.mubr.bf16.gmra.mrb[0].mxu0 %v4700
  %v4795 = vpop.f32.mrb[0].mxu0
  %v4796 = vadd.f32 0.0, %v4795
  %v4797 = vpop.f32.mrb[0].mxu0
  %v4798 = vadd.f32 0.0, %v4797
  %v4799 = vpop.f32.mrb[0].mxu0
  %v4800 = vadd.f32 0.0, %v4799
  %v4801 = vpop.f32.mrb[0].mxu0
  %v4802 = vadd.f32 0.0, %v4801
  %4803 = vmatprep.mubr.bf16.mxu0 0
  %4804 = vmatmul.mubr.bf16.gmra.mrb[0].mxu0 %v4703
  %v4805 = vpop.f32.mrb[0].mxu0
  %v4806 = vadd.f32 0.0, %v4805
  %v4807 = vpop.f32.mrb[0].mxu0
  %v4808 = vadd.f32 0.0, %v4807
  %v4809 = vpop.f32.mrb[0].mxu0
  %v4810 = vadd.f32 0.0, %v4809
  %v4811 = vpop.f32.mrb[0].mxu0
  %v4812 = vadd.f32 0.0, %v4811
  %4813 = vmatprep.mubr.bf16.mxu0 0
  %4814 = vmatmul.mubr.bf16.gmra.mrb[0].mxu0 %v4706
  %v4815 = vpop.f32.mrb[0].mxu0
  %v4816 = vadd.f32 0.0, %v4815
  %v4817 = vpop.f32.mrb[0].mxu0
  %v4818 = vadd.f32 0.0, %v4817
  %v4819 = vpop.f32.mrb[0].mxu0
  %v4820 = vadd.f32 0.0, %v4819
  %v4821 = vpop.f32.mrb[0].mxu0
  %v4822 = vadd.f32 0.0, %v4821
  %4823 = vmatprep.mubr.bf16.mxu0 0
  %4824 = vmatmul.mubr.bf16.gmra.mrb[0].mxu0 %v4709
  %v4825 = vpop.f32.mrb[0].mxu0
  %v4826 = vadd.f32 0.0, %v4825
  %v4827 = vpop.f32.mrb[0].mxu0
  %v4828 = vadd.f32 0.0, %v4827
  %v4829 = vpop.f32.mrb[0].mxu0
  %v4830 = vadd.f32 0.0, %v4829
  %v4831 = vpop.f32.mrb[0].mxu0
  %v4832 = vadd.f32 0.0, %v4831
  %4833 = vmatprep.mubr.bf16.mxu0 0
  %4834 = vmatmul.mubr.bf16.gmra.mrb[0].mxu0 %v4712
  %v4835 = vpop.f32.mrb[0].mxu0
  %v4836 = vadd.f32 0.0, %v4835
  %v4837 = vpop.f32.mrb[0].mxu0
  %v4838 = vadd.f32 0.0, %v4837
  %v4839 = vpop.f32.mrb[0].mxu0
  %v4840 = vadd.f32 0.0, %v4839
  %v4841 = vpop.f32.mrb[0].mxu0
  %v4842 = vadd.f32 0.0, %v4841
  %4843 = vmatprep.mubr.bf16.mxu0 0
  %4844 = vmatmul.mubr.bf16.gmra.mrb[0].mxu0 %v4715
  %v4845 = vpop.f32.mrb[0].mxu0
  %v4846 = vadd.f32 0.0, %v4845
  %v4847 = vpop.f32.mrb[0].mxu0
  %v4848 = vadd.f32 0.0, %v4847
  %v4849 = vpop.f32.mrb[0].mxu0
  %v4850 = vadd.f32 0.0, %v4849
  %v4851 = vpop.f32.mrb[0].mxu0
  %v4852 = vadd.f32 0.0, %v4851
  %4853 = vmatprep.mubr.bf16.mxu0 0
  %4854 = vmatmul.mubr.bf16.gmra.mrb[0].mxu0 %v4718
  %v4855 = vpop.f32.mrb[0].mxu0
  %v4856 = vadd.f32 0.0, %v4855
  %v4857 = vpop.f32.mrb[0].mxu0
  %v4858 = vadd.f32 0.0, %v4857
  %v4859 = vpop.f32.mrb[0].mxu0
  %v4860 = vadd.f32 0.0, %v4859
  %v4861 = vpop.f32.mrb[0].mxu0
  %v4862 = vadd.f32 0.0, %v4861
  %4863 = vmatprep.mubr.bf16.mxu0 0
  %4864 = vmatmul.mubr.bf16.gmra.mrb[0].mxu0 %v4721
  %v4865 = vpop.f32.mrb[0].mxu0
  %v4866 = vadd.f32 0.0, %v4865
  %v4867 = vpop.f32.mrb[0].mxu0
  %v4868 = vadd.f32 0.0, %v4867
  %v4869 = vpop.f32.mrb[0].mxu0
  %v4870 = vadd.f32 0.0, %v4869
  %v4871 = vpop.f32.mrb[0].mxu0
  %v4872 = vadd.f32 0.0, %v4871
  %4873 = vmatprep.mubr.bf16.mxu0 0
  %4874 = vmatmul.mubr.bf16.gmra.mrb[0].mxu0 %v4724
  %v4875 = vpop.f32.mrb[0].mxu0
  %v4876 = vadd.f32 0.0, %v4875
  %v4877 = vpop.f32.mrb[0].mxu0
  %v4878 = vadd.f32 0.0, %v4877
  %v4879 = vpop.f32.mrb[0].mxu0
  %v4880 = vadd.f32 0.0, %v4879
  %v4881 = vpop.f32.mrb[0].mxu0
  %v4882 = vadd.f32 0.0, %v4881
  %4883 = vmatprep.mubr.bf16.mxu0 0
  %4884 = vmatmul.mubr.bf16.gmra.mrb[0].mxu0 %v4727
  %v4885 = vpop.f32.mrb[0].mxu0
  %v4886 = vadd.f32 0.0, %v4885
  %v4887 = vpop.f32.mrb[0].mxu0
  %v4888 = vadd.f32 0.0, %v4887
  %v4889 = vpop.f32.mrb[0].mxu0
  %v4890 = vadd.f32 0.0, %v4889
  %v4891 = vpop.f32.mrb[0].mxu0
  %v4892 = vadd.f32 0.0, %v4891
  %4893 = vmatprep.mubr.bf16.mxu0 0
  %4894 = vmatmul.mubr.bf16.gmra.mrb[0].mxu0 %v4730
  %v4895 = vpop.f32.mrb[0].mxu0
  %v4896 = vadd.f32 0.0, %v4895
  %v4897 = vpop.f32.mrb[0].mxu0
  %v4898 = vadd.f32 0.0, %v4897
  %v4899 = vpop.f32.mrb[0].mxu0
  %v4900 = vadd.f32 0.0, %v4899
  %v4901 = vpop.f32.mrb[0].mxu0
  %v4902 = vadd.f32 0.0, %v4901
  %4903 = vmatprep.mubr.bf16.mxu0 0
  %4904 = vmatmul.mubr.bf16.gmra.mrb[0].mxu0 %v4733
  %v4905 = vpop.f32.mrb[0].mxu0
  %v4906 = vadd.f32 0.0, %v4905
  %v4907 = vpop.f32.mrb[0].mxu0
  %v4908 = vadd.f32 0.0, %v4907
  %v4909 = vpop.f32.mrb[0].mxu0
  %v4910 = vadd.f32 0.0, %v4909
  %v4911 = vpop.f32.mrb[0].mxu0
  %v4912 = vadd.f32 0.0, %v4911
  %4913 = vdwg.mxu0
  %v4914 = vadd.f32 %v4450, %v4776
  %v4915 = vadd.f32 %v4452, %v4778
  %v4916 = vadd.f32 %v4454, %v4780
  %v4917 = vadd.f32 %v4456, %v4782
  %v4918 = vadd.f32 %v4460, %v4786
  %v4919 = vadd.f32 %v4462, %v4788
  %v4920 = vadd.f32 %v4464, %v4790
  %v4921 = vadd.f32 %v4466, %v4792
  %v4922 = vadd.f32 %v4470, %v4796
  %v4923 = vadd.f32 %v4472, %v4798
  %v4924 = vadd.f32 %v4474, %v4800
  %v4925 = vadd.f32 %v4476, %v4802
  %v4926 = vadd.f32 %v4480, %v4806
  %v4927 = vadd.f32 %v4482, %v4808
  %v4928 = vadd.f32 %v4484, %v4810
  %v4929 = vadd.f32 %v4486, %v4812
  %v4930 = vadd.f32 %v4490, %v4816
  %v4931 = vadd.f32 %v4492, %v4818
  %v4932 = vadd.f32 %v4494, %v4820
  %v4933 = vadd.f32 %v4496, %v4822
  %v4934 = vadd.f32 %v4500, %v4826
  %v4935 = vadd.f32 %v4502, %v4828
  %v4936 = vadd.f32 %v4504, %v4830
  %v4937 = vadd.f32 %v4506, %v4832
  %v4938 = vadd.f32 %v4510, %v4836
  %v4939 = vadd.f32 %v4512, %v4838
  %v4940 = vadd.f32 %v4514, %v4840
  %v4941 = vadd.f32 %v4516, %v4842
  %v4942 = vadd.f32 %v4520, %v4846
  %v4943 = vadd.f32 %v4522, %v4848
  %v4944 = vadd.f32 %v4524, %v4850
  %v4945 = vadd.f32 %v4526, %v4852
  %v4946 = vadd.f32 %v4530, %v4856
  %v4947 = vadd.f32 %v4532, %v4858
  %v4948 = vadd.f32 %v4534, %v4860
  %v4949 = vadd.f32 %v4536, %v4862
  %v4950 = vadd.f32 %v4540, %v4866
  %v4951 = vadd.f32 %v4542, %v4868
  %v4952 = vadd.f32 %v4544, %v4870
  %v4953 = vadd.f32 %v4546, %v4872
  %v4954 = vadd.f32 %v4550, %v4876
  %v4955 = vadd.f32 %v4552, %v4878
  %v4956 = vadd.f32 %v4554, %v4880
  %v4957 = vadd.f32 %v4556, %v4882
  %v4958 = vadd.f32 %v4560, %v4886
  %v4959 = vadd.f32 %v4562, %v4888
  %v4960 = vadd.f32 %v4564, %v4890
  %v4961 = vadd.f32 %v4566, %v4892
  %v4962 = vadd.f32 %v4570, %v4896
  %v4963 = vadd.f32 %v4572, %v4898
  %v4964 = vadd.f32 %v4574, %v4900
  %v4965 = vadd.f32 %v4576, %v4902
  %v4966 = vadd.f32 %v4580, %v4906
  %v4967 = vadd.f32 %v4582, %v4908
  %v4968 = vadd.f32 %v4584, %v4910
  %v4969 = vadd.f32 %v4586, %v4912
  %v4970 = vld [vmem:[#allocation3 + $0x10] sm:$0xff]
  %v4971 = vld [vmem:[#allocation3 + $0x18] sm:$0xff]
  %v4972 = vld [vmem:[#allocation3 + $0x20] sm:$0xff]
  %v4973 = vld [vmem:[#allocation3 + $0x28] sm:$0xff]
  %v4974 = vld [vmem:[#allocation3 + $0x30] sm:$0xff]
  %v4975 = vld [vmem:[#allocation3 + $0x38] sm:$0xff]
  %v4976 = vld [vmem:[#allocation3 + $0x40] sm:$0xff]
  %v4977 = vld [vmem:[#allocation3 + $0x48] sm:$0xff]
  %v4978 = vld [vmem:[#allocation3 + $0x50] sm:$0xff]
  %v4979 = vld [vmem:[#allocation3 + $0x58] sm:$0xff]
  %v4980 = vld [vmem:[#allocation3 + $0x60] sm:$0xff]
  %v4981 = vld [vmem:[#allocation3 + $0x68] sm:$0xff]
  %v4982 = vld [vmem:[#allocation3 + $0x70] sm:$0xff]
  %v4983 = vld [vmem:[#allocation3 + $0x78] sm:$0xff]
  %s4984 = scalar_lea.vmem %s4, 360
  %v4985 = vld [vmem:[%s4984] sm:$0xff]
  %v4986 = vld [vmem:[%s4984 + $0x8] sm:$0xff]
  %v4987 = vld [vmem:[%s4984 + $0x10] sm:$0xff]
  %v4988 = vld [vmem:[%s4984 + $0x18] sm:$0xff]
  %v4989 = vld [vmem:[%s4984 + $0x20] sm:$0xff]
  %v4990 = vld [vmem:[%s4984 + $0x28] sm:$0xff]
  %v4991 = vld [vmem:[%s4984 + $0x30] sm:$0xff]
  %v4992 = vld [vmem:[%s4984 + $0x38] sm:$0xff]
  %v4993 = vld [vmem:[%s4984 + $0x40] sm:$0xff]
  %v4994 = vld [vmem:[%s4984 + $0x48] sm:$0xff]
  %v4995 = vld [vmem:[%s4984 + $0x50] sm:$0xff]
  %v4996 = vld [vmem:[%s4984 + $0x58] sm:$0xff]
  %v4997 = vld [vmem:[%s4984 + $0x60] sm:$0xff]
  %v4998 = vld [vmem:[%s4984 + $0x68] sm:$0xff]
  %v4999 = vld [vmem:[%s4984 + $0x70] sm:$0xff]
  %v5015 = vunpack.c.l.b16 %v4985
  %v5016 = vunpack.c.h.b16 %v4985
  %v5017 = vunpack.c.l.b16 %v4986
  %v5018 = vunpack.c.h.b16 %v4986
  %v5019 = vunpack.c.l.b16 %v4987
  %v5020 = vunpack.c.h.b16 %v4987
  %v5021 = vunpack.c.l.b16 %v4988
  %v5022 = vunpack.c.h.b16 %v4988
  %v5023 = vunpack.c.l.b16 %v4989
  %v5024 = vunpack.c.h.b16 %v4989
  %v5025 = vunpack.c.l.b16 %v4990
  %v5026 = vunpack.c.h.b16 %v4990
  %v5027 = vunpack.c.l.b16 %v4991
  %v5028 = vunpack.c.h.b16 %v4991
  %v5029 = vunpack.c.l.b16 %v4992
  %v5030 = vunpack.c.h.b16 %v4992
  %v5031 = vunpack.c.l.b16 %v4993
  %v5032 = vunpack.c.h.b16 %v4993
  %v5033 = vunpack.c.l.b16 %v4994
  %v5034 = vunpack.c.h.b16 %v4994
  %v5035 = vunpack.c.l.b16 %v4995
  %v5036 = vunpack.c.h.b16 %v4995
  %v5037 = vunpack.c.l.b16 %v4996
  %v5038 = vunpack.c.h.b16 %v4996
  %v5039 = vunpack.c.l.b16 %v4997
  %v5040 = vunpack.c.h.b16 %v4997
  %v5041 = vunpack.c.l.b16 %v4998
  %v5042 = vunpack.c.h.b16 %v4998
  %v5043 = vunpack.c.l.b16 %v4999
  %v5044 = vunpack.c.h.b16 %v4999
  %v5045 = vpack.c.b16 %v5017, %v5015
  %v5046 = vpack.c.b16 %v5018, %v5016
  %v5047 = vpack.c.b16 %v5021, %v5019
  %v5048 = vpack.c.b16 %v5022, %v5020
  %v5049 = vpack.c.b16 %v5025, %v5023
  %v5050 = vpack.c.b16 %v5026, %v5024
  %v5051 = vpack.c.b16 %v5029, %v5027
  %v5052 = vpack.c.b16 %v5030, %v5028
  %v5053 = vpack.c.b16 %v5033, %v5031
  %v5054 = vpack.c.b16 %v5034, %v5032
  %v5055 = vpack.c.b16 %v5037, %v5035
  %v5056 = vpack.c.b16 %v5038, %v5036
  %v5057 = vpack.c.b16 %v5041, %v5039
  %v5058 = vpack.c.b16 %v5042, %v5040
  %v5059 = vpack.c.b16 %v5043, %v5043
  %v5060 = vpack.c.b16 %v5044, %v5044
  %v5076 = vsel %vm3899, %v4970, 0
  %v5079 = vsel %vm3899, %v4971, 0
  %v5082 = vsel %vm3899, %v4972, 0
  %v5085 = vsel %vm3899, %v4973, 0
  %v5088 = vsel %vm3899, %v4974, 0
  %v5091 = vsel %vm3899, %v4975, 0
  %v5094 = vsel %vm3899, %v4976, 0
  %v5097 = vsel %vm3899, %v4977, 0
  %v5100 = vsel %vm3899, %v4978, 0
  %v5103 = vsel %vm3899, %v4979, 0
  %v5106 = vsel %vm3899, %v4980, 0
  %v5109 = vsel %vm3899, %v4981, 0
  %v5112 = vsel %vm3899, %v4982, 0
  %v5115 = vsel %vm3899, %v4983, 0
  %v5118 = vsel %vm4112, %v5059, 0
  %v5121 = vsel %vm4112, %v5060, 0
  %5123 = vmatprep.subr.bf16.mxu0 %v5046
  %5124 = vmatpush1.bf16.msra.mxu0 %v5045
  %5125 = vmatprep.subr.bf16.mxu0 %v5048
  %5126 = vmatpush1.bf16.msra.mxu0 %v5047
  %5127 = vmatprep.subr.bf16.mxu0 %v5050
  %5128 = vmatpush1.bf16.msra.mxu0 %v5049
  %5129 = vmatprep.subr.bf16.mxu0 %v5052
  %5130 = vmatpush1.bf16.msra.mxu0 %v5051
  %5131 = vmatprep.subr.bf16.mxu0 %v5054
  %5132 = vmatpush1.bf16.msra.mxu0 %v5053
  %5133 = vmatprep.subr.bf16.mxu0 %v5056
  %5134 = vmatpush1.bf16.msra.mxu0 %v5055
  %5135 = vmatprep.subr.bf16.mxu0 %v5058
  %5136 = vmatpush1.bf16.msra.mxu0 %v5057
  %5137 = vmatprep.subr.bf16.mxu0 %v5121
  %5138 = vmatpush1.bf16.msra.mxu0 %v5118
  %5139 = vmatprep.subr.bf16.mxu0 0
  %5140 = vmatpush1.bf16.msra.mxu0 0
  %5141 = vmatprep.subr.bf16.mxu0 0
  %5142 = vmatpush1.bf16.msra.mxu0 0
  %5143 = vmatprep.subr.bf16.mxu0 0
  %5144 = vmatpush1.bf16.msra.mxu0 0
  %5145 = vmatprep.subr.bf16.mxu0 0
  %5146 = vmatpush1.bf16.msra.mxu0 0
  %5147 = vmatprep.subr.bf16.mxu0 0
  %5148 = vmatpush1.bf16.msra.mxu0 0
  %5149 = vmatprep.subr.bf16.mxu0 0
  %5150 = vmatpush1.bf16.msra.mxu0 0
  %5151 = vmatprep.subr.bf16.mxu0 0
  %5152 = vmatpush1.bf16.msra.mxu0 0
  %5153 = vmatprep.subr.bf16.mxu0 0
  %5154 = vmatpush1.bf16.msra.mxu0 0
  %5155 = vmatprep.mubr.bf16.mxu0 0
  %5156 = vmatmul.mubr.bf16.gmra.mrb[0].mxu0 %v5076
  %v5157 = vpop.f32.mrb[0].mxu0
  %v5158 = vadd.f32 0.0, %v5157
  %v5159 = vpop.f32.mrb[0].mxu0
  %v5160 = vadd.f32 0.0, %v5159
  %v5161 = vpop.f32.mrb[0].mxu0
  %v5162 = vadd.f32 0.0, %v5161
  %v5163 = vpop.f32.mrb[0].mxu0
  %v5164 = vadd.f32 0.0, %v5163
  %5165 = vmatprep.mubr.bf16.mxu0 0
  %5166 = vmatmul.mubr.bf16.gmra.mrb[0].mxu0 %v5079
  %v5167 = vpop.f32.mrb[0].mxu0
  %v5168 = vadd.f32 0.0, %v5167
  %v5169 = vpop.f32.mrb[0].mxu0
  %v5170 = vadd.f32 0.0, %v5169
  %v5171 = vpop.f32.mrb[0].mxu0
  %v5172 = vadd.f32 0.0, %v5171
  %v5173 = vpop.f32.mrb[0].mxu0
  %v5174 = vadd.f32 0.0, %v5173
  %5175 = vmatprep.mubr.bf16.mxu0 0
  %5176 = vmatmul.mubr.bf16.gmra.mrb[0].mxu0 %v5082
  %v5177 = vpop.f32.mrb[0].mxu0
  %v5178 = vadd.f32 0.0, %v5177
  %v5179 = vpop.f32.mrb[0].mxu0
  %v5180 = vadd.f32 0.0, %v5179
  %v5181 = vpop.f32.mrb[0].mxu0
  %v5182 = vadd.f32 0.0, %v5181
  %v5183 = vpop.f32.mrb[0].mxu0
  %v5184 = vadd.f32 0.0, %v5183
  %5185 = vmatprep.mubr.bf16.mxu0 0
  %5186 = vmatmul.mubr.bf16.gmra.mrb[0].mxu0 %v5085
  %v5187 = vpop.f32.mrb[0].mxu0
  %v5188 = vadd.f32 0.0, %v5187
  %v5189 = vpop.f32.mrb[0].mxu0
  %v5190 = vadd.f32 0.0, %v5189
  %v5191 = vpop.f32.mrb[0].mxu0
  %v5192 = vadd.f32 0.0, %v5191
  %v5193 = vpop.f32.mrb[0].mxu0
  %v5194 = vadd.f32 0.0, %v5193
  %5195 = vmatprep.mubr.bf16.mxu0 0
  %5196 = vmatmul.mubr.bf16.gmra.mrb[0].mxu0 %v5088
  %v5197 = vpop.f32.mrb[0].mxu0
  %v5198 = vadd.f32 0.0, %v5197
  %v5199 = vpop.f32.mrb[0].mxu0
  %v5200 = vadd.f32 0.0, %v5199
  %v5201 = vpop.f32.mrb[0].mxu0
  %v5202 = vadd.f32 0.0, %v5201
  %v5203 = vpop.f32.mrb[0].mxu0
  %v5204 = vadd.f32 0.0, %v5203
  %5205 = vmatprep.mubr.bf16.mxu0 0
  %5206 = vmatmul.mubr.bf16.gmra.mrb[0].mxu0 %v5091
  %v5207 = vpop.f32.mrb[0].mxu0
  %v5208 = vadd.f32 0.0, %v5207
  %v5209 = vpop.f32.mrb[0].mxu0
  %v5210 = vadd.f32 0.0, %v5209
  %v5211 = vpop.f32.mrb[0].mxu0
  %v5212 = vadd.f32 0.0, %v5211
  %v5213 = vpop.f32.mrb[0].mxu0
  %v5214 = vadd.f32 0.0, %v5213
  %5215 = vmatprep.mubr.bf16.mxu0 0
  %5216 = vmatmul.mubr.bf16.gmra.mrb[0].mxu0 %v5094
  %v5217 = vpop.f32.mrb[0].mxu0
  %v5218 = vadd.f32 0.0, %v5217
  %v5219 = vpop.f32.mrb[0].mxu0
  %v5220 = vadd.f32 0.0, %v5219
  %v5221 = vpop.f32.mrb[0].mxu0
  %v5222 = vadd.f32 0.0, %v5221
  %v5223 = vpop.f32.mrb[0].mxu0
  %v5224 = vadd.f32 0.0, %v5223
  %5225 = vmatprep.mubr.bf16.mxu0 0
  %5226 = vmatmul.mubr.bf16.gmra.mrb[0].mxu0 %v5097
  %v5227 = vpop.f32.mrb[0].mxu0
  %v5228 = vadd.f32 0.0, %v5227
  %v5229 = vpop.f32.mrb[0].mxu0
  %v5230 = vadd.f32 0.0, %v5229
  %v5231 = vpop.f32.mrb[0].mxu0
  %v5232 = vadd.f32 0.0, %v5231
  %v5233 = vpop.f32.mrb[0].mxu0
  %v5234 = vadd.f32 0.0, %v5233
  %5235 = vmatprep.mubr.bf16.mxu0 0
  %5236 = vmatmul.mubr.bf16.gmra.mrb[0].mxu0 %v5100
  %v5237 = vpop.f32.mrb[0].mxu0
  %v5238 = vadd.f32 0.0, %v5237
  %v5239 = vpop.f32.mrb[0].mxu0
  %v5240 = vadd.f32 0.0, %v5239
  %v5241 = vpop.f32.mrb[0].mxu0
  %v5242 = vadd.f32 0.0, %v5241
  %v5243 = vpop.f32.mrb[0].mxu0
  %v5244 = vadd.f32 0.0, %v5243
  %5245 = vmatprep.mubr.bf16.mxu0 0
  %5246 = vmatmul.mubr.bf16.gmra.mrb[0].mxu0 %v5103
  %v5247 = vpop.f32.mrb[0].mxu0
  %v5248 = vadd.f32 0.0, %v5247
  %v5249 = vpop.f32.mrb[0].mxu0
  %v5250 = vadd.f32 0.0, %v5249
  %v5251 = vpop.f32.mrb[0].mxu0
  %v5252 = vadd.f32 0.0, %v5251
  %v5253 = vpop.f32.mrb[0].mxu0
  %v5254 = vadd.f32 0.0, %v5253
  %5255 = vmatprep.mubr.bf16.mxu0 0
  %5256 = vmatmul.mubr.bf16.gmra.mrb[0].mxu0 %v5106
  %v5257 = vpop.f32.mrb[0].mxu0
  %v5258 = vadd.f32 0.0, %v5257
  %v5259 = vpop.f32.mrb[0].mxu0
  %v5260 = vadd.f32 0.0, %v5259
  %v5261 = vpop.f32.mrb[0].mxu0
  %v5262 = vadd.f32 0.0, %v5261
  %v5263 = vpop.f32.mrb[0].mxu0
  %v5264 = vadd.f32 0.0, %v5263
  %5265 = vmatprep.mubr.bf16.mxu0 0
  %5266 = vmatmul.mubr.bf16.gmra.mrb[0].mxu0 %v5109
  %v5267 = vpop.f32.mrb[0].mxu0
  %v5268 = vadd.f32 0.0, %v5267
  %v5269 = vpop.f32.mrb[0].mxu0
  %v5270 = vadd.f32 0.0, %v5269
  %v5271 = vpop.f32.mrb[0].mxu0
  %v5272 = vadd.f32 0.0, %v5271
  %v5273 = vpop.f32.mrb[0].mxu0
  %v5274 = vadd.f32 0.0, %v5273
  %5275 = vmatprep.mubr.bf16.mxu0 0
  %5276 = vmatmul.mubr.bf16.gmra.mrb[0].mxu0 %v5112
  %v5277 = vpop.f32.mrb[0].mxu0
  %v5278 = vadd.f32 0.0, %v5277
  %v5279 = vpop.f32.mrb[0].mxu0
  %v5280 = vadd.f32 0.0, %v5279
  %v5281 = vpop.f32.mrb[0].mxu0
  %v5282 = vadd.f32 0.0, %v5281
  %v5283 = vpop.f32.mrb[0].mxu0
  %v5284 = vadd.f32 0.0, %v5283
  %5285 = vmatprep.mubr.bf16.mxu0 0
  %5286 = vmatmul.mubr.bf16.gmra.mrb[0].mxu0 %v5115
  %v5287 = vpop.f32.mrb[0].mxu0
  %v5288 = vadd.f32 0.0, %v5287
  %v5289 = vpop.f32.mrb[0].mxu0
  %v5290 = vadd.f32 0.0, %v5289
  %v5291 = vpop.f32.mrb[0].mxu0
  %v5292 = vadd.f32 0.0, %v5291
  %v5293 = vpop.f32.mrb[0].mxu0
  %v5294 = vadd.f32 0.0, %v5293
  %5295 = vdwg.mxu0
  %v5296 = vadd.f32 %v4914, %v5158
  %v5297 = vadd.f32 %v4915, %v5160
  %v5298 = vadd.f32 %v4916, %v5162
  %v5299 = vadd.f32 %v4917, %v5164
  %v5300 = vadd.f32 %v4918, %v5168
  %v5301 = vadd.f32 %v4919, %v5170
  %v5302 = vadd.f32 %v4920, %v5172
  %v5303 = vadd.f32 %v4921, %v5174
  %v5304 = vadd.f32 %v4922, %v5178
  %v5305 = vadd.f32 %v4923, %v5180
  %v5306 = vadd.f32 %v4924, %v5182
  %v5307 = vadd.f32 %v4925, %v5184
  %v5308 = vadd.f32 %v4926, %v5188
  %v5309 = vadd.f32 %v4927, %v5190
  %v5310 = vadd.f32 %v4928, %v5192
  %v5311 = vadd.f32 %v4929, %v5194
  %v5312 = vadd.f32 %v4930, %v5198
  %v5313 = vadd.f32 %v4931, %v5200
  %v5314 = vadd.f32 %v4932, %v5202
  %v5315 = vadd.f32 %v4933, %v5204
  %v5316 = vadd.f32 %v4934, %v5208
  %v5317 = vadd.f32 %v4935, %v5210
  %v5318 = vadd.f32 %v4936, %v5212
  %v5319 = vadd.f32 %v4937, %v5214
  %v5320 = vadd.f32 %v4938, %v5218
  %v5321 = vadd.f32 %v4939, %v5220
  %v5322 = vadd.f32 %v4940, %v5222
  %v5323 = vadd.f32 %v4941, %v5224
  %v5324 = vadd.f32 %v4942, %v5228
  %v5325 = vadd.f32 %v4943, %v5230
  %v5326 = vadd.f32 %v4944, %v5232
  %v5327 = vadd.f32 %v4945, %v5234
  %v5328 = vadd.f32 %v4946, %v5238
  %v5329 = vadd.f32 %v4947, %v5240
  %v5330 = vadd.f32 %v4948, %v5242
  %v5331 = vadd.f32 %v4949, %v5244
  %v5332 = vadd.f32 %v4950, %v5248
  %v5333 = vadd.f32 %v4951, %v5250
  %v5334 = vadd.f32 %v4952, %v5252
  %v5335 = vadd.f32 %v4953, %v5254
  %v5336 = vadd.f32 %v4954, %v5258
  %v5337 = vadd.f32 %v4955, %v5260
  %v5338 = vadd.f32 %v4956, %v5262
  %v5339 = vadd.f32 %v4957, %v5264
  %v5340 = vadd.f32 %v4958, %v5268
  %v5341 = vadd.f32 %v4959, %v5270
  %v5342 = vadd.f32 %v4960, %v5272
  %v5343 = vadd.f32 %v4961, %v5274
  %v5344 = vadd.f32 %v4962, %v5278
  %v5345 = vadd.f32 %v4963, %v5280
  %v5346 = vadd.f32 %v4964, %v5282
  %v5347 = vadd.f32 %v4965, %v5284
  %v5348 = vadd.f32 %v4966, %v5288
  %v5349 = vadd.f32 %v4967, %v5290
  %v5350 = vadd.f32 %v4968, %v5292
  %v5351 = vadd.f32 %v4969, %v5294
  %v5352 = vld [vmem:[#allocation2 + $0x20] sm:$0xff]
  %v5353 = vld [vmem:[#allocation2 + $0x28] sm:$0xff]
  %v5354 = vld [vmem:[#allocation2 + $0x30] sm:$0xff]
  %v5355 = vld [vmem:[#allocation2 + $0x38] sm:$0xff]
  %v5356 = vld [vmem:[#allocation2 + $0x40] sm:$0xff]
  %v5357 = vld [vmem:[#allocation2 + $0x48] sm:$0xff]
  %v5358 = vld [vmem:[#allocation2 + $0x50] sm:$0xff]
  %v5359 = vld [vmem:[#allocation2 + $0x58] sm:$0xff]
  %v5360 = vld [vmem:[#allocation2 + $0x60] sm:$0xff]
  %v5361 = vld [vmem:[#allocation2 + $0x68] sm:$0xff]
  %v5362 = vld [vmem:[#allocation2 + $0x70] sm:$0xff]
  %v5363 = vld [vmem:[#allocation2 + $0x78] sm:$0xff]
  %v5364 = vld [vmem:[#allocation2 + $0x80] sm:$0xff]
  %v5365 = vld [vmem:[#allocation2 + $0x88] sm:$0xff]
  %s5366 = scalar_lea.vmem %s4, 480
  %v5367 = vld [vmem:[%s5366] sm:$0xff]
  %v5368 = vld [vmem:[%s5366 + $0x8] sm:$0xff]
  %v5369 = vld [vmem:[%s5366 + $0x10] sm:$0xff]
  %v5370 = vld [vmem:[%s5366 + $0x18] sm:$0xff]
  %v5371 = vld [vmem:[%s5366 + $0x20] sm:$0xff]
  %v5372 = vld [vmem:[%s5366 + $0x28] sm:$0xff]
  %v5373 = vld [vmem:[%s5366 + $0x30] sm:$0xff]
  %v5374 = vld [vmem:[%s5366 + $0x38] sm:$0xff]
  %v5375 = vld [vmem:[%s5366 + $0x40] sm:$0xff]
  %v5376 = vld [vmem:[%s5366 + $0x48] sm:$0xff]
  %v5377 = vld [vmem:[%s5366 + $0x50] sm:$0xff]
  %v5378 = vld [vmem:[%s5366 + $0x58] sm:$0xff]
  %v5379 = vld [vmem:[%s5366 + $0x60] sm:$0xff]
  %v5380 = vld [vmem:[%s5366 + $0x68] sm:$0xff]
  %v5381 = vld [vmem:[%s5366 + $0x70] sm:$0xff]
  %v5397 = vunpack.c.l.b16 %v5367
  %v5398 = vunpack.c.h.b16 %v5367
  %v5399 = vunpack.c.l.b16 %v5368
  %v5400 = vunpack.c.h.b16 %v5368
  %v5401 = vunpack.c.l.b16 %v5369
  %v5402 = vunpack.c.h.b16 %v5369
  %v5403 = vunpack.c.l.b16 %v5370
  %v5404 = vunpack.c.h.b16 %v5370
  %v5405 = vunpack.c.l.b16 %v5371
  %v5406 = vunpack.c.h.b16 %v5371
  %v5407 = vunpack.c.l.b16 %v5372
  %v5408 = vunpack.c.h.b16 %v5372
  %v5409 = vunpack.c.l.b16 %v5373
  %v5410 = vunpack.c.h.b16 %v5373
  %v5411 = vunpack.c.l.b16 %v5374
  %v5412 = vunpack.c.h.b16 %v5374
  %v5413 = vunpack.c.l.b16 %v5375
  %v5414 = vunpack.c.h.b16 %v5375
  %v5415 = vunpack.c.l.b16 %v5376
  %v5416 = vunpack.c.h.b16 %v5376
  %v5417 = vunpack.c.l.b16 %v5377
  %v5418 = vunpack.c.h.b16 %v5377
  %v5419 = vunpack.c.l.b16 %v5378
  %v5420 = vunpack.c.h.b16 %v5378
  %v5421 = vunpack.c.l.b16 %v5379
  %v5422 = vunpack.c.h.b16 %v5379
  %v5423 = vunpack.c.l.b16 %v5380
  %v5424 = vunpack.c.h.b16 %v5380
  %v5425 = vunpack.c.l.b16 %v5381
  %v5426 = vunpack.c.h.b16 %v5381
  %v5427 = vpack.c.b16 %v5399, %v5397
  %v5428 = vpack.c.b16 %v5400, %v5398
  %v5429 = vpack.c.b16 %v5403, %v5401
  %v5430 = vpack.c.b16 %v5404, %v5402
  %v5431 = vpack.c.b16 %v5407, %v5405
  %v5432 = vpack.c.b16 %v5408, %v5406
  %v5433 = vpack.c.b16 %v5411, %v5409
  %v5434 = vpack.c.b16 %v5412, %v5410
  %v5435 = vpack.c.b16 %v5415, %v5413
  %v5436 = vpack.c.b16 %v5416, %v5414
  %v5437 = vpack.c.b16 %v5419, %v5417
  %v5438 = vpack.c.b16 %v5420, %v5418
  %v5439 = vpack.c.b16 %v5423, %v5421
  %v5440 = vpack.c.b16 %v5424, %v5422
  %v5441 = vpack.c.b16 %v5425, %v5425
  %v5442 = vpack.c.b16 %v5426, %v5426
  %v5458 = vsel %vm3899, %v5352, 0
  %v5461 = vsel %vm3899, %v5353, 0
  %v5464 = vsel %vm3899, %v5354, 0
  %v5467 = vsel %vm3899, %v5355, 0
  %v5470 = vsel %vm3899, %v5356, 0
  %v5473 = vsel %vm3899, %v5357, 0
  %v5476 = vsel %vm3899, %v5358, 0
  %v5479 = vsel %vm3899, %v5359, 0
  %v5482 = vsel %vm3899, %v5360, 0
  %v5485 = vsel %vm3899, %v5361, 0
  %v5488 = vsel %vm3899, %v5362, 0
  %v5491 = vsel %vm3899, %v5363, 0
  %v5494 = vsel %vm3899, %v5364, 0
  %v5497 = vsel %vm3899, %v5365, 0
  %v5500 = vsel %vm4112, %v5441, 0
  %v5503 = vsel %vm4112, %v5442, 0
  %5505 = vmatprep.subr.bf16.mxu0 %v5428
  %5506 = vmatpush1.bf16.msra.mxu0 %v5427
  %5507 = vmatprep.subr.bf16.mxu0 %v5430
  %5508 = vmatpush1.bf16.msra.mxu0 %v5429
  %5509 = vmatprep.subr.bf16.mxu0 %v5432
  %5510 = vmatpush1.bf16.msra.mxu0 %v5431
  %5511 = vmatprep.subr.bf16.mxu0 %v5434
  %5512 = vmatpush1.bf16.msra.mxu0 %v5433
  %5513 = vmatprep.subr.bf16.mxu0 %v5436
  %5514 = vmatpush1.bf16.msra.mxu0 %v5435
  %5515 = vmatprep.subr.bf16.mxu0 %v5438
  %5516 = vmatpush1.bf16.msra.mxu0 %v5437
  %5517 = vmatprep.subr.bf16.mxu0 %v5440
  %5518 = vmatpush1.bf16.msra.mxu0 %v5439
  %5519 = vmatprep.subr.bf16.mxu0 %v5503
  %5520 = vmatpush1.bf16.msra.mxu0 %v5500
  %5521 = vmatprep.subr.bf16.mxu0 0
  %5522 = vmatpush1.bf16.msra.mxu0 0
  %5523 = vmatprep.subr.bf16.mxu0 0
  %5524 = vmatpush1.bf16.msra.mxu0 0
  %5525 = vmatprep.subr.bf16.mxu0 0
  %5526 = vmatpush1.bf16.msra.mxu0 0
  %5527 = vmatprep.subr.bf16.mxu0 0
  %5528 = vmatpush1.bf16.msra.mxu0 0
  %5529 = vmatprep.subr.bf16.mxu0 0
  %5530 = vmatpush1.bf16.msra.mxu0 0
  %5531 = vmatprep.subr.bf16.mxu0 0
  %5532 = vmatpush1.bf16.msra.mxu0 0
  %5533 = vmatprep.subr.bf16.mxu0 0
  %5534 = vmatpush1.bf16.msra.mxu0 0
  %5535 = vmatprep.subr.bf16.mxu0 0
  %5536 = vmatpush1.bf16.msra.mxu0 0
  %5537 = vmatprep.mubr.bf16.mxu0 0
  %5538 = vmatmul.mubr.bf16.gmra.mrb[0].mxu0 %v5458
  %v5539 = vpop.f32.mrb[0].mxu0
  %v5540 = vadd.f32 0.0, %v5539
  %v5541 = vpop.f32.mrb[0].mxu0
  %v5542 = vadd.f32 0.0, %v5541
  %v5543 = vpop.f32.mrb[0].mxu0
  %v5544 = vadd.f32 0.0, %v5543
  %v5545 = vpop.f32.mrb[0].mxu0
  %v5546 = vadd.f32 0.0, %v5545
  %5547 = vmatprep.mubr.bf16.mxu0 0
  %5548 = vmatmul.mubr.bf16.gmra.mrb[0].mxu0 %v5461
  %v5549 = vpop.f32.mrb[0].mxu0
  %v5550 = vadd.f32 0.0, %v5549
  %v5551 = vpop.f32.mrb[0].mxu0
  %v5552 = vadd.f32 0.0, %v5551
  %v5553 = vpop.f32.mrb[0].mxu0
  %v5554 = vadd.f32 0.0, %v5553
  %v5555 = vpop.f32.mrb[0].mxu0
  %v5556 = vadd.f32 0.0, %v5555
  %5557 = vmatprep.mubr.bf16.mxu0 0
  %5558 = vmatmul.mubr.bf16.gmra.mrb[0].mxu0 %v5464
  %v5559 = vpop.f32.mrb[0].mxu0
  %v5560 = vadd.f32 0.0, %v5559
  %v5561 = vpop.f32.mrb[0].mxu0
  %v5562 = vadd.f32 0.0, %v5561
  %v5563 = vpop.f32.mrb[0].mxu0
  %v5564 = vadd.f32 0.0, %v5563
  %v5565 = vpop.f32.mrb[0].mxu0
  %v5566 = vadd.f32 0.0, %v5565
  %5567 = vmatprep.mubr.bf16.mxu0 0
  %5568 = vmatmul.mubr.bf16.gmra.mrb[0].mxu0 %v5467
  %v5569 = vpop.f32.mrb[0].mxu0
  %v5570 = vadd.f32 0.0, %v5569
  %v5571 = vpop.f32.mrb[0].mxu0
  %v5572 = vadd.f32 0.0, %v5571
  %v5573 = vpop.f32.mrb[0].mxu0
  %v5574 = vadd.f32 0.0, %v5573
  %v5575 = vpop.f32.mrb[0].mxu0
  %v5576 = vadd.f32 0.0, %v5575
  %5577 = vmatprep.mubr.bf16.mxu0 0
  %5578 = vmatmul.mubr.bf16.gmra.mrb[0].mxu0 %v5470
  %v5579 = vpop.f32.mrb[0].mxu0
  %v5580 = vadd.f32 0.0, %v5579
  %v5581 = vpop.f32.mrb[0].mxu0
  %v5582 = vadd.f32 0.0, %v5581
  %v5583 = vpop.f32.mrb[0].mxu0
  %v5584 = vadd.f32 0.0, %v5583
  %v5585 = vpop.f32.mrb[0].mxu0
  %v5586 = vadd.f32 0.0, %v5585
  %5587 = vmatprep.mubr.bf16.mxu0 0
  %5588 = vmatmul.mubr.bf16.gmra.mrb[0].mxu0 %v5473
  %v5589 = vpop.f32.mrb[0].mxu0
  %v5590 = vadd.f32 0.0, %v5589
  %v5591 = vpop.f32.mrb[0].mxu0
  %v5592 = vadd.f32 0.0, %v5591
  %v5593 = vpop.f32.mrb[0].mxu0
  %v5594 = vadd.f32 0.0, %v5593
  %v5595 = vpop.f32.mrb[0].mxu0
  %v5596 = vadd.f32 0.0, %v5595
  %5597 = vmatprep.mubr.bf16.mxu0 0
  %5598 = vmatmul.mubr.bf16.gmra.mrb[0].mxu0 %v5476
  %v5599 = vpop.f32.mrb[0].mxu0
  %v5600 = vadd.f32 0.0, %v5599
  %v5601 = vpop.f32.mrb[0].mxu0
  %v5602 = vadd.f32 0.0, %v5601
  %v5603 = vpop.f32.mrb[0].mxu0
  %v5604 = vadd.f32 0.0, %v5603
  %v5605 = vpop.f32.mrb[0].mxu0
  %v5606 = vadd.f32 0.0, %v5605
  %5607 = vmatprep.mubr.bf16.mxu0 0
  %5608 = vmatmul.mubr.bf16.gmra.mrb[0].mxu0 %v5479
  %v5609 = vpop.f32.mrb[0].mxu0
  %v5610 = vadd.f32 0.0, %v5609
  %v5611 = vpop.f32.mrb[0].mxu0
  %v5612 = vadd.f32 0.0, %v5611
  %v5613 = vpop.f32.mrb[0].mxu0
  %v5614 = vadd.f32 0.0, %v5613
  %v5615 = vpop.f32.mrb[0].mxu0
  %v5616 = vadd.f32 0.0, %v5615
  %5617 = vmatprep.mubr.bf16.mxu0 0
  %5618 = vmatmul.mubr.bf16.gmra.mrb[0].mxu0 %v5482
  %v5619 = vpop.f32.mrb[0].mxu0
  %v5620 = vadd.f32 0.0, %v5619
  %v5621 = vpop.f32.mrb[0].mxu0
  %v5622 = vadd.f32 0.0, %v5621
  %v5623 = vpop.f32.mrb[0].mxu0
  %v5624 = vadd.f32 0.0, %v5623
  %v5625 = vpop.f32.mrb[0].mxu0
  %v5626 = vadd.f32 0.0, %v5625
  %5627 = vmatprep.mubr.bf16.mxu0 0
  %5628 = vmatmul.mubr.bf16.gmra.mrb[0].mxu0 %v5485
  %v5629 = vpop.f32.mrb[0].mxu0
  %v5630 = vadd.f32 0.0, %v5629
  %v5631 = vpop.f32.mrb[0].mxu0
  %v5632 = vadd.f32 0.0, %v5631
  %v5633 = vpop.f32.mrb[0].mxu0
  %v5634 = vadd.f32 0.0, %v5633
  %v5635 = vpop.f32.mrb[0].mxu0
  %v5636 = vadd.f32 0.0, %v5635
  %5637 = vmatprep.mubr.bf16.mxu0 0
  %5638 = vmatmul.mubr.bf16.gmra.mrb[0].mxu0 %v5488
  %v5639 = vpop.f32.mrb[0].mxu0
  %v5640 = vadd.f32 0.0, %v5639
  %v5641 = vpop.f32.mrb[0].mxu0
  %v5642 = vadd.f32 0.0, %v5641
  %v5643 = vpop.f32.mrb[0].mxu0
  %v5644 = vadd.f32 0.0, %v5643
  %v5645 = vpop.f32.mrb[0].mxu0
  %v5646 = vadd.f32 0.0, %v5645
  %5647 = vmatprep.mubr.bf16.mxu0 0
  %5648 = vmatmul.mubr.bf16.gmra.mrb[0].mxu0 %v5491
  %v5649 = vpop.f32.mrb[0].mxu0
  %v5650 = vadd.f32 0.0, %v5649
  %v5651 = vpop.f32.mrb[0].mxu0
  %v5652 = vadd.f32 0.0, %v5651
  %v5653 = vpop.f32.mrb[0].mxu0
  %v5654 = vadd.f32 0.0, %v5653
  %v5655 = vpop.f32.mrb[0].mxu0
  %v5656 = vadd.f32 0.0, %v5655
  %5657 = vmatprep.mubr.bf16.mxu0 0
  %5658 = vmatmul.mubr.bf16.gmra.mrb[0].mxu0 %v5494
  %v5659 = vpop.f32.mrb[0].mxu0
  %v5660 = vadd.f32 0.0, %v5659
  %v5661 = vpop.f32.mrb[0].mxu0
  %v5662 = vadd.f32 0.0, %v5661
  %v5663 = vpop.f32.mrb[0].mxu0
  %v5664 = vadd.f32 0.0, %v5663
  %v5665 = vpop.f32.mrb[0].mxu0
  %v5666 = vadd.f32 0.0, %v5665
  %5667 = vmatprep.mubr.bf16.mxu0 0
  %5668 = vmatmul.mubr.bf16.gmra.mrb[0].mxu0 %v5497
  %v5669 = vpop.f32.mrb[0].mxu0
  %v5670 = vadd.f32 0.0, %v5669
  %v5671 = vpop.f32.mrb[0].mxu0
  %v5672 = vadd.f32 0.0, %v5671
  %v5673 = vpop.f32.mrb[0].mxu0
  %v5674 = vadd.f32 0.0, %v5673
  %v5675 = vpop.f32.mrb[0].mxu0
  %v5676 = vadd.f32 0.0, %v5675
  %5677 = vdwg.mxu0
  %v5678 = vadd.f32 %v5296, %v5540
  %v5679 = vadd.f32 %v5297, %v5542
  %v5680 = vadd.f32 %v5298, %v5544
  %v5681 = vadd.f32 %v5299, %v5546
  %v5682 = vadd.f32 %v5300, %v5550
  %v5683 = vadd.f32 %v5301, %v5552
  %v5684 = vadd.f32 %v5302, %v5554
  %v5685 = vadd.f32 %v5303, %v5556
  %v5686 = vadd.f32 %v5304, %v5560
  %v5687 = vadd.f32 %v5305, %v5562
  %v5688 = vadd.f32 %v5306, %v5564
  %v5689 = vadd.f32 %v5307, %v5566
  %v5690 = vadd.f32 %v5308, %v5570
  %v5691 = vadd.f32 %v5309, %v5572
  %v5692 = vadd.f32 %v5310, %v5574
  %v5693 = vadd.f32 %v5311, %v5576
  %v5694 = vadd.f32 %v5312, %v5580
  %v5695 = vadd.f32 %v5313, %v5582
  %v5696 = vadd.f32 %v5314, %v5584
  %v5697 = vadd.f32 %v5315, %v5586
  %v5698 = vadd.f32 %v5316, %v5590
  %v5699 = vadd.f32 %v5317, %v5592
  %v5700 = vadd.f32 %v5318, %v5594
  %v5701 = vadd.f32 %v5319, %v5596
  %v5702 = vadd.f32 %v5320, %v5600
  %v5703 = vadd.f32 %v5321, %v5602
  %v5704 = vadd.f32 %v5322, %v5604
  %v5705 = vadd.f32 %v5323, %v5606
  %v5706 = vadd.f32 %v5324, %v5610
  %v5707 = vadd.f32 %v5325, %v5612
  %v5708 = vadd.f32 %v5326, %v5614
  %v5709 = vadd.f32 %v5327, %v5616
  %v5710 = vadd.f32 %v5328, %v5620
  %v5711 = vadd.f32 %v5329, %v5622
  %v5712 = vadd.f32 %v5330, %v5624
  %v5713 = vadd.f32 %v5331, %v5626
  %v5714 = vadd.f32 %v5332, %v5630
  %v5715 = vadd.f32 %v5333, %v5632
  %v5716 = vadd.f32 %v5334, %v5634
  %v5717 = vadd.f32 %v5335, %v5636
  %v5718 = vadd.f32 %v5336, %v5640
  %v5719 = vadd.f32 %v5337, %v5642
  %v5720 = vadd.f32 %v5338, %v5644
  %v5721 = vadd.f32 %v5339, %v5646
  %v5722 = vadd.f32 %v5340, %v5650
  %v5723 = vadd.f32 %v5341, %v5652
  %v5724 = vadd.f32 %v5342, %v5654
  %v5725 = vadd.f32 %v5343, %v5656
  %v5726 = vadd.f32 %v5344, %v5660
  %v5727 = vadd.f32 %v5345, %v5662
  %v5728 = vadd.f32 %v5346, %v5664
  %v5729 = vadd.f32 %v5347, %v5666
  %v5730 = vadd.f32 %v5348, %v5670
  %v5731 = vadd.f32 %v5349, %v5672
  %v5732 = vadd.f32 %v5350, %v5674
  %v5733 = vadd.f32 %v5351, %v5676
  %v5734 = vmax.f32 %v5678, %v5679
  %v5735 = vmax.f32 %v5680, %v5681
  %v5736 = vmax.f32 %v5682, %v5683
  %v5737 = vmax.f32 %v5684, %v5685
  %v5738 = vmax.f32 %v5686, %v5687
  %v5739 = vmax.f32 %v5688, %v5689
  %v5740 = vmax.f32 %v5690, %v5691
  %v5741 = vmax.f32 %v5692, %v5693
  %v5742 = vmax.f32 %v5694, %v5695
  %v5743 = vmax.f32 %v5696, %v5697
  %v5744 = vmax.f32 %v5698, %v5699
  %v5745 = vmax.f32 %v5700, %v5701
  %v5746 = vmax.f32 %v5702, %v5703
  %v5747 = vmax.f32 %v5704, %v5705
  %v5748 = vmax.f32 %v5706, %v5707
  %v5749 = vmax.f32 %v5708, %v5709
  %v5750 = vmax.f32 %v5710, %v5711
  %v5751 = vmax.f32 %v5712, %v5713
  %v5752 = vmax.f32 %v5714, %v5715
  %v5753 = vmax.f32 %v5716, %v5717
  %v5754 = vmax.f32 %v5718, %v5719
  %v5755 = vmax.f32 %v5720, %v5721
  %v5756 = vmax.f32 %v5722, %v5723
  %v5757 = vmax.f32 %v5724, %v5725
  %v5758 = vmax.f32 %v5726, %v5727
  %v5759 = vmax.f32 %v5728, %v5729
  %v5760 = vmax.f32 %v5730, %v5731
  %v5761 = vmax.f32 %v5732, %v5733
  %5762 = vmatprep.subr.bf16.mxu0 %v4041
  %5763 = vmatpush1.bf16.msra.mxu0 %v4040
  %5764 = vmatprep.subr.bf16.mxu0 %v4043
  %5765 = vmatpush1.bf16.msra.mxu0 %v4042
  %5766 = vmatprep.subr.bf16.mxu0 %v4045
  %5767 = vmatpush1.bf16.msra.mxu0 %v4044
  %5768 = vmatprep.subr.bf16.mxu0 %v4047
  %5769 = vmatpush1.bf16.msra.mxu0 %v4046
  %5770 = vmatprep.subr.bf16.mxu0 %v4049
  %5771 = vmatpush1.bf16.msra.mxu0 %v4048
  %5772 = vmatprep.subr.bf16.mxu0 %v4051
  %5773 = vmatpush1.bf16.msra.mxu0 %v4050
  %5774 = vmatprep.subr.bf16.mxu0 %v4053
  %5775 = vmatpush1.bf16.msra.mxu0 %v4052
  %5776 = vmatprep.subr.bf16.mxu0 %v4117
  %5777 = vmatpush1.bf16.msra.mxu0 %v4114
  %5778 = vmatprep.subr.bf16.mxu0 0
  %5779 = vmatpush1.bf16.msra.mxu0 0
  %5780 = vmatprep.subr.bf16.mxu0 0
  %5781 = vmatpush1.bf16.msra.mxu0 0
  %5782 = vmatprep.subr.bf16.mxu0 0
  %5783 = vmatpush1.bf16.msra.mxu0 0
  %5784 = vmatprep.subr.bf16.mxu0 0
  %5785 = vmatpush1.bf16.msra.mxu0 0
  %5786 = vmatprep.subr.bf16.mxu0 0
  %5787 = vmatpush1.bf16.msra.mxu0 0
  %5788 = vmatprep.subr.bf16.mxu0 0
  %5789 = vmatpush1.bf16.msra.mxu0 0
  %5790 = vmatprep.subr.bf16.mxu0 0
  %5791 = vmatpush1.bf16.msra.mxu0 0
  %5792 = vmatprep.subr.bf16.mxu0 0
  %5793 = vmatpush1.bf16.msra.mxu0 0
  %5794 = vmatprep.mubr.bf16.mxu0 0
  %5795 = vmatmul.mubr.bf16.gmra.mrb[0].mxu0 %v4694
  %v5796 = vpop.f32.mrb[0].mxu0
  %v5797 = vadd.f32 0.0, %v5796
  %v5798 = vpop.f32.mrb[0].mxu0
  %v5799 = vadd.f32 0.0, %v5798
  %v5800 = vpop.f32.mrb[0].mxu0
  %v5801 = vadd.f32 0.0, %v5800
  %v5802 = vpop.f32.mrb[0].mxu0
  %v5803 = vadd.f32 0.0, %v5802
  %5804 = vmatprep.mubr.bf16.mxu0 0
  %5805 = vmatmul.mubr.bf16.gmra.mrb[0].mxu0 %v4697
  %v5806 = vpop.f32.mrb[0].mxu0
  %v5807 = vadd.f32 0.0, %v5806
  %v5808 = vpop.f32.mrb[0].mxu0
  %v5809 = vadd.f32 0.0, %v5808
  %v5810 = vpop.f32.mrb[0].mxu0
  %v5811 = vadd.f32 0.0, %v5810
  %v5812 = vpop.f32.mrb[0].mxu0
  %v5813 = vadd.f32 0.0, %v5812
  %5814 = vmatprep.mubr.bf16.mxu0 0
  %5815 = vmatmul.mubr.bf16.gmra.mrb[0].mxu0 %v4700
  %v5816 = vpop.f32.mrb[0].mxu0
  %v5817 = vadd.f32 0.0, %v5816
  %v5818 = vpop.f32.mrb[0].mxu0
  %v5819 = vadd.f32 0.0, %v5818
  %v5820 = vpop.f32.mrb[0].mxu0
  %v5821 = vadd.f32 0.0, %v5820
  %v5822 = vpop.f32.mrb[0].mxu0
  %v5823 = vadd.f32 0.0, %v5822
  %5824 = vmatprep.mubr.bf16.mxu0 0
  %5825 = vmatmul.mubr.bf16.gmra.mrb[0].mxu0 %v4703
  %v5826 = vpop.f32.mrb[0].mxu0
  %v5827 = vadd.f32 0.0, %v5826
  %v5828 = vpop.f32.mrb[0].mxu0
  %v5829 = vadd.f32 0.0, %v5828
  %v5830 = vpop.f32.mrb[0].mxu0
  %v5831 = vadd.f32 0.0, %v5830
  %v5832 = vpop.f32.mrb[0].mxu0
  %v5833 = vadd.f32 0.0, %v5832
  %5834 = vmatprep.mubr.bf16.mxu0 0
  %5835 = vmatmul.mubr.bf16.gmra.mrb[0].mxu0 %v4706
  %v5836 = vpop.f32.mrb[0].mxu0
  %v5837 = vadd.f32 0.0, %v5836
  %v5838 = vpop.f32.mrb[0].mxu0
  %v5839 = vadd.f32 0.0, %v5838
  %v5840 = vpop.f32.mrb[0].mxu0
  %v5841 = vadd.f32 0.0, %v5840
  %v5842 = vpop.f32.mrb[0].mxu0
  %v5843 = vadd.f32 0.0, %v5842
  %5844 = vmatprep.mubr.bf16.mxu0 0
  %5845 = vmatmul.mubr.bf16.gmra.mrb[0].mxu0 %v4709
  %v5846 = vpop.f32.mrb[0].mxu0
  %v5847 = vadd.f32 0.0, %v5846
  %v5848 = vpop.f32.mrb[0].mxu0
  %v5849 = vadd.f32 0.0, %v5848
  %v5850 = vpop.f32.mrb[0].mxu0
  %v5851 = vadd.f32 0.0, %v5850
  %v5852 = vpop.f32.mrb[0].mxu0
  %v5853 = vadd.f32 0.0, %v5852
  %5854 = vmatprep.mubr.bf16.mxu0 0
  %5855 = vmatmul.mubr.bf16.gmra.mrb[0].mxu0 %v4712
  %v5856 = vpop.f32.mrb[0].mxu0
  %v5857 = vadd.f32 0.0, %v5856
  %v5858 = vpop.f32.mrb[0].mxu0
  %v5859 = vadd.f32 0.0, %v5858
  %v5860 = vpop.f32.mrb[0].mxu0
  %v5861 = vadd.f32 0.0, %v5860
  %v5862 = vpop.f32.mrb[0].mxu0
  %v5863 = vadd.f32 0.0, %v5862
  %5864 = vmatprep.mubr.bf16.mxu0 0
  %5865 = vmatmul.mubr.bf16.gmra.mrb[0].mxu0 %v4715
  %v5866 = vpop.f32.mrb[0].mxu0
  %v5867 = vadd.f32 0.0, %v5866
  %v5868 = vpop.f32.mrb[0].mxu0
  %v5869 = vadd.f32 0.0, %v5868
  %v5870 = vpop.f32.mrb[0].mxu0
  %v5871 = vadd.f32 0.0, %v5870
  %v5872 = vpop.f32.mrb[0].mxu0
  %v5873 = vadd.f32 0.0, %v5872
  %5874 = vmatprep.mubr.bf16.mxu0 0
  %5875 = vmatmul.mubr.bf16.gmra.mrb[0].mxu0 %v4718
  %v5876 = vpop.f32.mrb[0].mxu0
  %v5877 = vadd.f32 0.0, %v5876
  %v5878 = vpop.f32.mrb[0].mxu0
  %v5879 = vadd.f32 0.0, %v5878
  %v5880 = vpop.f32.mrb[0].mxu0
  %v5881 = vadd.f32 0.0, %v5880
  %v5882 = vpop.f32.mrb[0].mxu0
  %v5883 = vadd.f32 0.0, %v5882
  %5884 = vmatprep.mubr.bf16.mxu0 0
  %5885 = vmatmul.mubr.bf16.gmra.mrb[0].mxu0 %v4721
  %v5886 = vpop.f32.mrb[0].mxu0
  %v5887 = vadd.f32 0.0, %v5886
  %v5888 = vpop.f32.mrb[0].mxu0
  %v5889 = vadd.f32 0.0, %v5888
  %v5890 = vpop.f32.mrb[0].mxu0
  %v5891 = vadd.f32 0.0, %v5890
  %v5892 = vpop.f32.mrb[0].mxu0
  %v5893 = vadd.f32 0.0, %v5892
  %5894 = vmatprep.mubr.bf16.mxu0 0
  %5895 = vmatmul.mubr.bf16.gmra.mrb[0].mxu0 %v4724
  %v5896 = vpop.f32.mrb[0].mxu0
  %v5897 = vadd.f32 0.0, %v5896
  %v5898 = vpop.f32.mrb[0].mxu0
  %v5899 = vadd.f32 0.0, %v5898
  %v5900 = vpop.f32.mrb[0].mxu0
  %v5901 = vadd.f32 0.0, %v5900
  %v5902 = vpop.f32.mrb[0].mxu0
  %v5903 = vadd.f32 0.0, %v5902
  %5904 = vmatprep.mubr.bf16.mxu0 0
  %5905 = vmatmul.mubr.bf16.gmra.mrb[0].mxu0 %v4727
  %v5906 = vpop.f32.mrb[0].mxu0
  %v5907 = vadd.f32 0.0, %v5906
  %v5908 = vpop.f32.mrb[0].mxu0
  %v5909 = vadd.f32 0.0, %v5908
  %v5910 = vpop.f32.mrb[0].mxu0
  %v5911 = vadd.f32 0.0, %v5910
  %v5912 = vpop.f32.mrb[0].mxu0
  %v5913 = vadd.f32 0.0, %v5912
  %5914 = vmatprep.mubr.bf16.mxu0 0
  %5915 = vmatmul.mubr.bf16.gmra.mrb[0].mxu0 %v4730
  %v5916 = vpop.f32.mrb[0].mxu0
  %v5917 = vadd.f32 0.0, %v5916
  %v5918 = vpop.f32.mrb[0].mxu0
  %v5919 = vadd.f32 0.0, %v5918
  %v5920 = vpop.f32.mrb[0].mxu0
  %v5921 = vadd.f32 0.0, %v5920
  %v5922 = vpop.f32.mrb[0].mxu0
  %v5923 = vadd.f32 0.0, %v5922
  %5924 = vmatprep.mubr.bf16.mxu0 0
  %5925 = vmatmul.mubr.bf16.gmra.mrb[0].mxu0 %v4733
  %v5926 = vpop.f32.mrb[0].mxu0
  %v5927 = vadd.f32 0.0, %v5926
  %v5928 = vpop.f32.mrb[0].mxu0
  %v5929 = vadd.f32 0.0, %v5928
  %v5930 = vpop.f32.mrb[0].mxu0
  %v5931 = vadd.f32 0.0, %v5930
  %v5932 = vpop.f32.mrb[0].mxu0
  %v5933 = vadd.f32 0.0, %v5932
  %5934 = vdwg.mxu0
  %5935 = vmatprep.subr.bf16.mxu0 %v4338
  %5936 = vmatpush1.bf16.msra.mxu0 %v4337
  %5937 = vmatprep.subr.bf16.mxu0 %v4340
  %5938 = vmatpush1.bf16.msra.mxu0 %v4339
  %5939 = vmatprep.subr.bf16.mxu0 %v4342
  %5940 = vmatpush1.bf16.msra.mxu0 %v4341
  %5941 = vmatprep.subr.bf16.mxu0 %v4344
  %5942 = vmatpush1.bf16.msra.mxu0 %v4343
  %5943 = vmatprep.subr.bf16.mxu0 %v4346
  %5944 = vmatpush1.bf16.msra.mxu0 %v4345
  %5945 = vmatprep.subr.bf16.mxu0 %v4348
  %5946 = vmatpush1.bf16.msra.mxu0 %v4347
  %5947 = vmatprep.subr.bf16.mxu0 %v4350
  %5948 = vmatpush1.bf16.msra.mxu0 %v4349
  %5949 = vmatprep.subr.bf16.mxu0 %v4413
  %5950 = vmatpush1.bf16.msra.mxu0 %v4410
  %5951 = vmatprep.subr.bf16.mxu0 0
  %5952 = vmatpush1.bf16.msra.mxu0 0
  %5953 = vmatprep.subr.bf16.mxu0 0
  %5954 = vmatpush1.bf16.msra.mxu0 0
  %5955 = vmatprep.subr.bf16.mxu0 0
  %5956 = vmatpush1.bf16.msra.mxu0 0
  %5957 = vmatprep.subr.bf16.mxu0 0
  %5958 = vmatpush1.bf16.msra.mxu0 0
  %5959 = vmatprep.subr.bf16.mxu0 0
  %5960 = vmatpush1.bf16.msra.mxu0 0
  %5961 = vmatprep.subr.bf16.mxu0 0
  %5962 = vmatpush1.bf16.msra.mxu0 0
  %5963 = vmatprep.subr.bf16.mxu0 0
  %5964 = vmatpush1.bf16.msra.mxu0 0
  %5965 = vmatprep.subr.bf16.mxu0 0
  %5966 = vmatpush1.bf16.msra.mxu0 0
  %5967 = vmatprep.mubr.bf16.mxu0 0
  %5968 = vmatmul.mubr.bf16.gmra.mrb[0].mxu0 %v4071
  %v5969 = vpop.f32.mrb[0].mxu0
  %v5970 = vadd.f32 %v5797, %v5969
  %v5971 = vpop.f32.mrb[0].mxu0
  %v5972 = vadd.f32 %v5799, %v5971
  %v5973 = vpop.f32.mrb[0].mxu0
  %v5974 = vadd.f32 %v5801, %v5973
  %v5975 = vpop.f32.mrb[0].mxu0
  %v5976 = vadd.f32 %v5803, %v5975
  %5977 = vmatprep.mubr.bf16.mxu0 0
  %5978 = vmatmul.mubr.bf16.gmra.mrb[0].mxu0 %v4074
  %v5979 = vpop.f32.mrb[0].mxu0
  %v5980 = vadd.f32 %v5807, %v5979
  %v5981 = vpop.f32.mrb[0].mxu0
  %v5982 = vadd.f32 %v5809, %v5981
  %v5983 = vpop.f32.mrb[0].mxu0
  %v5984 = vadd.f32 %v5811, %v5983
  %v5985 = vpop.f32.mrb[0].mxu0
  %v5986 = vadd.f32 %v5813, %v5985
  %5987 = vmatprep.mubr.bf16.mxu0 0
  %5988 = vmatmul.mubr.bf16.gmra.mrb[0].mxu0 %v4077
  %v5989 = vpop.f32.mrb[0].mxu0
  %v5990 = vadd.f32 %v5817, %v5989
  %v5991 = vpop.f32.mrb[0].mxu0
  %v5992 = vadd.f32 %v5819, %v5991
  %v5993 = vpop.f32.mrb[0].mxu0
  %v5994 = vadd.f32 %v5821, %v5993
  %v5995 = vpop.f32.mrb[0].mxu0
  %v5996 = vadd.f32 %v5823, %v5995
  %5997 = vmatprep.mubr.bf16.mxu0 0
  %5998 = vmatmul.mubr.bf16.gmra.mrb[0].mxu0 %v4080
  %v5999 = vpop.f32.mrb[0].mxu0
  %v6000 = vadd.f32 %v5827, %v5999
  %v6001 = vpop.f32.mrb[0].mxu0
  %v6002 = vadd.f32 %v5829, %v6001
  %v6003 = vpop.f32.mrb[0].mxu0
  %v6004 = vadd.f32 %v5831, %v6003
  %v6005 = vpop.f32.mrb[0].mxu0
  %v6006 = vadd.f32 %v5833, %v6005
  %6007 = vmatprep.mubr.bf16.mxu0 0
  %6008 = vmatmul.mubr.bf16.gmra.mrb[0].mxu0 %v4083
  %v6009 = vpop.f32.mrb[0].mxu0
  %v6010 = vadd.f32 %v5837, %v6009
  %v6011 = vpop.f32.mrb[0].mxu0
  %v6012 = vadd.f32 %v5839, %v6011
  %v6013 = vpop.f32.mrb[0].mxu0
  %v6014 = vadd.f32 %v5841, %v6013
  %v6015 = vpop.f32.mrb[0].mxu0
  %v6016 = vadd.f32 %v5843, %v6015
  %6017 = vmatprep.mubr.bf16.mxu0 0
  %6018 = vmatmul.mubr.bf16.gmra.mrb[0].mxu0 %v4086
  %v6019 = vpop.f32.mrb[0].mxu0
  %v6020 = vadd.f32 %v5847, %v6019
  %v6021 = vpop.f32.mrb[0].mxu0
  %v6022 = vadd.f32 %v5849, %v6021
  %v6023 = vpop.f32.mrb[0].mxu0
  %v6024 = vadd.f32 %v5851, %v6023
  %v6025 = vpop.f32.mrb[0].mxu0
  %v6026 = vadd.f32 %v5853, %v6025
  %6027 = vmatprep.mubr.bf16.mxu0 0
  %6028 = vmatmul.mubr.bf16.gmra.mrb[0].mxu0 %v4089
  %v6029 = vpop.f32.mrb[0].mxu0
  %v6030 = vadd.f32 %v5857, %v6029
  %v6031 = vpop.f32.mrb[0].mxu0
  %v6032 = vadd.f32 %v5859, %v6031
  %v6033 = vpop.f32.mrb[0].mxu0
  %v6034 = vadd.f32 %v5861, %v6033
  %v6035 = vpop.f32.mrb[0].mxu0
  %v6036 = vadd.f32 %v5863, %v6035
  %6037 = vmatprep.mubr.bf16.mxu0 0
  %6038 = vmatmul.mubr.bf16.gmra.mrb[0].mxu0 %v4092
  %v6039 = vpop.f32.mrb[0].mxu0
  %v6040 = vadd.f32 %v5867, %v6039
  %v6041 = vpop.f32.mrb[0].mxu0
  %v6042 = vadd.f32 %v5869, %v6041
  %v6043 = vpop.f32.mrb[0].mxu0
  %v6044 = vadd.f32 %v5871, %v6043
  %v6045 = vpop.f32.mrb[0].mxu0
  %v6046 = vadd.f32 %v5873, %v6045
  %6047 = vmatprep.mubr.bf16.mxu0 0
  %6048 = vmatmul.mubr.bf16.gmra.mrb[0].mxu0 %v4095
  %v6049 = vpop.f32.mrb[0].mxu0
  %v6050 = vadd.f32 %v5877, %v6049
  %v6051 = vpop.f32.mrb[0].mxu0
  %v6052 = vadd.f32 %v5879, %v6051
  %v6053 = vpop.f32.mrb[0].mxu0
  %v6054 = vadd.f32 %v5881, %v6053
  %v6055 = vpop.f32.mrb[0].mxu0
  %v6056 = vadd.f32 %v5883, %v6055
  %6057 = vmatprep.mubr.bf16.mxu0 0
  %6058 = vmatmul.mubr.bf16.gmra.mrb[0].mxu0 %v4098
  %v6059 = vpop.f32.mrb[0].mxu0
  %v6060 = vadd.f32 %v5887, %v6059
  %v6061 = vpop.f32.mrb[0].mxu0
  %v6062 = vadd.f32 %v5889, %v6061
  %v6063 = vpop.f32.mrb[0].mxu0
  %v6064 = vadd.f32 %v5891, %v6063
  %v6065 = vpop.f32.mrb[0].mxu0
  %v6066 = vadd.f32 %v5893, %v6065
  %6067 = vmatprep.mubr.bf16.mxu0 0
  %6068 = vmatmul.mubr.bf16.gmra.mrb[0].mxu0 %v4101
  %v6069 = vpop.f32.mrb[0].mxu0
  %v6070 = vadd.f32 %v5897, %v6069
  %v6071 = vpop.f32.mrb[0].mxu0
  %v6072 = vadd.f32 %v5899, %v6071
  %v6073 = vpop.f32.mrb[0].mxu0
  %v6074 = vadd.f32 %v5901, %v6073
  %v6075 = vpop.f32.mrb[0].mxu0
  %v6076 = vadd.f32 %v5903, %v6075
  %6077 = vmatprep.mubr.bf16.mxu0 0
  %6078 = vmatmul.mubr.bf16.gmra.mrb[0].mxu0 %v4104
  %v6079 = vpop.f32.mrb[0].mxu0
  %v6080 = vadd.f32 %v5907, %v6079
  %v6081 = vpop.f32.mrb[0].mxu0
  %v6082 = vadd.f32 %v5909, %v6081
  %v6083 = vpop.f32.mrb[0].mxu0
  %v6084 = vadd.f32 %v5911, %v6083
  %v6085 = vpop.f32.mrb[0].mxu0
  %v6086 = vadd.f32 %v5913, %v6085
  %6087 = vmatprep.mubr.bf16.mxu0 0
  %6088 = vmatmul.mubr.bf16.gmra.mrb[0].mxu0 %v4107
  %v6089 = vpop.f32.mrb[0].mxu0
  %v6090 = vadd.f32 %v5917, %v6089
  %v6091 = vpop.f32.mrb[0].mxu0
  %v6092 = vadd.f32 %v5919, %v6091
  %v6093 = vpop.f32.mrb[0].mxu0
  %v6094 = vadd.f32 %v5921, %v6093
  %v6095 = vpop.f32.mrb[0].mxu0
  %v6096 = vadd.f32 %v5923, %v6095
  %6097 = vmatprep.mubr.bf16.mxu0 0
  %6098 = vmatmul.mubr.bf16.gmra.mrb[0].mxu0 %v4110
  %v6099 = vpop.f32.mrb[0].mxu0
  %v6100 = vadd.f32 %v5927, %v6099
  %v6101 = vpop.f32.mrb[0].mxu0
  %v6102 = vadd.f32 %v5929, %v6101
  %v6103 = vpop.f32.mrb[0].mxu0
  %v6104 = vadd.f32 %v5931, %v6103
  %v6105 = vpop.f32.mrb[0].mxu0
  %v6106 = vadd.f32 %v5933, %v6105
  %6107 = vdwg.mxu0
  %6108 = vmatprep.subr.bf16.mxu0 %v4664
  %6109 = vmatpush1.bf16.msra.mxu0 %v4663
  %6110 = vmatprep.subr.bf16.mxu0 %v4666
  %6111 = vmatpush1.bf16.msra.mxu0 %v4665
  %6112 = vmatprep.subr.bf16.mxu0 %v4668
  %6113 = vmatpush1.bf16.msra.mxu0 %v4667
  %6114 = vmatprep.subr.bf16.mxu0 %v4670
  %6115 = vmatpush1.bf16.msra.mxu0 %v4669
  %6116 = vmatprep.subr.bf16.mxu0 %v4672
  %6117 = vmatpush1.bf16.msra.mxu0 %v4671
  %6118 = vmatprep.subr.bf16.mxu0 %v4674
  %6119 = vmatpush1.bf16.msra.mxu0 %v4673
  %6120 = vmatprep.subr.bf16.mxu0 %v4676
  %6121 = vmatpush1.bf16.msra.mxu0 %v4675
  %6122 = vmatprep.subr.bf16.mxu0 %v4739
  %6123 = vmatpush1.bf16.msra.mxu0 %v4736
  %6124 = vmatprep.subr.bf16.mxu0 0
  %6125 = vmatpush1.bf16.msra.mxu0 0
  %6126 = vmatprep.subr.bf16.mxu0 0
  %6127 = vmatpush1.bf16.msra.mxu0 0
  %6128 = vmatprep.subr.bf16.mxu0 0
  %6129 = vmatpush1.bf16.msra.mxu0 0
  %6130 = vmatprep.subr.bf16.mxu0 0
  %6131 = vmatpush1.bf16.msra.mxu0 0
  %6132 = vmatprep.subr.bf16.mxu0 0
  %6133 = vmatpush1.bf16.msra.mxu0 0
  %6134 = vmatprep.subr.bf16.mxu0 0
  %6135 = vmatpush1.bf16.msra.mxu0 0
  %6136 = vmatprep.subr.bf16.mxu0 0
  %6137 = vmatpush1.bf16.msra.mxu0 0
  %6138 = vmatprep.subr.bf16.mxu0 0
  %6139 = vmatpush1.bf16.msra.mxu0 0
  %6140 = vmatprep.mubr.bf16.mxu0 0
  %6141 = vmatmul.mubr.bf16.gmra.mrb[0].mxu0 %v5076
  %v6142 = vpop.f32.mrb[0].mxu0
  %v6143 = vadd.f32 0.0, %v6142
  %v6144 = vpop.f32.mrb[0].mxu0
  %v6145 = vadd.f32 0.0, %v6144
  %v6146 = vpop.f32.mrb[0].mxu0
  %v6147 = vadd.f32 0.0, %v6146
  %v6148 = vpop.f32.mrb[0].mxu0
  %v6149 = vadd.f32 0.0, %v6148
  %6150 = vmatprep.mubr.bf16.mxu0 0
  %6151 = vmatmul.mubr.bf16.gmra.mrb[0].mxu0 %v5079
  %v6152 = vpop.f32.mrb[0].mxu0
  %v6153 = vadd.f32 0.0, %v6152
  %v6154 = vpop.f32.mrb[0].mxu0
  %v6155 = vadd.f32 0.0, %v6154
  %v6156 = vpop.f32.mrb[0].mxu0
  %v6157 = vadd.f32 0.0, %v6156
  %v6158 = vpop.f32.mrb[0].mxu0
  %v6159 = vadd.f32 0.0, %v6158
  %6160 = vmatprep.mubr.bf16.mxu0 0
  %6161 = vmatmul.mubr.bf16.gmra.mrb[0].mxu0 %v5082
  %v6162 = vpop.f32.mrb[0].mxu0
  %v6163 = vadd.f32 0.0, %v6162
  %v6164 = vpop.f32.mrb[0].mxu0
  %v6165 = vadd.f32 0.0, %v6164
  %v6166 = vpop.f32.mrb[0].mxu0
  %v6167 = vadd.f32 0.0, %v6166
  %v6168 = vpop.f32.mrb[0].mxu0
  %v6169 = vadd.f32 0.0, %v6168
  %6170 = vmatprep.mubr.bf16.mxu0 0
  %6171 = vmatmul.mubr.bf16.gmra.mrb[0].mxu0 %v5085
  %v6172 = vpop.f32.mrb[0].mxu0
  %v6173 = vadd.f32 0.0, %v6172
  %v6174 = vpop.f32.mrb[0].mxu0
  %v6175 = vadd.f32 0.0, %v6174
  %v6176 = vpop.f32.mrb[0].mxu0
  %v6177 = vadd.f32 0.0, %v6176
  %v6178 = vpop.f32.mrb[0].mxu0
  %v6179 = vadd.f32 0.0, %v6178
  %6180 = vmatprep.mubr.bf16.mxu0 0
  %6181 = vmatmul.mubr.bf16.gmra.mrb[0].mxu0 %v5088
  %v6182 = vpop.f32.mrb[0].mxu0
  %v6183 = vadd.f32 0.0, %v6182
  %v6184 = vpop.f32.mrb[0].mxu0
  %v6185 = vadd.f32 0.0, %v6184
  %v6186 = vpop.f32.mrb[0].mxu0
  %v6187 = vadd.f32 0.0, %v6186
  %v6188 = vpop.f32.mrb[0].mxu0
  %v6189 = vadd.f32 0.0, %v6188
  %6190 = vmatprep.mubr.bf16.mxu0 0
  %6191 = vmatmul.mubr.bf16.gmra.mrb[0].mxu0 %v5091
  %v6192 = vpop.f32.mrb[0].mxu0
  %v6193 = vadd.f32 0.0, %v6192
  %v6194 = vpop.f32.mrb[0].mxu0
  %v6195 = vadd.f32 0.0, %v6194
  %v6196 = vpop.f32.mrb[0].mxu0
  %v6197 = vadd.f32 0.0, %v6196
  %v6198 = vpop.f32.mrb[0].mxu0
  %v6199 = vadd.f32 0.0, %v6198
  %6200 = vmatprep.mubr.bf16.mxu0 0
  %6201 = vmatmul.mubr.bf16.gmra.mrb[0].mxu0 %v5094
  %v6202 = vpop.f32.mrb[0].mxu0
  %v6203 = vadd.f32 0.0, %v6202
  %v6204 = vpop.f32.mrb[0].mxu0
  %v6205 = vadd.f32 0.0, %v6204
  %v6206 = vpop.f32.mrb[0].mxu0
  %v6207 = vadd.f32 0.0, %v6206
  %v6208 = vpop.f32.mrb[0].mxu0
  %v6209 = vadd.f32 0.0, %v6208
  %6210 = vmatprep.mubr.bf16.mxu0 0
  %6211 = vmatmul.mubr.bf16.gmra.mrb[0].mxu0 %v5097
  %v6212 = vpop.f32.mrb[0].mxu0
  %v6213 = vadd.f32 0.0, %v6212
  %v6214 = vpop.f32.mrb[0].mxu0
  %v6215 = vadd.f32 0.0, %v6214
  %v6216 = vpop.f32.mrb[0].mxu0
  %v6217 = vadd.f32 0.0, %v6216
  %v6218 = vpop.f32.mrb[0].mxu0
  %v6219 = vadd.f32 0.0, %v6218
  %6220 = vmatprep.mubr.bf16.mxu0 0
  %6221 = vmatmul.mubr.bf16.gmra.mrb[0].mxu0 %v5100
  %v6222 = vpop.f32.mrb[0].mxu0
  %v6223 = vadd.f32 0.0, %v6222
  %v6224 = vpop.f32.mrb[0].mxu0
  %v6225 = vadd.f32 0.0, %v6224
  %v6226 = vpop.f32.mrb[0].mxu0
  %v6227 = vadd.f32 0.0, %v6226
  %v6228 = vpop.f32.mrb[0].mxu0
  %v6229 = vadd.f32 0.0, %v6228
  %6230 = vmatprep.mubr.bf16.mxu0 0
  %6231 = vmatmul.mubr.bf16.gmra.mrb[0].mxu0 %v5103
  %v6232 = vpop.f32.mrb[0].mxu0
  %v6233 = vadd.f32 0.0, %v6232
  %v6234 = vpop.f32.mrb[0].mxu0
  %v6235 = vadd.f32 0.0, %v6234
  %v6236 = vpop.f32.mrb[0].mxu0
  %v6237 = vadd.f32 0.0, %v6236
  %v6238 = vpop.f32.mrb[0].mxu0
  %v6239 = vadd.f32 0.0, %v6238
  %6240 = vmatprep.mubr.bf16.mxu0 0
  %6241 = vmatmul.mubr.bf16.gmra.mrb[0].mxu0 %v5106
  %v6242 = vpop.f32.mrb[0].mxu0
  %v6243 = vadd.f32 0.0, %v6242
  %v6244 = vpop.f32.mrb[0].mxu0
  %v6245 = vadd.f32 0.0, %v6244
  %v6246 = vpop.f32.mrb[0].mxu0
  %v6247 = vadd.f32 0.0, %v6246
  %v6248 = vpop.f32.mrb[0].mxu0
  %v6249 = vadd.f32 0.0, %v6248
  %6250 = vmatprep.mubr.bf16.mxu0 0
  %6251 = vmatmul.mubr.bf16.gmra.mrb[0].mxu0 %v5109
  %v6252 = vpop.f32.mrb[0].mxu0
  %v6253 = vadd.f32 0.0, %v6252
  %v6254 = vpop.f32.mrb[0].mxu0
  %v6255 = vadd.f32 0.0, %v6254
  %v6256 = vpop.f32.mrb[0].mxu0
  %v6257 = vadd.f32 0.0, %v6256
  %v6258 = vpop.f32.mrb[0].mxu0
  %v6259 = vadd.f32 0.0, %v6258
  %6260 = vmatprep.mubr.bf16.mxu0 0
  %6261 = vmatmul.mubr.bf16.gmra.mrb[0].mxu0 %v5112
  %v6262 = vpop.f32.mrb[0].mxu0
  %v6263 = vadd.f32 0.0, %v6262
  %v6264 = vpop.f32.mrb[0].mxu0
  %v6265 = vadd.f32 0.0, %v6264
  %v6266 = vpop.f32.mrb[0].mxu0
  %v6267 = vadd.f32 0.0, %v6266
  %v6268 = vpop.f32.mrb[0].mxu0
  %v6269 = vadd.f32 0.0, %v6268
  %6270 = vmatprep.mubr.bf16.mxu0 0
  %6271 = vmatmul.mubr.bf16.gmra.mrb[0].mxu0 %v5115
  %v6272 = vpop.f32.mrb[0].mxu0
  %v6273 = vadd.f32 0.0, %v6272
  %v6274 = vpop.f32.mrb[0].mxu0
  %v6275 = vadd.f32 0.0, %v6274
  %v6276 = vpop.f32.mrb[0].mxu0
  %v6277 = vadd.f32 0.0, %v6276
  %v6278 = vpop.f32.mrb[0].mxu0
  %v6279 = vadd.f32 0.0, %v6278
  %6280 = vdwg.mxu0
  %v6281 = vadd.f32 %v5970, %v6143
  %v6282 = vadd.f32 %v5972, %v6145
  %v6283 = vadd.f32 %v5974, %v6147
  %v6284 = vadd.f32 %v5976, %v6149
  %v6285 = vadd.f32 %v5980, %v6153
  %v6286 = vadd.f32 %v5982, %v6155
  %v6287 = vadd.f32 %v5984, %v6157
  %v6288 = vadd.f32 %v5986, %v6159
  %v6289 = vadd.f32 %v5990, %v6163
  %v6290 = vadd.f32 %v5992, %v6165
  %v6291 = vadd.f32 %v5994, %v6167
  %v6292 = vadd.f32 %v5996, %v6169
  %v6293 = vadd.f32 %v6000, %v6173
  %v6294 = vadd.f32 %v6002, %v6175
  %v6295 = vadd.f32 %v6004, %v6177
  %v6296 = vadd.f32 %v6006, %v6179
  %v6297 = vadd.f32 %v6010, %v6183
  %v6298 = vadd.f32 %v6012, %v6185
  %v6299 = vadd.f32 %v6014, %v6187
  %v6300 = vadd.f32 %v6016, %v6189
  %v6301 = vadd.f32 %v6020, %v6193
  %v6302 = vadd.f32 %v6022, %v6195
  %v6303 = vadd.f32 %v6024, %v6197
  %v6304 = vadd.f32 %v6026, %v6199
  %v6305 = vadd.f32 %v6030, %v6203
  %v6306 = vadd.f32 %v6032, %v6205
  %v6307 = vadd.f32 %v6034, %v6207
  %v6308 = vadd.f32 %v6036, %v6209
  %v6309 = vadd.f32 %v6040, %v6213
  %v6310 = vadd.f32 %v6042, %v6215
  %v6311 = vadd.f32 %v6044, %v6217
  %v6312 = vadd.f32 %v6046, %v6219
  %v6313 = vadd.f32 %v6050, %v6223
  %v6314 = vadd.f32 %v6052, %v6225
  %v6315 = vadd.f32 %v6054, %v6227
  %v6316 = vadd.f32 %v6056, %v6229
  %v6317 = vadd.f32 %v6060, %v6233
  %v6318 = vadd.f32 %v6062, %v6235
  %v6319 = vadd.f32 %v6064, %v6237
  %v6320 = vadd.f32 %v6066, %v6239
  %v6321 = vadd.f32 %v6070, %v6243
  %v6322 = vadd.f32 %v6072, %v6245
  %v6323 = vadd.f32 %v6074, %v6247
  %v6324 = vadd.f32 %v6076, %v6249
  %v6325 = vadd.f32 %v6080, %v6253
  %v6326 = vadd.f32 %v6082, %v6255
  %v6327 = vadd.f32 %v6084, %v6257
  %v6328 = vadd.f32 %v6086, %v6259
  %v6329 = vadd.f32 %v6090, %v6263
  %v6330 = vadd.f32 %v6092, %v6265
  %v6331 = vadd.f32 %v6094, %v6267
  %v6332 = vadd.f32 %v6096, %v6269
  %v6333 = vadd.f32 %v6100, %v6273
  %v6334 = vadd.f32 %v6102, %v6275
  %v6335 = vadd.f32 %v6104, %v6277
  %v6336 = vadd.f32 %v6106, %v6279
  %6337 = vmatprep.subr.bf16.mxu0 %v5046
  %6338 = vmatpush1.bf16.msra.mxu0 %v5045
  %6339 = vmatprep.subr.bf16.mxu0 %v5048
  %6340 = vmatpush1.bf16.msra.mxu0 %v5047
  %6341 = vmatprep.subr.bf16.mxu0 %v5050
  %6342 = vmatpush1.bf16.msra.mxu0 %v5049
  %6343 = vmatprep.subr.bf16.mxu0 %v5052
  %6344 = vmatpush1.bf16.msra.mxu0 %v5051
  %6345 = vmatprep.subr.bf16.mxu0 %v5054
  %6346 = vmatpush1.bf16.msra.mxu0 %v5053
  %6347 = vmatprep.subr.bf16.mxu0 %v5056
  %6348 = vmatpush1.bf16.msra.mxu0 %v5055
  %6349 = vmatprep.subr.bf16.mxu0 %v5058
  %6350 = vmatpush1.bf16.msra.mxu0 %v5057
  %6351 = vmatprep.subr.bf16.mxu0 %v5121
  %6352 = vmatpush1.bf16.msra.mxu0 %v5118
  %6353 = vmatprep.subr.bf16.mxu0 0
  %6354 = vmatpush1.bf16.msra.mxu0 0
  %6355 = vmatprep.subr.bf16.mxu0 0
  %6356 = vmatpush1.bf16.msra.mxu0 0
  %6357 = vmatprep.subr.bf16.mxu0 0
  %6358 = vmatpush1.bf16.msra.mxu0 0
  %6359 = vmatprep.subr.bf16.mxu0 0
  %6360 = vmatpush1.bf16.msra.mxu0 0
  %6361 = vmatprep.subr.bf16.mxu0 0
  %6362 = vmatpush1.bf16.msra.mxu0 0
  %6363 = vmatprep.subr.bf16.mxu0 0
  %6364 = vmatpush1.bf16.msra.mxu0 0
  %6365 = vmatprep.subr.bf16.mxu0 0
  %6366 = vmatpush1.bf16.msra.mxu0 0
  %6367 = vmatprep.subr.bf16.mxu0 0
  %6368 = vmatpush1.bf16.msra.mxu0 0
  %6369 = vmatprep.mubr.bf16.mxu0 0
  %6370 = vmatmul.mubr.bf16.gmra.mrb[0].mxu0 %v5458
  %v6371 = vpop.f32.mrb[0].mxu0
  %v6372 = vadd.f32 0.0, %v6371
  %v6373 = vpop.f32.mrb[0].mxu0
  %v6374 = vadd.f32 0.0, %v6373
  %v6375 = vpop.f32.mrb[0].mxu0
  %v6376 = vadd.f32 0.0, %v6375
  %v6377 = vpop.f32.mrb[0].mxu0
  %v6378 = vadd.f32 0.0, %v6377
  %6379 = vmatprep.mubr.bf16.mxu0 0
  %6380 = vmatmul.mubr.bf16.gmra.mrb[0].mxu0 %v5461
  %v6381 = vpop.f32.mrb[0].mxu0
  %v6382 = vadd.f32 0.0, %v6381
  %v6383 = vpop.f32.mrb[0].mxu0
  %v6384 = vadd.f32 0.0, %v6383
  %v6385 = vpop.f32.mrb[0].mxu0
  %v6386 = vadd.f32 0.0, %v6385
  %v6387 = vpop.f32.mrb[0].mxu0
  %v6388 = vadd.f32 0.0, %v6387
  %6389 = vmatprep.mubr.bf16.mxu0 0
  %6390 = vmatmul.mubr.bf16.gmra.mrb[0].mxu0 %v5464
  %v6391 = vpop.f32.mrb[0].mxu0
  %v6392 = vadd.f32 0.0, %v6391
  %v6393 = vpop.f32.mrb[0].mxu0
  %v6394 = vadd.f32 0.0, %v6393
  %v6395 = vpop.f32.mrb[0].mxu0
  %v6396 = vadd.f32 0.0, %v6395
  %v6397 = vpop.f32.mrb[0].mxu0
  %v6398 = vadd.f32 0.0, %v6397
  %6399 = vmatprep.mubr.bf16.mxu0 0
  %6400 = vmatmul.mubr.bf16.gmra.mrb[0].mxu0 %v5467
  %v6401 = vpop.f32.mrb[0].mxu0
  %v6402 = vadd.f32 0.0, %v6401
  %v6403 = vpop.f32.mrb[0].mxu0
  %v6404 = vadd.f32 0.0, %v6403
  %v6405 = vpop.f32.mrb[0].mxu0
  %v6406 = vadd.f32 0.0, %v6405
  %v6407 = vpop.f32.mrb[0].mxu0
  %v6408 = vadd.f32 0.0, %v6407
  %6409 = vmatprep.mubr.bf16.mxu0 0
  %6410 = vmatmul.mubr.bf16.gmra.mrb[0].mxu0 %v5470
  %v6411 = vpop.f32.mrb[0].mxu0
  %v6412 = vadd.f32 0.0, %v6411
  %v6413 = vpop.f32.mrb[0].mxu0
  %v6414 = vadd.f32 0.0, %v6413
  %v6415 = vpop.f32.mrb[0].mxu0
  %v6416 = vadd.f32 0.0, %v6415
  %v6417 = vpop.f32.mrb[0].mxu0
  %v6418 = vadd.f32 0.0, %v6417
  %6419 = vmatprep.mubr.bf16.mxu0 0
  %6420 = vmatmul.mubr.bf16.gmra.mrb[0].mxu0 %v5473
  %v6421 = vpop.f32.mrb[0].mxu0
  %v6422 = vadd.f32 0.0, %v6421
  %v6423 = vpop.f32.mrb[0].mxu0
  %v6424 = vadd.f32 0.0, %v6423
  %v6425 = vpop.f32.mrb[0].mxu0
  %v6426 = vadd.f32 0.0, %v6425
  %v6427 = vpop.f32.mrb[0].mxu0
  %v6428 = vadd.f32 0.0, %v6427
  %6429 = vmatprep.mubr.bf16.mxu0 0
  %6430 = vmatmul.mubr.bf16.gmra.mrb[0].mxu0 %v5476
  %v6431 = vpop.f32.mrb[0].mxu0
  %v6432 = vadd.f32 0.0, %v6431
  %v6433 = vpop.f32.mrb[0].mxu0
  %v6434 = vadd.f32 0.0, %v6433
  %v6435 = vpop.f32.mrb[0].mxu0
  %v6436 = vadd.f32 0.0, %v6435
  %v6437 = vpop.f32.mrb[0].mxu0
  %v6438 = vadd.f32 0.0, %v6437
  %6439 = vmatprep.mubr.bf16.mxu0 0
  %6440 = vmatmul.mubr.bf16.gmra.mrb[0].mxu0 %v5479
  %v6441 = vpop.f32.mrb[0].mxu0
  %v6442 = vadd.f32 0.0, %v6441
  %v6443 = vpop.f32.mrb[0].mxu0
  %v6444 = vadd.f32 0.0, %v6443
  %v6445 = vpop.f32.mrb[0].mxu0
  %v6446 = vadd.f32 0.0, %v6445
  %v6447 = vpop.f32.mrb[0].mxu0
  %v6448 = vadd.f32 0.0, %v6447
  %6449 = vmatprep.mubr.bf16.mxu0 0
  %6450 = vmatmul.mubr.bf16.gmra.mrb[0].mxu0 %v5482
  %v6451 = vpop.f32.mrb[0].mxu0
  %v6452 = vadd.f32 0.0, %v6451
  %v6453 = vpop.f32.mrb[0].mxu0
  %v6454 = vadd.f32 0.0, %v6453
  %v6455 = vpop.f32.mrb[0].mxu0
  %v6456 = vadd.f32 0.0, %v6455
  %v6457 = vpop.f32.mrb[0].mxu0
  %v6458 = vadd.f32 0.0, %v6457
  %6459 = vmatprep.mubr.bf16.mxu0 0
  %6460 = vmatmul.mubr.bf16.gmra.mrb[0].mxu0 %v5485
  %v6461 = vpop.f32.mrb[0].mxu0
  %v6462 = vadd.f32 0.0, %v6461
  %v6463 = vpop.f32.mrb[0].mxu0
  %v6464 = vadd.f32 0.0, %v6463
  %v6465 = vpop.f32.mrb[0].mxu0
  %v6466 = vadd.f32 0.0, %v6465
  %v6467 = vpop.f32.mrb[0].mxu0
  %v6468 = vadd.f32 0.0, %v6467
  %6469 = vmatprep.mubr.bf16.mxu0 0
  %6470 = vmatmul.mubr.bf16.gmra.mrb[0].mxu0 %v5488
  %v6471 = vpop.f32.mrb[0].mxu0
  %v6472 = vadd.f32 0.0, %v6471
  %v6473 = vpop.f32.mrb[0].mxu0
  %v6474 = vadd.f32 0.0, %v6473
  %v6475 = vpop.f32.mrb[0].mxu0
  %v6476 = vadd.f32 0.0, %v6475
  %v6477 = vpop.f32.mrb[0].mxu0
  %v6478 = vadd.f32 0.0, %v6477
  %6479 = vmatprep.mubr.bf16.mxu0 0
  %6480 = vmatmul.mubr.bf16.gmra.mrb[0].mxu0 %v5491
  %v6481 = vpop.f32.mrb[0].mxu0
  %v6482 = vadd.f32 0.0, %v6481
  %v6483 = vpop.f32.mrb[0].mxu0
  %v6484 = vadd.f32 0.0, %v6483
  %v6485 = vpop.f32.mrb[0].mxu0
  %v6486 = vadd.f32 0.0, %v6485
  %v6487 = vpop.f32.mrb[0].mxu0
  %v6488 = vadd.f32 0.0, %v6487
  %6489 = vmatprep.mubr.bf16.mxu0 0
  %6490 = vmatmul.mubr.bf16.gmra.mrb[0].mxu0 %v5494
  %v6491 = vpop.f32.mrb[0].mxu0
  %v6492 = vadd.f32 0.0, %v6491
  %v6493 = vpop.f32.mrb[0].mxu0
  %v6494 = vadd.f32 0.0, %v6493
  %v6495 = vpop.f32.mrb[0].mxu0
  %v6496 = vadd.f32 0.0, %v6495
  %v6497 = vpop.f32.mrb[0].mxu0
  %v6498 = vadd.f32 0.0, %v6497
  %6499 = vmatprep.mubr.bf16.mxu0 0
  %6500 = vmatmul.mubr.bf16.gmra.mrb[0].mxu0 %v5497
  %v6501 = vpop.f32.mrb[0].mxu0
  %v6502 = vadd.f32 0.0, %v6501
  %v6503 = vpop.f32.mrb[0].mxu0
  %v6504 = vadd.f32 0.0, %v6503
  %v6505 = vpop.f32.mrb[0].mxu0
  %v6506 = vadd.f32 0.0, %v6505
  %v6507 = vpop.f32.mrb[0].mxu0
  %v6508 = vadd.f32 0.0, %v6507
  %6509 = vdwg.mxu0
  %v6510 = vadd.f32 %v6281, %v6372
  %v6511 = vadd.f32 %v6282, %v6374
  %v6512 = vadd.f32 %v6283, %v6376
  %v6513 = vadd.f32 %v6284, %v6378
  %v6514 = vadd.f32 %v6285, %v6382
  %v6515 = vadd.f32 %v6286, %v6384
  %v6516 = vadd.f32 %v6287, %v6386
  %v6517 = vadd.f32 %v6288, %v6388
  %v6518 = vadd.f32 %v6289, %v6392
  %v6519 = vadd.f32 %v6290, %v6394
  %v6520 = vadd.f32 %v6291, %v6396
  %v6521 = vadd.f32 %v6292, %v6398
  %v6522 = vadd.f32 %v6293, %v6402
  %v6523 = vadd.f32 %v6294, %v6404
  %v6524 = vadd.f32 %v6295, %v6406
  %v6525 = vadd.f32 %v6296, %v6408
  %v6526 = vadd.f32 %v6297, %v6412
  %v6527 = vadd.f32 %v6298, %v6414
  %v6528 = vadd.f32 %v6299, %v6416
  %v6529 = vadd.f32 %v6300, %v6418
  %v6530 = vadd.f32 %v6301, %v6422
  %v6531 = vadd.f32 %v6302, %v6424
  %v6532 = vadd.f32 %v6303, %v6426
  %v6533 = vadd.f32 %v6304, %v6428
  %v6534 = vadd.f32 %v6305, %v6432
  %v6535 = vadd.f32 %v6306, %v6434
  %v6536 = vadd.f32 %v6307, %v6436
  %v6537 = vadd.f32 %v6308, %v6438
  %v6538 = vadd.f32 %v6309, %v6442
  %v6539 = vadd.f32 %v6310, %v6444
  %v6540 = vadd.f32 %v6311, %v6446
  %v6541 = vadd.f32 %v6312, %v6448
  %v6542 = vadd.f32 %v6313, %v6452
  %v6543 = vadd.f32 %v6314, %v6454
  %v6544 = vadd.f32 %v6315, %v6456
  %v6545 = vadd.f32 %v6316, %v6458
  %v6546 = vadd.f32 %v6317, %v6462
  %v6547 = vadd.f32 %v6318, %v6464
  %v6548 = vadd.f32 %v6319, %v6466
  %v6549 = vadd.f32 %v6320, %v6468
  %v6550 = vadd.f32 %v6321, %v6472
  %v6551 = vadd.f32 %v6322, %v6474
  %v6552 = vadd.f32 %v6323, %v6476
  %v6553 = vadd.f32 %v6324, %v6478
  %v6554 = vadd.f32 %v6325, %v6482
  %v6555 = vadd.f32 %v6326, %v6484
  %v6556 = vadd.f32 %v6327, %v6486
  %v6557 = vadd.f32 %v6328, %v6488
  %v6558 = vadd.f32 %v6329, %v6492
  %v6559 = vadd.f32 %v6330, %v6494
  %v6560 = vadd.f32 %v6331, %v6496
  %v6561 = vadd.f32 %v6332, %v6498
  %v6562 = vadd.f32 %v6333, %v6502
  %v6563 = vadd.f32 %v6334, %v6504
  %v6564 = vadd.f32 %v6335, %v6506
  %v6565 = vadd.f32 %v6336, %v6508
  %v6566 = vld [vmem:[#allocation3 + $0x20] sm:$0xff]
  %v6567 = vld [vmem:[#allocation3 + $0x28] sm:$0xff]
  %v6568 = vld [vmem:[#allocation3 + $0x30] sm:$0xff]
  %v6569 = vld [vmem:[#allocation3 + $0x38] sm:$0xff]
  %v6570 = vld [vmem:[#allocation3 + $0x40] sm:$0xff]
  %v6571 = vld [vmem:[#allocation3 + $0x48] sm:$0xff]
  %v6572 = vld [vmem:[#allocation3 + $0x50] sm:$0xff]
  %v6573 = vld [vmem:[#allocation3 + $0x58] sm:$0xff]
  %v6574 = vld [vmem:[#allocation3 + $0x60] sm:$0xff]
  %v6575 = vld [vmem:[#allocation3 + $0x68] sm:$0xff]
  %v6576 = vld [vmem:[#allocation3 + $0x70] sm:$0xff]
  %v6577 = vld [vmem:[#allocation3 + $0x78] sm:$0xff]
  %v6578 = vld [vmem:[#allocation3 + $0x80] sm:$0xff]
  %v6579 = vld [vmem:[#allocation3 + $0x88] sm:$0xff]
  %v6581 = vsel %vm3899, %v6566, 0
  %v6584 = vsel %vm3899, %v6567, 0
  %v6587 = vsel %vm3899, %v6568, 0
  %v6590 = vsel %vm3899, %v6569, 0
  %v6593 = vsel %vm3899, %v6570, 0
  %v6596 = vsel %vm3899, %v6571, 0
  %v6599 = vsel %vm3899, %v6572, 0
  %v6602 = vsel %vm3899, %v6573, 0
  %v6605 = vsel %vm3899, %v6574, 0
  %v6608 = vsel %vm3899, %v6575, 0
  %v6611 = vsel %vm3899, %v6576, 0
  %v6614 = vsel %vm3899, %v6577, 0
  %v6617 = vsel %vm3899, %v6578, 0
  %v6620 = vsel %vm3899, %v6579, 0
  %6622 = vmatprep.subr.bf16.mxu0 %v5428
  %6623 = vmatpush1.bf16.msra.mxu0 %v5427
  %6624 = vmatprep.subr.bf16.mxu0 %v5430
  %6625 = vmatpush1.bf16.msra.mxu0 %v5429
  %6626 = vmatprep.subr.bf16.mxu0 %v5432
  %6627 = vmatpush1.bf16.msra.mxu0 %v5431
  %6628 = vmatprep.subr.bf16.mxu0 %v5434
  %6629 = vmatpush1.bf16.msra.mxu0 %v5433
  %6630 = vmatprep.subr.bf16.mxu0 %v5436
  %6631 = vmatpush1.bf16.msra.mxu0 %v5435
  %6632 = vmatprep.subr.bf16.mxu0 %v5438
  %6633 = vmatpush1.bf16.msra.mxu0 %v5437
  %6634 = vmatprep.subr.bf16.mxu0 %v5440
  %6635 = vmatpush1.bf16.msra.mxu0 %v5439
  %6636 = vmatprep.subr.bf16.mxu0 %v5503
  %6637 = vmatpush1.bf16.msra.mxu0 %v5500
  %6638 = vmatprep.subr.bf16.mxu0 0
  %6639 = vmatpush1.bf16.msra.mxu0 0
  %6640 = vmatprep.subr.bf16.mxu0 0
  %6641 = vmatpush1.bf16.msra.mxu0 0
  %6642 = vmatprep.subr.bf16.mxu0 0
  %6643 = vmatpush1.bf16.msra.mxu0 0
  %6644 = vmatprep.subr.bf16.mxu0 0
  %6645 = vmatpush1.bf16.msra.mxu0 0
  %6646 = vmatprep.subr.bf16.mxu0 0
  %6647 = vmatpush1.bf16.msra.mxu0 0
  %6648 = vmatprep.subr.bf16.mxu0 0
  %6649 = vmatpush1.bf16.msra.mxu0 0
  %6650 = vmatprep.subr.bf16.mxu0 0
  %6651 = vmatpush1.bf16.msra.mxu0 0
  %6652 = vmatprep.subr.bf16.mxu0 0
  %6653 = vmatpush1.bf16.msra.mxu0 0
  %6654 = vmatprep.mubr.bf16.mxu0 0
  %6655 = vmatmul.mubr.bf16.gmra.mrb[0].mxu0 %v6581
  %v6656 = vpop.f32.mrb[0].mxu0
  %v6657 = vadd.f32 0.0, %v6656
  %v6658 = vpop.f32.mrb[0].mxu0
  %v6659 = vadd.f32 0.0, %v6658
  %v6660 = vpop.f32.mrb[0].mxu0
  %v6661 = vadd.f32 0.0, %v6660
  %v6662 = vpop.f32.mrb[0].mxu0
  %v6663 = vadd.f32 0.0, %v6662
  %6664 = vmatprep.mubr.bf16.mxu0 0
  %6665 = vmatmul.mubr.bf16.gmra.mrb[0].mxu0 %v6584
  %v6666 = vpop.f32.mrb[0].mxu0
  %v6667 = vadd.f32 0.0, %v6666
  %v6668 = vpop.f32.mrb[0].mxu0
  %v6669 = vadd.f32 0.0, %v6668
  %v6670 = vpop.f32.mrb[0].mxu0
  %v6671 = vadd.f32 0.0, %v6670
  %v6672 = vpop.f32.mrb[0].mxu0
  %v6673 = vadd.f32 0.0, %v6672
  %6674 = vmatprep.mubr.bf16.mxu0 0
  %6675 = vmatmul.mubr.bf16.gmra.mrb[0].mxu0 %v6587
  %v6676 = vpop.f32.mrb[0].mxu0
  %v6677 = vadd.f32 0.0, %v6676
  %v6678 = vpop.f32.mrb[0].mxu0
  %v6679 = vadd.f32 0.0, %v6678
  %v6680 = vpop.f32.mrb[0].mxu0
  %v6681 = vadd.f32 0.0, %v6680
  %v6682 = vpop.f32.mrb[0].mxu0
  %v6683 = vadd.f32 0.0, %v6682
  %6684 = vmatprep.mubr.bf16.mxu0 0
  %6685 = vmatmul.mubr.bf16.gmra.mrb[0].mxu0 %v6590
  %v6686 = vpop.f32.mrb[0].mxu0
  %v6687 = vadd.f32 0.0, %v6686
  %v6688 = vpop.f32.mrb[0].mxu0
  %v6689 = vadd.f32 0.0, %v6688
  %v6690 = vpop.f32.mrb[0].mxu0
  %v6691 = vadd.f32 0.0, %v6690
  %v6692 = vpop.f32.mrb[0].mxu0
  %v6693 = vadd.f32 0.0, %v6692
  %6694 = vmatprep.mubr.bf16.mxu0 0
  %6695 = vmatmul.mubr.bf16.gmra.mrb[0].mxu0 %v6593
  %v6696 = vpop.f32.mrb[0].mxu0
  %v6697 = vadd.f32 0.0, %v6696
  %v6698 = vpop.f32.mrb[0].mxu0
  %v6699 = vadd.f32 0.0, %v6698
  %v6700 = vpop.f32.mrb[0].mxu0
  %v6701 = vadd.f32 0.0, %v6700
  %v6702 = vpop.f32.mrb[0].mxu0
  %v6703 = vadd.f32 0.0, %v6702
  %6704 = vmatprep.mubr.bf16.mxu0 0
  %6705 = vmatmul.mubr.bf16.gmra.mrb[0].mxu0 %v6596
  %v6706 = vpop.f32.mrb[0].mxu0
  %v6707 = vadd.f32 0.0, %v6706
  %v6708 = vpop.f32.mrb[0].mxu0
  %v6709 = vadd.f32 0.0, %v6708
  %v6710 = vpop.f32.mrb[0].mxu0
  %v6711 = vadd.f32 0.0, %v6710
  %v6712 = vpop.f32.mrb[0].mxu0
  %v6713 = vadd.f32 0.0, %v6712
  %6714 = vmatprep.mubr.bf16.mxu0 0
  %6715 = vmatmul.mubr.bf16.gmra.mrb[0].mxu0 %v6599
  %v6716 = vpop.f32.mrb[0].mxu0
  %v6717 = vadd.f32 0.0, %v6716
  %v6718 = vpop.f32.mrb[0].mxu0
  %v6719 = vadd.f32 0.0, %v6718
  %v6720 = vpop.f32.mrb[0].mxu0
  %v6721 = vadd.f32 0.0, %v6720
  %v6722 = vpop.f32.mrb[0].mxu0
  %v6723 = vadd.f32 0.0, %v6722
  %6724 = vmatprep.mubr.bf16.mxu0 0
  %6725 = vmatmul.mubr.bf16.gmra.mrb[0].mxu0 %v6602
  %v6726 = vpop.f32.mrb[0].mxu0
  %v6727 = vadd.f32 0.0, %v6726
  %v6728 = vpop.f32.mrb[0].mxu0
  %v6729 = vadd.f32 0.0, %v6728
  %v6730 = vpop.f32.mrb[0].mxu0
  %v6731 = vadd.f32 0.0, %v6730
  %v6732 = vpop.f32.mrb[0].mxu0
  %v6733 = vadd.f32 0.0, %v6732
  %6734 = vmatprep.mubr.bf16.mxu0 0
  %6735 = vmatmul.mubr.bf16.gmra.mrb[0].mxu0 %v6605
  %v6736 = vpop.f32.mrb[0].mxu0
  %v6737 = vadd.f32 0.0, %v6736
  %v6738 = vpop.f32.mrb[0].mxu0
  %v6739 = vadd.f32 0.0, %v6738
  %v6740 = vpop.f32.mrb[0].mxu0
  %v6741 = vadd.f32 0.0, %v6740
  %v6742 = vpop.f32.mrb[0].mxu0
  %v6743 = vadd.f32 0.0, %v6742
  %6744 = vmatprep.mubr.bf16.mxu0 0
  %6745 = vmatmul.mubr.bf16.gmra.mrb[0].mxu0 %v6608
  %v6746 = vpop.f32.mrb[0].mxu0
  %v6747 = vadd.f32 0.0, %v6746
  %v6748 = vpop.f32.mrb[0].mxu0
  %v6749 = vadd.f32 0.0, %v6748
  %v6750 = vpop.f32.mrb[0].mxu0
  %v6751 = vadd.f32 0.0, %v6750
  %v6752 = vpop.f32.mrb[0].mxu0
  %v6753 = vadd.f32 0.0, %v6752
  %6754 = vmatprep.mubr.bf16.mxu0 0
  %6755 = vmatmul.mubr.bf16.gmra.mrb[0].mxu0 %v6611
  %v6756 = vpop.f32.mrb[0].mxu0
  %v6757 = vadd.f32 0.0, %v6756
  %v6758 = vpop.f32.mrb[0].mxu0
  %v6759 = vadd.f32 0.0, %v6758
  %v6760 = vpop.f32.mrb[0].mxu0
  %v6761 = vadd.f32 0.0, %v6760
  %v6762 = vpop.f32.mrb[0].mxu0
  %v6763 = vadd.f32 0.0, %v6762
  %6764 = vmatprep.mubr.bf16.mxu0 0
  %6765 = vmatmul.mubr.bf16.gmra.mrb[0].mxu0 %v6614
  %v6766 = vpop.f32.mrb[0].mxu0
  %v6767 = vadd.f32 0.0, %v6766
  %v6768 = vpop.f32.mrb[0].mxu0
  %v6769 = vadd.f32 0.0, %v6768
  %v6770 = vpop.f32.mrb[0].mxu0
  %v6771 = vadd.f32 0.0, %v6770
  %v6772 = vpop.f32.mrb[0].mxu0
  %v6773 = vadd.f32 0.0, %v6772
  %6774 = vmatprep.mubr.bf16.mxu0 0
  %6775 = vmatmul.mubr.bf16.gmra.mrb[0].mxu0 %v6617
  %v6776 = vpop.f32.mrb[0].mxu0
  %v6777 = vadd.f32 0.0, %v6776
  %v6778 = vpop.f32.mrb[0].mxu0
  %v6779 = vadd.f32 0.0, %v6778
  %v6780 = vpop.f32.mrb[0].mxu0
  %v6781 = vadd.f32 0.0, %v6780
  %v6782 = vpop.f32.mrb[0].mxu0
  %v6783 = vadd.f32 0.0, %v6782
  %6784 = vmatprep.mubr.bf16.mxu0 0
  %6785 = vmatmul.mubr.bf16.gmra.mrb[0].mxu0 %v6620
  %v6786 = vpop.f32.mrb[0].mxu0
  %v6787 = vadd.f32 0.0, %v6786
  %v6788 = vpop.f32.mrb[0].mxu0
  %v6789 = vadd.f32 0.0, %v6788
  %v6790 = vpop.f32.mrb[0].mxu0
  %v6791 = vadd.f32 0.0, %v6790
  %v6792 = vpop.f32.mrb[0].mxu0
  %v6793 = vadd.f32 0.0, %v6792
  %6794 = vdwg.mxu0
  %v6795 = vadd.f32 %v6510, %v6657
  %v6796 = vadd.f32 %v6511, %v6659
  %v6797 = vadd.f32 %v6512, %v6661
  %v6798 = vadd.f32 %v6513, %v6663
  %v6799 = vadd.f32 %v6514, %v6667
  %v6800 = vadd.f32 %v6515, %v6669
  %v6801 = vadd.f32 %v6516, %v6671
  %v6802 = vadd.f32 %v6517, %v6673
  %v6803 = vadd.f32 %v6518, %v6677
  %v6804 = vadd.f32 %v6519, %v6679
  %v6805 = vadd.f32 %v6520, %v6681
  %v6806 = vadd.f32 %v6521, %v6683
  %v6807 = vadd.f32 %v6522, %v6687
  %v6808 = vadd.f32 %v6523, %v6689
  %v6809 = vadd.f32 %v6524, %v6691
  %v6810 = vadd.f32 %v6525, %v6693
  %v6811 = vadd.f32 %v6526, %v6697
  %v6812 = vadd.f32 %v6527, %v6699
  %v6813 = vadd.f32 %v6528, %v6701
  %v6814 = vadd.f32 %v6529, %v6703
  %v6815 = vadd.f32 %v6530, %v6707
  %v6816 = vadd.f32 %v6531, %v6709
  %v6817 = vadd.f32 %v6532, %v6711
  %v6818 = vadd.f32 %v6533, %v6713
  %v6819 = vadd.f32 %v6534, %v6717
  %v6820 = vadd.f32 %v6535, %v6719
  %v6821 = vadd.f32 %v6536, %v6721
  %v6822 = vadd.f32 %v6537, %v6723
  %v6823 = vadd.f32 %v6538, %v6727
  %v6824 = vadd.f32 %v6539, %v6729
  %v6825 = vadd.f32 %v6540, %v6731
  %v6826 = vadd.f32 %v6541, %v6733
  %v6827 = vadd.f32 %v6542, %v6737
  %v6828 = vadd.f32 %v6543, %v6739
  %v6829 = vadd.f32 %v6544, %v6741
  %v6830 = vadd.f32 %v6545, %v6743
  %v6831 = vadd.f32 %v6546, %v6747
  %v6832 = vadd.f32 %v6547, %v6749
  %v6833 = vadd.f32 %v6548, %v6751
  %v6834 = vadd.f32 %v6549, %v6753
  %v6835 = vadd.f32 %v6550, %v6757
  %v6836 = vadd.f32 %v6551, %v6759
  %v6837 = vadd.f32 %v6552, %v6761
  %v6838 = vadd.f32 %v6553, %v6763
  %v6839 = vadd.f32 %v6554, %v6767
  %v6840 = vadd.f32 %v6555, %v6769
  %v6841 = vadd.f32 %v6556, %v6771
  %v6842 = vadd.f32 %v6557, %v6773
  %v6843 = vadd.f32 %v6558, %v6777
  %v6844 = vadd.f32 %v6559, %v6779
  %v6845 = vadd.f32 %v6560, %v6781
  %v6846 = vadd.f32 %v6561, %v6783
  %v6847 = vadd.f32 %v6562, %v6787
  %v6848 = vadd.f32 %v6563, %v6789
  %v6849 = vadd.f32 %v6564, %v6791
  %v6850 = vadd.f32 %v6565, %v6793
  %v6851 = vmax.f32 %v6795, %v6796
  %v6852 = vmax.f32 %v6797, %v6798
  %v6853 = vmax.f32 %v6799, %v6800
  %v6854 = vmax.f32 %v6801, %v6802
  %v6855 = vmax.f32 %v6803, %v6804
  %v6856 = vmax.f32 %v6805, %v6806
  %v6857 = vmax.f32 %v6807, %v6808
  %v6858 = vmax.f32 %v6809, %v6810
  %v6859 = vmax.f32 %v6811, %v6812
  %v6860 = vmax.f32 %v6813, %v6814
  %v6861 = vmax.f32 %v6815, %v6816
  %v6862 = vmax.f32 %v6817, %v6818
  %v6863 = vmax.f32 %v6819, %v6820
  %v6864 = vmax.f32 %v6821, %v6822
  %v6865 = vmax.f32 %v6823, %v6824
  %v6866 = vmax.f32 %v6825, %v6826
  %v6867 = vmax.f32 %v6827, %v6828
  %v6868 = vmax.f32 %v6829, %v6830
  %v6869 = vmax.f32 %v6831, %v6832
  %v6870 = vmax.f32 %v6833, %v6834
  %v6871 = vmax.f32 %v6835, %v6836
  %v6872 = vmax.f32 %v6837, %v6838
  %v6873 = vmax.f32 %v6839, %v6840
  %v6874 = vmax.f32 %v6841, %v6842
  %v6875 = vmax.f32 %v6843, %v6844
  %v6876 = vmax.f32 %v6845, %v6846
  %v6877 = vmax.f32 %v6847, %v6848
  %v6878 = vmax.f32 %v6849, %v6850
  %v6879 = vmax.f32 %v5734, %v6851
  %v6880 = vmax.f32 %v5735, %v6852
  %v6881 = vmax.f32 %v5736, %v6853
  %v6882 = vmax.f32 %v5737, %v6854
  %v6883 = vmax.f32 %v5738, %v6855
  %v6884 = vmax.f32 %v5739, %v6856
  %v6885 = vmax.f32 %v5740, %v6857
  %v6886 = vmax.f32 %v5741, %v6858
  %v6887 = vmax.f32 %v5742, %v6859
  %v6888 = vmax.f32 %v5743, %v6860
  %v6889 = vmax.f32 %v5744, %v6861
  %v6890 = vmax.f32 %v5745, %v6862
  %v6891 = vmax.f32 %v5746, %v6863
  %v6892 = vmax.f32 %v5747, %v6864
  %v6893 = vmax.f32 %v5748, %v6865
  %v6894 = vmax.f32 %v5749, %v6866
  %v6895 = vmax.f32 %v5750, %v6867
  %v6896 = vmax.f32 %v5751, %v6868
  %v6897 = vmax.f32 %v5752, %v6869
  %v6898 = vmax.f32 %v5753, %v6870
  %v6899 = vmax.f32 %v5754, %v6871
  %v6900 = vmax.f32 %v5755, %v6872
  %v6901 = vmax.f32 %v5756, %v6873
  %v6902 = vmax.f32 %v5757, %v6874
  %v6903 = vmax.f32 %v5758, %v6875
  %v6904 = vmax.f32 %v5759, %v6876
  %v6905 = vmax.f32 %v5760, %v6877
  %v6906 = vmax.f32 %v5761, %v6878
  %v6907 = vld [vmem:[%s5] sm:$0x1]
  %v6909 = vlaneseq
  %v6910 = vshrl.u32 %v6909, 7
  %v6911 = vsub.s32 0, %v6910
  %v6912 = vrot.slane %v6907, %v6911
  %v6914 = vadd.f32 %v6879, %v6912
  %v6915 = vadd.f32 %v6880, %v6912
  %v6916 = vadd.f32 %v6881, %v6912
  %v6917 = vadd.f32 %v6882, %v6912
  %v6918 = vadd.f32 %v6883, %v6912
  %v6919 = vadd.f32 %v6884, %v6912
  %v6920 = vadd.f32 %v6885, %v6912
  %v6921 = vadd.f32 %v6886, %v6912
  %v6922 = vadd.f32 %v6887, %v6912
  %v6923 = vadd.f32 %v6888, %v6912
  %v6924 = vadd.f32 %v6889, %v6912
  %v6925 = vadd.f32 %v6890, %v6912
  %v6926 = vadd.f32 %v6891, %v6912
  %v6927 = vadd.f32 %v6892, %v6912
  %v6928 = vadd.f32 %v6893, %v6912
  %v6929 = vadd.f32 %v6894, %v6912
  %v6930 = vadd.f32 %v6895, %v6912
  %v6931 = vadd.f32 %v6896, %v6912
  %v6932 = vadd.f32 %v6897, %v6912
  %v6933 = vadd.f32 %v6898, %v6912
  %v6934 = vadd.f32 %v6899, %v6912
  %v6935 = vadd.f32 %v6900, %v6912
  %v6936 = vadd.f32 %v6901, %v6912
  %v6937 = vadd.f32 %v6902, %v6912
  %v6938 = vadd.f32 %v6903, %v6912
  %v6939 = vadd.f32 %v6904, %v6912
  %v6940 = vadd.f32 %v6905, %v6912
  %v6941 = vadd.f32 %v6906, %v6912
  %v6942 = vmax.f32 %v6914, 0.0
  %v6943 = vmax.f32 %v6915, 0.0
  %v6944 = vmax.f32 %v6916, 0.0
  %v6945 = vmax.f32 %v6917, 0.0
  %v6946 = vmax.f32 %v6918, 0.0
  %v6947 = vmax.f32 %v6919, 0.0
  %v6948 = vmax.f32 %v6920, 0.0
  %v6949 = vmax.f32 %v6921, 0.0
  %v6950 = vmax.f32 %v6922, 0.0
  %v6951 = vmax.f32 %v6923, 0.0
  %v6952 = vmax.f32 %v6924, 0.0
  %v6953 = vmax.f32 %v6925, 0.0
  %v6954 = vmax.f32 %v6926, 0.0
  %v6955 = vmax.f32 %v6927, 0.0
  %v6956 = vmax.f32 %v6928, 0.0
  %v6957 = vmax.f32 %v6929, 0.0
  %v6958 = vmax.f32 %v6930, 0.0
  %v6959 = vmax.f32 %v6931, 0.0
  %v6960 = vmax.f32 %v6932, 0.0
  %v6961 = vmax.f32 %v6933, 0.0
  %v6962 = vmax.f32 %v6934, 0.0
  %v6963 = vmax.f32 %v6935, 0.0
  %v6964 = vmax.f32 %v6936, 0.0
  %v6965 = vmax.f32 %v6937, 0.0
  %v6966 = vmax.f32 %v6938, 0.0
  %v6967 = vmax.f32 %v6939, 0.0
  %v6968 = vmax.f32 %v6940, 0.0
  %v6969 = vmax.f32 %v6941, 0.0
  %v6970 = vpack.c.bf16 %v6943, %v6942
  %v6971 = vpack.c.bf16 %v6945, %v6944
  %v6972 = vpack.c.bf16 %v6947, %v6946
  %v6973 = vpack.c.bf16 %v6949, %v6948
  %v6974 = vpack.c.bf16 %v6951, %v6950
  %v6975 = vpack.c.bf16 %v6953, %v6952
  %v6976 = vpack.c.bf16 %v6955, %v6954
  %v6977 = vpack.c.bf16 %v6957, %v6956
  %v6978 = vpack.c.bf16 %v6959, %v6958
  %v6979 = vpack.c.bf16 %v6961, %v6960
  %v6980 = vpack.c.bf16 %v6963, %v6962
  %v6981 = vpack.c.bf16 %v6965, %v6964
  %v6982 = vpack.c.bf16 %v6967, %v6966
  %v6983 = vpack.c.bf16 %v6969, %v6968
  %vm6984 = vcmask 916480
  %6985 = vst.msk [vmem:[#allocation4] sm:$0xff] %vm6984, 0
  %6986 = vst.msk [vmem:[#allocation4 + $0x8] sm:$0xff] %vm6984, 0
  %6987 = vst.msk [vmem:[#allocation4 + $0x10] sm:$0xff] %vm6984, %v6972
  %6988 = vst.msk [vmem:[#allocation4 + $0x18] sm:$0xff] %vm6984, %v6973
  %6989 = vst.msk [vmem:[#allocation4 + $0x20] sm:$0xff] %vm6984, %v6976
  %6990 = vst.msk [vmem:[#allocation4 + $0x28] sm:$0xff] %vm6984, %v6977
  %6991 = vst.msk [vmem:[#allocation4 + $0x30] sm:$0xff] %vm6984, %v6980
  %6992 = vst.msk [vmem:[#allocation4 + $0x38] sm:$0xff] %vm6984, %v6981
  %6993 = vst.msk [vmem:[#allocation5] sm:$0xff] %vm6984, %v6970
  %6994 = vst.msk [vmem:[#allocation5 + $0x8] sm:$0xff] %vm6984, %v6971
  %6995 = vst.msk [vmem:[#allocation5 + $0x10] sm:$0xff] %vm6984, %v6974
  %6996 = vst.msk [vmem:[#allocation5 + $0x18] sm:$0xff] %vm6984, %v6975
  %6997 = vst.msk [vmem:[#allocation5 + $0x20] sm:$0xff] %vm6984, %v6978
  %6998 = vst.msk [vmem:[#allocation5 + $0x28] sm:$0xff] %vm6984, %v6979
  %6999 = vst.msk [vmem:[#allocation5 + $0x30] sm:$0xff] %vm6984, %v6982
  %7000 = vst.msk [vmem:[#allocation5 + $0x38] sm:$0xff] %vm6984, %v6983
  %v7001 = vld [vmem:[#allocation4] sm:$0xff]
  %v7002 = vld [vmem:[#allocation4 + $0x8] sm:$0xff]
  %v7003 = vld [vmem:[#allocation4 + $0x10] sm:$0xff]
  %v7004 = vld [vmem:[#allocation4 + $0x18] sm:$0xff]
  %v7005 = vld [vmem:[#allocation4 + $0x20] sm:$0xff]
  %v7006 = vld [vmem:[#allocation4 + $0x28] sm:$0xff]
  %v7007 = vld [vmem:[%s6] sm:$0xff]
  %v7008 = vld [vmem:[%s6 + $0x8] sm:$0xff]
  %v7009 = vld [vmem:[%s6 + $0x10] sm:$0xff]
  %v7010 = vld [vmem:[%s6 + $0x18] sm:$0xff]
  %v7011 = vld [vmem:[%s6 + $0x20] sm:$0xff]
  %v7012 = vld [vmem:[%s6 + $0x28] sm:$0xff]
  %v7013 = vld [vmem:[%s6 + $0x30] sm:$0xff]
  %v7014 = vld [vmem:[%s6 + $0x38] sm:$0xff]
  %v7015 = vld [vmem:[%s6 + $0x40] sm:$0xff]
  %v7016 = vld [vmem:[%s6 + $0x48] sm:$0xff]
  %v7017 = vld [vmem:[%s6 + $0x50] sm:$0xff]
  %v7018 = vld [vmem:[%s6 + $0x58] sm:$0xff]
  %v7019 = vld [vmem:[%s6 + $0x60] sm:$0xff]
  %v7020 = vld [vmem:[%s6 + $0x68] sm:$0xff]
  %v7021 = vld [vmem:[#allocation5] sm:$0xff]
  %v7022 = vld [vmem:[#allocation5 + $0x8] sm:$0xff]
  %v7023 = vld [vmem:[#allocation5 + $0x10] sm:$0xff]
  %v7024 = vld [vmem:[#allocation5 + $0x18] sm:$0xff]
  %v7025 = vld [vmem:[#allocation5 + $0x20] sm:$0xff]
  %v7026 = vld [vmem:[#allocation5 + $0x28] sm:$0xff]
  %s7027 = scalar_lea.vmem %s6, 112
  %v7028 = vld [vmem:[%s7027] sm:$0xff]
  %v7029 = vld [vmem:[%s7027 + $0x8] sm:$0xff]
  %v7030 = vld [vmem:[%s7027 + $0x10] sm:$0xff]
  %v7031 = vld [vmem:[%s7027 + $0x18] sm:$0xff]
  %v7032 = vld [vmem:[%s7027 + $0x20] sm:$0xff]
  %v7033 = vld [vmem:[%s7027 + $0x28] sm:$0xff]
  %v7034 = vld [vmem:[%s7027 + $0x30] sm:$0xff]
  %v7035 = vld [vmem:[%s7027 + $0x38] sm:$0xff]
  %v7036 = vld [vmem:[%s7027 + $0x40] sm:$0xff]
  %v7037 = vld [vmem:[%s7027 + $0x48] sm:$0xff]
  %v7038 = vld [vmem:[%s7027 + $0x50] sm:$0xff]
  %v7039 = vld [vmem:[%s7027 + $0x58] sm:$0xff]
  %v7040 = vld [vmem:[%s7027 + $0x60] sm:$0xff]
  %v7041 = vld [vmem:[%s7027 + $0x68] sm:$0xff]
  %v7056 = vunpack.c.l.b16 %v7028
  %v7057 = vunpack.c.h.b16 %v7028
  %v7058 = vunpack.c.l.b16 %v7029
  %v7059 = vunpack.c.h.b16 %v7029
  %v7060 = vunpack.c.l.b16 %v7030
  %v7061 = vunpack.c.h.b16 %v7030
  %v7062 = vunpack.c.l.b16 %v7031
  %v7063 = vunpack.c.h.b16 %v7031
  %v7064 = vunpack.c.l.b16 %v7032
  %v7065 = vunpack.c.h.b16 %v7032
  %v7066 = vunpack.c.l.b16 %v7033
  %v7067 = vunpack.c.h.b16 %v7033
  %v7068 = vunpack.c.l.b16 %v7034
  %v7069 = vunpack.c.h.b16 %v7034
  %v7070 = vunpack.c.l.b16 %v7035
  %v7071 = vunpack.c.h.b16 %v7035
  %v7072 = vunpack.c.l.b16 %v7036
  %v7073 = vunpack.c.h.b16 %v7036
  %v7074 = vunpack.c.l.b16 %v7037
  %v7075 = vunpack.c.h.b16 %v7037
  %v7076 = vunpack.c.l.b16 %v7038
  %v7077 = vunpack.c.h.b16 %v7038
  %v7078 = vunpack.c.l.b16 %v7039
  %v7079 = vunpack.c.h.b16 %v7039
  %v7080 = vunpack.c.l.b16 %v7040
  %v7081 = vunpack.c.h.b16 %v7040
  %v7082 = vunpack.c.l.b16 %v7041
  %v7083 = vunpack.c.h.b16 %v7041
  %v7084 = vpack.c.b16 %v7058, %v7056
  %v7085 = vpack.c.b16 %v7059, %v7057
  %v7086 = vpack.c.b16 %v7062, %v7060
  %v7087 = vpack.c.b16 %v7063, %v7061
  %v7088 = vpack.c.b16 %v7066, %v7064
  %v7089 = vpack.c.b16 %v7067, %v7065
  %v7090 = vpack.c.b16 %v7070, %v7068
  %v7091 = vpack.c.b16 %v7071, %v7069
  %v7092 = vpack.c.b16 %v7074, %v7072
  %v7093 = vpack.c.b16 %v7075, %v7073
  %v7094 = vpack.c.b16 %v7078, %v7076
  %v7095 = vpack.c.b16 %v7079, %v7077
  %v7096 = vpack.c.b16 %v7082, %v7080
  %v7097 = vpack.c.b16 %v7083, %v7081
  %v7113 = vsel %vm6984, %v7021, 0
  %v7116 = vsel %vm6984, %v7022, 0
  %v7119 = vsel %vm6984, %v7023, 0
  %v7122 = vsel %vm6984, %v7024, 0
  %v7125 = vsel %vm6984, %v7025, 0
  %v7128 = vsel %vm6984, %v7026, 0
  %7130 = vmatprep.subr.bf16.mxu0 %v7085
  %7131 = vmatpush1.bf16.msra.mxu0 %v7084
  %7132 = vmatprep.subr.bf16.mxu0 %v7087
  %7133 = vmatpush1.bf16.msra.mxu0 %v7086
  %7134 = vmatprep.subr.bf16.mxu0 %v7089
  %7135 = vmatpush1.bf16.msra.mxu0 %v7088
  %7136 = vmatprep.subr.bf16.mxu0 %v7091
  %7137 = vmatpush1.bf16.msra.mxu0 %v7090
  %7138 = vmatprep.subr.bf16.mxu0 %v7093
  %7139 = vmatpush1.bf16.msra.mxu0 %v7092
  %7140 = vmatprep.subr.bf16.mxu0 %v7095
  %7141 = vmatpush1.bf16.msra.mxu0 %v7094
  %7142 = vmatprep.subr.bf16.mxu0 %v7097
  %7143 = vmatpush1.bf16.msra.mxu0 %v7096
  %7144 = vmatprep.subr.bf16.mxu0 0
  %7145 = vmatpush1.bf16.msra.mxu0 0
  %7146 = vmatprep.subr.bf16.mxu0 0
  %7147 = vmatpush1.bf16.msra.mxu0 0
  %7148 = vmatprep.subr.bf16.mxu0 0
  %7149 = vmatpush1.bf16.msra.mxu0 0
  %7150 = vmatprep.subr.bf16.mxu0 0
  %7151 = vmatpush1.bf16.msra.mxu0 0
  %7152 = vmatprep.subr.bf16.mxu0 0
  %7153 = vmatpush1.bf16.msra.mxu0 0
  %7154 = vmatprep.subr.bf16.mxu0 0
  %7155 = vmatpush1.bf16.msra.mxu0 0
  %7156 = vmatprep.subr.bf16.mxu0 0
  %7157 = vmatpush1.bf16.msra.mxu0 0
  %7158 = vmatprep.subr.bf16.mxu0 0
  %7159 = vmatpush1.bf16.msra.mxu0 0
  %7160 = vmatprep.subr.bf16.mxu0 0
  %7161 = vmatpush1.bf16.msra.mxu0 0
  %7162 = vmatprep.mubr.bf16.mxu0 0
  %7163 = vmatmul.mubr.bf16.gmra.mrb[0].mxu0 %v7113
  %v7164 = vpop.f32.mrb[0].mxu0
  %v7165 = vadd.f32 0.0, %v7164
  %v7166 = vpop.f32.mrb[0].mxu0
  %v7167 = vadd.f32 0.0, %v7166
  %v7168 = vpop.f32.mrb[0].mxu0
  %v7169 = vadd.f32 0.0, %v7168
  %v7170 = vpop.f32.mrb[0].mxu0
  %v7171 = vadd.f32 0.0, %v7170
  %7172 = vmatprep.mubr.bf16.mxu0 0
  %7173 = vmatmul.mubr.bf16.gmra.mrb[0].mxu0 %v7116
  %v7174 = vpop.f32.mrb[0].mxu0
  %v7175 = vadd.f32 0.0, %v7174
  %v7176 = vpop.f32.mrb[0].mxu0
  %v7177 = vadd.f32 0.0, %v7176
  %v7178 = vpop.f32.mrb[0].mxu0
  %v7179 = vadd.f32 0.0, %v7178
  %v7180 = vpop.f32.mrb[0].mxu0
  %v7181 = vadd.f32 0.0, %v7180
  %7182 = vmatprep.mubr.bf16.mxu0 0
  %7183 = vmatmul.mubr.bf16.gmra.mrb[0].mxu0 %v7119
  %v7184 = vpop.f32.mrb[0].mxu0
  %v7185 = vadd.f32 0.0, %v7184
  %v7186 = vpop.f32.mrb[0].mxu0
  %v7187 = vadd.f32 0.0, %v7186
  %v7188 = vpop.f32.mrb[0].mxu0
  %v7189 = vadd.f32 0.0, %v7188
  %v7190 = vpop.f32.mrb[0].mxu0
  %v7191 = vadd.f32 0.0, %v7190
  %7192 = vmatprep.mubr.bf16.mxu0 0
  %7193 = vmatmul.mubr.bf16.gmra.mrb[0].mxu0 %v7122
  %v7194 = vpop.f32.mrb[0].mxu0
  %v7195 = vadd.f32 0.0, %v7194
  %v7196 = vpop.f32.mrb[0].mxu0
  %v7197 = vadd.f32 0.0, %v7196
  %v7198 = vpop.f32.mrb[0].mxu0
  %v7199 = vadd.f32 0.0, %v7198
  %v7200 = vpop.f32.mrb[0].mxu0
  %v7201 = vadd.f32 0.0, %v7200
  %7202 = vmatprep.mubr.bf16.mxu0 0
  %7203 = vmatmul.mubr.bf16.gmra.mrb[0].mxu0 %v7125
  %v7204 = vpop.f32.mrb[0].mxu0
  %v7205 = vadd.f32 0.0, %v7204
  %v7206 = vpop.f32.mrb[0].mxu0
  %v7207 = vadd.f32 0.0, %v7206
  %v7208 = vpop.f32.mrb[0].mxu0
  %v7209 = vadd.f32 0.0, %v7208
  %v7210 = vpop.f32.mrb[0].mxu0
  %v7211 = vadd.f32 0.0, %v7210
  %7212 = vmatprep.mubr.bf16.mxu0 0
  %7213 = vmatmul.mubr.bf16.gmra.mrb[0].mxu0 %v7128
  %v7214 = vpop.f32.mrb[0].mxu0
  %v7215 = vadd.f32 0.0, %v7214
  %v7216 = vpop.f32.mrb[0].mxu0
  %v7217 = vadd.f32 0.0, %v7216
  %v7218 = vpop.f32.mrb[0].mxu0
  %v7219 = vadd.f32 0.0, %v7218
  %v7220 = vpop.f32.mrb[0].mxu0
  %v7221 = vadd.f32 0.0, %v7220
  %7222 = vdwg.mxu0
  %v7237 = vunpack.c.l.b16 %v7007
  %v7238 = vunpack.c.h.b16 %v7007
  %v7239 = vunpack.c.l.b16 %v7008
  %v7240 = vunpack.c.h.b16 %v7008
  %v7241 = vunpack.c.l.b16 %v7009
  %v7242 = vunpack.c.h.b16 %v7009
  %v7243 = vunpack.c.l.b16 %v7010
  %v7244 = vunpack.c.h.b16 %v7010
  %v7245 = vunpack.c.l.b16 %v7011
  %v7246 = vunpack.c.h.b16 %v7011
  %v7247 = vunpack.c.l.b16 %v7012
  %v7248 = vunpack.c.h.b16 %v7012
  %v7249 = vunpack.c.l.b16 %v7013
  %v7250 = vunpack.c.h.b16 %v7013
  %v7251 = vunpack.c.l.b16 %v7014
  %v7252 = vunpack.c.h.b16 %v7014
  %v7253 = vunpack.c.l.b16 %v7015
  %v7254 = vunpack.c.h.b16 %v7015
  %v7255 = vunpack.c.l.b16 %v7016
  %v7256 = vunpack.c.h.b16 %v7016
  %v7257 = vunpack.c.l.b16 %v7017
  %v7258 = vunpack.c.h.b16 %v7017
  %v7259 = vunpack.c.l.b16 %v7018
  %v7260 = vunpack.c.h.b16 %v7018
  %v7261 = vunpack.c.l.b16 %v7019
  %v7262 = vunpack.c.h.b16 %v7019
  %v7263 = vunpack.c.l.b16 %v7020
  %v7264 = vunpack.c.h.b16 %v7020
  %v7265 = vpack.c.b16 %v7239, %v7237
  %v7266 = vpack.c.b16 %v7240, %v7238
  %v7267 = vpack.c.b16 %v7243, %v7241
  %v7268 = vpack.c.b16 %v7244, %v7242
  %v7269 = vpack.c.b16 %v7247, %v7245
  %v7270 = vpack.c.b16 %v7248, %v7246
  %v7271 = vpack.c.b16 %v7251, %v7249
  %v7272 = vpack.c.b16 %v7252, %v7250
  %v7273 = vpack.c.b16 %v7255, %v7253
  %v7274 = vpack.c.b16 %v7256, %v7254
  %v7275 = vpack.c.b16 %v7259, %v7257
  %v7276 = vpack.c.b16 %v7260, %v7258
  %v7277 = vpack.c.b16 %v7263, %v7261
  %v7278 = vpack.c.b16 %v7264, %v7262
  %v7294 = vsel %vm6984, %v7001, 0
  %v7297 = vsel %vm6984, %v7002, 0
  %v7300 = vsel %vm6984, %v7003, 0
  %v7303 = vsel %vm6984, %v7004, 0
  %v7306 = vsel %vm6984, %v7005, 0
  %v7309 = vsel %vm6984, %v7006, 0
  %7311 = vmatprep.subr.bf16.mxu0 %v7266
  %7312 = vmatpush1.bf16.msra.mxu0 %v7265
  %7313 = vmatprep.subr.bf16.mxu0 %v7268
  %7314 = vmatpush1.bf16.msra.mxu0 %v7267
  %7315 = vmatprep.subr.bf16.mxu0 %v7270
  %7316 = vmatpush1.bf16.msra.mxu0 %v7269
  %7317 = vmatprep.subr.bf16.mxu0 %v7272
  %7318 = vmatpush1.bf16.msra.mxu0 %v7271
  %7319 = vmatprep.subr.bf16.mxu0 %v7274
  %7320 = vmatpush1.bf16.msra.mxu0 %v7273
  %7321 = vmatprep.subr.bf16.mxu0 %v7276
  %7322 = vmatpush1.bf16.msra.mxu0 %v7275
  %7323 = vmatprep.subr.bf16.mxu0 %v7278
  %7324 = vmatpush1.bf16.msra.mxu0 %v7277
  %7325 = vmatprep.subr.bf16.mxu0 0
  %7326 = vmatpush1.bf16.msra.mxu0 0
  %7327 = vmatprep.subr.bf16.mxu0 0
  %7328 = vmatpush1.bf16.msra.mxu0 0
  %7329 = vmatprep.subr.bf16.mxu0 0
  %7330 = vmatpush1.bf16.msra.mxu0 0
  %7331 = vmatprep.subr.bf16.mxu0 0
  %7332 = vmatpush1.bf16.msra.mxu0 0
  %7333 = vmatprep.subr.bf16.mxu0 0
  %7334 = vmatpush1.bf16.msra.mxu0 0
  %7335 = vmatprep.subr.bf16.mxu0 0
  %7336 = vmatpush1.bf16.msra.mxu0 0
  %7337 = vmatprep.subr.bf16.mxu0 0
  %7338 = vmatpush1.bf16.msra.mxu0 0
  %7339 = vmatprep.subr.bf16.mxu0 0
  %7340 = vmatpush1.bf16.msra.mxu0 0
  %7341 = vmatprep.subr.bf16.mxu0 0
  %7342 = vmatpush1.bf16.msra.mxu0 0
  %7343 = vmatprep.mubr.bf16.mxu0 0
  %7344 = vmatmul.mubr.bf16.gmra.mrb[0].mxu0 %v7294
  %v7345 = vpop.f32.mrb[0].mxu0
  %v7346 = vadd.f32 %v7165, %v7345
  %v7347 = vpop.f32.mrb[0].mxu0
  %v7348 = vadd.f32 %v7167, %v7347
  %v7349 = vpop.f32.mrb[0].mxu0
  %v7350 = vadd.f32 %v7169, %v7349
  %v7351 = vpop.f32.mrb[0].mxu0
  %v7352 = vadd.f32 %v7171, %v7351
  %7353 = vmatprep.mubr.bf16.mxu0 0
  %7354 = vmatmul.mubr.bf16.gmra.mrb[0].mxu0 %v7297
  %v7355 = vpop.f32.mrb[0].mxu0
  %v7356 = vadd.f32 %v7175, %v7355
  %v7357 = vpop.f32.mrb[0].mxu0
  %v7358 = vadd.f32 %v7177, %v7357
  %v7359 = vpop.f32.mrb[0].mxu0
  %v7360 = vadd.f32 %v7179, %v7359
  %v7361 = vpop.f32.mrb[0].mxu0
  %v7362 = vadd.f32 %v7181, %v7361
  %7363 = vmatprep.mubr.bf16.mxu0 0
  %7364 = vmatmul.mubr.bf16.gmra.mrb[0].mxu0 %v7300
  %v7365 = vpop.f32.mrb[0].mxu0
  %v7366 = vadd.f32 %v7185, %v7365
  %v7367 = vpop.f32.mrb[0].mxu0
  %v7368 = vadd.f32 %v7187, %v7367
  %v7369 = vpop.f32.mrb[0].mxu0
  %v7370 = vadd.f32 %v7189, %v7369
  %v7371 = vpop.f32.mrb[0].mxu0
  %v7372 = vadd.f32 %v7191, %v7371
  %7373 = vmatprep.mubr.bf16.mxu0 0
  %7374 = vmatmul.mubr.bf16.gmra.mrb[0].mxu0 %v7303
  %v7375 = vpop.f32.mrb[0].mxu0
  %v7376 = vadd.f32 %v7195, %v7375
  %v7377 = vpop.f32.mrb[0].mxu0
  %v7378 = vadd.f32 %v7197, %v7377
  %v7379 = vpop.f32.mrb[0].mxu0
  %v7380 = vadd.f32 %v7199, %v7379
  %v7381 = vpop.f32.mrb[0].mxu0
  %v7382 = vadd.f32 %v7201, %v7381
  %7383 = vmatprep.mubr.bf16.mxu0 0
  %7384 = vmatmul.mubr.bf16.gmra.mrb[0].mxu0 %v7306
  %v7385 = vpop.f32.mrb[0].mxu0
  %v7386 = vadd.f32 %v7205, %v7385
  %v7387 = vpop.f32.mrb[0].mxu0
  %v7388 = vadd.f32 %v7207, %v7387
  %v7389 = vpop.f32.mrb[0].mxu0
  %v7390 = vadd.f32 %v7209, %v7389
  %v7391 = vpop.f32.mrb[0].mxu0
  %v7392 = vadd.f32 %v7211, %v7391
  %7393 = vmatprep.mubr.bf16.mxu0 0
  %7394 = vmatmul.mubr.bf16.gmra.mrb[0].mxu0 %v7309
  %v7395 = vpop.f32.mrb[0].mxu0
  %v7396 = vadd.f32 %v7215, %v7395
  %v7397 = vpop.f32.mrb[0].mxu0
  %v7398 = vadd.f32 %v7217, %v7397
  %v7399 = vpop.f32.mrb[0].mxu0
  %v7400 = vadd.f32 %v7219, %v7399
  %v7401 = vpop.f32.mrb[0].mxu0
  %v7402 = vadd.f32 %v7221, %v7401
  %7403 = vdwg.mxu0
  %v7404 = vld [vmem:[#allocation4 + $0x10] sm:$0xff]
  %v7405 = vld [vmem:[#allocation4 + $0x18] sm:$0xff]
  %v7406 = vld [vmem:[#allocation4 + $0x20] sm:$0xff]
  %v7407 = vld [vmem:[#allocation4 + $0x28] sm:$0xff]
  %v7408 = vld [vmem:[#allocation4 + $0x30] sm:$0xff]
  %v7409 = vld [vmem:[#allocation4 + $0x38] sm:$0xff]
  %s7410 = scalar_lea.vmem %s6, 224
  %v7411 = vld [vmem:[%s7410] sm:$0xff]
  %v7412 = vld [vmem:[%s7410 + $0x8] sm:$0xff]
  %v7413 = vld [vmem:[%s7410 + $0x10] sm:$0xff]
  %v7414 = vld [vmem:[%s7410 + $0x18] sm:$0xff]
  %v7415 = vld [vmem:[%s7410 + $0x20] sm:$0xff]
  %v7416 = vld [vmem:[%s7410 + $0x28] sm:$0xff]
  %v7417 = vld [vmem:[%s7410 + $0x30] sm:$0xff]
  %v7418 = vld [vmem:[%s7410 + $0x38] sm:$0xff]
  %v7419 = vld [vmem:[%s7410 + $0x40] sm:$0xff]
  %v7420 = vld [vmem:[%s7410 + $0x48] sm:$0xff]
  %v7421 = vld [vmem:[%s7410 + $0x50] sm:$0xff]
  %v7422 = vld [vmem:[%s7410 + $0x58] sm:$0xff]
  %v7423 = vld [vmem:[%s7410 + $0x60] sm:$0xff]
  %v7424 = vld [vmem:[%s7410 + $0x68] sm:$0xff]
  %v7439 = vunpack.c.l.b16 %v7411
  %v7440 = vunpack.c.h.b16 %v7411
  %v7441 = vunpack.c.l.b16 %v7412
  %v7442 = vunpack.c.h.b16 %v7412
  %v7443 = vunpack.c.l.b16 %v7413
  %v7444 = vunpack.c.h.b16 %v7413
  %v7445 = vunpack.c.l.b16 %v7414
  %v7446 = vunpack.c.h.b16 %v7414
  %v7447 = vunpack.c.l.b16 %v7415
  %v7448 = vunpack.c.h.b16 %v7415
  %v7449 = vunpack.c.l.b16 %v7416
  %v7450 = vunpack.c.h.b16 %v7416
  %v7451 = vunpack.c.l.b16 %v7417
  %v7452 = vunpack.c.h.b16 %v7417
  %v7453 = vunpack.c.l.b16 %v7418
  %v7454 = vunpack.c.h.b16 %v7418
  %v7455 = vunpack.c.l.b16 %v7419
  %v7456 = vunpack.c.h.b16 %v7419
  %v7457 = vunpack.c.l.b16 %v7420
  %v7458 = vunpack.c.h.b16 %v7420
  %v7459 = vunpack.c.l.b16 %v7421
  %v7460 = vunpack.c.h.b16 %v7421
  %v7461 = vunpack.c.l.b16 %v7422
  %v7462 = vunpack.c.h.b16 %v7422
  %v7463 = vunpack.c.l.b16 %v7423
  %v7464 = vunpack.c.h.b16 %v7423
  %v7465 = vunpack.c.l.b16 %v7424
  %v7466 = vunpack.c.h.b16 %v7424
  %v7467 = vpack.c.b16 %v7441, %v7439
  %v7468 = vpack.c.b16 %v7442, %v7440
  %v7469 = vpack.c.b16 %v7445, %v7443
  %v7470 = vpack.c.b16 %v7446, %v7444
  %v7471 = vpack.c.b16 %v7449, %v7447
  %v7472 = vpack.c.b16 %v7450, %v7448
  %v7473 = vpack.c.b16 %v7453, %v7451
  %v7474 = vpack.c.b16 %v7454, %v7452
  %v7475 = vpack.c.b16 %v7457, %v7455
  %v7476 = vpack.c.b16 %v7458, %v7456
  %v7477 = vpack.c.b16 %v7461, %v7459
  %v7478 = vpack.c.b16 %v7462, %v7460
  %v7479 = vpack.c.b16 %v7465, %v7463
  %v7480 = vpack.c.b16 %v7466, %v7464
  %v7496 = vsel %vm6984, %v7404, 0
  %v7499 = vsel %vm6984, %v7405, 0
  %v7502 = vsel %vm6984, %v7406, 0
  %v7505 = vsel %vm6984, %v7407, 0
  %v7508 = vsel %vm6984, %v7408, 0
  %v7511 = vsel %vm6984, %v7409, 0
  %7513 = vmatprep.subr.bf16.mxu0 %v7468
  %7514 = vmatpush1.bf16.msra.mxu0 %v7467
  %7515 = vmatprep.subr.bf16.mxu0 %v7470
  %7516 = vmatpush1.bf16.msra.mxu0 %v7469
  %7517 = vmatprep.subr.bf16.mxu0 %v7472
  %7518 = vmatpush1.bf16.msra.mxu0 %v7471
  %7519 = vmatprep.subr.bf16.mxu0 %v7474
  %7520 = vmatpush1.bf16.msra.mxu0 %v7473
  %7521 = vmatprep.subr.bf16.mxu0 %v7476
  %7522 = vmatpush1.bf16.msra.mxu0 %v7475
  %7523 = vmatprep.subr.bf16.mxu0 %v7478
  %7524 = vmatpush1.bf16.msra.mxu0 %v7477
  %7525 = vmatprep.subr.bf16.mxu0 %v7480
  %7526 = vmatpush1.bf16.msra.mxu0 %v7479
  %7527 = vmatprep.subr.bf16.mxu0 0
  %7528 = vmatpush1.bf16.msra.mxu0 0
  %7529 = vmatprep.subr.bf16.mxu0 0
  %7530 = vmatpush1.bf16.msra.mxu0 0
  %7531 = vmatprep.subr.bf16.mxu0 0
  %7532 = vmatpush1.bf16.msra.mxu0 0
  %7533 = vmatprep.subr.bf16.mxu0 0
  %7534 = vmatpush1.bf16.msra.mxu0 0
  %7535 = vmatprep.subr.bf16.mxu0 0
  %7536 = vmatpush1.bf16.msra.mxu0 0
  %7537 = vmatprep.subr.bf16.mxu0 0
  %7538 = vmatpush1.bf16.msra.mxu0 0
  %7539 = vmatprep.subr.bf16.mxu0 0
  %7540 = vmatpush1.bf16.msra.mxu0 0
  %7541 = vmatprep.subr.bf16.mxu0 0
  %7542 = vmatpush1.bf16.msra.mxu0 0
  %7543 = vmatprep.subr.bf16.mxu0 0
  %7544 = vmatpush1.bf16.msra.mxu0 0
  %7545 = vmatprep.mubr.bf16.mxu0 0
  %7546 = vmatmul.mubr.bf16.gmra.mrb[0].mxu0 %v7496
  %v7547 = vpop.f32.mrb[0].mxu0
  %v7548 = vadd.f32 0.0, %v7547
  %v7549 = vpop.f32.mrb[0].mxu0
  %v7550 = vadd.f32 0.0, %v7549
  %v7551 = vpop.f32.mrb[0].mxu0
  %v7552 = vadd.f32 0.0, %v7551
  %v7553 = vpop.f32.mrb[0].mxu0
  %v7554 = vadd.f32 0.0, %v7553
  %7555 = vmatprep.mubr.bf16.mxu0 0
  %7556 = vmatmul.mubr.bf16.gmra.mrb[0].mxu0 %v7499
  %v7557 = vpop.f32.mrb[0].mxu0
  %v7558 = vadd.f32 0.0, %v7557
  %v7559 = vpop.f32.mrb[0].mxu0
  %v7560 = vadd.f32 0.0, %v7559
  %v7561 = vpop.f32.mrb[0].mxu0
  %v7562 = vadd.f32 0.0, %v7561
  %v7563 = vpop.f32.mrb[0].mxu0
  %v7564 = vadd.f32 0.0, %v7563
  %7565 = vmatprep.mubr.bf16.mxu0 0
  %7566 = vmatmul.mubr.bf16.gmra.mrb[0].mxu0 %v7502
  %v7567 = vpop.f32.mrb[0].mxu0
  %v7568 = vadd.f32 0.0, %v7567
  %v7569 = vpop.f32.mrb[0].mxu0
  %v7570 = vadd.f32 0.0, %v7569
  %v7571 = vpop.f32.mrb[0].mxu0
  %v7572 = vadd.f32 0.0, %v7571
  %v7573 = vpop.f32.mrb[0].mxu0
  %v7574 = vadd.f32 0.0, %v7573
  %7575 = vmatprep.mubr.bf16.mxu0 0
  %7576 = vmatmul.mubr.bf16.gmra.mrb[0].mxu0 %v7505
  %v7577 = vpop.f32.mrb[0].mxu0
  %v7578 = vadd.f32 0.0, %v7577
  %v7579 = vpop.f32.mrb[0].mxu0
  %v7580 = vadd.f32 0.0, %v7579
  %v7581 = vpop.f32.mrb[0].mxu0
  %v7582 = vadd.f32 0.0, %v7581
  %v7583 = vpop.f32.mrb[0].mxu0
  %v7584 = vadd.f32 0.0, %v7583
  %7585 = vmatprep.mubr.bf16.mxu0 0
  %7586 = vmatmul.mubr.bf16.gmra.mrb[0].mxu0 %v7508
  %v7587 = vpop.f32.mrb[0].mxu0
  %v7588 = vadd.f32 0.0, %v7587
  %v7589 = vpop.f32.mrb[0].mxu0
  %v7590 = vadd.f32 0.0, %v7589
  %v7591 = vpop.f32.mrb[0].mxu0
  %v7592 = vadd.f32 0.0, %v7591
  %v7593 = vpop.f32.mrb[0].mxu0
  %v7594 = vadd.f32 0.0, %v7593
  %7595 = vmatprep.mubr.bf16.mxu0 0
  %7596 = vmatmul.mubr.bf16.gmra.mrb[0].mxu0 %v7511
  %v7597 = vpop.f32.mrb[0].mxu0
  %v7598 = vadd.f32 0.0, %v7597
  %v7599 = vpop.f32.mrb[0].mxu0
  %v7600 = vadd.f32 0.0, %v7599
  %v7601 = vpop.f32.mrb[0].mxu0
  %v7602 = vadd.f32 0.0, %v7601
  %v7603 = vpop.f32.mrb[0].mxu0
  %v7604 = vadd.f32 0.0, %v7603
  %7605 = vdwg.mxu0
  %v7606 = vadd.f32 %v7346, %v7548
  %v7607 = vadd.f32 %v7348, %v7550
  %v7608 = vadd.f32 %v7350, %v7552
  %v7609 = vadd.f32 %v7352, %v7554
  %v7610 = vadd.f32 %v7356, %v7558
  %v7611 = vadd.f32 %v7358, %v7560
  %v7612 = vadd.f32 %v7360, %v7562
  %v7613 = vadd.f32 %v7362, %v7564
  %v7614 = vadd.f32 %v7366, %v7568
  %v7615 = vadd.f32 %v7368, %v7570
  %v7616 = vadd.f32 %v7370, %v7572
  %v7617 = vadd.f32 %v7372, %v7574
  %v7618 = vadd.f32 %v7376, %v7578
  %v7619 = vadd.f32 %v7378, %v7580
  %v7620 = vadd.f32 %v7380, %v7582
  %v7621 = vadd.f32 %v7382, %v7584
  %v7622 = vadd.f32 %v7386, %v7588
  %v7623 = vadd.f32 %v7388, %v7590
  %v7624 = vadd.f32 %v7390, %v7592
  %v7625 = vadd.f32 %v7392, %v7594
  %v7626 = vadd.f32 %v7396, %v7598
  %v7627 = vadd.f32 %v7398, %v7600
  %v7628 = vadd.f32 %v7400, %v7602
  %v7629 = vadd.f32 %v7402, %v7604
  %v7630 = vmax.f32 %v7606, %v7607
  %v7631 = vmax.f32 %v7608, %v7609
  %v7632 = vmax.f32 %v7610, %v7611
  %v7633 = vmax.f32 %v7612, %v7613
  %v7634 = vmax.f32 %v7614, %v7615
  %v7635 = vmax.f32 %v7616, %v7617
  %v7636 = vmax.f32 %v7618, %v7619
  %v7637 = vmax.f32 %v7620, %v7621
  %v7638 = vmax.f32 %v7622, %v7623
  %v7639 = vmax.f32 %v7624, %v7625
  %v7640 = vmax.f32 %v7626, %v7627
  %v7641 = vmax.f32 %v7628, %v7629
  %7642 = vmatprep.subr.bf16.mxu0 %v7085
  %7643 = vmatpush1.bf16.msra.mxu0 %v7084
  %7644 = vmatprep.subr.bf16.mxu0 %v7087
  %7645 = vmatpush1.bf16.msra.mxu0 %v7086
  %7646 = vmatprep.subr.bf16.mxu0 %v7089
  %7647 = vmatpush1.bf16.msra.mxu0 %v7088
  %7648 = vmatprep.subr.bf16.mxu0 %v7091
  %7649 = vmatpush1.bf16.msra.mxu0 %v7090
  %7650 = vmatprep.subr.bf16.mxu0 %v7093
  %7651 = vmatpush1.bf16.msra.mxu0 %v7092
  %7652 = vmatprep.subr.bf16.mxu0 %v7095
  %7653 = vmatpush1.bf16.msra.mxu0 %v7094
  %7654 = vmatprep.subr.bf16.mxu0 %v7097
  %7655 = vmatpush1.bf16.msra.mxu0 %v7096
  %7656 = vmatprep.subr.bf16.mxu0 0
  %7657 = vmatpush1.bf16.msra.mxu0 0
  %7658 = vmatprep.subr.bf16.mxu0 0
  %7659 = vmatpush1.bf16.msra.mxu0 0
  %7660 = vmatprep.subr.bf16.mxu0 0
  %7661 = vmatpush1.bf16.msra.mxu0 0
  %7662 = vmatprep.subr.bf16.mxu0 0
  %7663 = vmatpush1.bf16.msra.mxu0 0
  %7664 = vmatprep.subr.bf16.mxu0 0
  %7665 = vmatpush1.bf16.msra.mxu0 0
  %7666 = vmatprep.subr.bf16.mxu0 0
  %7667 = vmatpush1.bf16.msra.mxu0 0
  %7668 = vmatprep.subr.bf16.mxu0 0
  %7669 = vmatpush1.bf16.msra.mxu0 0
  %7670 = vmatprep.subr.bf16.mxu0 0
  %7671 = vmatpush1.bf16.msra.mxu0 0
  %7672 = vmatprep.subr.bf16.mxu0 0
  %7673 = vmatpush1.bf16.msra.mxu0 0
  %7674 = vmatprep.mubr.bf16.mxu0 0
  %7675 = vmatmul.mubr.bf16.gmra.mrb[0].mxu0 %v7496
  %v7676 = vpop.f32.mrb[0].mxu0
  %v7677 = vadd.f32 0.0, %v7676
  %v7678 = vpop.f32.mrb[0].mxu0
  %v7679 = vadd.f32 0.0, %v7678
  %v7680 = vpop.f32.mrb[0].mxu0
  %v7681 = vadd.f32 0.0, %v7680
  %v7682 = vpop.f32.mrb[0].mxu0
  %v7683 = vadd.f32 0.0, %v7682
  %7684 = vmatprep.mubr.bf16.mxu0 0
  %7685 = vmatmul.mubr.bf16.gmra.mrb[0].mxu0 %v7499
  %v7686 = vpop.f32.mrb[0].mxu0
  %v7687 = vadd.f32 0.0, %v7686
  %v7688 = vpop.f32.mrb[0].mxu0
  %v7689 = vadd.f32 0.0, %v7688
  %v7690 = vpop.f32.mrb[0].mxu0
  %v7691 = vadd.f32 0.0, %v7690
  %v7692 = vpop.f32.mrb[0].mxu0
  %v7693 = vadd.f32 0.0, %v7692
  %7694 = vmatprep.mubr.bf16.mxu0 0
  %7695 = vmatmul.mubr.bf16.gmra.mrb[0].mxu0 %v7502
  %v7696 = vpop.f32.mrb[0].mxu0
  %v7697 = vadd.f32 0.0, %v7696
  %v7698 = vpop.f32.mrb[0].mxu0
  %v7699 = vadd.f32 0.0, %v7698
  %v7700 = vpop.f32.mrb[0].mxu0
  %v7701 = vadd.f32 0.0, %v7700
  %v7702 = vpop.f32.mrb[0].mxu0
  %v7703 = vadd.f32 0.0, %v7702
  %7704 = vmatprep.mubr.bf16.mxu0 0
  %7705 = vmatmul.mubr.bf16.gmra.mrb[0].mxu0 %v7505
  %v7706 = vpop.f32.mrb[0].mxu0
  %v7707 = vadd.f32 0.0, %v7706
  %v7708 = vpop.f32.mrb[0].mxu0
  %v7709 = vadd.f32 0.0, %v7708
  %v7710 = vpop.f32.mrb[0].mxu0
  %v7711 = vadd.f32 0.0, %v7710
  %v7712 = vpop.f32.mrb[0].mxu0
  %v7713 = vadd.f32 0.0, %v7712
  %7714 = vmatprep.mubr.bf16.mxu0 0
  %7715 = vmatmul.mubr.bf16.gmra.mrb[0].mxu0 %v7508
  %v7716 = vpop.f32.mrb[0].mxu0
  %v7717 = vadd.f32 0.0, %v7716
  %v7718 = vpop.f32.mrb[0].mxu0
  %v7719 = vadd.f32 0.0, %v7718
  %v7720 = vpop.f32.mrb[0].mxu0
  %v7721 = vadd.f32 0.0, %v7720
  %v7722 = vpop.f32.mrb[0].mxu0
  %v7723 = vadd.f32 0.0, %v7722
  %7724 = vmatprep.mubr.bf16.mxu0 0
  %7725 = vmatmul.mubr.bf16.gmra.mrb[0].mxu0 %v7511
  %v7726 = vpop.f32.mrb[0].mxu0
  %v7727 = vadd.f32 0.0, %v7726
  %v7728 = vpop.f32.mrb[0].mxu0
  %v7729 = vadd.f32 0.0, %v7728
  %v7730 = vpop.f32.mrb[0].mxu0
  %v7731 = vadd.f32 0.0, %v7730
  %v7732 = vpop.f32.mrb[0].mxu0
  %v7733 = vadd.f32 0.0, %v7732
  %7734 = vdwg.mxu0
  %7735 = vmatprep.subr.bf16.mxu0 %v7266
  %7736 = vmatpush1.bf16.msra.mxu0 %v7265
  %7737 = vmatprep.subr.bf16.mxu0 %v7268
  %7738 = vmatpush1.bf16.msra.mxu0 %v7267
  %7739 = vmatprep.subr.bf16.mxu0 %v7270
  %7740 = vmatpush1.bf16.msra.mxu0 %v7269
  %7741 = vmatprep.subr.bf16.mxu0 %v7272
  %7742 = vmatpush1.bf16.msra.mxu0 %v7271
  %7743 = vmatprep.subr.bf16.mxu0 %v7274
  %7744 = vmatpush1.bf16.msra.mxu0 %v7273
  %7745 = vmatprep.subr.bf16.mxu0 %v7276
  %7746 = vmatpush1.bf16.msra.mxu0 %v7275
  %7747 = vmatprep.subr.bf16.mxu0 %v7278
  %7748 = vmatpush1.bf16.msra.mxu0 %v7277
  %7749 = vmatprep.subr.bf16.mxu0 0
  %7750 = vmatpush1.bf16.msra.mxu0 0
  %7751 = vmatprep.subr.bf16.mxu0 0
  %7752 = vmatpush1.bf16.msra.mxu0 0
  %7753 = vmatprep.subr.bf16.mxu0 0
  %7754 = vmatpush1.bf16.msra.mxu0 0
  %7755 = vmatprep.subr.bf16.mxu0 0
  %7756 = vmatpush1.bf16.msra.mxu0 0
  %7757 = vmatprep.subr.bf16.mxu0 0
  %7758 = vmatpush1.bf16.msra.mxu0 0
  %7759 = vmatprep.subr.bf16.mxu0 0
  %7760 = vmatpush1.bf16.msra.mxu0 0
  %7761 = vmatprep.subr.bf16.mxu0 0
  %7762 = vmatpush1.bf16.msra.mxu0 0
  %7763 = vmatprep.subr.bf16.mxu0 0
  %7764 = vmatpush1.bf16.msra.mxu0 0
  %7765 = vmatprep.subr.bf16.mxu0 0
  %7766 = vmatpush1.bf16.msra.mxu0 0
  %7767 = vmatprep.mubr.bf16.mxu0 0
  %7768 = vmatmul.mubr.bf16.gmra.mrb[0].mxu0 %v7113
  %v7769 = vpop.f32.mrb[0].mxu0
  %v7770 = vadd.f32 %v7677, %v7769
  %v7771 = vpop.f32.mrb[0].mxu0
  %v7772 = vadd.f32 %v7679, %v7771
  %v7773 = vpop.f32.mrb[0].mxu0
  %v7774 = vadd.f32 %v7681, %v7773
  %v7775 = vpop.f32.mrb[0].mxu0
  %v7776 = vadd.f32 %v7683, %v7775
  %7777 = vmatprep.mubr.bf16.mxu0 0
  %7778 = vmatmul.mubr.bf16.gmra.mrb[0].mxu0 %v7116
  %v7779 = vpop.f32.mrb[0].mxu0
  %v7780 = vadd.f32 %v7687, %v7779
  %v7781 = vpop.f32.mrb[0].mxu0
  %v7782 = vadd.f32 %v7689, %v7781
  %v7783 = vpop.f32.mrb[0].mxu0
  %v7784 = vadd.f32 %v7691, %v7783
  %v7785 = vpop.f32.mrb[0].mxu0
  %v7786 = vadd.f32 %v7693, %v7785
  %7787 = vmatprep.mubr.bf16.mxu0 0
  %7788 = vmatmul.mubr.bf16.gmra.mrb[0].mxu0 %v7119
  %v7789 = vpop.f32.mrb[0].mxu0
  %v7790 = vadd.f32 %v7697, %v7789
  %v7791 = vpop.f32.mrb[0].mxu0
  %v7792 = vadd.f32 %v7699, %v7791
  %v7793 = vpop.f32.mrb[0].mxu0
  %v7794 = vadd.f32 %v7701, %v7793
  %v7795 = vpop.f32.mrb[0].mxu0
  %v7796 = vadd.f32 %v7703, %v7795
  %7797 = vmatprep.mubr.bf16.mxu0 0
  %7798 = vmatmul.mubr.bf16.gmra.mrb[0].mxu0 %v7122
  %v7799 = vpop.f32.mrb[0].mxu0
  %v7800 = vadd.f32 %v7707, %v7799
  %v7801 = vpop.f32.mrb[0].mxu0
  %v7802 = vadd.f32 %v7709, %v7801
  %v7803 = vpop.f32.mrb[0].mxu0
  %v7804 = vadd.f32 %v7711, %v7803
  %v7805 = vpop.f32.mrb[0].mxu0
  %v7806 = vadd.f32 %v7713, %v7805
  %7807 = vmatprep.mubr.bf16.mxu0 0
  %7808 = vmatmul.mubr.bf16.gmra.mrb[0].mxu0 %v7125
  %v7809 = vpop.f32.mrb[0].mxu0
  %v7810 = vadd.f32 %v7717, %v7809
  %v7811 = vpop.f32.mrb[0].mxu0
  %v7812 = vadd.f32 %v7719, %v7811
  %v7813 = vpop.f32.mrb[0].mxu0
  %v7814 = vadd.f32 %v7721, %v7813
  %v7815 = vpop.f32.mrb[0].mxu0
  %v7816 = vadd.f32 %v7723, %v7815
  %7817 = vmatprep.mubr.bf16.mxu0 0
  %7818 = vmatmul.mubr.bf16.gmra.mrb[0].mxu0 %v7128
  %v7819 = vpop.f32.mrb[0].mxu0
  %v7820 = vadd.f32 %v7727, %v7819
  %v7821 = vpop.f32.mrb[0].mxu0
  %v7822 = vadd.f32 %v7729, %v7821
  %v7823 = vpop.f32.mrb[0].mxu0
  %v7824 = vadd.f32 %v7731, %v7823
  %v7825 = vpop.f32.mrb[0].mxu0
  %v7826 = vadd.f32 %v7733, %v7825
  %7827 = vdwg.mxu0
  %v7828 = vld [vmem:[#allocation5 + $0x10] sm:$0xff]
  %v7829 = vld [vmem:[#allocation5 + $0x18] sm:$0xff]
  %v7830 = vld [vmem:[#allocation5 + $0x20] sm:$0xff]
  %v7831 = vld [vmem:[#allocation5 + $0x28] sm:$0xff]
  %v7832 = vld [vmem:[#allocation5 + $0x30] sm:$0xff]
  %v7833 = vld [vmem:[#allocation5 + $0x38] sm:$0xff]
  %v7835 = vsel %vm6984, %v7828, 0
  %v7838 = vsel %vm6984, %v7829, 0
  %v7841 = vsel %vm6984, %v7830, 0
  %v7844 = vsel %vm6984, %v7831, 0
  %v7847 = vsel %vm6984, %v7832, 0
  %v7850 = vsel %vm6984, %v7833, 0
  %7852 = vmatprep.subr.bf16.mxu0 %v7468
  %7853 = vmatpush1.bf16.msra.mxu0 %v7467
  %7854 = vmatprep.subr.bf16.mxu0 %v7470
  %7855 = vmatpush1.bf16.msra.mxu0 %v7469
  %7856 = vmatprep.subr.bf16.mxu0 %v7472
  %7857 = vmatpush1.bf16.msra.mxu0 %v7471
  %7858 = vmatprep.subr.bf16.mxu0 %v7474
  %7859 = vmatpush1.bf16.msra.mxu0 %v7473
  %7860 = vmatprep.subr.bf16.mxu0 %v7476
  %7861 = vmatpush1.bf16.msra.mxu0 %v7475
  %7862 = vmatprep.subr.bf16.mxu0 %v7478
  %7863 = vmatpush1.bf16.msra.mxu0 %v7477
  %7864 = vmatprep.subr.bf16.mxu0 %v7480
  %7865 = vmatpush1.bf16.msra.mxu0 %v7479
  %7866 = vmatprep.subr.bf16.mxu0 0
  %7867 = vmatpush1.bf16.msra.mxu0 0
  %7868 = vmatprep.subr.bf16.mxu0 0
  %7869 = vmatpush1.bf16.msra.mxu0 0
  %7870 = vmatprep.subr.bf16.mxu0 0
  %7871 = vmatpush1.bf16.msra.mxu0 0
  %7872 = vmatprep.subr.bf16.mxu0 0
  %7873 = vmatpush1.bf16.msra.mxu0 0
  %7874 = vmatprep.subr.bf16.mxu0 0
  %7875 = vmatpush1.bf16.msra.mxu0 0
  %7876 = vmatprep.subr.bf16.mxu0 0
  %7877 = vmatpush1.bf16.msra.mxu0 0
  %7878 = vmatprep.subr.bf16.mxu0 0
  %7879 = vmatpush1.bf16.msra.mxu0 0
  %7880 = vmatprep.subr.bf16.mxu0 0
  %7881 = vmatpush1.bf16.msra.mxu0 0
  %7882 = vmatprep.subr.bf16.mxu0 0
  %7883 = vmatpush1.bf16.msra.mxu0 0
  %7884 = vmatprep.mubr.bf16.mxu0 0
  %7885 = vmatmul.mubr.bf16.gmra.mrb[0].mxu0 %v7835
  %v7886 = vpop.f32.mrb[0].mxu0
  %v7887 = vadd.f32 0.0, %v7886
  %v7888 = vpop.f32.mrb[0].mxu0
  %v7889 = vadd.f32 0.0, %v7888
  %v7890 = vpop.f32.mrb[0].mxu0
  %v7891 = vadd.f32 0.0, %v7890
  %v7892 = vpop.f32.mrb[0].mxu0
  %v7893 = vadd.f32 0.0, %v7892
  %7894 = vmatprep.mubr.bf16.mxu0 0
  %7895 = vmatmul.mubr.bf16.gmra.mrb[0].mxu0 %v7838
  %v7896 = vpop.f32.mrb[0].mxu0
  %v7897 = vadd.f32 0.0, %v7896
  %v7898 = vpop.f32.mrb[0].mxu0
  %v7899 = vadd.f32 0.0, %v7898
  %v7900 = vpop.f32.mrb[0].mxu0
  %v7901 = vadd.f32 0.0, %v7900
  %v7902 = vpop.f32.mrb[0].mxu0
  %v7903 = vadd.f32 0.0, %v7902
  %7904 = vmatprep.mubr.bf16.mxu0 0
  %7905 = vmatmul.mubr.bf16.gmra.mrb[0].mxu0 %v7841
  %v7906 = vpop.f32.mrb[0].mxu0
  %v7907 = vadd.f32 0.0, %v7906
  %v7908 = vpop.f32.mrb[0].mxu0
  %v7909 = vadd.f32 0.0, %v7908
  %v7910 = vpop.f32.mrb[0].mxu0
  %v7911 = vadd.f32 0.0, %v7910
  %v7912 = vpop.f32.mrb[0].mxu0
  %v7913 = vadd.f32 0.0, %v7912
  %7914 = vmatprep.mubr.bf16.mxu0 0
  %7915 = vmatmul.mubr.bf16.gmra.mrb[0].mxu0 %v7844
  %v7916 = vpop.f32.mrb[0].mxu0
  %v7917 = vadd.f32 0.0, %v7916
  %v7918 = vpop.f32.mrb[0].mxu0
  %v7919 = vadd.f32 0.0, %v7918
  %v7920 = vpop.f32.mrb[0].mxu0
  %v7921 = vadd.f32 0.0, %v7920
  %v7922 = vpop.f32.mrb[0].mxu0
  %v7923 = vadd.f32 0.0, %v7922
  %7924 = vmatprep.mubr.bf16.mxu0 0
  %7925 = vmatmul.mubr.bf16.gmra.mrb[0].mxu0 %v7847
  %v7926 = vpop.f32.mrb[0].mxu0
  %v7927 = vadd.f32 0.0, %v7926
  %v7928 = vpop.f32.mrb[0].mxu0
  %v7929 = vadd.f32 0.0, %v7928
  %v7930 = vpop.f32.mrb[0].mxu0
  %v7931 = vadd.f32 0.0, %v7930
  %v7932 = vpop.f32.mrb[0].mxu0
  %v7933 = vadd.f32 0.0, %v7932
  %7934 = vmatprep.mubr.bf16.mxu0 0
  %7935 = vmatmul.mubr.bf16.gmra.mrb[0].mxu0 %v7850
  %v7936 = vpop.f32.mrb[0].mxu0
  %v7937 = vadd.f32 0.0, %v7936
  %v7938 = vpop.f32.mrb[0].mxu0
  %v7939 = vadd.f32 0.0, %v7938
  %v7940 = vpop.f32.mrb[0].mxu0
  %v7941 = vadd.f32 0.0, %v7940
  %v7942 = vpop.f32.mrb[0].mxu0
  %v7943 = vadd.f32 0.0, %v7942
  %7944 = vdwg.mxu0
  %v7945 = vadd.f32 %v7770, %v7887
  %v7946 = vadd.f32 %v7772, %v7889
  %v7947 = vadd.f32 %v7774, %v7891
  %v7948 = vadd.f32 %v7776, %v7893
  %v7949 = vadd.f32 %v7780, %v7897
  %v7950 = vadd.f32 %v7782, %v7899
  %v7951 = vadd.f32 %v7784, %v7901
  %v7952 = vadd.f32 %v7786, %v7903
  %v7953 = vadd.f32 %v7790, %v7907
  %v7954 = vadd.f32 %v7792, %v7909
  %v7955 = vadd.f32 %v7794, %v7911
  %v7956 = vadd.f32 %v7796, %v7913
  %v7957 = vadd.f32 %v7800, %v7917
  %v7958 = vadd.f32 %v7802, %v7919
  %v7959 = vadd.f32 %v7804, %v7921
  %v7960 = vadd.f32 %v7806, %v7923
  %v7961 = vadd.f32 %v7810, %v7927
  %v7962 = vadd.f32 %v7812, %v7929
  %v7963 = vadd.f32 %v7814, %v7931
  %v7964 = vadd.f32 %v7816, %v7933
  %v7965 = vadd.f32 %v7820, %v7937
  %v7966 = vadd.f32 %v7822, %v7939
  %v7967 = vadd.f32 %v7824, %v7941
  %v7968 = vadd.f32 %v7826, %v7943
  %v7969 = vmax.f32 %v7945, %v7946
  %v7970 = vmax.f32 %v7947, %v7948
  %v7971 = vmax.f32 %v7949, %v7950
  %v7972 = vmax.f32 %v7951, %v7952
  %v7973 = vmax.f32 %v7953, %v7954
  %v7974 = vmax.f32 %v7955, %v7956
  %v7975 = vmax.f32 %v7957, %v7958
  %v7976 = vmax.f32 %v7959, %v7960
  %v7977 = vmax.f32 %v7961, %v7962
  %v7978 = vmax.f32 %v7963, %v7964
  %v7979 = vmax.f32 %v7965, %v7966
  %v7980 = vmax.f32 %v7967, %v7968
  %v7981 = vmax.f32 %v7630, %v7969
  %v7982 = vmax.f32 %v7631, %v7970
  %v7983 = vmax.f32 %v7632, %v7971
  %v7984 = vmax.f32 %v7633, %v7972
  %v7985 = vmax.f32 %v7634, %v7973
  %v7986 = vmax.f32 %v7635, %v7974
  %v7987 = vmax.f32 %v7636, %v7975
  %v7988 = vmax.f32 %v7637, %v7976
  %v7989 = vmax.f32 %v7638, %v7977
  %v7990 = vmax.f32 %v7639, %v7978
  %v7991 = vmax.f32 %v7640, %v7979
  %v7992 = vmax.f32 %v7641, %v7980
  %v7993 = vld [vmem:[%s7] sm:$0x1]
  %v7995 = vlaneseq
  %v7996 = vshrl.u32 %v7995, 7
  %v7997 = vsub.s32 0, %v7996
  %v7998 = vrot.slane %v7993, %v7997
  %v8000 = vadd.f32 %v7981, %v7998
  %v8001 = vadd.f32 %v7982, %v7998
  %v8002 = vadd.f32 %v7983, %v7998
  %v8003 = vadd.f32 %v7984, %v7998
  %v8004 = vadd.f32 %v7985, %v7998
  %v8005 = vadd.f32 %v7986, %v7998
  %v8006 = vadd.f32 %v7987, %v7998
  %v8007 = vadd.f32 %v7988, %v7998
  %v8008 = vadd.f32 %v7989, %v7998
  %v8009 = vadd.f32 %v7990, %v7998
  %v8010 = vadd.f32 %v7991, %v7998
  %v8011 = vadd.f32 %v7992, %v7998
  %v8012 = vmax.f32 %v8000, 0.0
  %v8013 = vmax.f32 %v8001, 0.0
  %v8014 = vmax.f32 %v8002, 0.0
  %v8015 = vmax.f32 %v8003, 0.0
  %v8016 = vmax.f32 %v8004, 0.0
  %v8017 = vmax.f32 %v8005, 0.0
  %v8018 = vmax.f32 %v8006, 0.0
  %v8019 = vmax.f32 %v8007, 0.0
  %v8020 = vmax.f32 %v8008, 0.0
  %v8021 = vmax.f32 %v8009, 0.0
  %v8022 = vmax.f32 %v8010, 0.0
  %v8023 = vmax.f32 %v8011, 0.0
  %v8024 = vld [vmem:[%s9] sm:$0x1]
  %v8025 = vld [vmem:[%s8] sm:$0xff]
  %v8026 = vld [vmem:[%s8 + $0x8] sm:$0xff]
  %v8027 = vld [vmem:[%s8 + $0x10] sm:$0xff]
  %v8028 = vld [vmem:[%s8 + $0x18] sm:$0xff]
  %v8029 = vld [vmem:[%s8 + $0x20] sm:$0xff]
  %v8030 = vld [vmem:[%s8 + $0x28] sm:$0xff]
  %v8031 = vld [vmem:[%s8 + $0x30] sm:$0xff]
  %v8032 = vld [vmem:[%s8 + $0x38] sm:$0xff]
  %v8033 = vld [vmem:[%s8 + $0x40] sm:$0xff]
  %v8034 = vld [vmem:[%s8 + $0x48] sm:$0xff]
  %v8035 = vld [vmem:[%s8 + $0x50] sm:$0xff]
  %v8036 = vld [vmem:[%s8 + $0x58] sm:$0xff]
  %vm8037 = vcmask 785408
  %v8039 = vsel %vm8037, %v8012, 0
  %v8042 = vsel %vm8037, %v8013, 0
  %v8045 = vsel %vm8037, %v8014, 0
  %v8048 = vsel %vm8037, %v8015, 0
  %8050 = vmatprep.subr.mxu0 0.0
  %8051 = vmatpush1.msra.mxu0 %v8025
  %8052 = vmatprep.subr.mxu0 0.0
  %8053 = vmatpush1.msra.mxu0 %v8026
  %8054 = vmatprep.subr.mxu0 0.0
  %8055 = vmatpush1.msra.mxu0 %v8027
  %8056 = vmatprep.subr.mxu0 0.0
  %8057 = vmatpush1.msra.mxu0 %v8028
  %8058 = vmatprep.subr.mxu0 0.0
  %8059 = vmatpush1.msra.mxu0 %v8029
  %8060 = vmatprep.subr.mxu0 0.0
  %8061 = vmatpush1.msra.mxu0 %v8030
  %8062 = vmatprep.subr.mxu0 0.0
  %8063 = vmatpush1.msra.mxu0 %v8031
  %8064 = vmatprep.subr.mxu0 0.0
  %8065 = vmatpush1.msra.mxu0 %v8032
  %8066 = vmatprep.subr.mxu0 0.0
  %8067 = vmatpush1.msra.mxu0 %v8033
  %8068 = vmatprep.subr.mxu0 0.0
  %8069 = vmatpush1.msra.mxu0 %v8034
  %8070 = vmatprep.subr.mxu0 0.0
  %8071 = vmatpush1.msra.mxu0 %v8035
  %8072 = vmatprep.subr.mxu0 0.0
  %8073 = vmatpush1.msra.mxu0 %v8036
  %8074 = vmatprep.subr.mxu0 0.0
  %8075 = vmatpush1.msra.mxu0 0.0
  %8076 = vmatprep.subr.mxu0 0.0
  %8077 = vmatpush1.msra.mxu0 0.0
  %8078 = vmatprep.subr.mxu0 0.0
  %8079 = vmatpush1.msra.mxu0 0.0
  %8080 = vmatprep.subr.mxu0 0.0
  %8081 = vmatpush1.msra.mxu0 0.0
  %8082 = vmatprep.subr.mxu0 0.0
  %8083 = vmatpush1.msra.mxu0 0.0
  %8084 = vmatprep.subr.mxu0 0.0
  %8085 = vmatpush1.msra.mxu0 0.0
  %8086 = vmatprep.subr.mxu0 0.0
  %8087 = vmatpush1.msra.mxu0 0.0
  %8088 = vmatprep.subr.mxu0 0.0
  %8089 = vmatpush1.msra.mxu0 0.0
  %8090 = vmatprep.subr.mxu0 0.0
  %8091 = vmatpush1.msra.mxu0 0.0
  %8092 = vmatprep.subr.mxu0 0.0
  %8093 = vmatpush1.msra.mxu0 0.0
  %8094 = vmatprep.subr.mxu0 0.0
  %8095 = vmatpush1.msra.mxu0 0.0
  %8096 = vmatprep.subr.mxu0 0.0
  %8097 = vmatpush1.msra.mxu0 0.0
  %8098 = vmatprep.subr.mxu0 0.0
  %8099 = vmatpush1.msra.mxu0 0.0
  %8100 = vmatprep.subr.mxu0 0.0
  %8101 = vmatpush1.msra.mxu0 0.0
  %8102 = vmatprep.subr.mxu0 0.0
  %8103 = vmatpush1.msra.mxu0 0.0
  %8104 = vmatprep.subr.mxu0 0.0
  %8105 = vmatpush1.msra.mxu0 0.0
  %8106 = vmatprep.subr.mxu0 0.0
  %8107 = vmatpush1.msra.mxu0 0.0
  %8108 = vmatprep.subr.mxu0 0.0
  %8109 = vmatpush1.msra.mxu0 0.0
  %8110 = vmatprep.subr.mxu0 0.0
  %8111 = vmatpush1.msra.mxu0 0.0
  %8112 = vmatprep.subr.mxu0 0.0
  %8113 = vmatpush1.msra.mxu0 0.0
  %8114 = vmatprep.mubr.f32.mxu0 0.0
  %8115 = vmatmul.mubr.f32.gmra.mrb[0].mxu0 %v8039
  %v8116 = vpop.f32.mrb[0].mxu0
  %v8117 = vadd.f32 0.0, %v8116
  %v8118 = vpop.f32.mrb[0].mxu0
  %8119 = vmatprep.mubr.f32.mxu0 0.0
  %8120 = vmatmul.mubr.f32.gmra.mrb[0].mxu0 %v8042
  %v8121 = vpop.f32.mrb[0].mxu0
  %v8122 = vadd.f32 0.0, %v8121
  %v8123 = vpop.f32.mrb[0].mxu0
  %8124 = vmatprep.mubr.f32.mxu0 0.0
  %8125 = vmatmul.mubr.f32.gmra.mrb[0].mxu0 %v8045
  %v8126 = vpop.f32.mrb[0].mxu0
  %v8127 = vadd.f32 0.0, %v8126
  %v8128 = vpop.f32.mrb[0].mxu0
  %8129 = vmatprep.mubr.f32.mxu0 0.0
  %8130 = vmatmul.mubr.f32.gmra.mrb[0].mxu0 %v8048
  %v8131 = vpop.f32.mrb[0].mxu0
  %v8132 = vadd.f32 0.0, %v8131
  %v8133 = vpop.f32.mrb[0].mxu0
  %8134 = vdwg.mxu0
  %v8136 = vlaneseq
  %v8137 = vshrl.u32 %v8136, 7
  %v8138 = vsub.s32 0, %v8137
  %v8139 = vrot.slane %v8024, %v8138
  %v8141 = vadd.f32 %v8139, %v8117
  %v8142 = vadd.f32 %v8139, %v8122
  %v8143 = vadd.f32 %v8139, %v8127
  %v8144 = vadd.f32 %v8139, %v8132
  %s8145 = scalar_lea.vmem %s8, 96
  %v8146 = vld [vmem:[%s8145] sm:$0xff]
  %v8147 = vld [vmem:[%s8145 + $0x8] sm:$0xff]
  %v8148 = vld [vmem:[%s8145 + $0x10] sm:$0xff]
  %v8149 = vld [vmem:[%s8145 + $0x18] sm:$0xff]
  %v8150 = vld [vmem:[%s8145 + $0x20] sm:$0xff]
  %v8151 = vld [vmem:[%s8145 + $0x28] sm:$0xff]
  %v8152 = vld [vmem:[%s8145 + $0x30] sm:$0xff]
  %v8153 = vld [vmem:[%s8145 + $0x38] sm:$0xff]
  %v8154 = vld [vmem:[%s8145 + $0x40] sm:$0xff]
  %v8155 = vld [vmem:[%s8145 + $0x48] sm:$0xff]
  %v8156 = vld [vmem:[%s8145 + $0x50] sm:$0xff]
  %v8157 = vld [vmem:[%s8145 + $0x58] sm:$0xff]
  %v8159 = vsel %vm8037, %v8016, 0
  %v8162 = vsel %vm8037, %v8017, 0
  %v8165 = vsel %vm8037, %v8018, 0
  %v8168 = vsel %vm8037, %v8019, 0
  %8170 = vmatprep.subr.mxu0 0.0
  %8171 = vmatpush1.msra.mxu0 %v8146
  %8172 = vmatprep.subr.mxu0 0.0
  %8173 = vmatpush1.msra.mxu0 %v8147
  %8174 = vmatprep.subr.mxu0 0.0
  %8175 = vmatpush1.msra.mxu0 %v8148
  %8176 = vmatprep.subr.mxu0 0.0
  %8177 = vmatpush1.msra.mxu0 %v8149
  %8178 = vmatprep.subr.mxu0 0.0
  %8179 = vmatpush1.msra.mxu0 %v8150
  %8180 = vmatprep.subr.mxu0 0.0
  %8181 = vmatpush1.msra.mxu0 %v8151
  %8182 = vmatprep.subr.mxu0 0.0
  %8183 = vmatpush1.msra.mxu0 %v8152
  %8184 = vmatprep.subr.mxu0 0.0
  %8185 = vmatpush1.msra.mxu0 %v8153
  %8186 = vmatprep.subr.mxu0 0.0
  %8187 = vmatpush1.msra.mxu0 %v8154
  %8188 = vmatprep.subr.mxu0 0.0
  %8189 = vmatpush1.msra.mxu0 %v8155
  %8190 = vmatprep.subr.mxu0 0.0
  %8191 = vmatpush1.msra.mxu0 %v8156
  %8192 = vmatprep.subr.mxu0 0.0
  %8193 = vmatpush1.msra.mxu0 %v8157
  %8194 = vmatprep.subr.mxu0 0.0
  %8195 = vmatpush1.msra.mxu0 0.0
  %8196 = vmatprep.subr.mxu0 0.0
  %8197 = vmatpush1.msra.mxu0 0.0
  %8198 = vmatprep.subr.mxu0 0.0
  %8199 = vmatpush1.msra.mxu0 0.0
  %8200 = vmatprep.subr.mxu0 0.0
  %8201 = vmatpush1.msra.mxu0 0.0
  %8202 = vmatprep.subr.mxu0 0.0
  %8203 = vmatpush1.msra.mxu0 0.0
  %8204 = vmatprep.subr.mxu0 0.0
  %8205 = vmatpush1.msra.mxu0 0.0
  %8206 = vmatprep.subr.mxu0 0.0
  %8207 = vmatpush1.msra.mxu0 0.0
  %8208 = vmatprep.subr.mxu0 0.0
  %8209 = vmatpush1.msra.mxu0 0.0
  %8210 = vmatprep.subr.mxu0 0.0
  %8211 = vmatpush1.msra.mxu0 0.0
  %8212 = vmatprep.subr.mxu0 0.0
  %8213 = vmatpush1.msra.mxu0 0.0
  %8214 = vmatprep.subr.mxu0 0.0
  %8215 = vmatpush1.msra.mxu0 0.0
  %8216 = vmatprep.subr.mxu0 0.0
  %8217 = vmatpush1.msra.mxu0 0.0
  %8218 = vmatprep.subr.mxu0 0.0
  %8219 = vmatpush1.msra.mxu0 0.0
  %8220 = vmatprep.subr.mxu0 0.0
  %8221 = vmatpush1.msra.mxu0 0.0
  %8222 = vmatprep.subr.mxu0 0.0
  %8223 = vmatpush1.msra.mxu0 0.0
  %8224 = vmatprep.subr.mxu0 0.0
  %8225 = vmatpush1.msra.mxu0 0.0
  %8226 = vmatprep.subr.mxu0 0.0
  %8227 = vmatpush1.msra.mxu0 0.0
  %8228 = vmatprep.subr.mxu0 0.0
  %8229 = vmatpush1.msra.mxu0 0.0
  %8230 = vmatprep.subr.mxu0 0.0
  %8231 = vmatpush1.msra.mxu0 0.0
  %8232 = vmatprep.subr.mxu0 0.0
  %8233 = vmatpush1.msra.mxu0 0.0
  %8234 = vmatprep.mubr.f32.mxu0 0.0
  %8235 = vmatmul.mubr.f32.gmra.mrb[0].mxu0 %v8159
  %v8236 = vpop.f32.mrb[0].mxu0
  %v8237 = vadd.f32 0.0, %v8236
  %v8238 = vpop.f32.mrb[0].mxu0
  %8239 = vmatprep.mubr.f32.mxu0 0.0
  %8240 = vmatmul.mubr.f32.gmra.mrb[0].mxu0 %v8162
  %v8241 = vpop.f32.mrb[0].mxu0
  %v8242 = vadd.f32 0.0, %v8241
  %v8243 = vpop.f32.mrb[0].mxu0
  %8244 = vmatprep.mubr.f32.mxu0 0.0
  %8245 = vmatmul.mubr.f32.gmra.mrb[0].mxu0 %v8165
  %v8246 = vpop.f32.mrb[0].mxu0
  %v8247 = vadd.f32 0.0, %v8246
  %v8248 = vpop.f32.mrb[0].mxu0
  %8249 = vmatprep.mubr.f32.mxu0 0.0
  %8250 = vmatmul.mubr.f32.gmra.mrb[0].mxu0 %v8168
  %v8251 = vpop.f32.mrb[0].mxu0
  %v8252 = vadd.f32 0.0, %v8251
  %v8253 = vpop.f32.mrb[0].mxu0
  %8254 = vdwg.mxu0
  %v8255 = vadd.f32 %v8141, %v8237
  %v8256 = vadd.f32 %v8142, %v8242
  %v8257 = vadd.f32 %v8143, %v8247
  %v8258 = vadd.f32 %v8144, %v8252
  %s8259 = scalar_lea.vmem %s8, 192
  %v8260 = vld [vmem:[%s8259] sm:$0xff]
  %v8261 = vld [vmem:[%s8259 + $0x8] sm:$0xff]
  %v8262 = vld [vmem:[%s8259 + $0x10] sm:$0xff]
  %v8263 = vld [vmem:[%s8259 + $0x18] sm:$0xff]
  %v8264 = vld [vmem:[%s8259 + $0x20] sm:$0xff]
  %v8265 = vld [vmem:[%s8259 + $0x28] sm:$0xff]
  %v8266 = vld [vmem:[%s8259 + $0x30] sm:$0xff]
  %v8267 = vld [vmem:[%s8259 + $0x38] sm:$0xff]
  %v8268 = vld [vmem:[%s8259 + $0x40] sm:$0xff]
  %v8269 = vld [vmem:[%s8259 + $0x48] sm:$0xff]
  %v8270 = vld [vmem:[%s8259 + $0x50] sm:$0xff]
  %v8271 = vld [vmem:[%s8259 + $0x58] sm:$0xff]
  %v8273 = vsel %vm8037, %v8020, 0
  %v8276 = vsel %vm8037, %v8021, 0
  %v8279 = vsel %vm8037, %v8022, 0
  %v8282 = vsel %vm8037, %v8023, 0
  %8284 = vmatprep.subr.mxu0 0.0
  %8285 = vmatpush1.msra.mxu0 %v8260
  %8286 = vmatprep.subr.mxu0 0.0
  %8287 = vmatpush1.msra.mxu0 %v8261
  %8288 = vmatprep.subr.mxu0 0.0
  %8289 = vmatpush1.msra.mxu0 %v8262
  %8290 = vmatprep.subr.mxu0 0.0
  %8291 = vmatpush1.msra.mxu0 %v8263
  %8292 = vmatprep.subr.mxu0 0.0
  %8293 = vmatpush1.msra.mxu0 %v8264
  %8294 = vmatprep.subr.mxu0 0.0
  %8295 = vmatpush1.msra.mxu0 %v8265
  %8296 = vmatprep.subr.mxu0 0.0
  %8297 = vmatpush1.msra.mxu0 %v8266
  %8298 = vmatprep.subr.mxu0 0.0
  %8299 = vmatpush1.msra.mxu0 %v8267
  %8300 = vmatprep.subr.mxu0 0.0
  %8301 = vmatpush1.msra.mxu0 %v8268
  %8302 = vmatprep.subr.mxu0 0.0
  %8303 = vmatpush1.msra.mxu0 %v8269
  %8304 = vmatprep.subr.mxu0 0.0
  %8305 = vmatpush1.msra.mxu0 %v8270
  %8306 = vmatprep.subr.mxu0 0.0
  %8307 = vmatpush1.msra.mxu0 %v8271
  %8308 = vmatprep.subr.mxu0 0.0
  %8309 = vmatpush1.msra.mxu0 0.0
  %8310 = vmatprep.subr.mxu0 0.0
  %8311 = vmatpush1.msra.mxu0 0.0
  %8312 = vmatprep.subr.mxu0 0.0
  %8313 = vmatpush1.msra.mxu0 0.0
  %8314 = vmatprep.subr.mxu0 0.0
  %8315 = vmatpush1.msra.mxu0 0.0
  %8316 = vmatprep.subr.mxu0 0.0
  %8317 = vmatpush1.msra.mxu0 0.0
  %8318 = vmatprep.subr.mxu0 0.0
  %8319 = vmatpush1.msra.mxu0 0.0
  %8320 = vmatprep.subr.mxu0 0.0
  %8321 = vmatpush1.msra.mxu0 0.0
  %8322 = vmatprep.subr.mxu0 0.0
  %8323 = vmatpush1.msra.mxu0 0.0
  %8324 = vmatprep.subr.mxu0 0.0
  %8325 = vmatpush1.msra.mxu0 0.0
  %8326 = vmatprep.subr.mxu0 0.0
  %8327 = vmatpush1.msra.mxu0 0.0
  %8328 = vmatprep.subr.mxu0 0.0
  %8329 = vmatpush1.msra.mxu0 0.0
  %8330 = vmatprep.subr.mxu0 0.0
  %8331 = vmatpush1.msra.mxu0 0.0
  %8332 = vmatprep.subr.mxu0 0.0
  %8333 = vmatpush1.msra.mxu0 0.0
  %8334 = vmatprep.subr.mxu0 0.0
  %8335 = vmatpush1.msra.mxu0 0.0
  %8336 = vmatprep.subr.mxu0 0.0
  %8337 = vmatpush1.msra.mxu0 0.0
  %8338 = vmatprep.subr.mxu0 0.0
  %8339 = vmatpush1.msra.mxu0 0.0
  %8340 = vmatprep.subr.mxu0 0.0
  %8341 = vmatpush1.msra.mxu0 0.0
  %8342 = vmatprep.subr.mxu0 0.0
  %8343 = vmatpush1.msra.mxu0 0.0
  %8344 = vmatprep.subr.mxu0 0.0
  %8345 = vmatpush1.msra.mxu0 0.0
  %8346 = vmatprep.subr.mxu0 0.0
  %8347 = vmatpush1.msra.mxu0 0.0
  %8348 = vmatprep.mubr.f32.mxu0 0.0
  %8349 = vmatmul.mubr.f32.gmra.mrb[0].mxu0 %v8273
  %v8350 = vpop.f32.mrb[0].mxu0
  %v8351 = vadd.f32 0.0, %v8350
  %v8352 = vpop.f32.mrb[0].mxu0
  %8353 = vmatprep.mubr.f32.mxu0 0.0
  %8354 = vmatmul.mubr.f32.gmra.mrb[0].mxu0 %v8276
  %v8355 = vpop.f32.mrb[0].mxu0
  %v8356 = vadd.f32 0.0, %v8355
  %v8357 = vpop.f32.mrb[0].mxu0
  %8358 = vmatprep.mubr.f32.mxu0 0.0
  %8359 = vmatmul.mubr.f32.gmra.mrb[0].mxu0 %v8279
  %v8360 = vpop.f32.mrb[0].mxu0
  %v8361 = vadd.f32 0.0, %v8360
  %v8362 = vpop.f32.mrb[0].mxu0
  %8363 = vmatprep.mubr.f32.mxu0 0.0
  %8364 = vmatmul.mubr.f32.gmra.mrb[0].mxu0 %v8282
  %v8365 = vpop.f32.mrb[0].mxu0
  %v8366 = vadd.f32 0.0, %v8365
  %v8367 = vpop.f32.mrb[0].mxu0
  %8368 = vdwg.mxu0
  %v8369 = vadd.f32 %v8255, %v8351
  %v8370 = vadd.f32 %v8256, %v8356
  %v8371 = vadd.f32 %v8257, %v8361
  %v8372 = vadd.f32 %v8258, %v8366
  %vm8373 = vcmask 80896
  %8374 = vst.msk [vmem:[%s10] sm:$0xff] %vm8373, %v8369
  %8375 = vst.msk [vmem:[%s10 + $0x8] sm:$0xff] %vm8373, %v8370
  %8376 = vst.msk [vmem:[%s10 + $0x10] sm:$0xff] %vm8373, %v8371
  %8377 = vst.msk [vmem:[%s10 + $0x18] sm:$0xff] %vm8373, %v8372
  // Predicated region
  $region42: #{cnn_forward.1} parent=0 // pred_check
    _
  $region43: #{cnn_forward.1} parent=0 // pred_check_branch
    %8379 = sbr.rel (0) target = $region45
  $region44: #{cnn_forward.1} parent=0 // pred_region
    _
  $region45: #{cnn_forward.1} parent=0 // pred_fallthru
    _
  // Predicated region
  $region46: #{cnn_forward.1} parent=0 // pred_check
    _
  $region47: #{cnn_forward.1} parent=0 // pred_check_branch
    %8381 = sbr.rel (0) target = $region49
  $region48: #{cnn_forward.1} parent=0 // pred_region
    _
  $region49: #{cnn_forward.1} parent=0 // pred_fallthru
    _

</llo_original>
